<compile_context>
chip_gen: v5e
topology: v5e:2x2
jax: 0.10.0
libtpu: 0.0.40
codegen_flags: <defaults>
</compile_context>

<pallas_src>
import functools

import jax
import jax.numpy as jnp
from jax.experimental import pallas as pl
from jax.experimental.pallas import tpu as pltpu

EPS = 1e-5


def _round_up(x, m):
    return (x + m - 1) // m * m


def _instance_norm_rows(h):
    # Per-row normalization over the feature dim, biased variance, eps inside
    # the sqrt (matches nn.InstanceNorm1d(affine=False) applied to 2D input).
    mean = jnp.mean(h, axis=-1, keepdims=True)
    centered = h - mean
    var = jnp.mean(centered * centered, axis=-1, keepdims=True)
    return centered * jax.lax.rsqrt(var + EPS)   # rsqrt -> EUP slot


def mlp_instnorm_kernel(x_ref,
                        w1_ref, b1_ref,
                        w2_ref, b2_ref,
                        w3_ref, b3_ref,
                        w4_ref, b4_ref,
                        o_ref):
    # fc1 -> InstanceNorm -> ReLU   (dropout p=0.0 is identity)
    # x is already bf16 (cast in the wrapper -> half the input DMA bytes).
    h = jnp.dot(x_ref[...], w1_ref[...],
                preferred_element_type=jnp.float32) + b1_ref[...]
    h = jnp.maximum(_instance_norm_rows(h), 0.0)

    # fc2 -> InstanceNorm -> ReLU
    h = jnp.dot(h.astype(jnp.bfloat16), w2_ref[...],
                preferred_element_type=jnp.float32) + b2_ref[...]
    h = jnp.maximum(_instance_norm_rows(h), 0.0)

    # fc3 -> InstanceNorm -> ReLU
    h = jnp.dot(h.astype(jnp.bfloat16), w3_ref[...],
                preferred_element_type=jnp.float32) + b3_ref[...]
    h = jnp.maximum(_instance_norm_rows(h), 0.0)

    # fc4 (unpadded, contiguous f32 writeback; block width == full array width)
    out = jnp.dot(h.astype(jnp.bfloat16), w4_ref[...],
                  preferred_element_type=jnp.float32) + b4_ref[...]
    o_ref[...] = out.astype(o_ref.dtype)


def _pick_tile_b(B):
    """Auto batch tile (see header): ~8 grid steps, multiple of 256,
    floored at 256, capped at 2048, small tail-tile waste, 16-row aligned
    (bf16 sublane packing)."""
    B16 = _round_up(max(B, 1), 16)
    if B16 <= 256:
        return B16                               # single small tile, no waste
    tile = min(2048, max(256, _round_up(-(-B16 // 8), 256)))
    # Avoid a wasteful tail tile (padded rows cost full DMA + compute).
    while tile > 256 and _round_up(B16, tile) - B16 > tile // 2:
        tile -= 256
    return tile


@functools.partial(jax.jit, static_argnames=("tile_b",))
def mlp_instance_norm(x, params, tile_b=None):
    """x: (B, input_dim) float32. params: dict of f32 weights/biases."""
    B, input_dim = x.shape
    out_dim = params["w4"].shape[1]

    if tile_b is None:
        tile_b = _pick_tile_b(B)
    # Keep the tile 16-row aligned (bf16 packing) and no larger than the batch.
    tile_b = min(_round_up(int(tile_b), 16), _round_up(max(B, 1), 16))
    B_p = _round_up(B, tile_b)
    num_tiles = B_p // tile_b

    # bf16 matmul inputs (halves x DMA and resident-weight VMEM); biases and
    # all norm math stay f32.
    x_p = x.astype(jnp.bfloat16)
    if B_p != B:
        x_p = jnp.pad(x_p, ((0, B_p - B), (0, 0)))

    w1 = params["w1"].astype(jnp.bfloat16)
    w2 = params["w2"].astype(jnp.bfloat16)
    w3 = params["w3"].astype(jnp.bfloat16)
    w4 = params["w4"].astype(jnp.bfloat16)

    weight_args = (w1, params["b1"], w2, params["b2"],
                   w3, params["b3"], w4, params["b4"])

    # Weights/biases: same block every grid step -> stay resident in VMEM.
    resident = lambda arr: pl.BlockSpec(arr.shape, lambda i: (0, 0))

    out = pl.pallas_call(
        mlp_instnorm_kernel,
        out_shape=jax.ShapeDtypeStruct((B_p, out_dim), jnp.float32),
        grid_spec=pl.GridSpec(
            grid=(num_tiles,),
            in_specs=[pl.BlockSpec((tile_b, input_dim), lambda i: (i, 0))]
                     + [resident(a) for a in weight_args],
            out_specs=pl.BlockSpec((tile_b, out_dim), lambda i: (i, 0)),
        ),
        compiler_params=pltpu.CompilerParams(
            # Batch axis shards across TensorCores on v7x megacore.
            dimension_semantics=("parallel",),
        ),
    )(x_p, *weight_args)

    return out[:B]


def init_params(key, input_dim, output_dim):
    """Deterministic init mimicking nn.Linear's uniform(-1/sqrt(in), 1/sqrt(in))."""
    dims = [(input_dim, 256), (256, 128), (128, 64), (64, output_dim)]
    params = {}
    for i, (din, dout) in enumerate(dims, start=1):
        key, kw, kb = jax.random.split(key, 3)
        bound = 1.0 / (din ** 0.5)
        params[f"w{i}"] = jax.random.uniform(
            kw, (din, dout), jnp.float32, minval=-bound, maxval=bound)
        params[f"b{i}"] = jax.random.uniform(
            kb, (1, dout), jnp.float32, minval=-bound, maxval=bound)
    return params


def reference_forward_matched(x, params):
    """Pure-JAX reference with numerics matched to the kernel
    (bf16 matmul inputs, f32 accumulation, f32 InstanceNorm/ReLU)."""
    h = x.astype(jnp.bfloat16)
    for i in range(1, 4):
        h = jnp.dot(h, params[f"w{i}"].astype(jnp.bfloat16),
                    preferred_element_type=jnp.float32) + params[f"b{i}"]
        h = jnp.maximum(_instance_norm_rows(h), 0.0)
        h = h.astype(jnp.bfloat16)
    return jnp.dot(h, params["w4"].astype(jnp.bfloat16),
                   preferred_element_type=jnp.float32) + params["b4"]


def reference_forward_f32(x, params):
    """Full-f32 reference (PyTorch-semantics check; looser tolerance because
    the kernel feeds bf16 inputs to the MXU)."""
    h = x
    for i in range(1, 4):
        h = h @ params[f"w{i}"] + params[f"b{i}"]
        mean = jnp.mean(h, axis=-1, keepdims=True)
        var = jnp.mean((h - mean) ** 2, axis=-1, keepdims=True)
        h = jnp.maximum((h - mean) / jnp.sqrt(var + EPS), 0.0)
    return h @ params["w4"] + params["b4"]


if __name__ == "__main__":
    # Demo: B=4096 -> auto tile_b=512 and an 8-step parallel grid (>=4 steps
    # per TensorCore on v7x, real DMA/compute overlap), still tiny data.
    B, input_dim, output_dim = 4096, 32, 16
    key = jax.random.PRNGKey(0)
    key, kx = jax.random.split(key)
    x = jax.random.normal(kx, (B, input_dim), jnp.float32)
    params = init_params(key, input_dim, output_dim)

    out = mlp_instance_norm(x, params)
    jax.block_until_ready(out)
    assert out.shape == (B, output_dim)

    # Numerics-matched reference (bf16 MXU inputs, f32 accumulation/norm).
    ref = reference_forward_matched(x, params)
    max_err = float(jnp.max(jnp.abs(out - ref)))
    assert jnp.allclose(out, ref, atol=1e-2, rtol=1e-2), max_err

    # Sanity check against the full-f32 PyTorch-style math (loose tolerance
    # because matmul inputs are bf16 on the MXU).
    ref_f32 = reference_forward_f32(x, params)
    assert jnp.allclose(out, ref_f32, atol=1e-1, rtol=1e-1)

    print("KERNEL_OK")
</pallas_src>

<mosaic_0001>
module attributes {stable_mosaic.version = 11 : i64} {
  func.func @mlp_instnorm_kernel(%arg0: i32, %arg1: memref<512x32xbf16, #tpu.memory_space<vmem>>, %arg2: memref<32x256xbf16, #tpu.memory_space<vmem>>, %arg3: memref<1x256xf32, #tpu.memory_space<vmem>>, %arg4: memref<256x128xbf16, #tpu.memory_space<vmem>>, %arg5: memref<1x128xf32, #tpu.memory_space<vmem>>, %arg6: memref<128x64xbf16, #tpu.memory_space<vmem>>, %arg7: memref<1x64xf32, #tpu.memory_space<vmem>>, %arg8: memref<64x16xbf16, #tpu.memory_space<vmem>>, %arg9: memref<1x16xf32, #tpu.memory_space<vmem>>, %arg10: memref<512x16xf32, #tpu.memory_space<vmem>>) attributes {dimension_semantics = [#tpu.dimension_semantics<parallel>], iteration_bounds = array<i64: 8>, scalar_prefetch = 0 : i64, scratch_operands = 0 : i64, tpu.core_type = #tpu.core_type<tc>, window_params = [{transform_indices = @transform_0, window_bounds = array<i64: 512, 32>}, {pipeline_mode = #tpu.pipeline_mode<synchronous>, transform_indices = @transform_1, window_bounds = array<i64: 32, 256>}, {pipeline_mode = #tpu.pipeline_mode<synchronous>, transform_indices = @transform_2, window_bounds = array<i64: 1, 256>}, {pipeline_mode = #tpu.pipeline_mode<synchronous>, transform_indices = @transform_3, window_bounds = array<i64: 256, 128>}, {pipeline_mode = #tpu.pipeline_mode<synchronous>, transform_indices = @transform_4, window_bounds = array<i64: 1, 128>}, {pipeline_mode = #tpu.pipeline_mode<synchronous>, transform_indices = @transform_5, window_bounds = array<i64: 128, 64>}, {pipeline_mode = #tpu.pipeline_mode<synchronous>, transform_indices = @transform_6, window_bounds = array<i64: 1, 64>}, {pipeline_mode = #tpu.pipeline_mode<synchronous>, transform_indices = @transform_7, window_bounds = array<i64: 64, 16>}, {pipeline_mode = #tpu.pipeline_mode<synchronous>, transform_indices = @transform_8, window_bounds = array<i64: 1, 16>}, {transform_indices = @transform_9, window_bounds = array<i64: 512, 16>}]} {
    %c0 = arith.constant 0 : index
    %c0_0 = arith.constant 0 : index
    %0 = vector.load %arg1[%c0, %c0_0] : memref<512x32xbf16, #tpu.memory_space<vmem>>, vector<512x32xbf16>
    %c0_1 = arith.constant 0 : index
    %c0_2 = arith.constant 0 : index
    %1 = vector.load %arg2[%c0_1, %c0_2] : memref<32x256xbf16, #tpu.memory_space<vmem>>, vector<32x256xbf16>
    %cst = arith.constant dense<0.000000e+00> : vector<512x256xf32>
    %2 = tpu.matmul %0, %1, %cst {dimension_numbers = #tpu.dot_dimension_numbers<[1], [0], [0], [1], [0, 0, 1, 1], [], []>} : vector<512x32xbf16>, vector<32x256xbf16>, vector<512x256xf32> -> vector<512x256xf32>
    %c0_3 = arith.constant 0 : index
    %c0_4 = arith.constant 0 : index
    %3 = vector.load %arg3[%c0_3, %c0_4] : memref<1x256xf32, #tpu.memory_space<vmem>>, vector<1x256xf32>
    %4 = vector.broadcast %3 : vector<1x256xf32> to vector<512x256xf32>
    %5 = arith.addf %2, %4 : vector<512x256xf32>
    %cst_5 = arith.constant dense<0.000000e+00> : vector<512xf32>
    %6 = vector.multi_reduction <add>, %5, %cst_5 [1] : vector<512x256xf32> to vector<512xf32>
    %7 = vector.shape_cast %6 : vector<512xf32> to vector<512x1xf32>
    %cst_6 = arith.constant 2.560000e+02 : f32
    %8 = vector.broadcast %cst_6 : f32 to vector<512x1xf32>
    %9 = arith.divf %7, %8 : vector<512x1xf32>
    %10 = vector.broadcast %9 : vector<512x1xf32> to vector<512x256xf32>
    %11 = arith.subf %5, %10 : vector<512x256xf32>
    %12 = arith.mulf %11, %11 : vector<512x256xf32>
    %cst_7 = arith.constant dense<0.000000e+00> : vector<512xf32>
    %13 = vector.multi_reduction <add>, %12, %cst_7 [1] : vector<512x256xf32> to vector<512xf32>
    %14 = vector.shape_cast %13 : vector<512xf32> to vector<512x1xf32>
    %cst_8 = arith.constant 2.560000e+02 : f32
    %15 = vector.broadcast %cst_8 : f32 to vector<512x1xf32>
    %16 = arith.divf %14, %15 : vector<512x1xf32>
    %cst_9 = arith.constant 9.99999974E-6 : f32
    %17 = vector.broadcast %cst_9 : f32 to vector<512x1xf32>
    %18 = arith.addf %16, %17 : vector<512x1xf32>
    %19 = math.rsqrt %18 : vector<512x1xf32>
    %20 = vector.broadcast %19 : vector<512x1xf32> to vector<512x256xf32>
    %21 = arith.mulf %11, %20 : vector<512x256xf32>
    %cst_10 = arith.constant 0.000000e+00 : f32
    %22 = vector.broadcast %cst_10 : f32 to vector<512x256xf32>
    %23 = arith.maximumf %21, %22 : vector<512x256xf32>
    %24 = arith.truncf %23 : vector<512x256xf32> to vector<512x256xbf16>
    %c0_11 = arith.constant 0 : index
    %c0_12 = arith.constant 0 : index
    %25 = vector.load %arg4[%c0_11, %c0_12] : memref<256x128xbf16, #tpu.memory_space<vmem>>, vector<256x128xbf16>
    %cst_13 = arith.constant dense<0.000000e+00> : vector<512x128xf32>
    %26 = tpu.matmul %24, %25, %cst_13 {dimension_numbers = #tpu.dot_dimension_numbers<[1], [0], [0], [1], [0, 0, 1, 1], [], []>} : vector<512x256xbf16>, vector<256x128xbf16>, vector<512x128xf32> -> vector<512x128xf32>
    %c0_14 = arith.constant 0 : index
    %c0_15 = arith.constant 0 : index
    %27 = vector.load %arg5[%c0_14, %c0_15] : memref<1x128xf32, #tpu.memory_space<vmem>>, vector<1x128xf32>
    %28 = vector.broadcast %27 : vector<1x128xf32> to vector<512x128xf32>
    %29 = arith.addf %26, %28 : vector<512x128xf32>
    %cst_16 = arith.constant dense<0.000000e+00> : vector<512xf32>
    %30 = vector.multi_reduction <add>, %29, %cst_16 [1] : vector<512x128xf32> to vector<512xf32>
    %31 = vector.shape_cast %30 : vector<512xf32> to vector<512x1xf32>
    %cst_17 = arith.constant 1.280000e+02 : f32
    %32 = vector.broadcast %cst_17 : f32 to vector<512x1xf32>
    %33 = arith.divf %31, %32 : vector<512x1xf32>
    %34 = vector.broadcast %33 : vector<512x1xf32> to vector<512x128xf32>
    %35 = arith.subf %29, %34 : vector<512x128xf32>
    %36 = arith.mulf %35, %35 : vector<512x128xf32>
    %cst_18 = arith.constant dense<0.000000e+00> : vector<512xf32>
    %37 = vector.multi_reduction <add>, %36, %cst_18 [1] : vector<512x128xf32> to vector<512xf32>
    %38 = vector.shape_cast %37 : vector<512xf32> to vector<512x1xf32>
    %cst_19 = arith.constant 1.280000e+02 : f32
    %39 = vector.broadcast %cst_19 : f32 to vector<512x1xf32>
    %40 = arith.divf %38, %39 : vector<512x1xf32>
    %cst_20 = arith.constant 9.99999974E-6 : f32
    %41 = vector.broadcast %cst_20 : f32 to vector<512x1xf32>
    %42 = arith.addf %40, %41 : vector<512x1xf32>
    %43 = math.rsqrt %42 : vector<512x1xf32>
    %44 = vector.broadcast %43 : vector<512x1xf32> to vector<512x128xf32>
    %45 = arith.mulf %35, %44 : vector<512x128xf32>
    %cst_21 = arith.constant 0.000000e+00 : f32
    %46 = vector.broadcast %cst_21 : f32 to vector<512x128xf32>
    %47 = arith.maximumf %45, %46 : vector<512x128xf32>
    %48 = arith.truncf %47 : vector<512x128xf32> to vector<512x128xbf16>
    %c0_22 = arith.constant 0 : index
    %c0_23 = arith.constant 0 : index
    %49 = vector.load %arg6[%c0_22, %c0_23] : memref<128x64xbf16, #tpu.memory_space<vmem>>, vector<128x64xbf16>
    %cst_24 = arith.constant dense<0.000000e+00> : vector<512x64xf32>
    %50 = tpu.matmul %48, %49, %cst_24 {dimension_numbers = #tpu.dot_dimension_numbers<[1], [0], [0], [1], [0, 0, 1, 1], [], []>} : vector<512x128xbf16>, vector<128x64xbf16>, vector<512x64xf32> -> vector<512x64xf32>
    %c0_25 = arith.constant 0 : index
    %c0_26 = arith.constant 0 : index
    %51 = vector.load %arg7[%c0_25, %c0_26] : memref<1x64xf32, #tpu.memory_space<vmem>>, vector<1x64xf32>
    %52 = vector.broadcast %51 : vector<1x64xf32> to vector<512x64xf32>
    %53 = arith.addf %50, %52 : vector<512x64xf32>
    %cst_27 = arith.constant dense<0.000000e+00> : vector<512xf32>
    %54 = vector.multi_reduction <add>, %53, %cst_27 [1] : vector<512x64xf32> to vector<512xf32>
    %55 = vector.shape_cast %54 : vector<512xf32> to vector<512x1xf32>
    %cst_28 = arith.constant 6.400000e+01 : f32
    %56 = vector.broadcast %cst_28 : f32 to vector<512x1xf32>
    %57 = arith.divf %55, %56 : vector<512x1xf32>
    %58 = vector.broadcast %57 : vector<512x1xf32> to vector<512x64xf32>
    %59 = arith.subf %53, %58 : vector<512x64xf32>
    %60 = arith.mulf %59, %59 : vector<512x64xf32>
    %cst_29 = arith.constant dense<0.000000e+00> : vector<512xf32>
    %61 = vector.multi_reduction <add>, %60, %cst_29 [1] : vector<512x64xf32> to vector<512xf32>
    %62 = vector.shape_cast %61 : vector<512xf32> to vector<512x1xf32>
    %cst_30 = arith.constant 6.400000e+01 : f32
    %63 = vector.broadcast %cst_30 : f32 to vector<512x1xf32>
    %64 = arith.divf %62, %63 : vector<512x1xf32>
    %cst_31 = arith.constant 9.99999974E-6 : f32
    %65 = vector.broadcast %cst_31 : f32 to vector<512x1xf32>
    %66 = arith.addf %64, %65 : vector<512x1xf32>
    %67 = math.rsqrt %66 : vector<512x1xf32>
    %68 = vector.broadcast %67 : vector<512x1xf32> to vector<512x64xf32>
    %69 = arith.mulf %59, %68 : vector<512x64xf32>
    %cst_32 = arith.constant 0.000000e+00 : f32
    %70 = vector.broadcast %cst_32 : f32 to vector<512x64xf32>
    %71 = arith.maximumf %69, %70 : vector<512x64xf32>
    %72 = arith.truncf %71 : vector<512x64xf32> to vector<512x64xbf16>
    %c0_33 = arith.constant 0 : index
    %c0_34 = arith.constant 0 : index
    %73 = vector.load %arg8[%c0_33, %c0_34] : memref<64x16xbf16, #tpu.memory_space<vmem>>, vector<64x16xbf16>
    %cst_35 = arith.constant dense<0.000000e+00> : vector<512x16xf32>
    %74 = tpu.matmul %72, %73, %cst_35 {dimension_numbers = #tpu.dot_dimension_numbers<[1], [0], [0], [1], [0, 0, 1, 1], [], []>} : vector<512x64xbf16>, vector<64x16xbf16>, vector<512x16xf32> -> vector<512x16xf32>
    %c0_36 = arith.constant 0 : index
    %c0_37 = arith.constant 0 : index
    %75 = vector.load %arg9[%c0_36, %c0_37] : memref<1x16xf32, #tpu.memory_space<vmem>>, vector<1x16xf32>
    %76 = vector.broadcast %75 : vector<1x16xf32> to vector<512x16xf32>
    %77 = arith.addf %74, %76 : vector<512x16xf32>
    %c0_38 = arith.constant 0 : index
    %c0_39 = arith.constant 0 : index
    %78 = vector.load %arg10[%c0_38, %c0_39] : memref<512x16xf32, #tpu.memory_space<vmem>>, vector<512x16xf32>
    tpu.vector_store %arg10[%c0_38, %c0_39], %77 {strides = array<i32>} : memref<512x16xf32, #tpu.memory_space<vmem>>, vector<512x16xf32>,
    return
  }
  func.func @transform_0(%arg0: i32) -> (i32, i32) {
    %c0_i32 = arith.constant 0 : i32
    %c0_i32_0 = arith.constant 0 : i32
    return %arg0, %c0_i32 : i32, i32
  }
  func.func @transform_1(%arg0: i32) -> (i32, i32) {
    %c0_i32 = arith.constant 0 : i32
    %c0_i32_0 = arith.constant 0 : i32
    %c0_i32_1 = arith.constant 0 : i32
    return %c0_i32, %c0_i32_0 : i32, i32
  }
  func.func @transform_2(%arg0: i32) -> (i32, i32) {
    %c0_i32 = arith.constant 0 : i32
    %c0_i32_0 = arith.constant 0 : i32
    %c0_i32_1 = arith.constant 0 : i32
    return %c0_i32, %c0_i32_0 : i32, i32
  }
  func.func @transform_3(%arg0: i32) -> (i32, i32) {
    %c0_i32 = arith.constant 0 : i32
    %c0_i32_0 = arith.constant 0 : i32
    %c0_i32_1 = arith.constant 0 : i32
    return %c0_i32, %c0_i32_0 : i32, i32
  }
  func.func @transform_4(%arg0: i32) -> (i32, i32) {
    %c0_i32 = arith.constant 0 : i32
    %c0_i32_0 = arith.constant 0 : i32
    %c0_i32_1 = arith.constant 0 : i32
    return %c0_i32, %c0_i32_0 : i32, i32
  }
  func.func @transform_5(%arg0: i32) -> (i32, i32) {
    %c0_i32 = arith.constant 0 : i32
    %c0_i32_0 = arith.constant 0 : i32
    %c0_i32_1 = arith.constant 0 : i32
    return %c0_i32, %c0_i32_0 : i32, i32
  }
  func.func @transform_6(%arg0: i32) -> (i32, i32) {
    %c0_i32 = arith.constant 0 : i32
    %c0_i32_0 = arith.constant 0 : i32
    %c0_i32_1 = arith.constant 0 : i32
    return %c0_i32, %c0_i32_0 : i32, i32
  }
  func.func @transform_7(%arg0: i32) -> (i32, i32) {
    %c0_i32 = arith.constant 0 : i32
    %c0_i32_0 = arith.constant 0 : i32
    %c0_i32_1 = arith.constant 0 : i32
    return %c0_i32, %c0_i32_0 : i32, i32
  }
  func.func @transform_8(%arg0: i32) -> (i32, i32) {
    %c0_i32 = arith.constant 0 : i32
    %c0_i32_0 = arith.constant 0 : i32
    %c0_i32_1 = arith.constant 0 : i32
    return %c0_i32, %c0_i32_0 : i32, i32
  }
  func.func @transform_9(%arg0: i32) -> (i32, i32) {
    %c0_i32 = arith.constant 0 : i32
    %c0_i32_0 = arith.constant 0 : i32
    return %arg0, %c0_i32 : i32, i32
  }
}

</mosaic_0001>

<llo_original>
// kernel: mlp_instance_norm.1
$region0: #{mlp_instance_norm.1}
  #allocation0 [shape = 'u32[]', space=smem, size = 0x4, offset = 0x4, fixed_abs, tag = 'smem constant byte address 0x4 - core index']
  #allocation1 [shape = 'u32[72,128]{1,0:T(1,128)}', space=vmem, size = 0x9000, scoped, tag = 'internal scratch']
  %s0 = inlined_call_operand.vmem [shape: bf16[4096,32], index: 0, kind: input, shape index: {}]
  %s1 = inlined_call_operand.vmem [shape: bf16[32,256], index: 1, kind: input, shape index: {}]
  %s2 = inlined_call_operand.vmem [shape: f32[1,256], index: 2, kind: input, shape index: {}]
  %s3 = inlined_call_operand.vmem [shape: bf16[256,128], index: 3, kind: input, shape index: {}]
  %s4 = inlined_call_operand.vmem [shape: f32[1,128], index: 4, kind: input, shape index: {}]
  %s5 = inlined_call_operand.vmem [shape: bf16[128,64], index: 5, kind: input, shape index: {}]
  %s6 = inlined_call_operand.vmem [shape: f32[1,64], index: 6, kind: input, shape index: {}]
  %s7 = inlined_call_operand.vmem [shape: bf16[64,16], index: 7, kind: input, shape index: {}]
  %s8 = inlined_call_operand.vmem [shape: f32[1,16], index: 8, kind: input, shape index: {}]
  %s9 = inlined_call_operand.vmem [shape: f32[4096,16], index: 9, kind: output, shape index: {}]
  %s10 = sld [smem:[#allocation0]]
  $region69: #{mlp_instance_norm.1} parent=0
    _
  %s12 = ssub.s32 1, %s10
  %s13 = scalar_select 0, %s12, %s10
  loop: start=0, step=1, limit=10
  $region2: #{mlp_instance_norm.1} parent=0 // loop_pre_header
    _
  $region3: #{mlp_instance_norm.1} parent=0 // loop_header
    %s15 = sphi 0, %s19
    %p16 = scmp.ge.s32.totalorder %s15, 10
    %s25 = sphi 0, %s27
    %s28 = sphi 0, %s25
    %s29 = sphi 0, %s28
    %s45 = sphi 0, %s29
    %s49 = sphi 0, %s49
    %s51 = sphi 0, %s49
    %s52 = sphi 0, %s51
    %s66 = sphi 0, %s52
    %s70 = sphi 0, %s70
    %s72 = sphi 0, %s70
    %s73 = sphi 0, %s72
    %s87 = sphi 0, %s73
    %s91 = sphi 0, %s91
    %s93 = sphi 0, %s91
    %s94 = sphi 0, %s93
    %s108 = sphi 0, %s94
    %s112 = sphi 0, %s112
    %s114 = sphi 0, %s112
    %s115 = sphi 0, %s114
    %s129 = sphi 0, %s115
    %s133 = sphi 0, %s133
    %s135 = sphi 0, %s133
    %s136 = sphi 0, %s135
    %s150 = sphi 0, %s136
    %s154 = sphi 0, %s154
    %s156 = sphi 0, %s154
    %s157 = sphi 0, %s156
    %s171 = sphi 0, %s157
    %s175 = sphi 0, %s175
    %s177 = sphi 0, %s175
    %s178 = sphi 0, %s177
    %s192 = sphi 0, %s178
    %s196 = sphi 0, %s196
    %s198 = sphi 0, %s196
    %s199 = sphi 0, %s198
    %s213 = sphi 0, %s199
    %s219 = sphi 0, %s221
    %s222 = sphi 0, %s219
    %s223 = sphi 0, %s222
    %s239 = sphi 0, %s223
  $region4: #{mlp_instance_norm.1} parent=0 // loop_header_branch
    %18 = sbr.rel (%p16) target = $region8
  $region5: #{mlp_instance_norm.1} parent=0 // loop_body
    %s20 = ssub.s32 %s15, 1
    %s21 = ssub.s32 %s15, 2
    %s22 = sadd.s32 %s15, 1
    %s23 = ssub.s32 %s15, %s22
    %p24 = scmp.eq.s32.totalorder %s23, 0
    %s26 = sadd.s32 %s25, 1
    %s27 = scalar_select %p24, %s25, %s26
    %p30 = pneg %p24
    %p31 = scmp.eq.s32.totalorder %s15, 7
    %p32 = por %p30, %p31
    %p33 = scmp.ne.s32.totalorder %s25, %s28
    %p34 = scmp.eq.s32.totalorder %s15, 0
    %p35 = por %p33, %p34
    %p36 = scmp.ne.s32.totalorder %s25, %s28
    %p37 = scmp.eq.s32.totalorder %s20, 7
    %p38 = por %p36, %p37
    %p39 = scmp.ne.s32.totalorder %s28, %s29
    %p40 = scmp.eq.s32.totalorder %s20, 0
    %p41 = por %p39, %p40
    %p42 = scmp.ne.s32.totalorder %s28, %s29
    %p43 = scmp.eq.s32.totalorder %s21, 7
    %p44 = por %p42, %p43
    %p46 = scmp.ne.s32.totalorder %s29, %s45
    %p47 = scmp.eq.s32.totalorder %s21, 0
    %p48 = por %p46, %p47
    %s50 = sadd.s32 %s49, 1
    %p53 = scmp.eq.s32.totalorder %s15, 7
    %p54 = scmp.ne.s32.totalorder %s49, %s51
    %p55 = scmp.eq.s32.totalorder %s15, 0
    %p56 = por %p54, %p55
    %p57 = scmp.ne.s32.totalorder %s49, %s51
    %p58 = scmp.eq.s32.totalorder %s20, 7
    %p59 = por %p57, %p58
    %p60 = scmp.ne.s32.totalorder %s51, %s52
    %p61 = scmp.eq.s32.totalorder %s20, 0
    %p62 = por %p60, %p61
    %p63 = scmp.ne.s32.totalorder %s51, %s52
    %p64 = scmp.eq.s32.totalorder %s21, 7
    %p65 = por %p63, %p64
    %p67 = scmp.ne.s32.totalorder %s52, %s66
    %p68 = scmp.eq.s32.totalorder %s21, 0
    %p69 = por %p67, %p68
    %s71 = sadd.s32 %s70, 1
    %p74 = scmp.eq.s32.totalorder %s15, 7
    %p75 = scmp.ne.s32.totalorder %s70, %s72
    %p76 = scmp.eq.s32.totalorder %s15, 0
    %p77 = por %p75, %p76
    %p78 = scmp.ne.s32.totalorder %s70, %s72
    %p79 = scmp.eq.s32.totalorder %s20, 7
    %p80 = por %p78, %p79
    %p81 = scmp.ne.s32.totalorder %s72, %s73
    %p82 = scmp.eq.s32.totalorder %s20, 0
    %p83 = por %p81, %p82
    %p84 = scmp.ne.s32.totalorder %s72, %s73
    %p85 = scmp.eq.s32.totalorder %s21, 7
    %p86 = por %p84, %p85
    %p88 = scmp.ne.s32.totalorder %s73, %s87
    %p89 = scmp.eq.s32.totalorder %s21, 0
    %p90 = por %p88, %p89
    %s92 = sadd.s32 %s91, 1
    %p95 = scmp.eq.s32.totalorder %s15, 7
    %p96 = scmp.ne.s32.totalorder %s91, %s93
    %p97 = scmp.eq.s32.totalorder %s15, 0
    %p98 = por %p96, %p97
    %p99 = scmp.ne.s32.totalorder %s91, %s93
    %p100 = scmp.eq.s32.totalorder %s20, 7
    %p101 = por %p99, %p100
    %p102 = scmp.ne.s32.totalorder %s93, %s94
    %p103 = scmp.eq.s32.totalorder %s20, 0
    %p104 = por %p102, %p103
    %p105 = scmp.ne.s32.totalorder %s93, %s94
    %p106 = scmp.eq.s32.totalorder %s21, 7
    %p107 = por %p105, %p106
    %p109 = scmp.ne.s32.totalorder %s94, %s108
    %p110 = scmp.eq.s32.totalorder %s21, 0
    %p111 = por %p109, %p110
    %s113 = sadd.s32 %s112, 1
    %p116 = scmp.eq.s32.totalorder %s15, 7
    %p117 = scmp.ne.s32.totalorder %s112, %s114
    %p118 = scmp.eq.s32.totalorder %s15, 0
    %p119 = por %p117, %p118
    %p120 = scmp.ne.s32.totalorder %s112, %s114
    %p121 = scmp.eq.s32.totalorder %s20, 7
    %p122 = por %p120, %p121
    %p123 = scmp.ne.s32.totalorder %s114, %s115
    %p124 = scmp.eq.s32.totalorder %s20, 0
    %p125 = por %p123, %p124
    %p126 = scmp.ne.s32.totalorder %s114, %s115
    %p127 = scmp.eq.s32.totalorder %s21, 7
    %p128 = por %p126, %p127
    %p130 = scmp.ne.s32.totalorder %s115, %s129
    %p131 = scmp.eq.s32.totalorder %s21, 0
    %p132 = por %p130, %p131
    %s134 = sadd.s32 %s133, 1
    %p137 = scmp.eq.s32.totalorder %s15, 7
    %p138 = scmp.ne.s32.totalorder %s133, %s135
    %p139 = scmp.eq.s32.totalorder %s15, 0
    %p140 = por %p138, %p139
    %p141 = scmp.ne.s32.totalorder %s133, %s135
    %p142 = scmp.eq.s32.totalorder %s20, 7
    %p143 = por %p141, %p142
    %p144 = scmp.ne.s32.totalorder %s135, %s136
    %p145 = scmp.eq.s32.totalorder %s20, 0
    %p146 = por %p144, %p145
    %p147 = scmp.ne.s32.totalorder %s135, %s136
    %p148 = scmp.eq.s32.totalorder %s21, 7
    %p149 = por %p147, %p148
    %p151 = scmp.ne.s32.totalorder %s136, %s150
    %p152 = scmp.eq.s32.totalorder %s21, 0
    %p153 = por %p151, %p152
    %s155 = sadd.s32 %s154, 1
    %p158 = scmp.eq.s32.totalorder %s15, 7
    %p159 = scmp.ne.s32.totalorder %s154, %s156
    %p160 = scmp.eq.s32.totalorder %s15, 0
    %p161 = por %p159, %p160
    %p162 = scmp.ne.s32.totalorder %s154, %s156
    %p163 = scmp.eq.s32.totalorder %s20, 7
    %p164 = por %p162, %p163
    %p165 = scmp.ne.s32.totalorder %s156, %s157
    %p166 = scmp.eq.s32.totalorder %s20, 0
    %p167 = por %p165, %p166
    %p168 = scmp.ne.s32.totalorder %s156, %s157
    %p169 = scmp.eq.s32.totalorder %s21, 7
    %p170 = por %p168, %p169
    %p172 = scmp.ne.s32.totalorder %s157, %s171
    %p173 = scmp.eq.s32.totalorder %s21, 0
    %p174 = por %p172, %p173
    %s176 = sadd.s32 %s175, 1
    %p179 = scmp.eq.s32.totalorder %s15, 7
    %p180 = scmp.ne.s32.totalorder %s175, %s177
    %p181 = scmp.eq.s32.totalorder %s15, 0
    %p182 = por %p180, %p181
    %p183 = scmp.ne.s32.totalorder %s175, %s177
    %p184 = scmp.eq.s32.totalorder %s20, 7
    %p185 = por %p183, %p184
    %p186 = scmp.ne.s32.totalorder %s177, %s178
    %p187 = scmp.eq.s32.totalorder %s20, 0
    %p188 = por %p186, %p187
    %p189 = scmp.ne.s32.totalorder %s177, %s178
    %p190 = scmp.eq.s32.totalorder %s21, 7
    %p191 = por %p189, %p190
    %p193 = scmp.ne.s32.totalorder %s178, %s192
    %p194 = scmp.eq.s32.totalorder %s21, 0
    %p195 = por %p193, %p194
    %s197 = sadd.s32 %s196, 1
    %p200 = scmp.eq.s32.totalorder %s15, 7
    %p201 = scmp.ne.s32.totalorder %s196, %s198
    %p202 = scmp.eq.s32.totalorder %s15, 0
    %p203 = por %p201, %p202
    %p204 = scmp.ne.s32.totalorder %s196, %s198
    %p205 = scmp.eq.s32.totalorder %s20, 7
    %p206 = por %p204, %p205
    %p207 = scmp.ne.s32.totalorder %s198, %s199
    %p208 = scmp.eq.s32.totalorder %s20, 0
    %p209 = por %p207, %p208
    %p210 = scmp.ne.s32.totalorder %s198, %s199
    %p211 = scmp.eq.s32.totalorder %s21, 7
    %p212 = por %p210, %p211
    %p214 = scmp.ne.s32.totalorder %s199, %s213
    %p215 = scmp.eq.s32.totalorder %s21, 0
    %p216 = por %p214, %p215
    %s217 = ssub.s32 %s15, %s22
    %p218 = scmp.eq.s32.totalorder %s217, 0
    %s220 = sadd.s32 %s219, 1
    %s221 = scalar_select %p218, %s219, %s220
    %p224 = pneg %p218
    %p225 = scmp.eq.s32.totalorder %s15, 7
    %p226 = por %p224, %p225
    %p227 = scmp.ne.s32.totalorder %s219, %s222
    %p228 = scmp.eq.s32.totalorder %s15, 0
    %p229 = por %p227, %p228
    %p230 = scmp.ne.s32.totalorder %s219, %s222
    %p231 = scmp.eq.s32.totalorder %s20, 7
    %p232 = por %p230, %p231
    %p233 = scmp.ne.s32.totalorder %s222, %s223
    %p234 = scmp.eq.s32.totalorder %s20, 0
    %p235 = por %p233, %p234
    %p236 = scmp.ne.s32.totalorder %s222, %s223
    %p237 = scmp.eq.s32.totalorder %s21, 7
    %p238 = por %p236, %p237
    %p240 = scmp.ne.s32.totalorder %s223, %s239
    %p241 = scmp.eq.s32.totalorder %s21, 0
    %p242 = por %p240, %p241
    %p243 = scmp.le.s32.totalorder 1, %s15
    %p244 = scmp.lt.s32.totalorder %s15, 9
    %p245 = pnand %p243, %p244
    %p246 = pneg %p245
    // Predicated region
    $region9: #{mlp_instance_norm.1} parent=5 // pred_check
      _
    $region10: #{mlp_instance_norm.1} parent=5 // pred_check_branch
      %248 = sbr.rel (%p245) target = $region12
    $region11: #{mlp_instance_norm.1} parent=5 // pred_region
      %s249 = ssub.s32 %s15, 1
      // Predicated region
      $region13: #{mlp_instance_norm.1} parent=11 // pred_check
        %p250 = pneg %p62
      $region14: #{mlp_instance_norm.1} parent=11 // pred_check_branch
        %252 = sbr.rel (%p250) target = $region16
      $region15: #{mlp_instance_norm.1} parent=11 // pred_region
        _
      $region16: #{mlp_instance_norm.1} parent=11 // pred_fallthru
        _
      // Predicated region
      $region17: #{mlp_instance_norm.1} parent=11 // pred_check
        %p253 = pneg %p83
      $region18: #{mlp_instance_norm.1} parent=11 // pred_check_branch
        %255 = sbr.rel (%p253) target = $region20
      $region19: #{mlp_instance_norm.1} parent=11 // pred_region
        _
      $region20: #{mlp_instance_norm.1} parent=11 // pred_fallthru
        _
      // Predicated region
      $region21: #{mlp_instance_norm.1} parent=11 // pred_check
        %p256 = pneg %p104
      $region22: #{mlp_instance_norm.1} parent=11 // pred_check_branch
        %258 = sbr.rel (%p256) target = $region24
      $region23: #{mlp_instance_norm.1} parent=11 // pred_region
        _
      $region24: #{mlp_instance_norm.1} parent=11 // pred_fallthru
        _
      // Predicated region
      $region25: #{mlp_instance_norm.1} parent=11 // pred_check
        %p259 = pneg %p125
      $region26: #{mlp_instance_norm.1} parent=11 // pred_check_branch
        %261 = sbr.rel (%p259) target = $region28
      $region27: #{mlp_instance_norm.1} parent=11 // pred_region
        _
      $region28: #{mlp_instance_norm.1} parent=11 // pred_fallthru
        _
      // Predicated region
      $region29: #{mlp_instance_norm.1} parent=11 // pred_check
        %p262 = pneg %p146
      $region30: #{mlp_instance_norm.1} parent=11 // pred_check_branch
        %264 = sbr.rel (%p262) target = $region32
      $region31: #{mlp_instance_norm.1} parent=11 // pred_region
        _
      $region32: #{mlp_instance_norm.1} parent=11 // pred_fallthru
        _
      // Predicated region
      $region33: #{mlp_instance_norm.1} parent=11 // pred_check
        %p265 = pneg %p167
      $region34: #{mlp_instance_norm.1} parent=11 // pred_check_branch
        %267 = sbr.rel (%p265) target = $region36
      $region35: #{mlp_instance_norm.1} parent=11 // pred_region
        _
      $region36: #{mlp_instance_norm.1} parent=11 // pred_fallthru
        _
      // Predicated region
      $region37: #{mlp_instance_norm.1} parent=11 // pred_check
        %p268 = pneg %p188
      $region38: #{mlp_instance_norm.1} parent=11 // pred_check_branch
        %270 = sbr.rel (%p268) target = $region40
      $region39: #{mlp_instance_norm.1} parent=11 // pred_region
        _
      $region40: #{mlp_instance_norm.1} parent=11 // pred_fallthru
        _
      // Predicated region
      $region41: #{mlp_instance_norm.1} parent=11 // pred_check
        %p271 = pneg %p209
      $region42: #{mlp_instance_norm.1} parent=11 // pred_check_branch
        %273 = sbr.rel (%p271) target = $region44
      $region43: #{mlp_instance_norm.1} parent=11 // pred_region
        _
      $region44: #{mlp_instance_norm.1} parent=11 // pred_fallthru
        _
    $region12: #{mlp_instance_norm.1} parent=5 // pred_fallthru
      _
    %p274 = scmp.lt.s32.totalorder %s15, 8
    // Predicated region
    $region45: #{mlp_instance_norm.1} parent=5 // pred_check
      %p275 = pneg %p274
    $region46: #{mlp_instance_norm.1} parent=5 // pred_check_branch
      %277 = sbr.rel (%p275) target = $region48
    $region47: #{mlp_instance_norm.1} parent=5 // pred_region
      // Predicated region
      $region49: #{mlp_instance_norm.1} parent=47 // pred_check
        %p278 = pneg %p35
      $region50: #{mlp_instance_norm.1} parent=47 // pred_check_branch
        %280 = sbr.rel (%p278) target = $region52
      $region51: #{mlp_instance_norm.1} parent=47 // pred_region
        %s281 = smul.u32 64, %s15
        %p282 = scmp.lt.s32.totalorder %s281, 511
        %s283 = scalar_select %p282, %s281, 511
        %s284 = smul.addr %s283, 4
        %s285 = scalar_lea.vmem %s0, %s284
        %s286 = smul.u32 64, %s15
      $region52: #{mlp_instance_norm.1} parent=47 // pred_fallthru
        _
    $region48: #{mlp_instance_norm.1} parent=5 // pred_fallthru
      _
    %p287 = scmp.le.s32.totalorder 1, %s15
    %p288 = scmp.lt.s32.totalorder %s15, 9
    %p289 = pnand %p287, %p288
    %p290 = pneg %p289
    // Predicated region
    $region53: #{mlp_instance_norm.1} parent=5 // pred_check
      _
    $region54: #{mlp_instance_norm.1} parent=5 // pred_check_branch
      %292 = sbr.rel (%p289) target = $region56
    $region55: #{mlp_instance_norm.1} parent=5 // pred_region
      %s293 = ssub.s32 %s15, 1
      %s294 = smul.u32 64, %s20
      %p295 = scmp.lt.s32.totalorder %s294, 511
      %s296 = scalar_select %p295, %s294, 511
      %s297 = smul.addr %s296, 4
      %s298 = scalar_lea.vmem %s0, %s297
      %p299 = pneg %p41
      %p300 = pneg %p38
      %p301 = pneg %p62
      %p302 = pneg %p59
      %p303 = pneg %p83
      %p304 = pneg %p80
      %p305 = pneg %p104
      %p306 = pneg %p101
      %p307 = pneg %p125
      %p308 = pneg %p122
      %p309 = pneg %p146
      %p310 = pneg %p143
      %p311 = pneg %p167
      %p312 = pneg %p164
      %p313 = pneg %p188
      %p314 = pneg %p185
      %p315 = pneg %p209
      %p316 = pneg %p206
      %p317 = pneg %p235
      %p318 = pneg %p232
      %s319 = smul.u32 64, %s20
      %p320 = scmp.lt.s32.totalorder %s319, 511
      %s321 = scalar_select %p320, %s319, 511
      %s322 = smul.addr %s321, 8
      %s323 = scalar_lea.vmem %s9, %s322
      %s324 = smul.u32 64, %s20
      %p325 = scmp.lt.s32.totalorder %s324, 511
      %s326 = scalar_select %p325, %s324, 511
      %s327 = smul.addr %s326, 4
      %s328 = scalar_lea.vmem %s0, %s327
      %s329 = smul.u32 64, %s20
      %s330 = smul.u32 64, %s20
      %p331 = scmp.lt.s32.totalorder %s330, 511
      %s332 = scalar_select %p331, %s330, 511
      %s333 = smul.addr %s332, 8
      %s334 = scalar_lea.vmem %s9, %s333
      %s335 = smul.u32 64, %s20
      %v337 = vld [vmem:[%s328] sm:$0xf]
      %v338 = vld [vmem:[%s328 + $0x4] sm:$0xf]
      %v339 = vld [vmem:[%s328 + $0x8] sm:$0xf]
      %v340 = vld [vmem:[%s328 + $0xc] sm:$0xf]
      %v341 = vld [vmem:[%s328 + $0x10] sm:$0xf]
      %v342 = vld [vmem:[%s328 + $0x14] sm:$0xf]
      %v343 = vld [vmem:[%s328 + $0x18] sm:$0xf]
      %v344 = vld [vmem:[%s328 + $0x1c] sm:$0xf]
      %v345 = vld [vmem:[%s328 + $0x20] sm:$0xf]
      %v346 = vld [vmem:[%s328 + $0x24] sm:$0xf]
      %v347 = vld [vmem:[%s328 + $0x28] sm:$0xf]
      %v348 = vld [vmem:[%s328 + $0x2c] sm:$0xf]
      %v349 = vld [vmem:[%s328 + $0x30] sm:$0xf]
      %v350 = vld [vmem:[%s328 + $0x34] sm:$0xf]
      %v351 = vld [vmem:[%s328 + $0x38] sm:$0xf]
      %v352 = vld [vmem:[%s328 + $0x3c] sm:$0xf]
      %v353 = vld [vmem:[%s328 + $0x40] sm:$0xf]
      %v354 = vld [vmem:[%s328 + $0x44] sm:$0xf]
      %v355 = vld [vmem:[%s328 + $0x48] sm:$0xf]
      %v356 = vld [vmem:[%s328 + $0x4c] sm:$0xf]
      %v357 = vld [vmem:[%s328 + $0x50] sm:$0xf]
      %v358 = vld [vmem:[%s328 + $0x54] sm:$0xf]
      %v359 = vld [vmem:[%s328 + $0x58] sm:$0xf]
      %v360 = vld [vmem:[%s328 + $0x5c] sm:$0xf]
      %v361 = vld [vmem:[%s328 + $0x60] sm:$0xf]
      %v362 = vld [vmem:[%s328 + $0x64] sm:$0xf]
      %v363 = vld [vmem:[%s328 + $0x68] sm:$0xf]
      %v364 = vld [vmem:[%s328 + $0x6c] sm:$0xf]
      %v365 = vld [vmem:[%s328 + $0x70] sm:$0xf]
      %v366 = vld [vmem:[%s328 + $0x74] sm:$0xf]
      %v367 = vld [vmem:[%s328 + $0x78] sm:$0xf]
      %v368 = vld [vmem:[%s328 + $0x7c] sm:$0xf]
      %v369 = vld [vmem:[%s328 + $0x80] sm:$0xf]
      %v370 = vld [vmem:[%s328 + $0x84] sm:$0xf]
      %v371 = vld [vmem:[%s328 + $0x88] sm:$0xf]
      %v372 = vld [vmem:[%s328 + $0x8c] sm:$0xf]
      %v373 = vld [vmem:[%s328 + $0x90] sm:$0xf]
      %v374 = vld [vmem:[%s328 + $0x94] sm:$0xf]
      %v375 = vld [vmem:[%s328 + $0x98] sm:$0xf]
      %v376 = vld [vmem:[%s328 + $0x9c] sm:$0xf]
      %v377 = vld [vmem:[%s328 + $0xa0] sm:$0xf]
      %v378 = vld [vmem:[%s328 + $0xa4] sm:$0xf]
      %v379 = vld [vmem:[%s328 + $0xa8] sm:$0xf]
      %v380 = vld [vmem:[%s328 + $0xac] sm:$0xf]
      %v381 = vld [vmem:[%s328 + $0xb0] sm:$0xf]
      %v382 = vld [vmem:[%s328 + $0xb4] sm:$0xf]
      %v383 = vld [vmem:[%s328 + $0xb8] sm:$0xf]
      %v384 = vld [vmem:[%s328 + $0xbc] sm:$0xf]
      %v385 = vld [vmem:[%s328 + $0xc0] sm:$0xf]
      %v386 = vld [vmem:[%s328 + $0xc4] sm:$0xf]
      %v387 = vld [vmem:[%s328 + $0xc8] sm:$0xf]
      %v388 = vld [vmem:[%s328 + $0xcc] sm:$0xf]
      %v389 = vld [vmem:[%s328 + $0xd0] sm:$0xf]
      %v390 = vld [vmem:[%s328 + $0xd4] sm:$0xf]
      %v391 = vld [vmem:[%s328 + $0xd8] sm:$0xf]
      %v392 = vld [vmem:[%s328 + $0xdc] sm:$0xf]
      %v393 = vld [vmem:[%s328 + $0xe0] sm:$0xf]
      %v394 = vld [vmem:[%s328 + $0xe4] sm:$0xf]
      %v395 = vld [vmem:[%s328 + $0xe8] sm:$0xf]
      %v396 = vld [vmem:[%s328 + $0xec] sm:$0xf]
      %v397 = vld [vmem:[%s328 + $0xf0] sm:$0xf]
      %v398 = vld [vmem:[%s328 + $0xf4] sm:$0xf]
      %v399 = vld [vmem:[%s328 + $0xf8] sm:$0xf]
      %v400 = vld [vmem:[%s328 + $0xfc] sm:$0xf]
      %v401 = vld [vmem:[%s1] sm:$0xff]
      %v402 = vld [vmem:[%s1 + $0x8] sm:$0xff]
      %v403 = vld [vmem:[%s1 + $0x10] sm:$0xff]
      %v404 = vld [vmem:[%s1 + $0x18] sm:$0xff]
      %v405 = vld [vmem:[%s2] sm:$0x3]
      %v407 = vperm.slane %v405, 0
      %v408 = vperm.slane %v405, 1
      %v475 = vunpack.c.l.b16 %v337
      %v476 = vunpack.c.l.b16 %v338
      %v477 = vunpack.c.l.b16 %v339
      %v478 = vunpack.c.l.b16 %v340
      %v479 = vunpack.c.l.b16 %v341
      %v480 = vunpack.c.l.b16 %v342
      %v481 = vunpack.c.l.b16 %v343
      %v482 = vunpack.c.l.b16 %v344
      %v483 = vunpack.c.l.b16 %v345
      %v484 = vunpack.c.l.b16 %v346
      %v485 = vunpack.c.l.b16 %v347
      %v486 = vunpack.c.l.b16 %v348
      %v487 = vunpack.c.l.b16 %v349
      %v488 = vunpack.c.l.b16 %v350
      %v489 = vunpack.c.l.b16 %v351
      %v490 = vunpack.c.l.b16 %v352
      %v491 = vunpack.c.l.b16 %v353
      %v492 = vunpack.c.l.b16 %v354
      %v493 = vunpack.c.l.b16 %v355
      %v494 = vunpack.c.l.b16 %v356
      %v495 = vunpack.c.l.b16 %v357
      %v496 = vunpack.c.l.b16 %v358
      %v497 = vunpack.c.l.b16 %v359
      %v498 = vunpack.c.l.b16 %v360
      %v499 = vunpack.c.l.b16 %v361
      %v500 = vunpack.c.l.b16 %v362
      %v501 = vunpack.c.l.b16 %v363
      %v502 = vunpack.c.l.b16 %v364
      %v503 = vunpack.c.l.b16 %v365
      %v504 = vunpack.c.l.b16 %v366
      %v505 = vunpack.c.l.b16 %v367
      %v506 = vunpack.c.l.b16 %v368
      %v507 = vunpack.c.l.b16 %v369
      %v508 = vunpack.c.l.b16 %v370
      %v509 = vunpack.c.l.b16 %v371
      %v510 = vunpack.c.l.b16 %v372
      %v511 = vunpack.c.l.b16 %v373
      %v512 = vunpack.c.l.b16 %v374
      %v513 = vunpack.c.l.b16 %v375
      %v514 = vunpack.c.l.b16 %v376
      %v515 = vunpack.c.l.b16 %v377
      %v516 = vunpack.c.l.b16 %v378
      %v517 = vunpack.c.l.b16 %v379
      %v518 = vunpack.c.l.b16 %v380
      %v519 = vunpack.c.l.b16 %v381
      %v520 = vunpack.c.l.b16 %v382
      %v521 = vunpack.c.l.b16 %v383
      %v522 = vunpack.c.l.b16 %v384
      %v523 = vunpack.c.l.b16 %v385
      %v524 = vunpack.c.l.b16 %v386
      %v525 = vunpack.c.l.b16 %v387
      %v526 = vunpack.c.l.b16 %v388
      %v527 = vunpack.c.l.b16 %v389
      %v528 = vunpack.c.l.b16 %v390
      %v529 = vunpack.c.l.b16 %v391
      %v530 = vunpack.c.l.b16 %v392
      %v531 = vunpack.c.l.b16 %v393
      %v532 = vunpack.c.l.b16 %v394
      %v533 = vunpack.c.l.b16 %v395
      %v534 = vunpack.c.l.b16 %v396
      %v535 = vunpack.c.l.b16 %v397
      %v536 = vunpack.c.l.b16 %v398
      %v537 = vunpack.c.l.b16 %v399
      %v538 = vunpack.c.l.b16 %v400
      %v539 = vpack.c.b16 %v476, %v475
      %v540 = vpack.c.b16 %v478, %v477
      %v541 = vpack.c.b16 %v480, %v479
      %v542 = vpack.c.b16 %v482, %v481
      %v543 = vpack.c.b16 %v484, %v483
      %v544 = vpack.c.b16 %v486, %v485
      %v545 = vpack.c.b16 %v488, %v487
      %v546 = vpack.c.b16 %v490, %v489
      %v547 = vpack.c.b16 %v492, %v491
      %v548 = vpack.c.b16 %v494, %v493
      %v549 = vpack.c.b16 %v496, %v495
      %v550 = vpack.c.b16 %v498, %v497
      %v551 = vpack.c.b16 %v500, %v499
      %v552 = vpack.c.b16 %v502, %v501
      %v553 = vpack.c.b16 %v504, %v503
      %v554 = vpack.c.b16 %v506, %v505
      %v555 = vpack.c.b16 %v508, %v507
      %v556 = vpack.c.b16 %v510, %v509
      %v557 = vpack.c.b16 %v512, %v511
      %v558 = vpack.c.b16 %v514, %v513
      %v559 = vpack.c.b16 %v516, %v515
      %v560 = vpack.c.b16 %v518, %v517
      %v561 = vpack.c.b16 %v520, %v519
      %v562 = vpack.c.b16 %v522, %v521
      %v563 = vpack.c.b16 %v524, %v523
      %v564 = vpack.c.b16 %v526, %v525
      %v565 = vpack.c.b16 %v528, %v527
      %v566 = vpack.c.b16 %v530, %v529
      %v567 = vpack.c.b16 %v532, %v531
      %v568 = vpack.c.b16 %v534, %v533
      %v569 = vpack.c.b16 %v536, %v535
      %v570 = vpack.c.b16 %v538, %v537
      %v575 = vunpack.c.l.b16 %v401
      %v576 = vunpack.c.h.b16 %v401
      %v577 = vunpack.c.l.b16 %v402
      %v578 = vunpack.c.h.b16 %v402
      %v579 = vunpack.c.l.b16 %v403
      %v580 = vunpack.c.h.b16 %v403
      %v581 = vunpack.c.l.b16 %v404
      %v582 = vunpack.c.h.b16 %v404
      %v583 = vpack.c.b16 %v577, %v575
      %v584 = vpack.c.b16 %v578, %v576
      %v585 = vpack.c.b16 %v581, %v579
      %v586 = vpack.c.b16 %v582, %v580
      %vm591 = vcmask 261120
      %v593 = vsel %vm591, %v539, 0
      %v596 = vsel %vm591, %v540, 0
      %v599 = vsel %vm591, %v541, 0
      %v602 = vsel %vm591, %v542, 0
      %v605 = vsel %vm591, %v543, 0
      %v608 = vsel %vm591, %v544, 0
      %v611 = vsel %vm591, %v545, 0
      %v614 = vsel %vm591, %v546, 0
      %v617 = vsel %vm591, %v547, 0
      %v620 = vsel %vm591, %v548, 0
      %v623 = vsel %vm591, %v549, 0
      %v626 = vsel %vm591, %v550, 0
      %v629 = vsel %vm591, %v551, 0
      %v632 = vsel %vm591, %v552, 0
      %v635 = vsel %vm591, %v553, 0
      %v638 = vsel %vm591, %v554, 0
      %v641 = vsel %vm591, %v555, 0
      %v644 = vsel %vm591, %v556, 0
      %v647 = vsel %vm591, %v557, 0
      %v650 = vsel %vm591, %v558, 0
      %v653 = vsel %vm591, %v559, 0
      %v656 = vsel %vm591, %v560, 0
      %v659 = vsel %vm591, %v561, 0
      %v662 = vsel %vm591, %v562, 0
      %v665 = vsel %vm591, %v563, 0
      %v668 = vsel %vm591, %v564, 0
      %v671 = vsel %vm591, %v565, 0
      %v674 = vsel %vm591, %v566, 0
      %v677 = vsel %vm591, %v567, 0
      %v680 = vsel %vm591, %v568, 0
      %v683 = vsel %vm591, %v569, 0
      %v686 = vsel %vm591, %v570, 0
      %688 = vmatpush.bf16.msra.mxu0 0
      %689 = vmatpush.bf16.msra.mxu0 0
      %690 = vmatpush.bf16.msra.mxu0 0
      %691 = vmatpush.bf16.msra.mxu0 0
      %692 = vmatpush.bf16.msra.mxu0 0
      %693 = vmatpush.bf16.msra.mxu0 0
      %694 = vmatpush.bf16.msra.mxu0 %v585
      %695 = vmatpush.bf16.msra.mxu0 %v583
      %696 = vmatmul.bf16.gmra.mxu0 %v593
      %v697 = vpop.f32.mrf.mxu0
      %v698 = vadd.f32 %v407, %v697
      %v699 = vpop.f32.mrf.mxu0
      %v700 = vadd.f32 %v407, %v699
      %701 = vmatmul.bf16.gmra.mxu0 %v596
      %v702 = vpop.f32.mrf.mxu0
      %v703 = vadd.f32 %v407, %v702
      %v704 = vpop.f32.mrf.mxu0
      %v705 = vadd.f32 %v407, %v704
      %706 = vmatmul.bf16.gmra.mxu0 %v599
      %v707 = vpop.f32.mrf.mxu0
      %v708 = vadd.f32 %v407, %v707
      %v709 = vpop.f32.mrf.mxu0
      %v710 = vadd.f32 %v407, %v709
      %711 = vmatmul.bf16.gmra.mxu0 %v602
      %v712 = vpop.f32.mrf.mxu0
      %v713 = vadd.f32 %v407, %v712
      %v714 = vpop.f32.mrf.mxu0
      %v715 = vadd.f32 %v407, %v714
      %716 = vmatmul.bf16.gmra.mxu0 %v605
      %v717 = vpop.f32.mrf.mxu0
      %v718 = vadd.f32 %v407, %v717
      %v719 = vpop.f32.mrf.mxu0
      %v720 = vadd.f32 %v407, %v719
      %721 = vmatmul.bf16.gmra.mxu0 %v608
      %v722 = vpop.f32.mrf.mxu0
      %v723 = vadd.f32 %v407, %v722
      %v724 = vpop.f32.mrf.mxu0
      %v725 = vadd.f32 %v407, %v724
      %726 = vmatmul.bf16.gmra.mxu0 %v611
      %v727 = vpop.f32.mrf.mxu0
      %v728 = vadd.f32 %v407, %v727
      %v729 = vpop.f32.mrf.mxu0
      %v730 = vadd.f32 %v407, %v729
      %731 = vmatmul.bf16.gmra.mxu0 %v614
      %v732 = vpop.f32.mrf.mxu0
      %v733 = vadd.f32 %v407, %v732
      %v734 = vpop.f32.mrf.mxu0
      %v735 = vadd.f32 %v407, %v734
      %736 = vmatmul.bf16.gmra.mxu0 %v617
      %v737 = vpop.f32.mrf.mxu0
      %v738 = vadd.f32 %v407, %v737
      %v739 = vpop.f32.mrf.mxu0
      %v740 = vadd.f32 %v407, %v739
      %741 = vmatmul.bf16.gmra.mxu0 %v620
      %v742 = vpop.f32.mrf.mxu0
      %v743 = vadd.f32 %v407, %v742
      %v744 = vpop.f32.mrf.mxu0
      %v745 = vadd.f32 %v407, %v744
      %746 = vmatmul.bf16.gmra.mxu0 %v623
      %v747 = vpop.f32.mrf.mxu0
      %v748 = vadd.f32 %v407, %v747
      %v749 = vpop.f32.mrf.mxu0
      %v750 = vadd.f32 %v407, %v749
      %751 = vmatmul.bf16.gmra.mxu0 %v626
      %v752 = vpop.f32.mrf.mxu0
      %v753 = vadd.f32 %v407, %v752
      %v754 = vpop.f32.mrf.mxu0
      %v755 = vadd.f32 %v407, %v754
      %756 = vmatmul.bf16.gmra.mxu0 %v629
      %v757 = vpop.f32.mrf.mxu0
      %v758 = vadd.f32 %v407, %v757
      %v759 = vpop.f32.mrf.mxu0
      %v760 = vadd.f32 %v407, %v759
      %761 = vmatmul.bf16.gmra.mxu0 %v632
      %v762 = vpop.f32.mrf.mxu0
      %v763 = vadd.f32 %v407, %v762
      %v764 = vpop.f32.mrf.mxu0
      %v765 = vadd.f32 %v407, %v764
      %766 = vmatmul.bf16.gmra.mxu0 %v635
      %v767 = vpop.f32.mrf.mxu0
      %v768 = vadd.f32 %v407, %v767
      %v769 = vpop.f32.mrf.mxu0
      %v770 = vadd.f32 %v407, %v769
      %771 = vmatmul.bf16.gmra.mxu0 %v638
      %v772 = vpop.f32.mrf.mxu0
      %v773 = vadd.f32 %v407, %v772
      %v774 = vpop.f32.mrf.mxu0
      %v775 = vadd.f32 %v407, %v774
      %776 = vmatmul.bf16.gmra.mxu0 %v641
      %v777 = vpop.f32.mrf.mxu0
      %v778 = vadd.f32 %v407, %v777
      %v779 = vpop.f32.mrf.mxu0
      %v780 = vadd.f32 %v407, %v779
      %781 = vmatmul.bf16.gmra.mxu0 %v644
      %v782 = vpop.f32.mrf.mxu0
      %v783 = vadd.f32 %v407, %v782
      %v784 = vpop.f32.mrf.mxu0
      %v785 = vadd.f32 %v407, %v784
      %786 = vmatmul.bf16.gmra.mxu0 %v647
      %v787 = vpop.f32.mrf.mxu0
      %v788 = vadd.f32 %v407, %v787
      %v789 = vpop.f32.mrf.mxu0
      %v790 = vadd.f32 %v407, %v789
      %791 = vmatmul.bf16.gmra.mxu0 %v650
      %v792 = vpop.f32.mrf.mxu0
      %v793 = vadd.f32 %v407, %v792
      %v794 = vpop.f32.mrf.mxu0
      %v795 = vadd.f32 %v407, %v794
      %796 = vmatmul.bf16.gmra.mxu0 %v653
      %v797 = vpop.f32.mrf.mxu0
      %v798 = vadd.f32 %v407, %v797
      %v799 = vpop.f32.mrf.mxu0
      %v800 = vadd.f32 %v407, %v799
      %801 = vmatmul.bf16.gmra.mxu0 %v656
      %v802 = vpop.f32.mrf.mxu0
      %v803 = vadd.f32 %v407, %v802
      %v804 = vpop.f32.mrf.mxu0
      %v805 = vadd.f32 %v407, %v804
      %806 = vmatmul.bf16.gmra.mxu0 %v659
      %v807 = vpop.f32.mrf.mxu0
      %v808 = vadd.f32 %v407, %v807
      %v809 = vpop.f32.mrf.mxu0
      %v810 = vadd.f32 %v407, %v809
      %811 = vmatmul.bf16.gmra.mxu0 %v662
      %v812 = vpop.f32.mrf.mxu0
      %v813 = vadd.f32 %v407, %v812
      %v814 = vpop.f32.mrf.mxu0
      %v815 = vadd.f32 %v407, %v814
      %816 = vmatmul.bf16.gmra.mxu0 %v665
      %v817 = vpop.f32.mrf.mxu0
      %v818 = vadd.f32 %v407, %v817
      %v819 = vpop.f32.mrf.mxu0
      %v820 = vadd.f32 %v407, %v819
      %821 = vmatmul.bf16.gmra.mxu0 %v668
      %v822 = vpop.f32.mrf.mxu0
      %v823 = vadd.f32 %v407, %v822
      %v824 = vpop.f32.mrf.mxu0
      %v825 = vadd.f32 %v407, %v824
      %826 = vmatmul.bf16.gmra.mxu0 %v671
      %v827 = vpop.f32.mrf.mxu0
      %v828 = vadd.f32 %v407, %v827
      %v829 = vpop.f32.mrf.mxu0
      %v830 = vadd.f32 %v407, %v829
      %831 = vmatmul.bf16.gmra.mxu0 %v674
      %v832 = vpop.f32.mrf.mxu0
      %v833 = vadd.f32 %v407, %v832
      %v834 = vpop.f32.mrf.mxu0
      %v835 = vadd.f32 %v407, %v834
      %836 = vmatmul.bf16.gmra.mxu0 %v677
      %v837 = vpop.f32.mrf.mxu0
      %v838 = vadd.f32 %v407, %v837
      %v839 = vpop.f32.mrf.mxu0
      %v840 = vadd.f32 %v407, %v839
      %841 = vmatmul.bf16.gmra.mxu0 %v680
      %v842 = vpop.f32.mrf.mxu0
      %v843 = vadd.f32 %v407, %v842
      %v844 = vpop.f32.mrf.mxu0
      %v845 = vadd.f32 %v407, %v844
      %846 = vmatmul.bf16.gmra.mxu0 %v683
      %v847 = vpop.f32.mrf.mxu0
      %v848 = vadd.f32 %v407, %v847
      %v849 = vpop.f32.mrf.mxu0
      %v850 = vadd.f32 %v407, %v849
      %851 = vmatmul.bf16.gmra.mxu0 %v686
      %v852 = vpop.f32.mrf.mxu0
      %v853 = vadd.f32 %v407, %v852
      %v854 = vpop.f32.mrf.mxu0
      %v855 = vadd.f32 %v407, %v854
      %856 = vdwg.mxu0
      %857 = vmatpush.bf16.msra.mxu0 0
      %858 = vmatpush.bf16.msra.mxu0 0
      %859 = vmatpush.bf16.msra.mxu0 0
      %860 = vmatpush.bf16.msra.mxu0 0
      %861 = vmatpush.bf16.msra.mxu0 0
      %862 = vmatpush.bf16.msra.mxu0 0
      %863 = vmatpush.bf16.msra.mxu0 %v586
      %864 = vmatpush.bf16.msra.mxu0 %v584
      %865 = vmatmul.bf16.gmra.mxu0 %v593
      %v866 = vpop.f32.mrf.mxu0
      %v867 = vadd.f32 %v408, %v866
      %v868 = vpop.f32.mrf.mxu0
      %v869 = vadd.f32 %v408, %v868
      %870 = vmatmul.bf16.gmra.mxu0 %v596
      %v871 = vpop.f32.mrf.mxu0
      %v872 = vadd.f32 %v408, %v871
      %v873 = vpop.f32.mrf.mxu0
      %v874 = vadd.f32 %v408, %v873
      %875 = vmatmul.bf16.gmra.mxu0 %v599
      %v876 = vpop.f32.mrf.mxu0
      %v877 = vadd.f32 %v408, %v876
      %v878 = vpop.f32.mrf.mxu0
      %v879 = vadd.f32 %v408, %v878
      %880 = vmatmul.bf16.gmra.mxu0 %v602
      %v881 = vpop.f32.mrf.mxu0
      %v882 = vadd.f32 %v408, %v881
      %v883 = vpop.f32.mrf.mxu0
      %v884 = vadd.f32 %v408, %v883
      %885 = vmatmul.bf16.gmra.mxu0 %v605
      %v886 = vpop.f32.mrf.mxu0
      %v887 = vadd.f32 %v408, %v886
      %v888 = vpop.f32.mrf.mxu0
      %v889 = vadd.f32 %v408, %v888
      %890 = vmatmul.bf16.gmra.mxu0 %v608
      %v891 = vpop.f32.mrf.mxu0
      %v892 = vadd.f32 %v408, %v891
      %v893 = vpop.f32.mrf.mxu0
      %v894 = vadd.f32 %v408, %v893
      %895 = vmatmul.bf16.gmra.mxu0 %v611
      %v896 = vpop.f32.mrf.mxu0
      %v897 = vadd.f32 %v408, %v896
      %v898 = vpop.f32.mrf.mxu0
      %v899 = vadd.f32 %v408, %v898
      %900 = vmatmul.bf16.gmra.mxu0 %v614
      %v901 = vpop.f32.mrf.mxu0
      %v902 = vadd.f32 %v408, %v901
      %v903 = vpop.f32.mrf.mxu0
      %v904 = vadd.f32 %v408, %v903
      %905 = vmatmul.bf16.gmra.mxu0 %v617
      %v906 = vpop.f32.mrf.mxu0
      %v907 = vadd.f32 %v408, %v906
      %v908 = vpop.f32.mrf.mxu0
      %v909 = vadd.f32 %v408, %v908
      %910 = vmatmul.bf16.gmra.mxu0 %v620
      %v911 = vpop.f32.mrf.mxu0
      %v912 = vadd.f32 %v408, %v911
      %v913 = vpop.f32.mrf.mxu0
      %v914 = vadd.f32 %v408, %v913
      %915 = vmatmul.bf16.gmra.mxu0 %v623
      %v916 = vpop.f32.mrf.mxu0
      %v917 = vadd.f32 %v408, %v916
      %v918 = vpop.f32.mrf.mxu0
      %v919 = vadd.f32 %v408, %v918
      %920 = vmatmul.bf16.gmra.mxu0 %v626
      %v921 = vpop.f32.mrf.mxu0
      %v922 = vadd.f32 %v408, %v921
      %v923 = vpop.f32.mrf.mxu0
      %v924 = vadd.f32 %v408, %v923
      %925 = vmatmul.bf16.gmra.mxu0 %v629
      %v926 = vpop.f32.mrf.mxu0
      %v927 = vadd.f32 %v408, %v926
      %v928 = vpop.f32.mrf.mxu0
      %v929 = vadd.f32 %v408, %v928
      %930 = vmatmul.bf16.gmra.mxu0 %v632
      %v931 = vpop.f32.mrf.mxu0
      %v932 = vadd.f32 %v408, %v931
      %v933 = vpop.f32.mrf.mxu0
      %v934 = vadd.f32 %v408, %v933
      %935 = vmatmul.bf16.gmra.mxu0 %v635
      %v936 = vpop.f32.mrf.mxu0
      %v937 = vadd.f32 %v408, %v936
      %v938 = vpop.f32.mrf.mxu0
      %v939 = vadd.f32 %v408, %v938
      %940 = vmatmul.bf16.gmra.mxu0 %v638
      %v941 = vpop.f32.mrf.mxu0
      %v942 = vadd.f32 %v408, %v941
      %v943 = vpop.f32.mrf.mxu0
      %v944 = vadd.f32 %v408, %v943
      %945 = vmatmul.bf16.gmra.mxu0 %v641
      %v946 = vpop.f32.mrf.mxu0
      %v947 = vadd.f32 %v408, %v946
      %v948 = vpop.f32.mrf.mxu0
      %v949 = vadd.f32 %v408, %v948
      %950 = vmatmul.bf16.gmra.mxu0 %v644
      %v951 = vpop.f32.mrf.mxu0
      %v952 = vadd.f32 %v408, %v951
      %v953 = vpop.f32.mrf.mxu0
      %v954 = vadd.f32 %v408, %v953
      %955 = vmatmul.bf16.gmra.mxu0 %v647
      %v956 = vpop.f32.mrf.mxu0
      %v957 = vadd.f32 %v408, %v956
      %v958 = vpop.f32.mrf.mxu0
      %v959 = vadd.f32 %v408, %v958
      %960 = vmatmul.bf16.gmra.mxu0 %v650
      %v961 = vpop.f32.mrf.mxu0
      %v962 = vadd.f32 %v408, %v961
      %v963 = vpop.f32.mrf.mxu0
      %v964 = vadd.f32 %v408, %v963
      %965 = vmatmul.bf16.gmra.mxu0 %v653
      %v966 = vpop.f32.mrf.mxu0
      %v967 = vadd.f32 %v408, %v966
      %v968 = vpop.f32.mrf.mxu0
      %v969 = vadd.f32 %v408, %v968
      %970 = vmatmul.bf16.gmra.mxu0 %v656
      %v971 = vpop.f32.mrf.mxu0
      %v972 = vadd.f32 %v408, %v971
      %v973 = vpop.f32.mrf.mxu0
      %v974 = vadd.f32 %v408, %v973
      %975 = vmatmul.bf16.gmra.mxu0 %v659
      %v976 = vpop.f32.mrf.mxu0
      %v977 = vadd.f32 %v408, %v976
      %v978 = vpop.f32.mrf.mxu0
      %v979 = vadd.f32 %v408, %v978
      %980 = vmatmul.bf16.gmra.mxu0 %v662
      %v981 = vpop.f32.mrf.mxu0
      %v982 = vadd.f32 %v408, %v981
      %v983 = vpop.f32.mrf.mxu0
      %v984 = vadd.f32 %v408, %v983
      %985 = vmatmul.bf16.gmra.mxu0 %v665
      %v986 = vpop.f32.mrf.mxu0
      %v987 = vadd.f32 %v408, %v986
      %v988 = vpop.f32.mrf.mxu0
      %v989 = vadd.f32 %v408, %v988
      %990 = vmatmul.bf16.gmra.mxu0 %v668
      %v991 = vpop.f32.mrf.mxu0
      %v992 = vadd.f32 %v408, %v991
      %v993 = vpop.f32.mrf.mxu0
      %v994 = vadd.f32 %v408, %v993
      %995 = vmatmul.bf16.gmra.mxu0 %v671
      %v996 = vpop.f32.mrf.mxu0
      %v997 = vadd.f32 %v408, %v996
      %v998 = vpop.f32.mrf.mxu0
      %v999 = vadd.f32 %v408, %v998
      %1000 = vmatmul.bf16.gmra.mxu0 %v674
      %v1001 = vpop.f32.mrf.mxu0
      %v1002 = vadd.f32 %v408, %v1001
      %v1003 = vpop.f32.mrf.mxu0
      %v1004 = vadd.f32 %v408, %v1003
      %1005 = vmatmul.bf16.gmra.mxu0 %v677
      %v1006 = vpop.f32.mrf.mxu0
      %v1007 = vadd.f32 %v408, %v1006
      %v1008 = vpop.f32.mrf.mxu0
      %v1009 = vadd.f32 %v408, %v1008
      %1010 = vmatmul.bf16.gmra.mxu0 %v680
      %v1011 = vpop.f32.mrf.mxu0
      %v1012 = vadd.f32 %v408, %v1011
      %v1013 = vpop.f32.mrf.mxu0
      %v1014 = vadd.f32 %v408, %v1013
      %1015 = vmatmul.bf16.gmra.mxu0 %v683
      %v1016 = vpop.f32.mrf.mxu0
      %v1017 = vadd.f32 %v408, %v1016
      %v1018 = vpop.f32.mrf.mxu0
      %v1019 = vadd.f32 %v408, %v1018
      %1020 = vmatmul.bf16.gmra.mxu0 %v686
      %v1021 = vpop.f32.mrf.mxu0
      %v1022 = vadd.f32 %v408, %v1021
      %v1023 = vpop.f32.mrf.mxu0
      %v1024 = vadd.f32 %v408, %v1023
      %1025 = vdwg.mxu0
      %v1026 = vadd.f32 %v698, %v867
      %1027 = vadd.xlane.f32.xlu0 %v1026
      %v1028 = vpop.xlane.xlu0 %1027
      %v1029 = vadd.f32 %v700, %v869
      %1030 = vadd.xlane.f32.xlu0 %v1029
      %v1031 = vpop.xlane.xlu0 %1030
      %v1032 = vadd.f32 %v703, %v872
      %1033 = vadd.xlane.f32.xlu0 %v1032
      %v1034 = vpop.xlane.xlu0 %1033
      %v1035 = vadd.f32 %v705, %v874
      %1036 = vadd.xlane.f32.xlu0 %v1035
      %v1037 = vpop.xlane.xlu0 %1036
      %v1038 = vadd.f32 %v708, %v877
      %1039 = vadd.xlane.f32.xlu0 %v1038
      %v1040 = vpop.xlane.xlu0 %1039
      %v1041 = vadd.f32 %v710, %v879
      %1042 = vadd.xlane.f32.xlu0 %v1041
      %v1043 = vpop.xlane.xlu0 %1042
      %v1044 = vadd.f32 %v713, %v882
      %1045 = vadd.xlane.f32.xlu0 %v1044
      %v1046 = vpop.xlane.xlu0 %1045
      %v1047 = vadd.f32 %v715, %v884
      %1048 = vadd.xlane.f32.xlu0 %v1047
      %v1049 = vpop.xlane.xlu0 %1048
      %v1050 = vadd.f32 %v718, %v887
      %1051 = vadd.xlane.f32.xlu0 %v1050
      %v1052 = vpop.xlane.xlu0 %1051
      %v1053 = vadd.f32 %v720, %v889
      %1054 = vadd.xlane.f32.xlu0 %v1053
      %v1055 = vpop.xlane.xlu0 %1054
      %v1056 = vadd.f32 %v723, %v892
      %1057 = vadd.xlane.f32.xlu0 %v1056
      %v1058 = vpop.xlane.xlu0 %1057
      %v1059 = vadd.f32 %v725, %v894
      %1060 = vadd.xlane.f32.xlu0 %v1059
      %v1061 = vpop.xlane.xlu0 %1060
      %v1062 = vadd.f32 %v728, %v897
      %1063 = vadd.xlane.f32.xlu0 %v1062
      %v1064 = vpop.xlane.xlu0 %1063
      %v1065 = vadd.f32 %v730, %v899
      %1066 = vadd.xlane.f32.xlu0 %v1065
      %v1067 = vpop.xlane.xlu0 %1066
      %v1068 = vadd.f32 %v733, %v902
      %1069 = vadd.xlane.f32.xlu0 %v1068
      %v1070 = vpop.xlane.xlu0 %1069
      %v1071 = vadd.f32 %v735, %v904
      %1072 = vadd.xlane.f32.xlu0 %v1071
      %v1073 = vpop.xlane.xlu0 %1072
      %v1074 = vadd.f32 %v738, %v907
      %1075 = vadd.xlane.f32.xlu0 %v1074
      %v1076 = vpop.xlane.xlu0 %1075
      %v1077 = vadd.f32 %v740, %v909
      %1078 = vadd.xlane.f32.xlu0 %v1077
      %v1079 = vpop.xlane.xlu0 %1078
      %v1080 = vadd.f32 %v743, %v912
      %1081 = vadd.xlane.f32.xlu0 %v1080
      %v1082 = vpop.xlane.xlu0 %1081
      %v1083 = vadd.f32 %v745, %v914
      %1084 = vadd.xlane.f32.xlu0 %v1083
      %v1085 = vpop.xlane.xlu0 %1084
      %v1086 = vadd.f32 %v748, %v917
      %1087 = vadd.xlane.f32.xlu0 %v1086
      %v1088 = vpop.xlane.xlu0 %1087
      %v1089 = vadd.f32 %v750, %v919
      %1090 = vadd.xlane.f32.xlu0 %v1089
      %v1091 = vpop.xlane.xlu0 %1090
      %v1092 = vadd.f32 %v753, %v922
      %1093 = vadd.xlane.f32.xlu0 %v1092
      %v1094 = vpop.xlane.xlu0 %1093
      %v1095 = vadd.f32 %v755, %v924
      %1096 = vadd.xlane.f32.xlu0 %v1095
      %v1097 = vpop.xlane.xlu0 %1096
      %v1098 = vadd.f32 %v758, %v927
      %1099 = vadd.xlane.f32.xlu0 %v1098
      %v1100 = vpop.xlane.xlu0 %1099
      %v1101 = vadd.f32 %v760, %v929
      %1102 = vadd.xlane.f32.xlu0 %v1101
      %v1103 = vpop.xlane.xlu0 %1102
      %v1104 = vadd.f32 %v763, %v932
      %1105 = vadd.xlane.f32.xlu0 %v1104
      %v1106 = vpop.xlane.xlu0 %1105
      %v1107 = vadd.f32 %v765, %v934
      %1108 = vadd.xlane.f32.xlu0 %v1107
      %v1109 = vpop.xlane.xlu0 %1108
      %v1110 = vadd.f32 %v768, %v937
      %1111 = vadd.xlane.f32.xlu0 %v1110
      %v1112 = vpop.xlane.xlu0 %1111
      %v1113 = vadd.f32 %v770, %v939
      %1114 = vadd.xlane.f32.xlu0 %v1113
      %v1115 = vpop.xlane.xlu0 %1114
      %v1116 = vadd.f32 %v773, %v942
      %1117 = vadd.xlane.f32.xlu0 %v1116
      %v1118 = vpop.xlane.xlu0 %1117
      %v1119 = vadd.f32 %v775, %v944
      %1120 = vadd.xlane.f32.xlu0 %v1119
      %v1121 = vpop.xlane.xlu0 %1120
      %v1122 = vadd.f32 %v778, %v947
      %1123 = vadd.xlane.f32.xlu0 %v1122
      %v1124 = vpop.xlane.xlu0 %1123
      %v1125 = vadd.f32 %v780, %v949
      %1126 = vadd.xlane.f32.xlu0 %v1125
      %v1127 = vpop.xlane.xlu0 %1126
      %v1128 = vadd.f32 %v783, %v952
      %1129 = vadd.xlane.f32.xlu0 %v1128
      %v1130 = vpop.xlane.xlu0 %1129
      %v1131 = vadd.f32 %v785, %v954
      %1132 = vadd.xlane.f32.xlu0 %v1131
      %v1133 = vpop.xlane.xlu0 %1132
      %v1134 = vadd.f32 %v788, %v957
      %1135 = vadd.xlane.f32.xlu0 %v1134
      %v1136 = vpop.xlane.xlu0 %1135
      %v1137 = vadd.f32 %v790, %v959
      %1138 = vadd.xlane.f32.xlu0 %v1137
      %v1139 = vpop.xlane.xlu0 %1138
      %v1140 = vadd.f32 %v793, %v962
      %1141 = vadd.xlane.f32.xlu0 %v1140
      %v1142 = vpop.xlane.xlu0 %1141
      %v1143 = vadd.f32 %v795, %v964
      %1144 = vadd.xlane.f32.xlu0 %v1143
      %v1145 = vpop.xlane.xlu0 %1144
      %v1146 = vadd.f32 %v798, %v967
      %1147 = vadd.xlane.f32.xlu0 %v1146
      %v1148 = vpop.xlane.xlu0 %1147
      %v1149 = vadd.f32 %v800, %v969
      %1150 = vadd.xlane.f32.xlu0 %v1149
      %v1151 = vpop.xlane.xlu0 %1150
      %v1152 = vadd.f32 %v803, %v972
      %1153 = vadd.xlane.f32.xlu0 %v1152
      %v1154 = vpop.xlane.xlu0 %1153
      %v1155 = vadd.f32 %v805, %v974
      %1156 = vadd.xlane.f32.xlu0 %v1155
      %v1157 = vpop.xlane.xlu0 %1156
      %v1158 = vadd.f32 %v808, %v977
      %1159 = vadd.xlane.f32.xlu0 %v1158
      %v1160 = vpop.xlane.xlu0 %1159
      %v1161 = vadd.f32 %v810, %v979
      %1162 = vadd.xlane.f32.xlu0 %v1161
      %v1163 = vpop.xlane.xlu0 %1162
      %v1164 = vadd.f32 %v813, %v982
      %1165 = vadd.xlane.f32.xlu0 %v1164
      %v1166 = vpop.xlane.xlu0 %1165
      %v1167 = vadd.f32 %v815, %v984
      %1168 = vadd.xlane.f32.xlu0 %v1167
      %v1169 = vpop.xlane.xlu0 %1168
      %v1170 = vadd.f32 %v818, %v987
      %1171 = vadd.xlane.f32.xlu0 %v1170
      %v1172 = vpop.xlane.xlu0 %1171
      %v1173 = vadd.f32 %v820, %v989
      %1174 = vadd.xlane.f32.xlu0 %v1173
      %v1175 = vpop.xlane.xlu0 %1174
      %v1176 = vadd.f32 %v823, %v992
      %1177 = vadd.xlane.f32.xlu0 %v1176
      %v1178 = vpop.xlane.xlu0 %1177
      %v1179 = vadd.f32 %v825, %v994
      %1180 = vadd.xlane.f32.xlu0 %v1179
      %v1181 = vpop.xlane.xlu0 %1180
      %v1182 = vadd.f32 %v828, %v997
      %1183 = vadd.xlane.f32.xlu0 %v1182
      %v1184 = vpop.xlane.xlu0 %1183
      %v1185 = vadd.f32 %v830, %v999
      %1186 = vadd.xlane.f32.xlu0 %v1185
      %v1187 = vpop.xlane.xlu0 %1186
      %v1188 = vadd.f32 %v833, %v1002
      %1189 = vadd.xlane.f32.xlu0 %v1188
      %v1190 = vpop.xlane.xlu0 %1189
      %v1191 = vadd.f32 %v835, %v1004
      %1192 = vadd.xlane.f32.xlu0 %v1191
      %v1193 = vpop.xlane.xlu0 %1192
      %v1194 = vadd.f32 %v838, %v1007
      %1195 = vadd.xlane.f32.xlu0 %v1194
      %v1196 = vpop.xlane.xlu0 %1195
      %v1197 = vadd.f32 %v840, %v1009
      %1198 = vadd.xlane.f32.xlu0 %v1197
      %v1199 = vpop.xlane.xlu0 %1198
      %v1200 = vadd.f32 %v843, %v1012
      %1201 = vadd.xlane.f32.xlu0 %v1200
      %v1202 = vpop.xlane.xlu0 %1201
      %v1203 = vadd.f32 %v845, %v1014
      %1204 = vadd.xlane.f32.xlu0 %v1203
      %v1205 = vpop.xlane.xlu0 %1204
      %v1206 = vadd.f32 %v848, %v1017
      %1207 = vadd.xlane.f32.xlu0 %v1206
      %v1208 = vpop.xlane.xlu0 %1207
      %v1209 = vadd.f32 %v850, %v1019
      %1210 = vadd.xlane.f32.xlu0 %v1209
      %v1211 = vpop.xlane.xlu0 %1210
      %v1212 = vadd.f32 %v853, %v1022
      %1213 = vadd.xlane.f32.xlu0 %v1212
      %v1214 = vpop.xlane.xlu0 %1213
      %v1215 = vadd.f32 %v855, %v1024
      %1216 = vadd.xlane.f32.xlu0 %v1215
      %v1217 = vpop.xlane.xlu0 %1216
      %v1218 = vrcp.pop 256.0
      %v1219 = vmul.f32 256.0, %v1218
      %v1220 = vsub.f32 1.0, %v1219
      %v1221 = vmul.f32 %v1218, %v1220
      %v1222 = vadd.f32 %v1218, %v1221
      %vm1223 = vweird.f32 %v1218
      %v1224 = vsel %vm1223, %v1218, %v1222
      %v1225 = vmul.f32 %v1028, %v1224
      %v1226 = vmul.f32 %v1031, %v1224
      %v1227 = vmul.f32 %v1034, %v1224
      %v1228 = vmul.f32 %v1037, %v1224
      %v1229 = vmul.f32 %v1040, %v1224
      %v1230 = vmul.f32 %v1043, %v1224
      %v1231 = vmul.f32 %v1046, %v1224
      %v1232 = vmul.f32 %v1049, %v1224
      %v1233 = vmul.f32 %v1052, %v1224
      %v1234 = vmul.f32 %v1055, %v1224
      %v1235 = vmul.f32 %v1058, %v1224
      %v1236 = vmul.f32 %v1061, %v1224
      %v1237 = vmul.f32 %v1064, %v1224
      %v1238 = vmul.f32 %v1067, %v1224
      %v1239 = vmul.f32 %v1070, %v1224
      %v1240 = vmul.f32 %v1073, %v1224
      %v1241 = vmul.f32 %v1076, %v1224
      %v1242 = vmul.f32 %v1079, %v1224
      %v1243 = vmul.f32 %v1082, %v1224
      %v1244 = vmul.f32 %v1085, %v1224
      %v1245 = vmul.f32 %v1088, %v1224
      %v1246 = vmul.f32 %v1091, %v1224
      %v1247 = vmul.f32 %v1094, %v1224
      %v1248 = vmul.f32 %v1097, %v1224
      %v1249 = vmul.f32 %v1100, %v1224
      %v1250 = vmul.f32 %v1103, %v1224
      %v1251 = vmul.f32 %v1106, %v1224
      %v1252 = vmul.f32 %v1109, %v1224
      %v1253 = vmul.f32 %v1112, %v1224
      %v1254 = vmul.f32 %v1115, %v1224
      %v1255 = vmul.f32 %v1118, %v1224
      %v1256 = vmul.f32 %v1121, %v1224
      %v1257 = vmul.f32 %v1124, %v1224
      %v1258 = vmul.f32 %v1127, %v1224
      %v1259 = vmul.f32 %v1130, %v1224
      %v1260 = vmul.f32 %v1133, %v1224
      %v1261 = vmul.f32 %v1136, %v1224
      %v1262 = vmul.f32 %v1139, %v1224
      %v1263 = vmul.f32 %v1142, %v1224
      %v1264 = vmul.f32 %v1145, %v1224
      %v1265 = vmul.f32 %v1148, %v1224
      %v1266 = vmul.f32 %v1151, %v1224
      %v1267 = vmul.f32 %v1154, %v1224
      %v1268 = vmul.f32 %v1157, %v1224
      %v1269 = vmul.f32 %v1160, %v1224
      %v1270 = vmul.f32 %v1163, %v1224
      %v1271 = vmul.f32 %v1166, %v1224
      %v1272 = vmul.f32 %v1169, %v1224
      %v1273 = vmul.f32 %v1172, %v1224
      %v1274 = vmul.f32 %v1175, %v1224
      %v1275 = vmul.f32 %v1178, %v1224
      %v1276 = vmul.f32 %v1181, %v1224
      %v1277 = vmul.f32 %v1184, %v1224
      %v1278 = vmul.f32 %v1187, %v1224
      %v1279 = vmul.f32 %v1190, %v1224
      %v1280 = vmul.f32 %v1193, %v1224
      %v1281 = vmul.f32 %v1196, %v1224
      %v1282 = vmul.f32 %v1199, %v1224
      %v1283 = vmul.f32 %v1202, %v1224
      %v1284 = vmul.f32 %v1205, %v1224
      %v1285 = vmul.f32 %v1208, %v1224
      %v1286 = vmul.f32 %v1211, %v1224
      %v1287 = vmul.f32 %v1214, %v1224
      %v1288 = vmul.f32 %v1217, %v1224
      %v1289 = vsub.f32 %v698, %v1225
      %v1290 = vsub.f32 %v867, %v1225
      %v1291 = vsub.f32 %v700, %v1226
      %v1292 = vsub.f32 %v869, %v1226
      %v1293 = vsub.f32 %v703, %v1227
      %v1294 = vsub.f32 %v872, %v1227
      %v1295 = vsub.f32 %v705, %v1228
      %v1296 = vsub.f32 %v874, %v1228
      %v1297 = vsub.f32 %v708, %v1229
      %v1298 = vsub.f32 %v877, %v1229
      %v1299 = vsub.f32 %v710, %v1230
      %v1300 = vsub.f32 %v879, %v1230
      %v1301 = vsub.f32 %v713, %v1231
      %v1302 = vsub.f32 %v882, %v1231
      %v1303 = vsub.f32 %v715, %v1232
      %v1304 = vsub.f32 %v884, %v1232
      %v1305 = vsub.f32 %v718, %v1233
      %v1306 = vsub.f32 %v887, %v1233
      %v1307 = vsub.f32 %v720, %v1234
      %v1308 = vsub.f32 %v889, %v1234
      %v1309 = vsub.f32 %v723, %v1235
      %v1310 = vsub.f32 %v892, %v1235
      %v1311 = vsub.f32 %v725, %v1236
      %v1312 = vsub.f32 %v894, %v1236
      %v1313 = vsub.f32 %v728, %v1237
      %v1314 = vsub.f32 %v897, %v1237
      %v1315 = vsub.f32 %v730, %v1238
      %v1316 = vsub.f32 %v899, %v1238
      %v1317 = vsub.f32 %v733, %v1239
      %v1318 = vsub.f32 %v902, %v1239
      %v1319 = vsub.f32 %v735, %v1240
      %v1320 = vsub.f32 %v904, %v1240
      %v1321 = vsub.f32 %v738, %v1241
      %v1322 = vsub.f32 %v907, %v1241
      %v1323 = vsub.f32 %v740, %v1242
      %v1324 = vsub.f32 %v909, %v1242
      %v1325 = vsub.f32 %v743, %v1243
      %v1326 = vsub.f32 %v912, %v1243
      %v1327 = vsub.f32 %v745, %v1244
      %v1328 = vsub.f32 %v914, %v1244
      %v1329 = vsub.f32 %v748, %v1245
      %v1330 = vsub.f32 %v917, %v1245
      %v1331 = vsub.f32 %v750, %v1246
      %v1332 = vsub.f32 %v919, %v1246
      %v1333 = vsub.f32 %v753, %v1247
      %v1334 = vsub.f32 %v922, %v1247
      %v1335 = vsub.f32 %v755, %v1248
      %v1336 = vsub.f32 %v924, %v1248
      %v1337 = vsub.f32 %v758, %v1249
      %v1338 = vsub.f32 %v927, %v1249
      %v1339 = vsub.f32 %v760, %v1250
      %v1340 = vsub.f32 %v929, %v1250
      %v1341 = vsub.f32 %v763, %v1251
      %v1342 = vsub.f32 %v932, %v1251
      %v1343 = vsub.f32 %v765, %v1252
      %v1344 = vsub.f32 %v934, %v1252
      %v1345 = vsub.f32 %v768, %v1253
      %v1346 = vsub.f32 %v937, %v1253
      %v1347 = vsub.f32 %v770, %v1254
      %v1348 = vsub.f32 %v939, %v1254
      %v1349 = vsub.f32 %v773, %v1255
      %v1350 = vsub.f32 %v942, %v1255
      %v1351 = vsub.f32 %v775, %v1256
      %v1352 = vsub.f32 %v944, %v1256
      %v1353 = vsub.f32 %v778, %v1257
      %v1354 = vsub.f32 %v947, %v1257
      %v1355 = vsub.f32 %v780, %v1258
      %v1356 = vsub.f32 %v949, %v1258
      %v1357 = vsub.f32 %v783, %v1259
      %v1358 = vsub.f32 %v952, %v1259
      %v1359 = vsub.f32 %v785, %v1260
      %v1360 = vsub.f32 %v954, %v1260
      %v1361 = vsub.f32 %v788, %v1261
      %v1362 = vsub.f32 %v957, %v1261
      %v1363 = vsub.f32 %v790, %v1262
      %v1364 = vsub.f32 %v959, %v1262
      %v1365 = vsub.f32 %v793, %v1263
      %v1366 = vsub.f32 %v962, %v1263
      %v1367 = vsub.f32 %v795, %v1264
      %v1368 = vsub.f32 %v964, %v1264
      %v1369 = vsub.f32 %v798, %v1265
      %v1370 = vsub.f32 %v967, %v1265
      %v1371 = vsub.f32 %v800, %v1266
      %v1372 = vsub.f32 %v969, %v1266
      %v1373 = vsub.f32 %v803, %v1267
      %v1374 = vsub.f32 %v972, %v1267
      %v1375 = vsub.f32 %v805, %v1268
      %v1376 = vsub.f32 %v974, %v1268
      %v1377 = vsub.f32 %v808, %v1269
      %v1378 = vsub.f32 %v977, %v1269
      %v1379 = vsub.f32 %v810, %v1270
      %v1380 = vsub.f32 %v979, %v1270
      %v1381 = vsub.f32 %v813, %v1271
      %v1382 = vsub.f32 %v982, %v1271
      %v1383 = vsub.f32 %v815, %v1272
      %v1384 = vsub.f32 %v984, %v1272
      %v1385 = vsub.f32 %v818, %v1273
      %v1386 = vsub.f32 %v987, %v1273
      %v1387 = vsub.f32 %v820, %v1274
      %v1388 = vsub.f32 %v989, %v1274
      %v1389 = vsub.f32 %v823, %v1275
      %v1390 = vsub.f32 %v992, %v1275
      %v1391 = vsub.f32 %v825, %v1276
      %v1392 = vsub.f32 %v994, %v1276
      %v1393 = vsub.f32 %v828, %v1277
      %v1394 = vsub.f32 %v997, %v1277
      %v1395 = vsub.f32 %v830, %v1278
      %v1396 = vsub.f32 %v999, %v1278
      %v1397 = vsub.f32 %v833, %v1279
      %v1398 = vsub.f32 %v1002, %v1279
      %v1399 = vsub.f32 %v835, %v1280
      %v1400 = vsub.f32 %v1004, %v1280
      %v1401 = vsub.f32 %v838, %v1281
      %v1402 = vsub.f32 %v1007, %v1281
      %v1403 = vsub.f32 %v840, %v1282
      %v1404 = vsub.f32 %v1009, %v1282
      %v1405 = vsub.f32 %v843, %v1283
      %v1406 = vsub.f32 %v1012, %v1283
      %v1407 = vsub.f32 %v845, %v1284
      %v1408 = vsub.f32 %v1014, %v1284
      %v1409 = vsub.f32 %v848, %v1285
      %v1410 = vsub.f32 %v1017, %v1285
      %v1411 = vsub.f32 %v850, %v1286
      %v1412 = vsub.f32 %v1019, %v1286
      %v1413 = vsub.f32 %v853, %v1287
      %v1414 = vsub.f32 %v1022, %v1287
      %v1415 = vsub.f32 %v855, %v1288
      %v1416 = vsub.f32 %v1024, %v1288
      %v1417 = vmul.f32 %v1289, %v1289
      %v1418 = vmul.f32 %v1290, %v1290
      %v1419 = vmul.f32 %v1291, %v1291
      %v1420 = vmul.f32 %v1292, %v1292
      %v1421 = vmul.f32 %v1293, %v1293
      %v1422 = vmul.f32 %v1294, %v1294
      %v1423 = vmul.f32 %v1295, %v1295
      %v1424 = vmul.f32 %v1296, %v1296
      %v1425 = vmul.f32 %v1297, %v1297
      %v1426 = vmul.f32 %v1298, %v1298
      %v1427 = vmul.f32 %v1299, %v1299
      %v1428 = vmul.f32 %v1300, %v1300
      %v1429 = vmul.f32 %v1301, %v1301
      %v1430 = vmul.f32 %v1302, %v1302
      %v1431 = vmul.f32 %v1303, %v1303
      %v1432 = vmul.f32 %v1304, %v1304
      %v1433 = vmul.f32 %v1305, %v1305
      %v1434 = vmul.f32 %v1306, %v1306
      %v1435 = vmul.f32 %v1307, %v1307
      %v1436 = vmul.f32 %v1308, %v1308
      %v1437 = vmul.f32 %v1309, %v1309
      %v1438 = vmul.f32 %v1310, %v1310
      %v1439 = vmul.f32 %v1311, %v1311
      %v1440 = vmul.f32 %v1312, %v1312
      %v1441 = vmul.f32 %v1313, %v1313
      %v1442 = vmul.f32 %v1314, %v1314
      %v1443 = vmul.f32 %v1315, %v1315
      %v1444 = vmul.f32 %v1316, %v1316
      %v1445 = vmul.f32 %v1317, %v1317
      %v1446 = vmul.f32 %v1318, %v1318
      %v1447 = vmul.f32 %v1319, %v1319
      %v1448 = vmul.f32 %v1320, %v1320
      %v1449 = vmul.f32 %v1321, %v1321
      %v1450 = vmul.f32 %v1322, %v1322
      %v1451 = vmul.f32 %v1323, %v1323
      %v1452 = vmul.f32 %v1324, %v1324
      %v1453 = vmul.f32 %v1325, %v1325
      %v1454 = vmul.f32 %v1326, %v1326
      %v1455 = vmul.f32 %v1327, %v1327
      %v1456 = vmul.f32 %v1328, %v1328
      %v1457 = vmul.f32 %v1329, %v1329
      %v1458 = vmul.f32 %v1330, %v1330
      %v1459 = vmul.f32 %v1331, %v1331
      %v1460 = vmul.f32 %v1332, %v1332
      %v1461 = vmul.f32 %v1333, %v1333
      %v1462 = vmul.f32 %v1334, %v1334
      %v1463 = vmul.f32 %v1335, %v1335
      %v1464 = vmul.f32 %v1336, %v1336
      %v1465 = vmul.f32 %v1337, %v1337
      %v1466 = vmul.f32 %v1338, %v1338
      %v1467 = vmul.f32 %v1339, %v1339
      %v1468 = vmul.f32 %v1340, %v1340
      %v1469 = vmul.f32 %v1341, %v1341
      %v1470 = vmul.f32 %v1342, %v1342
      %v1471 = vmul.f32 %v1343, %v1343
      %v1472 = vmul.f32 %v1344, %v1344
      %v1473 = vmul.f32 %v1345, %v1345
      %v1474 = vmul.f32 %v1346, %v1346
      %v1475 = vmul.f32 %v1347, %v1347
      %v1476 = vmul.f32 %v1348, %v1348
      %v1477 = vmul.f32 %v1349, %v1349
      %v1478 = vmul.f32 %v1350, %v1350
      %v1479 = vmul.f32 %v1351, %v1351
      %v1480 = vmul.f32 %v1352, %v1352
      %v1481 = vmul.f32 %v1353, %v1353
      %v1482 = vmul.f32 %v1354, %v1354
      %v1483 = vmul.f32 %v1355, %v1355
      %v1484 = vmul.f32 %v1356, %v1356
      %v1485 = vmul.f32 %v1357, %v1357
      %v1486 = vmul.f32 %v1358, %v1358
      %v1487 = vmul.f32 %v1359, %v1359
      %v1488 = vmul.f32 %v1360, %v1360
      %v1489 = vmul.f32 %v1361, %v1361
      %v1490 = vmul.f32 %v1362, %v1362
      %v1491 = vmul.f32 %v1363, %v1363
      %v1492 = vmul.f32 %v1364, %v1364
      %v1493 = vmul.f32 %v1365, %v1365
      %v1494 = vmul.f32 %v1366, %v1366
      %v1495 = vmul.f32 %v1367, %v1367
      %v1496 = vmul.f32 %v1368, %v1368
      %v1497 = vmul.f32 %v1369, %v1369
      %v1498 = vmul.f32 %v1370, %v1370
      %v1499 = vmul.f32 %v1371, %v1371
      %v1500 = vmul.f32 %v1372, %v1372
      %v1501 = vmul.f32 %v1373, %v1373
      %v1502 = vmul.f32 %v1374, %v1374
      %v1503 = vmul.f32 %v1375, %v1375
      %v1504 = vmul.f32 %v1376, %v1376
      %v1505 = vmul.f32 %v1377, %v1377
      %v1506 = vmul.f32 %v1378, %v1378
      %v1507 = vmul.f32 %v1379, %v1379
      %v1508 = vmul.f32 %v1380, %v1380
      %v1509 = vmul.f32 %v1381, %v1381
      %v1510 = vmul.f32 %v1382, %v1382
      %v1511 = vmul.f32 %v1383, %v1383
      %v1512 = vmul.f32 %v1384, %v1384
      %v1513 = vmul.f32 %v1385, %v1385
      %v1514 = vmul.f32 %v1386, %v1386
      %v1515 = vmul.f32 %v1387, %v1387
      %v1516 = vmul.f32 %v1388, %v1388
      %v1517 = vmul.f32 %v1389, %v1389
      %v1518 = vmul.f32 %v1390, %v1390
      %v1519 = vmul.f32 %v1391, %v1391
      %v1520 = vmul.f32 %v1392, %v1392
      %v1521 = vmul.f32 %v1393, %v1393
      %v1522 = vmul.f32 %v1394, %v1394
      %v1523 = vmul.f32 %v1395, %v1395
      %v1524 = vmul.f32 %v1396, %v1396
      %v1525 = vmul.f32 %v1397, %v1397
      %v1526 = vmul.f32 %v1398, %v1398
      %v1527 = vmul.f32 %v1399, %v1399
      %v1528 = vmul.f32 %v1400, %v1400
      %v1529 = vmul.f32 %v1401, %v1401
      %v1530 = vmul.f32 %v1402, %v1402
      %v1531 = vmul.f32 %v1403, %v1403
      %v1532 = vmul.f32 %v1404, %v1404
      %v1533 = vmul.f32 %v1405, %v1405
      %v1534 = vmul.f32 %v1406, %v1406
      %v1535 = vmul.f32 %v1407, %v1407
      %v1536 = vmul.f32 %v1408, %v1408
      %v1537 = vmul.f32 %v1409, %v1409
      %v1538 = vmul.f32 %v1410, %v1410
      %v1539 = vmul.f32 %v1411, %v1411
      %v1540 = vmul.f32 %v1412, %v1412
      %v1541 = vmul.f32 %v1413, %v1413
      %v1542 = vmul.f32 %v1414, %v1414
      %v1543 = vmul.f32 %v1415, %v1415
      %v1544 = vmul.f32 %v1416, %v1416
      %v1545 = vadd.f32 %v1417, %v1418
      %1546 = vadd.xlane.f32.xlu0 %v1545
      %v1547 = vpop.xlane.xlu0 %1546
      %v1548 = vadd.f32 %v1419, %v1420
      %1549 = vadd.xlane.f32.xlu0 %v1548
      %v1550 = vpop.xlane.xlu0 %1549
      %v1551 = vadd.f32 %v1421, %v1422
      %1552 = vadd.xlane.f32.xlu0 %v1551
      %v1553 = vpop.xlane.xlu0 %1552
      %v1554 = vadd.f32 %v1423, %v1424
      %1555 = vadd.xlane.f32.xlu0 %v1554
      %v1556 = vpop.xlane.xlu0 %1555
      %v1557 = vadd.f32 %v1425, %v1426
      %1558 = vadd.xlane.f32.xlu0 %v1557
      %v1559 = vpop.xlane.xlu0 %1558
      %v1560 = vadd.f32 %v1427, %v1428
      %1561 = vadd.xlane.f32.xlu0 %v1560
      %v1562 = vpop.xlane.xlu0 %1561
      %v1563 = vadd.f32 %v1429, %v1430
      %1564 = vadd.xlane.f32.xlu0 %v1563
      %v1565 = vpop.xlane.xlu0 %1564
      %v1566 = vadd.f32 %v1431, %v1432
      %1567 = vadd.xlane.f32.xlu0 %v1566
      %v1568 = vpop.xlane.xlu0 %1567
      %v1569 = vadd.f32 %v1433, %v1434
      %1570 = vadd.xlane.f32.xlu0 %v1569
      %v1571 = vpop.xlane.xlu0 %1570
      %v1572 = vadd.f32 %v1435, %v1436
      %1573 = vadd.xlane.f32.xlu0 %v1572
      %v1574 = vpop.xlane.xlu0 %1573
      %v1575 = vadd.f32 %v1437, %v1438
      %1576 = vadd.xlane.f32.xlu0 %v1575
      %v1577 = vpop.xlane.xlu0 %1576
      %v1578 = vadd.f32 %v1439, %v1440
      %1579 = vadd.xlane.f32.xlu0 %v1578
      %v1580 = vpop.xlane.xlu0 %1579
      %v1581 = vadd.f32 %v1441, %v1442
      %1582 = vadd.xlane.f32.xlu0 %v1581
      %v1583 = vpop.xlane.xlu0 %1582
      %v1584 = vadd.f32 %v1443, %v1444
      %1585 = vadd.xlane.f32.xlu0 %v1584
      %v1586 = vpop.xlane.xlu0 %1585
      %v1587 = vadd.f32 %v1445, %v1446
      %1588 = vadd.xlane.f32.xlu0 %v1587
      %v1589 = vpop.xlane.xlu0 %1588
      %v1590 = vadd.f32 %v1447, %v1448
      %1591 = vadd.xlane.f32.xlu0 %v1590
      %v1592 = vpop.xlane.xlu0 %1591
      %v1593 = vadd.f32 %v1449, %v1450
      %1594 = vadd.xlane.f32.xlu0 %v1593
      %v1595 = vpop.xlane.xlu0 %1594
      %v1596 = vadd.f32 %v1451, %v1452
      %1597 = vadd.xlane.f32.xlu0 %v1596
      %v1598 = vpop.xlane.xlu0 %1597
      %v1599 = vadd.f32 %v1453, %v1454
      %1600 = vadd.xlane.f32.xlu0 %v1599
      %v1601 = vpop.xlane.xlu0 %1600
      %v1602 = vadd.f32 %v1455, %v1456
      %1603 = vadd.xlane.f32.xlu0 %v1602
      %v1604 = vpop.xlane.xlu0 %1603
      %v1605 = vadd.f32 %v1457, %v1458
      %1606 = vadd.xlane.f32.xlu0 %v1605
      %v1607 = vpop.xlane.xlu0 %1606
      %v1608 = vadd.f32 %v1459, %v1460
      %1609 = vadd.xlane.f32.xlu0 %v1608
      %v1610 = vpop.xlane.xlu0 %1609
      %v1611 = vadd.f32 %v1461, %v1462
      %1612 = vadd.xlane.f32.xlu0 %v1611
      %v1613 = vpop.xlane.xlu0 %1612
      %v1614 = vadd.f32 %v1463, %v1464
      %1615 = vadd.xlane.f32.xlu0 %v1614
      %v1616 = vpop.xlane.xlu0 %1615
      %v1617 = vadd.f32 %v1465, %v1466
      %1618 = vadd.xlane.f32.xlu0 %v1617
      %v1619 = vpop.xlane.xlu0 %1618
      %v1620 = vadd.f32 %v1467, %v1468
      %1621 = vadd.xlane.f32.xlu0 %v1620
      %v1622 = vpop.xlane.xlu0 %1621
      %v1623 = vadd.f32 %v1469, %v1470
      %1624 = vadd.xlane.f32.xlu0 %v1623
      %v1625 = vpop.xlane.xlu0 %1624
      %v1626 = vadd.f32 %v1471, %v1472
      %1627 = vadd.xlane.f32.xlu0 %v1626
      %v1628 = vpop.xlane.xlu0 %1627
      %v1629 = vadd.f32 %v1473, %v1474
      %1630 = vadd.xlane.f32.xlu0 %v1629
      %v1631 = vpop.xlane.xlu0 %1630
      %v1632 = vadd.f32 %v1475, %v1476
      %1633 = vadd.xlane.f32.xlu0 %v1632
      %v1634 = vpop.xlane.xlu0 %1633
      %v1635 = vadd.f32 %v1477, %v1478
      %1636 = vadd.xlane.f32.xlu0 %v1635
      %v1637 = vpop.xlane.xlu0 %1636
      %v1638 = vadd.f32 %v1479, %v1480
      %1639 = vadd.xlane.f32.xlu0 %v1638
      %v1640 = vpop.xlane.xlu0 %1639
      %v1641 = vadd.f32 %v1481, %v1482
      %1642 = vadd.xlane.f32.xlu0 %v1641
      %v1643 = vpop.xlane.xlu0 %1642
      %v1644 = vadd.f32 %v1483, %v1484
      %1645 = vadd.xlane.f32.xlu0 %v1644
      %v1646 = vpop.xlane.xlu0 %1645
      %v1647 = vadd.f32 %v1485, %v1486
      %1648 = vadd.xlane.f32.xlu0 %v1647
      %v1649 = vpop.xlane.xlu0 %1648
      %v1650 = vadd.f32 %v1487, %v1488
      %1651 = vadd.xlane.f32.xlu0 %v1650
      %v1652 = vpop.xlane.xlu0 %1651
      %v1653 = vadd.f32 %v1489, %v1490
      %1654 = vadd.xlane.f32.xlu0 %v1653
      %v1655 = vpop.xlane.xlu0 %1654
      %v1656 = vadd.f32 %v1491, %v1492
      %1657 = vadd.xlane.f32.xlu0 %v1656
      %v1658 = vpop.xlane.xlu0 %1657
      %v1659 = vadd.f32 %v1493, %v1494
      %1660 = vadd.xlane.f32.xlu0 %v1659
      %v1661 = vpop.xlane.xlu0 %1660
      %v1662 = vadd.f32 %v1495, %v1496
      %1663 = vadd.xlane.f32.xlu0 %v1662
      %v1664 = vpop.xlane.xlu0 %1663
      %v1665 = vadd.f32 %v1497, %v1498
      %1666 = vadd.xlane.f32.xlu0 %v1665
      %v1667 = vpop.xlane.xlu0 %1666
      %v1668 = vadd.f32 %v1499, %v1500
      %1669 = vadd.xlane.f32.xlu0 %v1668
      %v1670 = vpop.xlane.xlu0 %1669
      %v1671 = vadd.f32 %v1501, %v1502
      %1672 = vadd.xlane.f32.xlu0 %v1671
      %v1673 = vpop.xlane.xlu0 %1672
      %v1674 = vadd.f32 %v1503, %v1504
      %1675 = vadd.xlane.f32.xlu0 %v1674
      %v1676 = vpop.xlane.xlu0 %1675
      %v1677 = vadd.f32 %v1505, %v1506
      %1678 = vadd.xlane.f32.xlu0 %v1677
      %v1679 = vpop.xlane.xlu0 %1678
      %v1680 = vadd.f32 %v1507, %v1508
      %1681 = vadd.xlane.f32.xlu0 %v1680
      %v1682 = vpop.xlane.xlu0 %1681
      %v1683 = vadd.f32 %v1509, %v1510
      %1684 = vadd.xlane.f32.xlu0 %v1683
      %v1685 = vpop.xlane.xlu0 %1684
      %v1686 = vadd.f32 %v1511, %v1512
      %1687 = vadd.xlane.f32.xlu0 %v1686
      %v1688 = vpop.xlane.xlu0 %1687
      %v1689 = vadd.f32 %v1513, %v1514
      %1690 = vadd.xlane.f32.xlu0 %v1689
      %v1691 = vpop.xlane.xlu0 %1690
      %v1692 = vadd.f32 %v1515, %v1516
      %1693 = vadd.xlane.f32.xlu0 %v1692
      %v1694 = vpop.xlane.xlu0 %1693
      %v1695 = vadd.f32 %v1517, %v1518
      %1696 = vadd.xlane.f32.xlu0 %v1695
      %v1697 = vpop.xlane.xlu0 %1696
      %v1698 = vadd.f32 %v1519, %v1520
      %1699 = vadd.xlane.f32.xlu0 %v1698
      %v1700 = vpop.xlane.xlu0 %1699
      %v1701 = vadd.f32 %v1521, %v1522
      %1702 = vadd.xlane.f32.xlu0 %v1701
      %v1703 = vpop.xlane.xlu0 %1702
      %v1704 = vadd.f32 %v1523, %v1524
      %1705 = vadd.xlane.f32.xlu0 %v1704
      %v1706 = vpop.xlane.xlu0 %1705
      %v1707 = vadd.f32 %v1525, %v1526
      %1708 = vadd.xlane.f32.xlu0 %v1707
      %v1709 = vpop.xlane.xlu0 %1708
      %v1710 = vadd.f32 %v1527, %v1528
      %1711 = vadd.xlane.f32.xlu0 %v1710
      %v1712 = vpop.xlane.xlu0 %1711
      %v1713 = vadd.f32 %v1529, %v1530
      %1714 = vadd.xlane.f32.xlu0 %v1713
      %v1715 = vpop.xlane.xlu0 %1714
      %v1716 = vadd.f32 %v1531, %v1532
      %1717 = vadd.xlane.f32.xlu0 %v1716
      %v1718 = vpop.xlane.xlu0 %1717
      %v1719 = vadd.f32 %v1533, %v1534
      %1720 = vadd.xlane.f32.xlu0 %v1719
      %v1721 = vpop.xlane.xlu0 %1720
      %v1722 = vadd.f32 %v1535, %v1536
      %1723 = vadd.xlane.f32.xlu0 %v1722
      %v1724 = vpop.xlane.xlu0 %1723
      %v1725 = vadd.f32 %v1537, %v1538
      %1726 = vadd.xlane.f32.xlu0 %v1725
      %v1727 = vpop.xlane.xlu0 %1726
      %v1728 = vadd.f32 %v1539, %v1540
      %1729 = vadd.xlane.f32.xlu0 %v1728
      %v1730 = vpop.xlane.xlu0 %1729
      %v1731 = vadd.f32 %v1541, %v1542
      %1732 = vadd.xlane.f32.xlu0 %v1731
      %v1733 = vpop.xlane.xlu0 %1732
      %v1734 = vadd.f32 %v1543, %v1544
      %1735 = vadd.xlane.f32.xlu0 %v1734
      %v1736 = vpop.xlane.xlu0 %1735
      %v1737 = vmul.f32 %v1547, %v1224
      %v1738 = vmul.f32 %v1550, %v1224
      %v1739 = vmul.f32 %v1553, %v1224
      %v1740 = vmul.f32 %v1556, %v1224
      %v1741 = vmul.f32 %v1559, %v1224
      %v1742 = vmul.f32 %v1562, %v1224
      %v1743 = vmul.f32 %v1565, %v1224
      %v1744 = vmul.f32 %v1568, %v1224
      %v1745 = vmul.f32 %v1571, %v1224
      %v1746 = vmul.f32 %v1574, %v1224
      %v1747 = vmul.f32 %v1577, %v1224
      %v1748 = vmul.f32 %v1580, %v1224
      %v1749 = vmul.f32 %v1583, %v1224
      %v1750 = vmul.f32 %v1586, %v1224
      %v1751 = vmul.f32 %v1589, %v1224
      %v1752 = vmul.f32 %v1592, %v1224
      %v1753 = vmul.f32 %v1595, %v1224
      %v1754 = vmul.f32 %v1598, %v1224
      %v1755 = vmul.f32 %v1601, %v1224
      %v1756 = vmul.f32 %v1604, %v1224
      %v1757 = vmul.f32 %v1607, %v1224
      %v1758 = vmul.f32 %v1610, %v1224
      %v1759 = vmul.f32 %v1613, %v1224
      %v1760 = vmul.f32 %v1616, %v1224
      %v1761 = vmul.f32 %v1619, %v1224
      %v1762 = vmul.f32 %v1622, %v1224
      %v1763 = vmul.f32 %v1625, %v1224
      %v1764 = vmul.f32 %v1628, %v1224
      %v1765 = vmul.f32 %v1631, %v1224
      %v1766 = vmul.f32 %v1634, %v1224
      %v1767 = vmul.f32 %v1637, %v1224
      %v1768 = vmul.f32 %v1640, %v1224
      %v1769 = vmul.f32 %v1643, %v1224
      %v1770 = vmul.f32 %v1646, %v1224
      %v1771 = vmul.f32 %v1649, %v1224
      %v1772 = vmul.f32 %v1652, %v1224
      %v1773 = vmul.f32 %v1655, %v1224
      %v1774 = vmul.f32 %v1658, %v1224
      %v1775 = vmul.f32 %v1661, %v1224
      %v1776 = vmul.f32 %v1664, %v1224
      %v1777 = vmul.f32 %v1667, %v1224
      %v1778 = vmul.f32 %v1670, %v1224
      %v1779 = vmul.f32 %v1673, %v1224
      %v1780 = vmul.f32 %v1676, %v1224
      %v1781 = vmul.f32 %v1679, %v1224
      %v1782 = vmul.f32 %v1682, %v1224
      %v1783 = vmul.f32 %v1685, %v1224
      %v1784 = vmul.f32 %v1688, %v1224
      %v1785 = vmul.f32 %v1691, %v1224
      %v1786 = vmul.f32 %v1694, %v1224
      %v1787 = vmul.f32 %v1697, %v1224
      %v1788 = vmul.f32 %v1700, %v1224
      %v1789 = vmul.f32 %v1703, %v1224
      %v1790 = vmul.f32 %v1706, %v1224
      %v1791 = vmul.f32 %v1709, %v1224
      %v1792 = vmul.f32 %v1712, %v1224
      %v1793 = vmul.f32 %v1715, %v1224
      %v1794 = vmul.f32 %v1718, %v1224
      %v1795 = vmul.f32 %v1721, %v1224
      %v1796 = vmul.f32 %v1724, %v1224
      %v1797 = vmul.f32 %v1727, %v1224
      %v1798 = vmul.f32 %v1730, %v1224
      %v1799 = vmul.f32 %v1733, %v1224
      %v1800 = vmul.f32 %v1736, %v1224
      %v1801 = vadd.f32 %v1737, 1e-05
      %v1802 = vadd.f32 %v1738, 1e-05
      %v1803 = vadd.f32 %v1739, 1e-05
      %v1804 = vadd.f32 %v1740, 1e-05
      %v1805 = vadd.f32 %v1741, 1e-05
      %v1806 = vadd.f32 %v1742, 1e-05
      %v1807 = vadd.f32 %v1743, 1e-05
      %v1808 = vadd.f32 %v1744, 1e-05
      %v1809 = vadd.f32 %v1745, 1e-05
      %v1810 = vadd.f32 %v1746, 1e-05
      %v1811 = vadd.f32 %v1747, 1e-05
      %v1812 = vadd.f32 %v1748, 1e-05
      %v1813 = vadd.f32 %v1749, 1e-05
      %v1814 = vadd.f32 %v1750, 1e-05
      %v1815 = vadd.f32 %v1751, 1e-05
      %v1816 = vadd.f32 %v1752, 1e-05
      %v1817 = vadd.f32 %v1753, 1e-05
      %v1818 = vadd.f32 %v1754, 1e-05
      %v1819 = vadd.f32 %v1755, 1e-05
      %v1820 = vadd.f32 %v1756, 1e-05
      %v1821 = vadd.f32 %v1757, 1e-05
      %v1822 = vadd.f32 %v1758, 1e-05
      %v1823 = vadd.f32 %v1759, 1e-05
      %v1824 = vadd.f32 %v1760, 1e-05
      %v1825 = vadd.f32 %v1761, 1e-05
      %v1826 = vadd.f32 %v1762, 1e-05
      %v1827 = vadd.f32 %v1763, 1e-05
      %v1828 = vadd.f32 %v1764, 1e-05
      %v1829 = vadd.f32 %v1765, 1e-05
      %v1830 = vadd.f32 %v1766, 1e-05
      %v1831 = vadd.f32 %v1767, 1e-05
      %v1832 = vadd.f32 %v1768, 1e-05
      %v1833 = vadd.f32 %v1769, 1e-05
      %v1834 = vadd.f32 %v1770, 1e-05
      %v1835 = vadd.f32 %v1771, 1e-05
      %v1836 = vadd.f32 %v1772, 1e-05
      %v1837 = vadd.f32 %v1773, 1e-05
      %v1838 = vadd.f32 %v1774, 1e-05
      %v1839 = vadd.f32 %v1775, 1e-05
      %v1840 = vadd.f32 %v1776, 1e-05
      %v1841 = vadd.f32 %v1777, 1e-05
      %v1842 = vadd.f32 %v1778, 1e-05
      %v1843 = vadd.f32 %v1779, 1e-05
      %v1844 = vadd.f32 %v1780, 1e-05
      %v1845 = vadd.f32 %v1781, 1e-05
      %v1846 = vadd.f32 %v1782, 1e-05
      %v1847 = vadd.f32 %v1783, 1e-05
      %v1848 = vadd.f32 %v1784, 1e-05
      %v1849 = vadd.f32 %v1785, 1e-05
      %v1850 = vadd.f32 %v1786, 1e-05
      %v1851 = vadd.f32 %v1787, 1e-05
      %v1852 = vadd.f32 %v1788, 1e-05
      %v1853 = vadd.f32 %v1789, 1e-05
      %v1854 = vadd.f32 %v1790, 1e-05
      %v1855 = vadd.f32 %v1791, 1e-05
      %v1856 = vadd.f32 %v1792, 1e-05
      %v1857 = vadd.f32 %v1793, 1e-05
      %v1858 = vadd.f32 %v1794, 1e-05
      %v1859 = vadd.f32 %v1795, 1e-05
      %v1860 = vadd.f32 %v1796, 1e-05
      %v1861 = vadd.f32 %v1797, 1e-05
      %v1862 = vadd.f32 %v1798, 1e-05
      %v1863 = vadd.f32 %v1799, 1e-05
      %v1864 = vadd.f32 %v1800, 1e-05
      %v1865 = vrsqrt.pop %v1801
      %v1866 = vmul.f32 %v1865, %v1801
      %v1867 = vmul.f32 %v1866, %v1865
      %v1868 = vmul.f32 0.5, %v1867
      %v1869 = vsub.f32 1.5, %v1868
      %v1870 = vmul.f32 %v1865, %v1869
      %vm1871 = vweird.f32 %v1801
      %vm1872 = vweird.f32 %v1865
      %vm1873 = vmor %vm1871, %vm1872
      %v1874 = vsel %vm1873, %v1865, %v1870
      %v1875 = vrsqrt.pop %v1802
      %v1876 = vmul.f32 %v1875, %v1802
      %v1877 = vmul.f32 %v1876, %v1875
      %v1878 = vmul.f32 0.5, %v1877
      %v1879 = vsub.f32 1.5, %v1878
      %v1880 = vmul.f32 %v1875, %v1879
      %vm1881 = vweird.f32 %v1802
      %vm1882 = vweird.f32 %v1875
      %vm1883 = vmor %vm1881, %vm1882
      %v1884 = vsel %vm1883, %v1875, %v1880
      %v1885 = vrsqrt.pop %v1803
      %v1886 = vmul.f32 %v1885, %v1803
      %v1887 = vmul.f32 %v1886, %v1885
      %v1888 = vmul.f32 0.5, %v1887
      %v1889 = vsub.f32 1.5, %v1888
      %v1890 = vmul.f32 %v1885, %v1889
      %vm1891 = vweird.f32 %v1803
      %vm1892 = vweird.f32 %v1885
      %vm1893 = vmor %vm1891, %vm1892
      %v1894 = vsel %vm1893, %v1885, %v1890
      %v1895 = vrsqrt.pop %v1804
      %v1896 = vmul.f32 %v1895, %v1804
      %v1897 = vmul.f32 %v1896, %v1895
      %v1898 = vmul.f32 0.5, %v1897
      %v1899 = vsub.f32 1.5, %v1898
      %v1900 = vmul.f32 %v1895, %v1899
      %vm1901 = vweird.f32 %v1804
      %vm1902 = vweird.f32 %v1895
      %vm1903 = vmor %vm1901, %vm1902
      %v1904 = vsel %vm1903, %v1895, %v1900
      %v1905 = vrsqrt.pop %v1805
      %v1906 = vmul.f32 %v1905, %v1805
      %v1907 = vmul.f32 %v1906, %v1905
      %v1908 = vmul.f32 0.5, %v1907
      %v1909 = vsub.f32 1.5, %v1908
      %v1910 = vmul.f32 %v1905, %v1909
      %vm1911 = vweird.f32 %v1805
      %vm1912 = vweird.f32 %v1905
      %vm1913 = vmor %vm1911, %vm1912
      %v1914 = vsel %vm1913, %v1905, %v1910
      %v1915 = vrsqrt.pop %v1806
      %v1916 = vmul.f32 %v1915, %v1806
      %v1917 = vmul.f32 %v1916, %v1915
      %v1918 = vmul.f32 0.5, %v1917
      %v1919 = vsub.f32 1.5, %v1918
      %v1920 = vmul.f32 %v1915, %v1919
      %vm1921 = vweird.f32 %v1806
      %vm1922 = vweird.f32 %v1915
      %vm1923 = vmor %vm1921, %vm1922
      %v1924 = vsel %vm1923, %v1915, %v1920
      %v1925 = vrsqrt.pop %v1807
      %v1926 = vmul.f32 %v1925, %v1807
      %v1927 = vmul.f32 %v1926, %v1925
      %v1928 = vmul.f32 0.5, %v1927
      %v1929 = vsub.f32 1.5, %v1928
      %v1930 = vmul.f32 %v1925, %v1929
      %vm1931 = vweird.f32 %v1807
      %vm1932 = vweird.f32 %v1925
      %vm1933 = vmor %vm1931, %vm1932
      %v1934 = vsel %vm1933, %v1925, %v1930
      %v1935 = vrsqrt.pop %v1808
      %v1936 = vmul.f32 %v1935, %v1808
      %v1937 = vmul.f32 %v1936, %v1935
      %v1938 = vmul.f32 0.5, %v1937
      %v1939 = vsub.f32 1.5, %v1938
      %v1940 = vmul.f32 %v1935, %v1939
      %vm1941 = vweird.f32 %v1808
      %vm1942 = vweird.f32 %v1935
      %vm1943 = vmor %vm1941, %vm1942
      %v1944 = vsel %vm1943, %v1935, %v1940
      %v1945 = vrsqrt.pop %v1809
      %v1946 = vmul.f32 %v1945, %v1809
      %v1947 = vmul.f32 %v1946, %v1945
      %v1948 = vmul.f32 0.5, %v1947
      %v1949 = vsub.f32 1.5, %v1948
      %v1950 = vmul.f32 %v1945, %v1949
      %vm1951 = vweird.f32 %v1809
      %vm1952 = vweird.f32 %v1945
      %vm1953 = vmor %vm1951, %vm1952
      %v1954 = vsel %vm1953, %v1945, %v1950
      %v1955 = vrsqrt.pop %v1810
      %v1956 = vmul.f32 %v1955, %v1810
      %v1957 = vmul.f32 %v1956, %v1955
      %v1958 = vmul.f32 0.5, %v1957
      %v1959 = vsub.f32 1.5, %v1958
      %v1960 = vmul.f32 %v1955, %v1959
      %vm1961 = vweird.f32 %v1810
      %vm1962 = vweird.f32 %v1955
      %vm1963 = vmor %vm1961, %vm1962
      %v1964 = vsel %vm1963, %v1955, %v1960
      %v1965 = vrsqrt.pop %v1811
      %v1966 = vmul.f32 %v1965, %v1811
      %v1967 = vmul.f32 %v1966, %v1965
      %v1968 = vmul.f32 0.5, %v1967
      %v1969 = vsub.f32 1.5, %v1968
      %v1970 = vmul.f32 %v1965, %v1969
      %vm1971 = vweird.f32 %v1811
      %vm1972 = vweird.f32 %v1965
      %vm1973 = vmor %vm1971, %vm1972
      %v1974 = vsel %vm1973, %v1965, %v1970
      %v1975 = vrsqrt.pop %v1812
      %v1976 = vmul.f32 %v1975, %v1812
      %v1977 = vmul.f32 %v1976, %v1975
      %v1978 = vmul.f32 0.5, %v1977
      %v1979 = vsub.f32 1.5, %v1978
      %v1980 = vmul.f32 %v1975, %v1979
      %vm1981 = vweird.f32 %v1812
      %vm1982 = vweird.f32 %v1975
      %vm1983 = vmor %vm1981, %vm1982
      %v1984 = vsel %vm1983, %v1975, %v1980
      %v1985 = vrsqrt.pop %v1813
      %v1986 = vmul.f32 %v1985, %v1813
      %v1987 = vmul.f32 %v1986, %v1985
      %v1988 = vmul.f32 0.5, %v1987
      %v1989 = vsub.f32 1.5, %v1988
      %v1990 = vmul.f32 %v1985, %v1989
      %vm1991 = vweird.f32 %v1813
      %vm1992 = vweird.f32 %v1985
      %vm1993 = vmor %vm1991, %vm1992
      %v1994 = vsel %vm1993, %v1985, %v1990
      %v1995 = vrsqrt.pop %v1814
      %v1996 = vmul.f32 %v1995, %v1814
      %v1997 = vmul.f32 %v1996, %v1995
      %v1998 = vmul.f32 0.5, %v1997
      %v1999 = vsub.f32 1.5, %v1998
      %v2000 = vmul.f32 %v1995, %v1999
      %vm2001 = vweird.f32 %v1814
      %vm2002 = vweird.f32 %v1995
      %vm2003 = vmor %vm2001, %vm2002
      %v2004 = vsel %vm2003, %v1995, %v2000
      %v2005 = vrsqrt.pop %v1815
      %v2006 = vmul.f32 %v2005, %v1815
      %v2007 = vmul.f32 %v2006, %v2005
      %v2008 = vmul.f32 0.5, %v2007
      %v2009 = vsub.f32 1.5, %v2008
      %v2010 = vmul.f32 %v2005, %v2009
      %vm2011 = vweird.f32 %v1815
      %vm2012 = vweird.f32 %v2005
      %vm2013 = vmor %vm2011, %vm2012
      %v2014 = vsel %vm2013, %v2005, %v2010
      %v2015 = vrsqrt.pop %v1816
      %v2016 = vmul.f32 %v2015, %v1816
      %v2017 = vmul.f32 %v2016, %v2015
      %v2018 = vmul.f32 0.5, %v2017
      %v2019 = vsub.f32 1.5, %v2018
      %v2020 = vmul.f32 %v2015, %v2019
      %vm2021 = vweird.f32 %v1816
      %vm2022 = vweird.f32 %v2015
      %vm2023 = vmor %vm2021, %vm2022
      %v2024 = vsel %vm2023, %v2015, %v2020
      %v2025 = vrsqrt.pop %v1817
      %v2026 = vmul.f32 %v2025, %v1817
      %v2027 = vmul.f32 %v2026, %v2025
      %v2028 = vmul.f32 0.5, %v2027
      %v2029 = vsub.f32 1.5, %v2028
      %v2030 = vmul.f32 %v2025, %v2029
      %vm2031 = vweird.f32 %v1817
      %vm2032 = vweird.f32 %v2025
      %vm2033 = vmor %vm2031, %vm2032
      %v2034 = vsel %vm2033, %v2025, %v2030
      %v2035 = vrsqrt.pop %v1818
      %v2036 = vmul.f32 %v2035, %v1818
      %v2037 = vmul.f32 %v2036, %v2035
      %v2038 = vmul.f32 0.5, %v2037
      %v2039 = vsub.f32 1.5, %v2038
      %v2040 = vmul.f32 %v2035, %v2039
      %vm2041 = vweird.f32 %v1818
      %vm2042 = vweird.f32 %v2035
      %vm2043 = vmor %vm2041, %vm2042
      %v2044 = vsel %vm2043, %v2035, %v2040
      %v2045 = vrsqrt.pop %v1819
      %v2046 = vmul.f32 %v2045, %v1819
      %v2047 = vmul.f32 %v2046, %v2045
      %v2048 = vmul.f32 0.5, %v2047
      %v2049 = vsub.f32 1.5, %v2048
      %v2050 = vmul.f32 %v2045, %v2049
      %vm2051 = vweird.f32 %v1819
      %vm2052 = vweird.f32 %v2045
      %vm2053 = vmor %vm2051, %vm2052
      %v2054 = vsel %vm2053, %v2045, %v2050
      %v2055 = vrsqrt.pop %v1820
      %v2056 = vmul.f32 %v2055, %v1820
      %v2057 = vmul.f32 %v2056, %v2055
      %v2058 = vmul.f32 0.5, %v2057
      %v2059 = vsub.f32 1.5, %v2058
      %v2060 = vmul.f32 %v2055, %v2059
      %vm2061 = vweird.f32 %v1820
      %vm2062 = vweird.f32 %v2055
      %vm2063 = vmor %vm2061, %vm2062
      %v2064 = vsel %vm2063, %v2055, %v2060
      %v2065 = vrsqrt.pop %v1821
      %v2066 = vmul.f32 %v2065, %v1821
      %v2067 = vmul.f32 %v2066, %v2065
      %v2068 = vmul.f32 0.5, %v2067
      %v2069 = vsub.f32 1.5, %v2068
      %v2070 = vmul.f32 %v2065, %v2069
      %vm2071 = vweird.f32 %v1821
      %vm2072 = vweird.f32 %v2065
      %vm2073 = vmor %vm2071, %vm2072
      %v2074 = vsel %vm2073, %v2065, %v2070
      %v2075 = vrsqrt.pop %v1822
      %v2076 = vmul.f32 %v2075, %v1822
      %v2077 = vmul.f32 %v2076, %v2075
      %v2078 = vmul.f32 0.5, %v2077
      %v2079 = vsub.f32 1.5, %v2078
      %v2080 = vmul.f32 %v2075, %v2079
      %vm2081 = vweird.f32 %v1822
      %vm2082 = vweird.f32 %v2075
      %vm2083 = vmor %vm2081, %vm2082
      %v2084 = vsel %vm2083, %v2075, %v2080
      %v2085 = vrsqrt.pop %v1823
      %v2086 = vmul.f32 %v2085, %v1823
      %v2087 = vmul.f32 %v2086, %v2085
      %v2088 = vmul.f32 0.5, %v2087
      %v2089 = vsub.f32 1.5, %v2088
      %v2090 = vmul.f32 %v2085, %v2089
      %vm2091 = vweird.f32 %v1823
      %vm2092 = vweird.f32 %v2085
      %vm2093 = vmor %vm2091, %vm2092
      %v2094 = vsel %vm2093, %v2085, %v2090
      %v2095 = vrsqrt.pop %v1824
      %v2096 = vmul.f32 %v2095, %v1824
      %v2097 = vmul.f32 %v2096, %v2095
      %v2098 = vmul.f32 0.5, %v2097
      %v2099 = vsub.f32 1.5, %v2098
      %v2100 = vmul.f32 %v2095, %v2099
      %vm2101 = vweird.f32 %v1824
      %vm2102 = vweird.f32 %v2095
      %vm2103 = vmor %vm2101, %vm2102
      %v2104 = vsel %vm2103, %v2095, %v2100
      %v2105 = vrsqrt.pop %v1825
      %v2106 = vmul.f32 %v2105, %v1825
      %v2107 = vmul.f32 %v2106, %v2105
      %v2108 = vmul.f32 0.5, %v2107
      %v2109 = vsub.f32 1.5, %v2108
      %v2110 = vmul.f32 %v2105, %v2109
      %vm2111 = vweird.f32 %v1825
      %vm2112 = vweird.f32 %v2105
      %vm2113 = vmor %vm2111, %vm2112
      %v2114 = vsel %vm2113, %v2105, %v2110
      %v2115 = vrsqrt.pop %v1826
      %v2116 = vmul.f32 %v2115, %v1826
      %v2117 = vmul.f32 %v2116, %v2115
      %v2118 = vmul.f32 0.5, %v2117
      %v2119 = vsub.f32 1.5, %v2118
      %v2120 = vmul.f32 %v2115, %v2119
      %vm2121 = vweird.f32 %v1826
      %vm2122 = vweird.f32 %v2115
      %vm2123 = vmor %vm2121, %vm2122
      %v2124 = vsel %vm2123, %v2115, %v2120
      %v2125 = vrsqrt.pop %v1827
      %v2126 = vmul.f32 %v2125, %v1827
      %v2127 = vmul.f32 %v2126, %v2125
      %v2128 = vmul.f32 0.5, %v2127
      %v2129 = vsub.f32 1.5, %v2128
      %v2130 = vmul.f32 %v2125, %v2129
      %vm2131 = vweird.f32 %v1827
      %vm2132 = vweird.f32 %v2125
      %vm2133 = vmor %vm2131, %vm2132
      %v2134 = vsel %vm2133, %v2125, %v2130
      %v2135 = vrsqrt.pop %v1828
      %v2136 = vmul.f32 %v2135, %v1828
      %v2137 = vmul.f32 %v2136, %v2135
      %v2138 = vmul.f32 0.5, %v2137
      %v2139 = vsub.f32 1.5, %v2138
      %v2140 = vmul.f32 %v2135, %v2139
      %vm2141 = vweird.f32 %v1828
      %vm2142 = vweird.f32 %v2135
      %vm2143 = vmor %vm2141, %vm2142
      %v2144 = vsel %vm2143, %v2135, %v2140
      %v2145 = vrsqrt.pop %v1829
      %v2146 = vmul.f32 %v2145, %v1829
      %v2147 = vmul.f32 %v2146, %v2145
      %v2148 = vmul.f32 0.5, %v2147
      %v2149 = vsub.f32 1.5, %v2148
      %v2150 = vmul.f32 %v2145, %v2149
      %vm2151 = vweird.f32 %v1829
      %vm2152 = vweird.f32 %v2145
      %vm2153 = vmor %vm2151, %vm2152
      %v2154 = vsel %vm2153, %v2145, %v2150
      %v2155 = vrsqrt.pop %v1830
      %v2156 = vmul.f32 %v2155, %v1830
      %v2157 = vmul.f32 %v2156, %v2155
      %v2158 = vmul.f32 0.5, %v2157
      %v2159 = vsub.f32 1.5, %v2158
      %v2160 = vmul.f32 %v2155, %v2159
      %vm2161 = vweird.f32 %v1830
      %vm2162 = vweird.f32 %v2155
      %vm2163 = vmor %vm2161, %vm2162
      %v2164 = vsel %vm2163, %v2155, %v2160
      %v2165 = vrsqrt.pop %v1831
      %v2166 = vmul.f32 %v2165, %v1831
      %v2167 = vmul.f32 %v2166, %v2165
      %v2168 = vmul.f32 0.5, %v2167
      %v2169 = vsub.f32 1.5, %v2168
      %v2170 = vmul.f32 %v2165, %v2169
      %vm2171 = vweird.f32 %v1831
      %vm2172 = vweird.f32 %v2165
      %vm2173 = vmor %vm2171, %vm2172
      %v2174 = vsel %vm2173, %v2165, %v2170
      %v2175 = vrsqrt.pop %v1832
      %v2176 = vmul.f32 %v2175, %v1832
      %v2177 = vmul.f32 %v2176, %v2175
      %v2178 = vmul.f32 0.5, %v2177
      %v2179 = vsub.f32 1.5, %v2178
      %v2180 = vmul.f32 %v2175, %v2179
      %vm2181 = vweird.f32 %v1832
      %vm2182 = vweird.f32 %v2175
      %vm2183 = vmor %vm2181, %vm2182
      %v2184 = vsel %vm2183, %v2175, %v2180
      %v2185 = vrsqrt.pop %v1833
      %v2186 = vmul.f32 %v2185, %v1833
      %v2187 = vmul.f32 %v2186, %v2185
      %v2188 = vmul.f32 0.5, %v2187
      %v2189 = vsub.f32 1.5, %v2188
      %v2190 = vmul.f32 %v2185, %v2189
      %vm2191 = vweird.f32 %v1833
      %vm2192 = vweird.f32 %v2185
      %vm2193 = vmor %vm2191, %vm2192
      %v2194 = vsel %vm2193, %v2185, %v2190
      %v2195 = vrsqrt.pop %v1834
      %v2196 = vmul.f32 %v2195, %v1834
      %v2197 = vmul.f32 %v2196, %v2195
      %v2198 = vmul.f32 0.5, %v2197
      %v2199 = vsub.f32 1.5, %v2198
      %v2200 = vmul.f32 %v2195, %v2199
      %vm2201 = vweird.f32 %v1834
      %vm2202 = vweird.f32 %v2195
      %vm2203 = vmor %vm2201, %vm2202
      %v2204 = vsel %vm2203, %v2195, %v2200
      %v2205 = vrsqrt.pop %v1835
      %v2206 = vmul.f32 %v2205, %v1835
      %v2207 = vmul.f32 %v2206, %v2205
      %v2208 = vmul.f32 0.5, %v2207
      %v2209 = vsub.f32 1.5, %v2208
      %v2210 = vmul.f32 %v2205, %v2209
      %vm2211 = vweird.f32 %v1835
      %vm2212 = vweird.f32 %v2205
      %vm2213 = vmor %vm2211, %vm2212
      %v2214 = vsel %vm2213, %v2205, %v2210
      %v2215 = vrsqrt.pop %v1836
      %v2216 = vmul.f32 %v2215, %v1836
      %v2217 = vmul.f32 %v2216, %v2215
      %v2218 = vmul.f32 0.5, %v2217
      %v2219 = vsub.f32 1.5, %v2218
      %v2220 = vmul.f32 %v2215, %v2219
      %vm2221 = vweird.f32 %v1836
      %vm2222 = vweird.f32 %v2215
      %vm2223 = vmor %vm2221, %vm2222
      %v2224 = vsel %vm2223, %v2215, %v2220
      %v2225 = vrsqrt.pop %v1837
      %v2226 = vmul.f32 %v2225, %v1837
      %v2227 = vmul.f32 %v2226, %v2225
      %v2228 = vmul.f32 0.5, %v2227
      %v2229 = vsub.f32 1.5, %v2228
      %v2230 = vmul.f32 %v2225, %v2229
      %vm2231 = vweird.f32 %v1837
      %vm2232 = vweird.f32 %v2225
      %vm2233 = vmor %vm2231, %vm2232
      %v2234 = vsel %vm2233, %v2225, %v2230
      %v2235 = vrsqrt.pop %v1838
      %v2236 = vmul.f32 %v2235, %v1838
      %v2237 = vmul.f32 %v2236, %v2235
      %v2238 = vmul.f32 0.5, %v2237
      %v2239 = vsub.f32 1.5, %v2238
      %v2240 = vmul.f32 %v2235, %v2239
      %vm2241 = vweird.f32 %v1838
      %vm2242 = vweird.f32 %v2235
      %vm2243 = vmor %vm2241, %vm2242
      %v2244 = vsel %vm2243, %v2235, %v2240
      %v2245 = vrsqrt.pop %v1839
      %v2246 = vmul.f32 %v2245, %v1839
      %v2247 = vmul.f32 %v2246, %v2245
      %v2248 = vmul.f32 0.5, %v2247
      %v2249 = vsub.f32 1.5, %v2248
      %v2250 = vmul.f32 %v2245, %v2249
      %vm2251 = vweird.f32 %v1839
      %vm2252 = vweird.f32 %v2245
      %vm2253 = vmor %vm2251, %vm2252
      %v2254 = vsel %vm2253, %v2245, %v2250
      %v2255 = vrsqrt.pop %v1840
      %v2256 = vmul.f32 %v2255, %v1840
      %v2257 = vmul.f32 %v2256, %v2255
      %v2258 = vmul.f32 0.5, %v2257
      %v2259 = vsub.f32 1.5, %v2258
      %v2260 = vmul.f32 %v2255, %v2259
      %vm2261 = vweird.f32 %v1840
      %vm2262 = vweird.f32 %v2255
      %vm2263 = vmor %vm2261, %vm2262
      %v2264 = vsel %vm2263, %v2255, %v2260
      %v2265 = vrsqrt.pop %v1841
      %v2266 = vmul.f32 %v2265, %v1841
      %v2267 = vmul.f32 %v2266, %v2265
      %v2268 = vmul.f32 0.5, %v2267
      %v2269 = vsub.f32 1.5, %v2268
      %v2270 = vmul.f32 %v2265, %v2269
      %vm2271 = vweird.f32 %v1841
      %vm2272 = vweird.f32 %v2265
      %vm2273 = vmor %vm2271, %vm2272
      %v2274 = vsel %vm2273, %v2265, %v2270
      %v2275 = vrsqrt.pop %v1842
      %v2276 = vmul.f32 %v2275, %v1842
      %v2277 = vmul.f32 %v2276, %v2275
      %v2278 = vmul.f32 0.5, %v2277
      %v2279 = vsub.f32 1.5, %v2278
      %v2280 = vmul.f32 %v2275, %v2279
      %vm2281 = vweird.f32 %v1842
      %vm2282 = vweird.f32 %v2275
      %vm2283 = vmor %vm2281, %vm2282
      %v2284 = vsel %vm2283, %v2275, %v2280
      %v2285 = vrsqrt.pop %v1843
      %v2286 = vmul.f32 %v2285, %v1843
      %v2287 = vmul.f32 %v2286, %v2285
      %v2288 = vmul.f32 0.5, %v2287
      %v2289 = vsub.f32 1.5, %v2288
      %v2290 = vmul.f32 %v2285, %v2289
      %vm2291 = vweird.f32 %v1843
      %vm2292 = vweird.f32 %v2285
      %vm2293 = vmor %vm2291, %vm2292
      %v2294 = vsel %vm2293, %v2285, %v2290
      %v2295 = vrsqrt.pop %v1844
      %v2296 = vmul.f32 %v2295, %v1844
      %v2297 = vmul.f32 %v2296, %v2295
      %v2298 = vmul.f32 0.5, %v2297
      %v2299 = vsub.f32 1.5, %v2298
      %v2300 = vmul.f32 %v2295, %v2299
      %vm2301 = vweird.f32 %v1844
      %vm2302 = vweird.f32 %v2295
      %vm2303 = vmor %vm2301, %vm2302
      %v2304 = vsel %vm2303, %v2295, %v2300
      %v2305 = vrsqrt.pop %v1845
      %v2306 = vmul.f32 %v2305, %v1845
      %v2307 = vmul.f32 %v2306, %v2305
      %v2308 = vmul.f32 0.5, %v2307
      %v2309 = vsub.f32 1.5, %v2308
      %v2310 = vmul.f32 %v2305, %v2309
      %vm2311 = vweird.f32 %v1845
      %vm2312 = vweird.f32 %v2305
      %vm2313 = vmor %vm2311, %vm2312
      %v2314 = vsel %vm2313, %v2305, %v2310
      %v2315 = vrsqrt.pop %v1846
      %v2316 = vmul.f32 %v2315, %v1846
      %v2317 = vmul.f32 %v2316, %v2315
      %v2318 = vmul.f32 0.5, %v2317
      %v2319 = vsub.f32 1.5, %v2318
      %v2320 = vmul.f32 %v2315, %v2319
      %vm2321 = vweird.f32 %v1846
      %vm2322 = vweird.f32 %v2315
      %vm2323 = vmor %vm2321, %vm2322
      %v2324 = vsel %vm2323, %v2315, %v2320
      %v2325 = vrsqrt.pop %v1847
      %v2326 = vmul.f32 %v2325, %v1847
      %v2327 = vmul.f32 %v2326, %v2325
      %v2328 = vmul.f32 0.5, %v2327
      %v2329 = vsub.f32 1.5, %v2328
      %v2330 = vmul.f32 %v2325, %v2329
      %vm2331 = vweird.f32 %v1847
      %vm2332 = vweird.f32 %v2325
      %vm2333 = vmor %vm2331, %vm2332
      %v2334 = vsel %vm2333, %v2325, %v2330
      %v2335 = vrsqrt.pop %v1848
      %v2336 = vmul.f32 %v2335, %v1848
      %v2337 = vmul.f32 %v2336, %v2335
      %v2338 = vmul.f32 0.5, %v2337
      %v2339 = vsub.f32 1.5, %v2338
      %v2340 = vmul.f32 %v2335, %v2339
      %vm2341 = vweird.f32 %v1848
      %vm2342 = vweird.f32 %v2335
      %vm2343 = vmor %vm2341, %vm2342
      %v2344 = vsel %vm2343, %v2335, %v2340
      %v2345 = vrsqrt.pop %v1849
      %v2346 = vmul.f32 %v2345, %v1849
      %v2347 = vmul.f32 %v2346, %v2345
      %v2348 = vmul.f32 0.5, %v2347
      %v2349 = vsub.f32 1.5, %v2348
      %v2350 = vmul.f32 %v2345, %v2349
      %vm2351 = vweird.f32 %v1849
      %vm2352 = vweird.f32 %v2345
      %vm2353 = vmor %vm2351, %vm2352
      %v2354 = vsel %vm2353, %v2345, %v2350
      %v2355 = vrsqrt.pop %v1850
      %v2356 = vmul.f32 %v2355, %v1850
      %v2357 = vmul.f32 %v2356, %v2355
      %v2358 = vmul.f32 0.5, %v2357
      %v2359 = vsub.f32 1.5, %v2358
      %v2360 = vmul.f32 %v2355, %v2359
      %vm2361 = vweird.f32 %v1850
      %vm2362 = vweird.f32 %v2355
      %vm2363 = vmor %vm2361, %vm2362
      %v2364 = vsel %vm2363, %v2355, %v2360
      %v2365 = vrsqrt.pop %v1851
      %v2366 = vmul.f32 %v2365, %v1851
      %v2367 = vmul.f32 %v2366, %v2365
      %v2368 = vmul.f32 0.5, %v2367
      %v2369 = vsub.f32 1.5, %v2368
      %v2370 = vmul.f32 %v2365, %v2369
      %vm2371 = vweird.f32 %v1851
      %vm2372 = vweird.f32 %v2365
      %vm2373 = vmor %vm2371, %vm2372
      %v2374 = vsel %vm2373, %v2365, %v2370
      %v2375 = vrsqrt.pop %v1852
      %v2376 = vmul.f32 %v2375, %v1852
      %v2377 = vmul.f32 %v2376, %v2375
      %v2378 = vmul.f32 0.5, %v2377
      %v2379 = vsub.f32 1.5, %v2378
      %v2380 = vmul.f32 %v2375, %v2379
      %vm2381 = vweird.f32 %v1852
      %vm2382 = vweird.f32 %v2375
      %vm2383 = vmor %vm2381, %vm2382
      %v2384 = vsel %vm2383, %v2375, %v2380
      %v2385 = vrsqrt.pop %v1853
      %v2386 = vmul.f32 %v2385, %v1853
      %v2387 = vmul.f32 %v2386, %v2385
      %v2388 = vmul.f32 0.5, %v2387
      %v2389 = vsub.f32 1.5, %v2388
      %v2390 = vmul.f32 %v2385, %v2389
      %vm2391 = vweird.f32 %v1853
      %vm2392 = vweird.f32 %v2385
      %vm2393 = vmor %vm2391, %vm2392
      %v2394 = vsel %vm2393, %v2385, %v2390
      %v2395 = vrsqrt.pop %v1854
      %v2396 = vmul.f32 %v2395, %v1854
      %v2397 = vmul.f32 %v2396, %v2395
      %v2398 = vmul.f32 0.5, %v2397
      %v2399 = vsub.f32 1.5, %v2398
      %v2400 = vmul.f32 %v2395, %v2399
      %vm2401 = vweird.f32 %v1854
      %vm2402 = vweird.f32 %v2395
      %vm2403 = vmor %vm2401, %vm2402
      %v2404 = vsel %vm2403, %v2395, %v2400
      %v2405 = vrsqrt.pop %v1855
      %v2406 = vmul.f32 %v2405, %v1855
      %v2407 = vmul.f32 %v2406, %v2405
      %v2408 = vmul.f32 0.5, %v2407
      %v2409 = vsub.f32 1.5, %v2408
      %v2410 = vmul.f32 %v2405, %v2409
      %vm2411 = vweird.f32 %v1855
      %vm2412 = vweird.f32 %v2405
      %vm2413 = vmor %vm2411, %vm2412
      %v2414 = vsel %vm2413, %v2405, %v2410
      %v2415 = vrsqrt.pop %v1856
      %v2416 = vmul.f32 %v2415, %v1856
      %v2417 = vmul.f32 %v2416, %v2415
      %v2418 = vmul.f32 0.5, %v2417
      %v2419 = vsub.f32 1.5, %v2418
      %v2420 = vmul.f32 %v2415, %v2419
      %vm2421 = vweird.f32 %v1856
      %vm2422 = vweird.f32 %v2415
      %vm2423 = vmor %vm2421, %vm2422
      %v2424 = vsel %vm2423, %v2415, %v2420
      %v2425 = vrsqrt.pop %v1857
      %v2426 = vmul.f32 %v2425, %v1857
      %v2427 = vmul.f32 %v2426, %v2425
      %v2428 = vmul.f32 0.5, %v2427
      %v2429 = vsub.f32 1.5, %v2428
      %v2430 = vmul.f32 %v2425, %v2429
      %vm2431 = vweird.f32 %v1857
      %vm2432 = vweird.f32 %v2425
      %vm2433 = vmor %vm2431, %vm2432
      %v2434 = vsel %vm2433, %v2425, %v2430
      %v2435 = vrsqrt.pop %v1858
      %v2436 = vmul.f32 %v2435, %v1858
      %v2437 = vmul.f32 %v2436, %v2435
      %v2438 = vmul.f32 0.5, %v2437
      %v2439 = vsub.f32 1.5, %v2438
      %v2440 = vmul.f32 %v2435, %v2439
      %vm2441 = vweird.f32 %v1858
      %vm2442 = vweird.f32 %v2435
      %vm2443 = vmor %vm2441, %vm2442
      %v2444 = vsel %vm2443, %v2435, %v2440
      %v2445 = vrsqrt.pop %v1859
      %v2446 = vmul.f32 %v2445, %v1859
      %v2447 = vmul.f32 %v2446, %v2445
      %v2448 = vmul.f32 0.5, %v2447
      %v2449 = vsub.f32 1.5, %v2448
      %v2450 = vmul.f32 %v2445, %v2449
      %vm2451 = vweird.f32 %v1859
      %vm2452 = vweird.f32 %v2445
      %vm2453 = vmor %vm2451, %vm2452
      %v2454 = vsel %vm2453, %v2445, %v2450
      %v2455 = vrsqrt.pop %v1860
      %v2456 = vmul.f32 %v2455, %v1860
      %v2457 = vmul.f32 %v2456, %v2455
      %v2458 = vmul.f32 0.5, %v2457
      %v2459 = vsub.f32 1.5, %v2458
      %v2460 = vmul.f32 %v2455, %v2459
      %vm2461 = vweird.f32 %v1860
      %vm2462 = vweird.f32 %v2455
      %vm2463 = vmor %vm2461, %vm2462
      %v2464 = vsel %vm2463, %v2455, %v2460
      %v2465 = vrsqrt.pop %v1861
      %v2466 = vmul.f32 %v2465, %v1861
      %v2467 = vmul.f32 %v2466, %v2465
      %v2468 = vmul.f32 0.5, %v2467
      %v2469 = vsub.f32 1.5, %v2468
      %v2470 = vmul.f32 %v2465, %v2469
      %vm2471 = vweird.f32 %v1861
      %vm2472 = vweird.f32 %v2465
      %vm2473 = vmor %vm2471, %vm2472
      %v2474 = vsel %vm2473, %v2465, %v2470
      %v2475 = vrsqrt.pop %v1862
      %v2476 = vmul.f32 %v2475, %v1862
      %v2477 = vmul.f32 %v2476, %v2475
      %v2478 = vmul.f32 0.5, %v2477
      %v2479 = vsub.f32 1.5, %v2478
      %v2480 = vmul.f32 %v2475, %v2479
      %vm2481 = vweird.f32 %v1862
      %vm2482 = vweird.f32 %v2475
      %vm2483 = vmor %vm2481, %vm2482
      %v2484 = vsel %vm2483, %v2475, %v2480
      %v2485 = vrsqrt.pop %v1863
      %v2486 = vmul.f32 %v2485, %v1863
      %v2487 = vmul.f32 %v2486, %v2485
      %v2488 = vmul.f32 0.5, %v2487
      %v2489 = vsub.f32 1.5, %v2488
      %v2490 = vmul.f32 %v2485, %v2489
      %vm2491 = vweird.f32 %v1863
      %vm2492 = vweird.f32 %v2485
      %vm2493 = vmor %vm2491, %vm2492
      %v2494 = vsel %vm2493, %v2485, %v2490
      %v2495 = vrsqrt.pop %v1864
      %v2496 = vmul.f32 %v2495, %v1864
      %v2497 = vmul.f32 %v2496, %v2495
      %v2498 = vmul.f32 0.5, %v2497
      %v2499 = vsub.f32 1.5, %v2498
      %v2500 = vmul.f32 %v2495, %v2499
      %vm2501 = vweird.f32 %v1864
      %vm2502 = vweird.f32 %v2495
      %vm2503 = vmor %vm2501, %vm2502
      %v2504 = vsel %vm2503, %v2495, %v2500
      %v2505 = vmul.f32 %v1289, %v1874
      %v2506 = vmul.f32 %v1290, %v1874
      %v2507 = vmul.f32 %v1291, %v1884
      %v2508 = vmul.f32 %v1292, %v1884
      %v2509 = vmul.f32 %v1293, %v1894
      %v2510 = vmul.f32 %v1294, %v1894
      %v2511 = vmul.f32 %v1295, %v1904
      %v2512 = vmul.f32 %v1296, %v1904
      %v2513 = vmul.f32 %v1297, %v1914
      %v2514 = vmul.f32 %v1298, %v1914
      %v2515 = vmul.f32 %v1299, %v1924
      %v2516 = vmul.f32 %v1300, %v1924
      %v2517 = vmul.f32 %v1301, %v1934
      %v2518 = vmul.f32 %v1302, %v1934
      %v2519 = vmul.f32 %v1303, %v1944
      %v2520 = vmul.f32 %v1304, %v1944
      %v2521 = vmul.f32 %v1305, %v1954
      %v2522 = vmul.f32 %v1306, %v1954
      %v2523 = vmul.f32 %v1307, %v1964
      %v2524 = vmul.f32 %v1308, %v1964
      %v2525 = vmul.f32 %v1309, %v1974
      %v2526 = vmul.f32 %v1310, %v1974
      %v2527 = vmul.f32 %v1311, %v1984
      %v2528 = vmul.f32 %v1312, %v1984
      %v2529 = vmul.f32 %v1313, %v1994
      %v2530 = vmul.f32 %v1314, %v1994
      %v2531 = vmul.f32 %v1315, %v2004
      %v2532 = vmul.f32 %v1316, %v2004
      %v2533 = vmul.f32 %v1317, %v2014
      %v2534 = vmul.f32 %v1318, %v2014
      %v2535 = vmul.f32 %v1319, %v2024
      %v2536 = vmul.f32 %v1320, %v2024
      %v2537 = vmul.f32 %v1321, %v2034
      %v2538 = vmul.f32 %v1322, %v2034
      %v2539 = vmul.f32 %v1323, %v2044
      %v2540 = vmul.f32 %v1324, %v2044
      %v2541 = vmul.f32 %v1325, %v2054
      %v2542 = vmul.f32 %v1326, %v2054
      %v2543 = vmul.f32 %v1327, %v2064
      %v2544 = vmul.f32 %v1328, %v2064
      %v2545 = vmul.f32 %v1329, %v2074
      %v2546 = vmul.f32 %v1330, %v2074
      %v2547 = vmul.f32 %v1331, %v2084
      %v2548 = vmul.f32 %v1332, %v2084
      %v2549 = vmul.f32 %v1333, %v2094
      %v2550 = vmul.f32 %v1334, %v2094
      %v2551 = vmul.f32 %v1335, %v2104
      %v2552 = vmul.f32 %v1336, %v2104
      %v2553 = vmul.f32 %v1337, %v2114
      %v2554 = vmul.f32 %v1338, %v2114
      %v2555 = vmul.f32 %v1339, %v2124
      %v2556 = vmul.f32 %v1340, %v2124
      %v2557 = vmul.f32 %v1341, %v2134
      %v2558 = vmul.f32 %v1342, %v2134
      %v2559 = vmul.f32 %v1343, %v2144
      %v2560 = vmul.f32 %v1344, %v2144
      %v2561 = vmul.f32 %v1345, %v2154
      %v2562 = vmul.f32 %v1346, %v2154
      %v2563 = vmul.f32 %v1347, %v2164
      %v2564 = vmul.f32 %v1348, %v2164
      %v2565 = vmul.f32 %v1349, %v2174
      %v2566 = vmul.f32 %v1350, %v2174
      %v2567 = vmul.f32 %v1351, %v2184
      %v2568 = vmul.f32 %v1352, %v2184
      %v2569 = vmul.f32 %v1353, %v2194
      %v2570 = vmul.f32 %v1354, %v2194
      %v2571 = vmul.f32 %v1355, %v2204
      %v2572 = vmul.f32 %v1356, %v2204
      %v2573 = vmul.f32 %v1357, %v2214
      %v2574 = vmul.f32 %v1358, %v2214
      %v2575 = vmul.f32 %v1359, %v2224
      %v2576 = vmul.f32 %v1360, %v2224
      %v2577 = vmul.f32 %v1361, %v2234
      %v2578 = vmul.f32 %v1362, %v2234
      %v2579 = vmul.f32 %v1363, %v2244
      %v2580 = vmul.f32 %v1364, %v2244
      %v2581 = vmul.f32 %v1365, %v2254
      %v2582 = vmul.f32 %v1366, %v2254
      %v2583 = vmul.f32 %v1367, %v2264
      %v2584 = vmul.f32 %v1368, %v2264
      %v2585 = vmul.f32 %v1369, %v2274
      %v2586 = vmul.f32 %v1370, %v2274
      %v2587 = vmul.f32 %v1371, %v2284
      %v2588 = vmul.f32 %v1372, %v2284
      %v2589 = vmul.f32 %v1373, %v2294
      %v2590 = vmul.f32 %v1374, %v2294
      %v2591 = vmul.f32 %v1375, %v2304
      %v2592 = vmul.f32 %v1376, %v2304
      %v2593 = vmul.f32 %v1377, %v2314
      %v2594 = vmul.f32 %v1378, %v2314
      %v2595 = vmul.f32 %v1379, %v2324
      %v2596 = vmul.f32 %v1380, %v2324
      %v2597 = vmul.f32 %v1381, %v2334
      %v2598 = vmul.f32 %v1382, %v2334
      %v2599 = vmul.f32 %v1383, %v2344
      %v2600 = vmul.f32 %v1384, %v2344
      %v2601 = vmul.f32 %v1385, %v2354
      %v2602 = vmul.f32 %v1386, %v2354
      %v2603 = vmul.f32 %v1387, %v2364
      %v2604 = vmul.f32 %v1388, %v2364
      %v2605 = vmul.f32 %v1389, %v2374
      %v2606 = vmul.f32 %v1390, %v2374
      %v2607 = vmul.f32 %v1391, %v2384
      %v2608 = vmul.f32 %v1392, %v2384
      %v2609 = vmul.f32 %v1393, %v2394
      %v2610 = vmul.f32 %v1394, %v2394
      %v2611 = vmul.f32 %v1395, %v2404
      %v2612 = vmul.f32 %v1396, %v2404
      %v2613 = vmul.f32 %v1397, %v2414
      %v2614 = vmul.f32 %v1398, %v2414
      %v2615 = vmul.f32 %v1399, %v2424
      %v2616 = vmul.f32 %v1400, %v2424
      %v2617 = vmul.f32 %v1401, %v2434
      %v2618 = vmul.f32 %v1402, %v2434
      %v2619 = vmul.f32 %v1403, %v2444
      %v2620 = vmul.f32 %v1404, %v2444
      %v2621 = vmul.f32 %v1405, %v2454
      %v2622 = vmul.f32 %v1406, %v2454
      %v2623 = vmul.f32 %v1407, %v2464
      %v2624 = vmul.f32 %v1408, %v2464
      %v2625 = vmul.f32 %v1409, %v2474
      %v2626 = vmul.f32 %v1410, %v2474
      %v2627 = vmul.f32 %v1411, %v2484
      %v2628 = vmul.f32 %v1412, %v2484
      %v2629 = vmul.f32 %v1413, %v2494
      %v2630 = vmul.f32 %v1414, %v2494
      %v2631 = vmul.f32 %v1415, %v2504
      %v2632 = vmul.f32 %v1416, %v2504
      %v2633 = vmax.f32 %v2505, 0.0
      %v2634 = vmax.f32 %v2506, 0.0
      %v2635 = vmax.f32 %v2507, 0.0
      %v2636 = vmax.f32 %v2508, 0.0
      %v2637 = vmax.f32 %v2509, 0.0
      %v2638 = vmax.f32 %v2510, 0.0
      %v2639 = vmax.f32 %v2511, 0.0
      %v2640 = vmax.f32 %v2512, 0.0
      %v2641 = vmax.f32 %v2513, 0.0
      %v2642 = vmax.f32 %v2514, 0.0
      %v2643 = vmax.f32 %v2515, 0.0
      %v2644 = vmax.f32 %v2516, 0.0
      %v2645 = vmax.f32 %v2517, 0.0
      %v2646 = vmax.f32 %v2518, 0.0
      %v2647 = vmax.f32 %v2519, 0.0
      %v2648 = vmax.f32 %v2520, 0.0
      %v2649 = vmax.f32 %v2521, 0.0
      %v2650 = vmax.f32 %v2522, 0.0
      %v2651 = vmax.f32 %v2523, 0.0
      %v2652 = vmax.f32 %v2524, 0.0
      %v2653 = vmax.f32 %v2525, 0.0
      %v2654 = vmax.f32 %v2526, 0.0
      %v2655 = vmax.f32 %v2527, 0.0
      %v2656 = vmax.f32 %v2528, 0.0
      %v2657 = vmax.f32 %v2529, 0.0
      %v2658 = vmax.f32 %v2530, 0.0
      %v2659 = vmax.f32 %v2531, 0.0
      %v2660 = vmax.f32 %v2532, 0.0
      %v2661 = vmax.f32 %v2533, 0.0
      %v2662 = vmax.f32 %v2534, 0.0
      %v2663 = vmax.f32 %v2535, 0.0
      %v2664 = vmax.f32 %v2536, 0.0
      %v2665 = vmax.f32 %v2537, 0.0
      %v2666 = vmax.f32 %v2538, 0.0
      %v2667 = vmax.f32 %v2539, 0.0
      %v2668 = vmax.f32 %v2540, 0.0
      %v2669 = vmax.f32 %v2541, 0.0
      %v2670 = vmax.f32 %v2542, 0.0
      %v2671 = vmax.f32 %v2543, 0.0
      %v2672 = vmax.f32 %v2544, 0.0
      %v2673 = vmax.f32 %v2545, 0.0
      %v2674 = vmax.f32 %v2546, 0.0
      %v2675 = vmax.f32 %v2547, 0.0
      %v2676 = vmax.f32 %v2548, 0.0
      %v2677 = vmax.f32 %v2549, 0.0
      %v2678 = vmax.f32 %v2550, 0.0
      %v2679 = vmax.f32 %v2551, 0.0
      %v2680 = vmax.f32 %v2552, 0.0
      %v2681 = vmax.f32 %v2553, 0.0
      %v2682 = vmax.f32 %v2554, 0.0
      %v2683 = vmax.f32 %v2555, 0.0
      %v2684 = vmax.f32 %v2556, 0.0
      %v2685 = vmax.f32 %v2557, 0.0
      %v2686 = vmax.f32 %v2558, 0.0
      %v2687 = vmax.f32 %v2559, 0.0
      %v2688 = vmax.f32 %v2560, 0.0
      %v2689 = vmax.f32 %v2561, 0.0
      %v2690 = vmax.f32 %v2562, 0.0
      %v2691 = vmax.f32 %v2563, 0.0
      %v2692 = vmax.f32 %v2564, 0.0
      %v2693 = vmax.f32 %v2565, 0.0
      %v2694 = vmax.f32 %v2566, 0.0
      %v2695 = vmax.f32 %v2567, 0.0
      %v2696 = vmax.f32 %v2568, 0.0
      %v2697 = vmax.f32 %v2569, 0.0
      %v2698 = vmax.f32 %v2570, 0.0
      %v2699 = vmax.f32 %v2571, 0.0
      %v2700 = vmax.f32 %v2572, 0.0
      %v2701 = vmax.f32 %v2573, 0.0
      %v2702 = vmax.f32 %v2574, 0.0
      %v2703 = vmax.f32 %v2575, 0.0
      %v2704 = vmax.f32 %v2576, 0.0
      %v2705 = vmax.f32 %v2577, 0.0
      %v2706 = vmax.f32 %v2578, 0.0
      %v2707 = vmax.f32 %v2579, 0.0
      %v2708 = vmax.f32 %v2580, 0.0
      %v2709 = vmax.f32 %v2581, 0.0
      %v2710 = vmax.f32 %v2582, 0.0
      %v2711 = vmax.f32 %v2583, 0.0
      %v2712 = vmax.f32 %v2584, 0.0
      %v2713 = vmax.f32 %v2585, 0.0
      %v2714 = vmax.f32 %v2586, 0.0
      %v2715 = vmax.f32 %v2587, 0.0
      %v2716 = vmax.f32 %v2588, 0.0
      %v2717 = vmax.f32 %v2589, 0.0
      %v2718 = vmax.f32 %v2590, 0.0
      %v2719 = vmax.f32 %v2591, 0.0
      %v2720 = vmax.f32 %v2592, 0.0
      %v2721 = vmax.f32 %v2593, 0.0
      %v2722 = vmax.f32 %v2594, 0.0
      %v2723 = vmax.f32 %v2595, 0.0
      %v2724 = vmax.f32 %v2596, 0.0
      %v2725 = vmax.f32 %v2597, 0.0
      %v2726 = vmax.f32 %v2598, 0.0
      %v2727 = vmax.f32 %v2599, 0.0
      %v2728 = vmax.f32 %v2600, 0.0
      %v2729 = vmax.f32 %v2601, 0.0
      %v2730 = vmax.f32 %v2602, 0.0
      %v2731 = vmax.f32 %v2603, 0.0
      %v2732 = vmax.f32 %v2604, 0.0
      %v2733 = vmax.f32 %v2605, 0.0
      %v2734 = vmax.f32 %v2606, 0.0
      %v2735 = vmax.f32 %v2607, 0.0
      %v2736 = vmax.f32 %v2608, 0.0
      %v2737 = vmax.f32 %v2609, 0.0
      %v2738 = vmax.f32 %v2610, 0.0
      %v2739 = vmax.f32 %v2611, 0.0
      %v2740 = vmax.f32 %v2612, 0.0
      %v2741 = vmax.f32 %v2613, 0.0
      %v2742 = vmax.f32 %v2614, 0.0
      %v2743 = vmax.f32 %v2615, 0.0
      %v2744 = vmax.f32 %v2616, 0.0
      %v2745 = vmax.f32 %v2617, 0.0
      %v2746 = vmax.f32 %v2618, 0.0
      %v2747 = vmax.f32 %v2619, 0.0
      %v2748 = vmax.f32 %v2620, 0.0
      %v2749 = vmax.f32 %v2621, 0.0
      %v2750 = vmax.f32 %v2622, 0.0
      %v2751 = vmax.f32 %v2623, 0.0
      %v2752 = vmax.f32 %v2624, 0.0
      %v2753 = vmax.f32 %v2625, 0.0
      %v2754 = vmax.f32 %v2626, 0.0
      %v2755 = vmax.f32 %v2627, 0.0
      %v2756 = vmax.f32 %v2628, 0.0
      %v2757 = vmax.f32 %v2629, 0.0
      %v2758 = vmax.f32 %v2630, 0.0
      %v2759 = vmax.f32 %v2631, 0.0
      %v2760 = vmax.f32 %v2632, 0.0
      %v2761 = vpack.c.bf16 %v2635, %v2633
      %v2762 = vpack.c.bf16 %v2636, %v2634
      %v2763 = vpack.c.bf16 %v2639, %v2637
      %v2764 = vpack.c.bf16 %v2640, %v2638
      %v2765 = vpack.c.bf16 %v2643, %v2641
      %v2766 = vpack.c.bf16 %v2644, %v2642
      %v2767 = vpack.c.bf16 %v2647, %v2645
      %v2768 = vpack.c.bf16 %v2648, %v2646
      %v2769 = vpack.c.bf16 %v2651, %v2649
      %v2770 = vpack.c.bf16 %v2652, %v2650
      %v2771 = vpack.c.bf16 %v2655, %v2653
      %v2772 = vpack.c.bf16 %v2656, %v2654
      %v2773 = vpack.c.bf16 %v2659, %v2657
      %v2774 = vpack.c.bf16 %v2660, %v2658
      %v2775 = vpack.c.bf16 %v2663, %v2661
      %v2776 = vpack.c.bf16 %v2664, %v2662
      %v2777 = vpack.c.bf16 %v2667, %v2665
      %v2778 = vpack.c.bf16 %v2668, %v2666
      %v2779 = vpack.c.bf16 %v2671, %v2669
      %v2780 = vpack.c.bf16 %v2672, %v2670
      %v2781 = vpack.c.bf16 %v2675, %v2673
      %v2782 = vpack.c.bf16 %v2676, %v2674
      %v2783 = vpack.c.bf16 %v2679, %v2677
      %v2784 = vpack.c.bf16 %v2680, %v2678
      %v2785 = vpack.c.bf16 %v2683, %v2681
      %v2786 = vpack.c.bf16 %v2684, %v2682
      %v2787 = vpack.c.bf16 %v2687, %v2685
      %v2788 = vpack.c.bf16 %v2688, %v2686
      %v2789 = vpack.c.bf16 %v2691, %v2689
      %v2790 = vpack.c.bf16 %v2692, %v2690
      %v2791 = vpack.c.bf16 %v2695, %v2693
      %v2792 = vpack.c.bf16 %v2696, %v2694
      %v2793 = vpack.c.bf16 %v2699, %v2697
      %v2794 = vpack.c.bf16 %v2700, %v2698
      %v2795 = vpack.c.bf16 %v2703, %v2701
      %v2796 = vpack.c.bf16 %v2704, %v2702
      %v2797 = vpack.c.bf16 %v2707, %v2705
      %v2798 = vpack.c.bf16 %v2708, %v2706
      %v2799 = vpack.c.bf16 %v2711, %v2709
      %v2800 = vpack.c.bf16 %v2712, %v2710
      %v2801 = vpack.c.bf16 %v2715, %v2713
      %v2802 = vpack.c.bf16 %v2716, %v2714
      %v2803 = vpack.c.bf16 %v2719, %v2717
      %v2804 = vpack.c.bf16 %v2720, %v2718
      %v2805 = vpack.c.bf16 %v2723, %v2721
      %v2806 = vpack.c.bf16 %v2724, %v2722
      %v2807 = vpack.c.bf16 %v2727, %v2725
      %v2808 = vpack.c.bf16 %v2728, %v2726
      %v2809 = vpack.c.bf16 %v2731, %v2729
      %v2810 = vpack.c.bf16 %v2732, %v2730
      %v2811 = vpack.c.bf16 %v2735, %v2733
      %v2812 = vpack.c.bf16 %v2736, %v2734
      %v2813 = vpack.c.bf16 %v2739, %v2737
      %v2814 = vpack.c.bf16 %v2740, %v2738
      %v2815 = vpack.c.bf16 %v2743, %v2741
      %v2816 = vpack.c.bf16 %v2744, %v2742
      %v2817 = vpack.c.bf16 %v2747, %v2745
      %v2818 = vpack.c.bf16 %v2748, %v2746
      %v2819 = vpack.c.bf16 %v2751, %v2749
      %v2820 = vpack.c.bf16 %v2752, %v2750
      %v2821 = vpack.c.bf16 %v2755, %v2753
      %v2822 = vpack.c.bf16 %v2756, %v2754
      %v2823 = vpack.c.bf16 %v2759, %v2757
      %v2824 = vpack.c.bf16 %v2760, %v2758
      %v2825 = vld [vmem:[%s3] sm:$0xf]
      %v2826 = vld [vmem:[%s3 + $0x4] sm:$0xf]
      %v2827 = vld [vmem:[%s3 + $0x8] sm:$0xf]
      %v2828 = vld [vmem:[%s3 + $0xc] sm:$0xf]
      %v2829 = vld [vmem:[%s3 + $0x10] sm:$0xf]
      %v2830 = vld [vmem:[%s3 + $0x14] sm:$0xf]
      %v2831 = vld [vmem:[%s3 + $0x18] sm:$0xf]
      %v2832 = vld [vmem:[%s3 + $0x1c] sm:$0xf]
      %v2833 = vld [vmem:[%s3 + $0x20] sm:$0xf]
      %v2834 = vld [vmem:[%s3 + $0x24] sm:$0xf]
      %v2835 = vld [vmem:[%s3 + $0x28] sm:$0xf]
      %v2836 = vld [vmem:[%s3 + $0x2c] sm:$0xf]
      %v2837 = vld [vmem:[%s3 + $0x30] sm:$0xf]
      %v2838 = vld [vmem:[%s3 + $0x34] sm:$0xf]
      %v2839 = vld [vmem:[%s3 + $0x38] sm:$0xf]
      %v2840 = vld [vmem:[%s3 + $0x3c] sm:$0xf]
      %v2841 = vld [vmem:[%s3 + $0x40] sm:$0xf]
      %v2842 = vld [vmem:[%s3 + $0x44] sm:$0xf]
      %v2843 = vld [vmem:[%s3 + $0x48] sm:$0xf]
      %v2844 = vld [vmem:[%s3 + $0x4c] sm:$0xf]
      %v2845 = vld [vmem:[%s3 + $0x50] sm:$0xf]
      %v2846 = vld [vmem:[%s3 + $0x54] sm:$0xf]
      %v2847 = vld [vmem:[%s3 + $0x58] sm:$0xf]
      %v2848 = vld [vmem:[%s3 + $0x5c] sm:$0xf]
      %v2849 = vld [vmem:[%s3 + $0x60] sm:$0xf]
      %v2850 = vld [vmem:[%s3 + $0x64] sm:$0xf]
      %v2851 = vld [vmem:[%s3 + $0x68] sm:$0xf]
      %v2852 = vld [vmem:[%s3 + $0x6c] sm:$0xf]
      %v2853 = vld [vmem:[%s3 + $0x70] sm:$0xf]
      %v2854 = vld [vmem:[%s3 + $0x74] sm:$0xf]
      %v2855 = vld [vmem:[%s3 + $0x78] sm:$0xf]
      %v2856 = vld [vmem:[%s3 + $0x7c] sm:$0xf]
      %v2857 = vld [vmem:[%s4] sm:$0x1]
      %v2859 = vperm.slane %v2857, 0
      %v2893 = vunpack.c.l.b16 %v2825
      %v2894 = vunpack.c.l.b16 %v2826
      %v2895 = vunpack.c.l.b16 %v2827
      %v2896 = vunpack.c.l.b16 %v2828
      %v2897 = vunpack.c.l.b16 %v2829
      %v2898 = vunpack.c.l.b16 %v2830
      %v2899 = vunpack.c.l.b16 %v2831
      %v2900 = vunpack.c.l.b16 %v2832
      %v2901 = vunpack.c.l.b16 %v2833
      %v2902 = vunpack.c.l.b16 %v2834
      %v2903 = vunpack.c.l.b16 %v2835
      %v2904 = vunpack.c.l.b16 %v2836
      %v2905 = vunpack.c.l.b16 %v2837
      %v2906 = vunpack.c.l.b16 %v2838
      %v2907 = vunpack.c.l.b16 %v2839
      %v2908 = vunpack.c.l.b16 %v2840
      %v2909 = vunpack.c.l.b16 %v2841
      %v2910 = vunpack.c.l.b16 %v2842
      %v2911 = vunpack.c.l.b16 %v2843
      %v2912 = vunpack.c.l.b16 %v2844
      %v2913 = vunpack.c.l.b16 %v2845
      %v2914 = vunpack.c.l.b16 %v2846
      %v2915 = vunpack.c.l.b16 %v2847
      %v2916 = vunpack.c.l.b16 %v2848
      %v2917 = vunpack.c.l.b16 %v2849
      %v2918 = vunpack.c.l.b16 %v2850
      %v2919 = vunpack.c.l.b16 %v2851
      %v2920 = vunpack.c.l.b16 %v2852
      %v2921 = vunpack.c.l.b16 %v2853
      %v2922 = vunpack.c.l.b16 %v2854
      %v2923 = vunpack.c.l.b16 %v2855
      %v2924 = vunpack.c.l.b16 %v2856
      %v2925 = vpack.c.b16 %v2894, %v2893
      %v2926 = vpack.c.b16 %v2896, %v2895
      %v2927 = vpack.c.b16 %v2898, %v2897
      %v2928 = vpack.c.b16 %v2900, %v2899
      %v2929 = vpack.c.b16 %v2902, %v2901
      %v2930 = vpack.c.b16 %v2904, %v2903
      %v2931 = vpack.c.b16 %v2906, %v2905
      %v2932 = vpack.c.b16 %v2908, %v2907
      %v2933 = vpack.c.b16 %v2910, %v2909
      %v2934 = vpack.c.b16 %v2912, %v2911
      %v2935 = vpack.c.b16 %v2914, %v2913
      %v2936 = vpack.c.b16 %v2916, %v2915
      %v2937 = vpack.c.b16 %v2918, %v2917
      %v2938 = vpack.c.b16 %v2920, %v2919
      %v2939 = vpack.c.b16 %v2922, %v2921
      %v2940 = vpack.c.b16 %v2924, %v2923
      %2957 = vmatpush.bf16.msra.mxu0 %v2932
      %2958 = vmatpush.bf16.msra.mxu0 %v2931
      %2959 = vmatpush.bf16.msra.mxu0 %v2930
      %2960 = vmatpush.bf16.msra.mxu0 %v2929
      %2961 = vmatpush.bf16.msra.mxu0 %v2928
      %2962 = vmatpush.bf16.msra.mxu0 %v2927
      %2963 = vmatpush.bf16.msra.mxu0 %v2926
      %2964 = vmatpush.bf16.msra.mxu0 %v2925
      %2965 = vmatmul.bf16.gmra.mxu0 %v2761
      %v2966 = vpop.f32.mrf.mxu0
      %v2967 = vadd.f32 %v2859, %v2966
      %v2968 = vpop.f32.mrf.mxu0
      %v2969 = vadd.f32 %v2859, %v2968
      %2970 = vmatmul.bf16.gmra.mxu0 %v2763
      %v2971 = vpop.f32.mrf.mxu0
      %v2972 = vadd.f32 %v2859, %v2971
      %v2973 = vpop.f32.mrf.mxu0
      %v2974 = vadd.f32 %v2859, %v2973
      %2975 = vmatmul.bf16.gmra.mxu0 %v2765
      %v2976 = vpop.f32.mrf.mxu0
      %v2977 = vadd.f32 %v2859, %v2976
      %v2978 = vpop.f32.mrf.mxu0
      %v2979 = vadd.f32 %v2859, %v2978
      %2980 = vmatmul.bf16.gmra.mxu0 %v2767
      %v2981 = vpop.f32.mrf.mxu0
      %v2982 = vadd.f32 %v2859, %v2981
      %v2983 = vpop.f32.mrf.mxu0
      %v2984 = vadd.f32 %v2859, %v2983
      %2985 = vmatmul.bf16.gmra.mxu0 %v2769
      %v2986 = vpop.f32.mrf.mxu0
      %v2987 = vadd.f32 %v2859, %v2986
      %v2988 = vpop.f32.mrf.mxu0
      %v2989 = vadd.f32 %v2859, %v2988
      %2990 = vmatmul.bf16.gmra.mxu0 %v2771
      %v2991 = vpop.f32.mrf.mxu0
      %v2992 = vadd.f32 %v2859, %v2991
      %v2993 = vpop.f32.mrf.mxu0
      %v2994 = vadd.f32 %v2859, %v2993
      %2995 = vmatmul.bf16.gmra.mxu0 %v2773
      %v2996 = vpop.f32.mrf.mxu0
      %v2997 = vadd.f32 %v2859, %v2996
      %v2998 = vpop.f32.mrf.mxu0
      %v2999 = vadd.f32 %v2859, %v2998
      %3000 = vmatmul.bf16.gmra.mxu0 %v2775
      %v3001 = vpop.f32.mrf.mxu0
      %v3002 = vadd.f32 %v2859, %v3001
      %v3003 = vpop.f32.mrf.mxu0
      %v3004 = vadd.f32 %v2859, %v3003
      %3005 = vmatmul.bf16.gmra.mxu0 %v2777
      %v3006 = vpop.f32.mrf.mxu0
      %v3007 = vadd.f32 %v2859, %v3006
      %v3008 = vpop.f32.mrf.mxu0
      %v3009 = vadd.f32 %v2859, %v3008
      %3010 = vmatmul.bf16.gmra.mxu0 %v2779
      %v3011 = vpop.f32.mrf.mxu0
      %v3012 = vadd.f32 %v2859, %v3011
      %v3013 = vpop.f32.mrf.mxu0
      %v3014 = vadd.f32 %v2859, %v3013
      %3015 = vmatmul.bf16.gmra.mxu0 %v2781
      %v3016 = vpop.f32.mrf.mxu0
      %v3017 = vadd.f32 %v2859, %v3016
      %v3018 = vpop.f32.mrf.mxu0
      %v3019 = vadd.f32 %v2859, %v3018
      %3020 = vmatmul.bf16.gmra.mxu0 %v2783
      %v3021 = vpop.f32.mrf.mxu0
      %v3022 = vadd.f32 %v2859, %v3021
      %v3023 = vpop.f32.mrf.mxu0
      %v3024 = vadd.f32 %v2859, %v3023
      %3025 = vmatmul.bf16.gmra.mxu0 %v2785
      %v3026 = vpop.f32.mrf.mxu0
      %v3027 = vadd.f32 %v2859, %v3026
      %v3028 = vpop.f32.mrf.mxu0
      %v3029 = vadd.f32 %v2859, %v3028
      %3030 = vmatmul.bf16.gmra.mxu0 %v2787
      %v3031 = vpop.f32.mrf.mxu0
      %v3032 = vadd.f32 %v2859, %v3031
      %v3033 = vpop.f32.mrf.mxu0
      %v3034 = vadd.f32 %v2859, %v3033
      %3035 = vmatmul.bf16.gmra.mxu0 %v2789
      %v3036 = vpop.f32.mrf.mxu0
      %v3037 = vadd.f32 %v2859, %v3036
      %v3038 = vpop.f32.mrf.mxu0
      %v3039 = vadd.f32 %v2859, %v3038
      %3040 = vmatmul.bf16.gmra.mxu0 %v2791
      %v3041 = vpop.f32.mrf.mxu0
      %v3042 = vadd.f32 %v2859, %v3041
      %v3043 = vpop.f32.mrf.mxu0
      %v3044 = vadd.f32 %v2859, %v3043
      %3045 = vmatmul.bf16.gmra.mxu0 %v2793
      %v3046 = vpop.f32.mrf.mxu0
      %v3047 = vadd.f32 %v2859, %v3046
      %v3048 = vpop.f32.mrf.mxu0
      %v3049 = vadd.f32 %v2859, %v3048
      %3050 = vmatmul.bf16.gmra.mxu0 %v2795
      %v3051 = vpop.f32.mrf.mxu0
      %v3052 = vadd.f32 %v2859, %v3051
      %v3053 = vpop.f32.mrf.mxu0
      %v3054 = vadd.f32 %v2859, %v3053
      %3055 = vmatmul.bf16.gmra.mxu0 %v2797
      %v3056 = vpop.f32.mrf.mxu0
      %v3057 = vadd.f32 %v2859, %v3056
      %v3058 = vpop.f32.mrf.mxu0
      %v3059 = vadd.f32 %v2859, %v3058
      %3060 = vmatmul.bf16.gmra.mxu0 %v2799
      %v3061 = vpop.f32.mrf.mxu0
      %v3062 = vadd.f32 %v2859, %v3061
      %v3063 = vpop.f32.mrf.mxu0
      %v3064 = vadd.f32 %v2859, %v3063
      %3065 = vmatmul.bf16.gmra.mxu0 %v2801
      %v3066 = vpop.f32.mrf.mxu0
      %v3067 = vadd.f32 %v2859, %v3066
      %v3068 = vpop.f32.mrf.mxu0
      %v3069 = vadd.f32 %v2859, %v3068
      %3070 = vmatmul.bf16.gmra.mxu0 %v2803
      %v3071 = vpop.f32.mrf.mxu0
      %v3072 = vadd.f32 %v2859, %v3071
      %v3073 = vpop.f32.mrf.mxu0
      %v3074 = vadd.f32 %v2859, %v3073
      %3075 = vmatmul.bf16.gmra.mxu0 %v2805
      %v3076 = vpop.f32.mrf.mxu0
      %v3077 = vadd.f32 %v2859, %v3076
      %v3078 = vpop.f32.mrf.mxu0
      %v3079 = vadd.f32 %v2859, %v3078
      %3080 = vmatmul.bf16.gmra.mxu0 %v2807
      %v3081 = vpop.f32.mrf.mxu0
      %v3082 = vadd.f32 %v2859, %v3081
      %v3083 = vpop.f32.mrf.mxu0
      %v3084 = vadd.f32 %v2859, %v3083
      %3085 = vmatmul.bf16.gmra.mxu0 %v2809
      %v3086 = vpop.f32.mrf.mxu0
      %v3087 = vadd.f32 %v2859, %v3086
      %v3088 = vpop.f32.mrf.mxu0
      %v3089 = vadd.f32 %v2859, %v3088
      %3090 = vmatmul.bf16.gmra.mxu0 %v2811
      %v3091 = vpop.f32.mrf.mxu0
      %v3092 = vadd.f32 %v2859, %v3091
      %v3093 = vpop.f32.mrf.mxu0
      %v3094 = vadd.f32 %v2859, %v3093
      %3095 = vmatmul.bf16.gmra.mxu0 %v2813
      %v3096 = vpop.f32.mrf.mxu0
      %v3097 = vadd.f32 %v2859, %v3096
      %v3098 = vpop.f32.mrf.mxu0
      %v3099 = vadd.f32 %v2859, %v3098
      %3100 = vmatmul.bf16.gmra.mxu0 %v2815
      %v3101 = vpop.f32.mrf.mxu0
      %v3102 = vadd.f32 %v2859, %v3101
      %v3103 = vpop.f32.mrf.mxu0
      %v3104 = vadd.f32 %v2859, %v3103
      %3105 = vmatmul.bf16.gmra.mxu0 %v2817
      %v3106 = vpop.f32.mrf.mxu0
      %v3107 = vadd.f32 %v2859, %v3106
      %v3108 = vpop.f32.mrf.mxu0
      %v3109 = vadd.f32 %v2859, %v3108
      %3110 = vmatmul.bf16.gmra.mxu0 %v2819
      %v3111 = vpop.f32.mrf.mxu0
      %v3112 = vadd.f32 %v2859, %v3111
      %v3113 = vpop.f32.mrf.mxu0
      %v3114 = vadd.f32 %v2859, %v3113
      %3115 = vmatmul.bf16.gmra.mxu0 %v2821
      %v3116 = vpop.f32.mrf.mxu0
      %v3117 = vadd.f32 %v2859, %v3116
      %v3118 = vpop.f32.mrf.mxu0
      %v3119 = vadd.f32 %v2859, %v3118
      %3120 = vmatmul.bf16.gmra.mxu0 %v2823
      %v3121 = vpop.f32.mrf.mxu0
      %v3122 = vadd.f32 %v2859, %v3121
      %v3123 = vpop.f32.mrf.mxu0
      %v3124 = vadd.f32 %v2859, %v3123
      %3125 = vdwg.mxu0
      %3126 = vmatpush.bf16.msra.mxu0 %v2940
      %3127 = vmatpush.bf16.msra.mxu0 %v2939
      %3128 = vmatpush.bf16.msra.mxu0 %v2938
      %3129 = vmatpush.bf16.msra.mxu0 %v2937
      %3130 = vmatpush.bf16.msra.mxu0 %v2936
      %3131 = vmatpush.bf16.msra.mxu0 %v2935
      %3132 = vmatpush.bf16.msra.mxu0 %v2934
      %3133 = vmatpush.bf16.msra.mxu0 %v2933
      %3134 = vmatmul.bf16.gmra.mxu0 %v2762
      %v3135 = vpop.f32.mrf.mxu0
      %v3136 = vadd.f32 %v2967, %v3135
      %v3137 = vpop.f32.mrf.mxu0
      %v3138 = vadd.f32 %v2969, %v3137
      %3139 = vmatmul.bf16.gmra.mxu0 %v2764
      %v3140 = vpop.f32.mrf.mxu0
      %v3141 = vadd.f32 %v2972, %v3140
      %v3142 = vpop.f32.mrf.mxu0
      %v3143 = vadd.f32 %v2974, %v3142
      %3144 = vmatmul.bf16.gmra.mxu0 %v2766
      %v3145 = vpop.f32.mrf.mxu0
      %v3146 = vadd.f32 %v2977, %v3145
      %v3147 = vpop.f32.mrf.mxu0
      %v3148 = vadd.f32 %v2979, %v3147
      %3149 = vmatmul.bf16.gmra.mxu0 %v2768
      %v3150 = vpop.f32.mrf.mxu0
      %v3151 = vadd.f32 %v2982, %v3150
      %v3152 = vpop.f32.mrf.mxu0
      %v3153 = vadd.f32 %v2984, %v3152
      %3154 = vmatmul.bf16.gmra.mxu0 %v2770
      %v3155 = vpop.f32.mrf.mxu0
      %v3156 = vadd.f32 %v2987, %v3155
      %v3157 = vpop.f32.mrf.mxu0
      %v3158 = vadd.f32 %v2989, %v3157
      %3159 = vmatmul.bf16.gmra.mxu0 %v2772
      %v3160 = vpop.f32.mrf.mxu0
      %v3161 = vadd.f32 %v2992, %v3160
      %v3162 = vpop.f32.mrf.mxu0
      %v3163 = vadd.f32 %v2994, %v3162
      %3164 = vmatmul.bf16.gmra.mxu0 %v2774
      %v3165 = vpop.f32.mrf.mxu0
      %v3166 = vadd.f32 %v2997, %v3165
      %v3167 = vpop.f32.mrf.mxu0
      %v3168 = vadd.f32 %v2999, %v3167
      %3169 = vmatmul.bf16.gmra.mxu0 %v2776
      %v3170 = vpop.f32.mrf.mxu0
      %v3171 = vadd.f32 %v3002, %v3170
      %v3172 = vpop.f32.mrf.mxu0
      %v3173 = vadd.f32 %v3004, %v3172
      %3174 = vmatmul.bf16.gmra.mxu0 %v2778
      %v3175 = vpop.f32.mrf.mxu0
      %v3176 = vadd.f32 %v3007, %v3175
      %v3177 = vpop.f32.mrf.mxu0
      %v3178 = vadd.f32 %v3009, %v3177
      %3179 = vmatmul.bf16.gmra.mxu0 %v2780
      %v3180 = vpop.f32.mrf.mxu0
      %v3181 = vadd.f32 %v3012, %v3180
      %v3182 = vpop.f32.mrf.mxu0
      %v3183 = vadd.f32 %v3014, %v3182
      %3184 = vmatmul.bf16.gmra.mxu0 %v2782
      %v3185 = vpop.f32.mrf.mxu0
      %v3186 = vadd.f32 %v3017, %v3185
      %v3187 = vpop.f32.mrf.mxu0
      %v3188 = vadd.f32 %v3019, %v3187
      %3189 = vmatmul.bf16.gmra.mxu0 %v2784
      %v3190 = vpop.f32.mrf.mxu0
      %v3191 = vadd.f32 %v3022, %v3190
      %v3192 = vpop.f32.mrf.mxu0
      %v3193 = vadd.f32 %v3024, %v3192
      %3194 = vmatmul.bf16.gmra.mxu0 %v2786
      %v3195 = vpop.f32.mrf.mxu0
      %v3196 = vadd.f32 %v3027, %v3195
      %v3197 = vpop.f32.mrf.mxu0
      %v3198 = vadd.f32 %v3029, %v3197
      %3199 = vmatmul.bf16.gmra.mxu0 %v2788
      %v3200 = vpop.f32.mrf.mxu0
      %v3201 = vadd.f32 %v3032, %v3200
      %v3202 = vpop.f32.mrf.mxu0
      %v3203 = vadd.f32 %v3034, %v3202
      %3204 = vmatmul.bf16.gmra.mxu0 %v2790
      %v3205 = vpop.f32.mrf.mxu0
      %v3206 = vadd.f32 %v3037, %v3205
      %v3207 = vpop.f32.mrf.mxu0
      %v3208 = vadd.f32 %v3039, %v3207
      %3209 = vmatmul.bf16.gmra.mxu0 %v2792
      %v3210 = vpop.f32.mrf.mxu0
      %v3211 = vadd.f32 %v3042, %v3210
      %v3212 = vpop.f32.mrf.mxu0
      %v3213 = vadd.f32 %v3044, %v3212
      %3214 = vmatmul.bf16.gmra.mxu0 %v2794
      %v3215 = vpop.f32.mrf.mxu0
      %v3216 = vadd.f32 %v3047, %v3215
      %v3217 = vpop.f32.mrf.mxu0
      %v3218 = vadd.f32 %v3049, %v3217
      %3219 = vmatmul.bf16.gmra.mxu0 %v2796
      %v3220 = vpop.f32.mrf.mxu0
      %v3221 = vadd.f32 %v3052, %v3220
      %v3222 = vpop.f32.mrf.mxu0
      %v3223 = vadd.f32 %v3054, %v3222
      %3224 = vmatmul.bf16.gmra.mxu0 %v2798
      %v3225 = vpop.f32.mrf.mxu0
      %v3226 = vadd.f32 %v3057, %v3225
      %v3227 = vpop.f32.mrf.mxu0
      %v3228 = vadd.f32 %v3059, %v3227
      %3229 = vmatmul.bf16.gmra.mxu0 %v2800
      %v3230 = vpop.f32.mrf.mxu0
      %v3231 = vadd.f32 %v3062, %v3230
      %v3232 = vpop.f32.mrf.mxu0
      %v3233 = vadd.f32 %v3064, %v3232
      %3234 = vmatmul.bf16.gmra.mxu0 %v2802
      %v3235 = vpop.f32.mrf.mxu0
      %v3236 = vadd.f32 %v3067, %v3235
      %v3237 = vpop.f32.mrf.mxu0
      %v3238 = vadd.f32 %v3069, %v3237
      %3239 = vmatmul.bf16.gmra.mxu0 %v2804
      %v3240 = vpop.f32.mrf.mxu0
      %v3241 = vadd.f32 %v3072, %v3240
      %v3242 = vpop.f32.mrf.mxu0
      %v3243 = vadd.f32 %v3074, %v3242
      %3244 = vmatmul.bf16.gmra.mxu0 %v2806
      %v3245 = vpop.f32.mrf.mxu0
      %v3246 = vadd.f32 %v3077, %v3245
      %v3247 = vpop.f32.mrf.mxu0
      %v3248 = vadd.f32 %v3079, %v3247
      %3249 = vmatmul.bf16.gmra.mxu0 %v2808
      %v3250 = vpop.f32.mrf.mxu0
      %v3251 = vadd.f32 %v3082, %v3250
      %v3252 = vpop.f32.mrf.mxu0
      %v3253 = vadd.f32 %v3084, %v3252
      %3254 = vmatmul.bf16.gmra.mxu0 %v2810
      %v3255 = vpop.f32.mrf.mxu0
      %v3256 = vadd.f32 %v3087, %v3255
      %v3257 = vpop.f32.mrf.mxu0
      %v3258 = vadd.f32 %v3089, %v3257
      %3259 = vmatmul.bf16.gmra.mxu0 %v2812
      %v3260 = vpop.f32.mrf.mxu0
      %v3261 = vadd.f32 %v3092, %v3260
      %v3262 = vpop.f32.mrf.mxu0
      %v3263 = vadd.f32 %v3094, %v3262
      %3264 = vmatmul.bf16.gmra.mxu0 %v2814
      %v3265 = vpop.f32.mrf.mxu0
      %v3266 = vadd.f32 %v3097, %v3265
      %v3267 = vpop.f32.mrf.mxu0
      %v3268 = vadd.f32 %v3099, %v3267
      %3269 = vmatmul.bf16.gmra.mxu0 %v2816
      %v3270 = vpop.f32.mrf.mxu0
      %v3271 = vadd.f32 %v3102, %v3270
      %v3272 = vpop.f32.mrf.mxu0
      %v3273 = vadd.f32 %v3104, %v3272
      %3274 = vmatmul.bf16.gmra.mxu0 %v2818
      %v3275 = vpop.f32.mrf.mxu0
      %v3276 = vadd.f32 %v3107, %v3275
      %v3277 = vpop.f32.mrf.mxu0
      %v3278 = vadd.f32 %v3109, %v3277
      %3279 = vmatmul.bf16.gmra.mxu0 %v2820
      %v3280 = vpop.f32.mrf.mxu0
      %v3281 = vadd.f32 %v3112, %v3280
      %v3282 = vpop.f32.mrf.mxu0
      %v3283 = vadd.f32 %v3114, %v3282
      %3284 = vmatmul.bf16.gmra.mxu0 %v2822
      %v3285 = vpop.f32.mrf.mxu0
      %v3286 = vadd.f32 %v3117, %v3285
      %v3287 = vpop.f32.mrf.mxu0
      %v3288 = vadd.f32 %v3119, %v3287
      %3289 = vmatmul.bf16.gmra.mxu0 %v2824
      %v3290 = vpop.f32.mrf.mxu0
      %v3291 = vadd.f32 %v3122, %v3290
      %v3292 = vpop.f32.mrf.mxu0
      %v3293 = vadd.f32 %v3124, %v3292
      %3294 = vdwg.mxu0
      %3295 = vadd.xlane.f32.xlu0 %v3136
      %v3296 = vpop.xlane.xlu0 %3295
      %3297 = vadd.xlane.f32.xlu0 %v3138
      %v3298 = vpop.xlane.xlu0 %3297
      %3299 = vadd.xlane.f32.xlu0 %v3141
      %v3300 = vpop.xlane.xlu0 %3299
      %3301 = vadd.xlane.f32.xlu0 %v3143
      %v3302 = vpop.xlane.xlu0 %3301
      %3303 = vadd.xlane.f32.xlu0 %v3146
      %v3304 = vpop.xlane.xlu0 %3303
      %3305 = vadd.xlane.f32.xlu0 %v3148
      %v3306 = vpop.xlane.xlu0 %3305
      %3307 = vadd.xlane.f32.xlu0 %v3151
      %v3308 = vpop.xlane.xlu0 %3307
      %3309 = vadd.xlane.f32.xlu0 %v3153
      %v3310 = vpop.xlane.xlu0 %3309
      %3311 = vadd.xlane.f32.xlu0 %v3156
      %v3312 = vpop.xlane.xlu0 %3311
      %3313 = vadd.xlane.f32.xlu0 %v3158
      %v3314 = vpop.xlane.xlu0 %3313
      %3315 = vadd.xlane.f32.xlu0 %v3161
      %v3316 = vpop.xlane.xlu0 %3315
      %3317 = vadd.xlane.f32.xlu0 %v3163
      %v3318 = vpop.xlane.xlu0 %3317
      %3319 = vadd.xlane.f32.xlu0 %v3166
      %v3320 = vpop.xlane.xlu0 %3319
      %3321 = vadd.xlane.f32.xlu0 %v3168
      %v3322 = vpop.xlane.xlu0 %3321
      %3323 = vadd.xlane.f32.xlu0 %v3171
      %v3324 = vpop.xlane.xlu0 %3323
      %3325 = vadd.xlane.f32.xlu0 %v3173
      %v3326 = vpop.xlane.xlu0 %3325
      %3327 = vadd.xlane.f32.xlu0 %v3176
      %v3328 = vpop.xlane.xlu0 %3327
      %3329 = vadd.xlane.f32.xlu0 %v3178
      %v3330 = vpop.xlane.xlu0 %3329
      %3331 = vadd.xlane.f32.xlu0 %v3181
      %v3332 = vpop.xlane.xlu0 %3331
      %3333 = vadd.xlane.f32.xlu0 %v3183
      %v3334 = vpop.xlane.xlu0 %3333
      %3335 = vadd.xlane.f32.xlu0 %v3186
      %v3336 = vpop.xlane.xlu0 %3335
      %3337 = vadd.xlane.f32.xlu0 %v3188
      %v3338 = vpop.xlane.xlu0 %3337
      %3339 = vadd.xlane.f32.xlu0 %v3191
      %v3340 = vpop.xlane.xlu0 %3339
      %3341 = vadd.xlane.f32.xlu0 %v3193
      %v3342 = vpop.xlane.xlu0 %3341
      %3343 = vadd.xlane.f32.xlu0 %v3196
      %v3344 = vpop.xlane.xlu0 %3343
      %3345 = vadd.xlane.f32.xlu0 %v3198
      %v3346 = vpop.xlane.xlu0 %3345
      %3347 = vadd.xlane.f32.xlu0 %v3201
      %v3348 = vpop.xlane.xlu0 %3347
      %3349 = vadd.xlane.f32.xlu0 %v3203
      %v3350 = vpop.xlane.xlu0 %3349
      %3351 = vadd.xlane.f32.xlu0 %v3206
      %v3352 = vpop.xlane.xlu0 %3351
      %3353 = vadd.xlane.f32.xlu0 %v3208
      %v3354 = vpop.xlane.xlu0 %3353
      %3355 = vadd.xlane.f32.xlu0 %v3211
      %v3356 = vpop.xlane.xlu0 %3355
      %3357 = vadd.xlane.f32.xlu0 %v3213
      %v3358 = vpop.xlane.xlu0 %3357
      %3359 = vadd.xlane.f32.xlu0 %v3216
      %v3360 = vpop.xlane.xlu0 %3359
      %3361 = vadd.xlane.f32.xlu0 %v3218
      %v3362 = vpop.xlane.xlu0 %3361
      %3363 = vadd.xlane.f32.xlu0 %v3221
      %v3364 = vpop.xlane.xlu0 %3363
      %3365 = vadd.xlane.f32.xlu0 %v3223
      %v3366 = vpop.xlane.xlu0 %3365
      %3367 = vadd.xlane.f32.xlu0 %v3226
      %v3368 = vpop.xlane.xlu0 %3367
      %3369 = vadd.xlane.f32.xlu0 %v3228
      %v3370 = vpop.xlane.xlu0 %3369
      %3371 = vadd.xlane.f32.xlu0 %v3231
      %v3372 = vpop.xlane.xlu0 %3371
      %3373 = vadd.xlane.f32.xlu0 %v3233
      %v3374 = vpop.xlane.xlu0 %3373
      %3375 = vadd.xlane.f32.xlu0 %v3236
      %v3376 = vpop.xlane.xlu0 %3375
      %3377 = vadd.xlane.f32.xlu0 %v3238
      %v3378 = vpop.xlane.xlu0 %3377
      %3379 = vadd.xlane.f32.xlu0 %v3241
      %v3380 = vpop.xlane.xlu0 %3379
      %3381 = vadd.xlane.f32.xlu0 %v3243
      %v3382 = vpop.xlane.xlu0 %3381
      %3383 = vadd.xlane.f32.xlu0 %v3246
      %v3384 = vpop.xlane.xlu0 %3383
      %3385 = vadd.xlane.f32.xlu0 %v3248
      %v3386 = vpop.xlane.xlu0 %3385
      %3387 = vadd.xlane.f32.xlu0 %v3251
      %v3388 = vpop.xlane.xlu0 %3387
      %3389 = vadd.xlane.f32.xlu0 %v3253
      %v3390 = vpop.xlane.xlu0 %3389
      %3391 = vadd.xlane.f32.xlu0 %v3256
      %v3392 = vpop.xlane.xlu0 %3391
      %3393 = vadd.xlane.f32.xlu0 %v3258
      %v3394 = vpop.xlane.xlu0 %3393
      %3395 = vadd.xlane.f32.xlu0 %v3261
      %v3396 = vpop.xlane.xlu0 %3395
      %3397 = vadd.xlane.f32.xlu0 %v3263
      %v3398 = vpop.xlane.xlu0 %3397
      %3399 = vadd.xlane.f32.xlu0 %v3266
      %v3400 = vpop.xlane.xlu0 %3399
      %3401 = vadd.xlane.f32.xlu0 %v3268
      %v3402 = vpop.xlane.xlu0 %3401
      %3403 = vadd.xlane.f32.xlu0 %v3271
      %v3404 = vpop.xlane.xlu0 %3403
      %3405 = vadd.xlane.f32.xlu0 %v3273
      %v3406 = vpop.xlane.xlu0 %3405
      %3407 = vadd.xlane.f32.xlu0 %v3276
      %v3408 = vpop.xlane.xlu0 %3407
      %3409 = vadd.xlane.f32.xlu0 %v3278
      %v3410 = vpop.xlane.xlu0 %3409
      %3411 = vadd.xlane.f32.xlu0 %v3281
      %v3412 = vpop.xlane.xlu0 %3411
      %3413 = vadd.xlane.f32.xlu0 %v3283
      %v3414 = vpop.xlane.xlu0 %3413
      %3415 = vadd.xlane.f32.xlu0 %v3286
      %v3416 = vpop.xlane.xlu0 %3415
      %3417 = vadd.xlane.f32.xlu0 %v3288
      %v3418 = vpop.xlane.xlu0 %3417
      %3419 = vadd.xlane.f32.xlu0 %v3291
      %v3420 = vpop.xlane.xlu0 %3419
      %3421 = vadd.xlane.f32.xlu0 %v3293
      %v3422 = vpop.xlane.xlu0 %3421
      %v3423 = vrcp.pop 128.0
      %v3424 = vmul.f32 128.0, %v3423
      %v3425 = vsub.f32 1.0, %v3424
      %v3426 = vmul.f32 %v3423, %v3425
      %v3427 = vadd.f32 %v3423, %v3426
      %vm3428 = vweird.f32 %v3423
      %v3429 = vsel %vm3428, %v3423, %v3427
      %v3430 = vmul.f32 %v3296, %v3429
      %v3431 = vmul.f32 %v3298, %v3429
      %v3432 = vmul.f32 %v3300, %v3429
      %v3433 = vmul.f32 %v3302, %v3429
      %v3434 = vmul.f32 %v3304, %v3429
      %v3435 = vmul.f32 %v3306, %v3429
      %v3436 = vmul.f32 %v3308, %v3429
      %v3437 = vmul.f32 %v3310, %v3429
      %v3438 = vmul.f32 %v3312, %v3429
      %v3439 = vmul.f32 %v3314, %v3429
      %v3440 = vmul.f32 %v3316, %v3429
      %v3441 = vmul.f32 %v3318, %v3429
      %v3442 = vmul.f32 %v3320, %v3429
      %v3443 = vmul.f32 %v3322, %v3429
      %v3444 = vmul.f32 %v3324, %v3429
      %v3445 = vmul.f32 %v3326, %v3429
      %v3446 = vmul.f32 %v3328, %v3429
      %v3447 = vmul.f32 %v3330, %v3429
      %v3448 = vmul.f32 %v3332, %v3429
      %v3449 = vmul.f32 %v3334, %v3429
      %v3450 = vmul.f32 %v3336, %v3429
      %v3451 = vmul.f32 %v3338, %v3429
      %v3452 = vmul.f32 %v3340, %v3429
      %v3453 = vmul.f32 %v3342, %v3429
      %v3454 = vmul.f32 %v3344, %v3429
      %v3455 = vmul.f32 %v3346, %v3429
      %v3456 = vmul.f32 %v3348, %v3429
      %v3457 = vmul.f32 %v3350, %v3429
      %v3458 = vmul.f32 %v3352, %v3429
      %v3459 = vmul.f32 %v3354, %v3429
      %v3460 = vmul.f32 %v3356, %v3429
      %v3461 = vmul.f32 %v3358, %v3429
      %v3462 = vmul.f32 %v3360, %v3429
      %v3463 = vmul.f32 %v3362, %v3429
      %v3464 = vmul.f32 %v3364, %v3429
      %v3465 = vmul.f32 %v3366, %v3429
      %v3466 = vmul.f32 %v3368, %v3429
      %v3467 = vmul.f32 %v3370, %v3429
      %v3468 = vmul.f32 %v3372, %v3429
      %v3469 = vmul.f32 %v3374, %v3429
      %v3470 = vmul.f32 %v3376, %v3429
      %v3471 = vmul.f32 %v3378, %v3429
      %v3472 = vmul.f32 %v3380, %v3429
      %v3473 = vmul.f32 %v3382, %v3429
      %v3474 = vmul.f32 %v3384, %v3429
      %v3475 = vmul.f32 %v3386, %v3429
      %v3476 = vmul.f32 %v3388, %v3429
      %v3477 = vmul.f32 %v3390, %v3429
      %v3478 = vmul.f32 %v3392, %v3429
      %v3479 = vmul.f32 %v3394, %v3429
      %v3480 = vmul.f32 %v3396, %v3429
      %v3481 = vmul.f32 %v3398, %v3429
      %v3482 = vmul.f32 %v3400, %v3429
      %v3483 = vmul.f32 %v3402, %v3429
      %v3484 = vmul.f32 %v3404, %v3429
      %v3485 = vmul.f32 %v3406, %v3429
      %v3486 = vmul.f32 %v3408, %v3429
      %v3487 = vmul.f32 %v3410, %v3429
      %v3488 = vmul.f32 %v3412, %v3429
      %v3489 = vmul.f32 %v3414, %v3429
      %v3490 = vmul.f32 %v3416, %v3429
      %v3491 = vmul.f32 %v3418, %v3429
      %v3492 = vmul.f32 %v3420, %v3429
      %v3493 = vmul.f32 %v3422, %v3429
      %v3494 = vsub.f32 %v3136, %v3430
      %v3495 = vsub.f32 %v3138, %v3431
      %v3496 = vsub.f32 %v3141, %v3432
      %v3497 = vsub.f32 %v3143, %v3433
      %v3498 = vsub.f32 %v3146, %v3434
      %v3499 = vsub.f32 %v3148, %v3435
      %v3500 = vsub.f32 %v3151, %v3436
      %v3501 = vsub.f32 %v3153, %v3437
      %v3502 = vsub.f32 %v3156, %v3438
      %v3503 = vsub.f32 %v3158, %v3439
      %v3504 = vsub.f32 %v3161, %v3440
      %v3505 = vsub.f32 %v3163, %v3441
      %v3506 = vsub.f32 %v3166, %v3442
      %v3507 = vsub.f32 %v3168, %v3443
      %v3508 = vsub.f32 %v3171, %v3444
      %v3509 = vsub.f32 %v3173, %v3445
      %v3510 = vsub.f32 %v3176, %v3446
      %v3511 = vsub.f32 %v3178, %v3447
      %v3512 = vsub.f32 %v3181, %v3448
      %v3513 = vsub.f32 %v3183, %v3449
      %v3514 = vsub.f32 %v3186, %v3450
      %v3515 = vsub.f32 %v3188, %v3451
      %v3516 = vsub.f32 %v3191, %v3452
      %v3517 = vsub.f32 %v3193, %v3453
      %v3518 = vsub.f32 %v3196, %v3454
      %v3519 = vsub.f32 %v3198, %v3455
      %v3520 = vsub.f32 %v3201, %v3456
      %v3521 = vsub.f32 %v3203, %v3457
      %v3522 = vsub.f32 %v3206, %v3458
      %v3523 = vsub.f32 %v3208, %v3459
      %v3524 = vsub.f32 %v3211, %v3460
      %v3525 = vsub.f32 %v3213, %v3461
      %v3526 = vsub.f32 %v3216, %v3462
      %v3527 = vsub.f32 %v3218, %v3463
      %v3528 = vsub.f32 %v3221, %v3464
      %v3529 = vsub.f32 %v3223, %v3465
      %v3530 = vsub.f32 %v3226, %v3466
      %v3531 = vsub.f32 %v3228, %v3467
      %v3532 = vsub.f32 %v3231, %v3468
      %v3533 = vsub.f32 %v3233, %v3469
      %v3534 = vsub.f32 %v3236, %v3470
      %v3535 = vsub.f32 %v3238, %v3471
      %v3536 = vsub.f32 %v3241, %v3472
      %v3537 = vsub.f32 %v3243, %v3473
      %v3538 = vsub.f32 %v3246, %v3474
      %v3539 = vsub.f32 %v3248, %v3475
      %v3540 = vsub.f32 %v3251, %v3476
      %v3541 = vsub.f32 %v3253, %v3477
      %v3542 = vsub.f32 %v3256, %v3478
      %v3543 = vsub.f32 %v3258, %v3479
      %v3544 = vsub.f32 %v3261, %v3480
      %v3545 = vsub.f32 %v3263, %v3481
      %v3546 = vsub.f32 %v3266, %v3482
      %v3547 = vsub.f32 %v3268, %v3483
      %v3548 = vsub.f32 %v3271, %v3484
      %v3549 = vsub.f32 %v3273, %v3485
      %v3550 = vsub.f32 %v3276, %v3486
      %v3551 = vsub.f32 %v3278, %v3487
      %v3552 = vsub.f32 %v3281, %v3488
      %v3553 = vsub.f32 %v3283, %v3489
      %v3554 = vsub.f32 %v3286, %v3490
      %v3555 = vsub.f32 %v3288, %v3491
      %v3556 = vsub.f32 %v3291, %v3492
      %v3557 = vsub.f32 %v3293, %v3493
      %v3558 = vmul.f32 %v3494, %v3494
      %v3559 = vmul.f32 %v3495, %v3495
      %v3560 = vmul.f32 %v3496, %v3496
      %v3561 = vmul.f32 %v3497, %v3497
      %v3562 = vmul.f32 %v3498, %v3498
      %v3563 = vmul.f32 %v3499, %v3499
      %v3564 = vmul.f32 %v3500, %v3500
      %v3565 = vmul.f32 %v3501, %v3501
      %v3566 = vmul.f32 %v3502, %v3502
      %v3567 = vmul.f32 %v3503, %v3503
      %v3568 = vmul.f32 %v3504, %v3504
      %v3569 = vmul.f32 %v3505, %v3505
      %v3570 = vmul.f32 %v3506, %v3506
      %v3571 = vmul.f32 %v3507, %v3507
      %v3572 = vmul.f32 %v3508, %v3508
      %v3573 = vmul.f32 %v3509, %v3509
      %v3574 = vmul.f32 %v3510, %v3510
      %v3575 = vmul.f32 %v3511, %v3511
      %v3576 = vmul.f32 %v3512, %v3512
      %v3577 = vmul.f32 %v3513, %v3513
      %v3578 = vmul.f32 %v3514, %v3514
      %v3579 = vmul.f32 %v3515, %v3515
      %v3580 = vmul.f32 %v3516, %v3516
      %v3581 = vmul.f32 %v3517, %v3517
      %v3582 = vmul.f32 %v3518, %v3518
      %v3583 = vmul.f32 %v3519, %v3519
      %v3584 = vmul.f32 %v3520, %v3520
      %v3585 = vmul.f32 %v3521, %v3521
      %v3586 = vmul.f32 %v3522, %v3522
      %v3587 = vmul.f32 %v3523, %v3523
      %v3588 = vmul.f32 %v3524, %v3524
      %v3589 = vmul.f32 %v3525, %v3525
      %v3590 = vmul.f32 %v3526, %v3526
      %v3591 = vmul.f32 %v3527, %v3527
      %v3592 = vmul.f32 %v3528, %v3528
      %v3593 = vmul.f32 %v3529, %v3529
      %v3594 = vmul.f32 %v3530, %v3530
      %v3595 = vmul.f32 %v3531, %v3531
      %v3596 = vmul.f32 %v3532, %v3532
      %v3597 = vmul.f32 %v3533, %v3533
      %v3598 = vmul.f32 %v3534, %v3534
      %v3599 = vmul.f32 %v3535, %v3535
      %v3600 = vmul.f32 %v3536, %v3536
      %v3601 = vmul.f32 %v3537, %v3537
      %v3602 = vmul.f32 %v3538, %v3538
      %v3603 = vmul.f32 %v3539, %v3539
      %v3604 = vmul.f32 %v3540, %v3540
      %v3605 = vmul.f32 %v3541, %v3541
      %v3606 = vmul.f32 %v3542, %v3542
      %v3607 = vmul.f32 %v3543, %v3543
      %v3608 = vmul.f32 %v3544, %v3544
      %v3609 = vmul.f32 %v3545, %v3545
      %v3610 = vmul.f32 %v3546, %v3546
      %v3611 = vmul.f32 %v3547, %v3547
      %v3612 = vmul.f32 %v3548, %v3548
      %v3613 = vmul.f32 %v3549, %v3549
      %v3614 = vmul.f32 %v3550, %v3550
      %v3615 = vmul.f32 %v3551, %v3551
      %v3616 = vmul.f32 %v3552, %v3552
      %v3617 = vmul.f32 %v3553, %v3553
      %v3618 = vmul.f32 %v3554, %v3554
      %v3619 = vmul.f32 %v3555, %v3555
      %v3620 = vmul.f32 %v3556, %v3556
      %v3621 = vmul.f32 %v3557, %v3557
      %3622 = vadd.xlane.f32.xlu0 %v3558
      %v3623 = vpop.xlane.xlu0 %3622
      %3624 = vadd.xlane.f32.xlu0 %v3559
      %v3625 = vpop.xlane.xlu0 %3624
      %3626 = vadd.xlane.f32.xlu0 %v3560
      %v3627 = vpop.xlane.xlu0 %3626
      %3628 = vadd.xlane.f32.xlu0 %v3561
      %v3629 = vpop.xlane.xlu0 %3628
      %3630 = vadd.xlane.f32.xlu0 %v3562
      %v3631 = vpop.xlane.xlu0 %3630
      %3632 = vadd.xlane.f32.xlu0 %v3563
      %v3633 = vpop.xlane.xlu0 %3632
      %3634 = vadd.xlane.f32.xlu0 %v3564
      %v3635 = vpop.xlane.xlu0 %3634
      %3636 = vadd.xlane.f32.xlu0 %v3565
      %v3637 = vpop.xlane.xlu0 %3636
      %3638 = vadd.xlane.f32.xlu0 %v3566
      %v3639 = vpop.xlane.xlu0 %3638
      %3640 = vadd.xlane.f32.xlu0 %v3567
      %v3641 = vpop.xlane.xlu0 %3640
      %3642 = vadd.xlane.f32.xlu0 %v3568
      %v3643 = vpop.xlane.xlu0 %3642
      %3644 = vadd.xlane.f32.xlu0 %v3569
      %v3645 = vpop.xlane.xlu0 %3644
      %3646 = vadd.xlane.f32.xlu0 %v3570
      %v3647 = vpop.xlane.xlu0 %3646
      %3648 = vadd.xlane.f32.xlu0 %v3571
      %v3649 = vpop.xlane.xlu0 %3648
      %3650 = vadd.xlane.f32.xlu0 %v3572
      %v3651 = vpop.xlane.xlu0 %3650
      %3652 = vadd.xlane.f32.xlu0 %v3573
      %v3653 = vpop.xlane.xlu0 %3652
      %3654 = vadd.xlane.f32.xlu0 %v3574
      %v3655 = vpop.xlane.xlu0 %3654
      %3656 = vadd.xlane.f32.xlu0 %v3575
      %v3657 = vpop.xlane.xlu0 %3656
      %3658 = vadd.xlane.f32.xlu0 %v3576
      %v3659 = vpop.xlane.xlu0 %3658
      %3660 = vadd.xlane.f32.xlu0 %v3577
      %v3661 = vpop.xlane.xlu0 %3660
      %3662 = vadd.xlane.f32.xlu0 %v3578
      %v3663 = vpop.xlane.xlu0 %3662
      %3664 = vadd.xlane.f32.xlu0 %v3579
      %v3665 = vpop.xlane.xlu0 %3664
      %3666 = vadd.xlane.f32.xlu0 %v3580
      %v3667 = vpop.xlane.xlu0 %3666
      %3668 = vadd.xlane.f32.xlu0 %v3581
      %v3669 = vpop.xlane.xlu0 %3668
      %3670 = vadd.xlane.f32.xlu0 %v3582
      %v3671 = vpop.xlane.xlu0 %3670
      %3672 = vadd.xlane.f32.xlu0 %v3583
      %v3673 = vpop.xlane.xlu0 %3672
      %3674 = vadd.xlane.f32.xlu0 %v3584
      %v3675 = vpop.xlane.xlu0 %3674
      %3676 = vadd.xlane.f32.xlu0 %v3585
      %v3677 = vpop.xlane.xlu0 %3676
      %3678 = vadd.xlane.f32.xlu0 %v3586
      %v3679 = vpop.xlane.xlu0 %3678
      %3680 = vadd.xlane.f32.xlu0 %v3587
      %v3681 = vpop.xlane.xlu0 %3680
      %3682 = vadd.xlane.f32.xlu0 %v3588
      %v3683 = vpop.xlane.xlu0 %3682
      %3684 = vadd.xlane.f32.xlu0 %v3589
      %v3685 = vpop.xlane.xlu0 %3684
      %3686 = vadd.xlane.f32.xlu0 %v3590
      %v3687 = vpop.xlane.xlu0 %3686
      %3688 = vadd.xlane.f32.xlu0 %v3591
      %v3689 = vpop.xlane.xlu0 %3688
      %3690 = vadd.xlane.f32.xlu0 %v3592
      %v3691 = vpop.xlane.xlu0 %3690
      %3692 = vadd.xlane.f32.xlu0 %v3593
      %v3693 = vpop.xlane.xlu0 %3692
      %3694 = vadd.xlane.f32.xlu0 %v3594
      %v3695 = vpop.xlane.xlu0 %3694
      %3696 = vadd.xlane.f32.xlu0 %v3595
      %v3697 = vpop.xlane.xlu0 %3696
      %3698 = vadd.xlane.f32.xlu0 %v3596
      %v3699 = vpop.xlane.xlu0 %3698
      %3700 = vadd.xlane.f32.xlu0 %v3597
      %v3701 = vpop.xlane.xlu0 %3700
      %3702 = vadd.xlane.f32.xlu0 %v3598
      %v3703 = vpop.xlane.xlu0 %3702
      %3704 = vadd.xlane.f32.xlu0 %v3599
      %v3705 = vpop.xlane.xlu0 %3704
      %3706 = vadd.xlane.f32.xlu0 %v3600
      %v3707 = vpop.xlane.xlu0 %3706
      %3708 = vadd.xlane.f32.xlu0 %v3601
      %v3709 = vpop.xlane.xlu0 %3708
      %3710 = vadd.xlane.f32.xlu0 %v3602
      %v3711 = vpop.xlane.xlu0 %3710
      %3712 = vadd.xlane.f32.xlu0 %v3603
      %v3713 = vpop.xlane.xlu0 %3712
      %3714 = vadd.xlane.f32.xlu0 %v3604
      %v3715 = vpop.xlane.xlu0 %3714
      %3716 = vadd.xlane.f32.xlu0 %v3605
      %v3717 = vpop.xlane.xlu0 %3716
      %3718 = vadd.xlane.f32.xlu0 %v3606
      %v3719 = vpop.xlane.xlu0 %3718
      %3720 = vadd.xlane.f32.xlu0 %v3607
      %v3721 = vpop.xlane.xlu0 %3720
      %3722 = vadd.xlane.f32.xlu0 %v3608
      %v3723 = vpop.xlane.xlu0 %3722
      %3724 = vadd.xlane.f32.xlu0 %v3609
      %v3725 = vpop.xlane.xlu0 %3724
      %3726 = vadd.xlane.f32.xlu0 %v3610
      %v3727 = vpop.xlane.xlu0 %3726
      %3728 = vadd.xlane.f32.xlu0 %v3611
      %v3729 = vpop.xlane.xlu0 %3728
      %3730 = vadd.xlane.f32.xlu0 %v3612
      %v3731 = vpop.xlane.xlu0 %3730
      %3732 = vadd.xlane.f32.xlu0 %v3613
      %v3733 = vpop.xlane.xlu0 %3732
      %3734 = vadd.xlane.f32.xlu0 %v3614
      %v3735 = vpop.xlane.xlu0 %3734
      %3736 = vadd.xlane.f32.xlu0 %v3615
      %v3737 = vpop.xlane.xlu0 %3736
      %3738 = vadd.xlane.f32.xlu0 %v3616
      %v3739 = vpop.xlane.xlu0 %3738
      %3740 = vadd.xlane.f32.xlu0 %v3617
      %v3741 = vpop.xlane.xlu0 %3740
      %3742 = vadd.xlane.f32.xlu0 %v3618
      %v3743 = vpop.xlane.xlu0 %3742
      %3744 = vadd.xlane.f32.xlu0 %v3619
      %v3745 = vpop.xlane.xlu0 %3744
      %3746 = vadd.xlane.f32.xlu0 %v3620
      %v3747 = vpop.xlane.xlu0 %3746
      %3748 = vadd.xlane.f32.xlu0 %v3621
      %v3749 = vpop.xlane.xlu0 %3748
      %v3750 = vmul.f32 %v3623, %v3429
      %v3751 = vmul.f32 %v3625, %v3429
      %v3752 = vmul.f32 %v3627, %v3429
      %v3753 = vmul.f32 %v3629, %v3429
      %v3754 = vmul.f32 %v3631, %v3429
      %v3755 = vmul.f32 %v3633, %v3429
      %v3756 = vmul.f32 %v3635, %v3429
      %v3757 = vmul.f32 %v3637, %v3429
      %v3758 = vmul.f32 %v3639, %v3429
      %v3759 = vmul.f32 %v3641, %v3429
      %v3760 = vmul.f32 %v3643, %v3429
      %v3761 = vmul.f32 %v3645, %v3429
      %v3762 = vmul.f32 %v3647, %v3429
      %v3763 = vmul.f32 %v3649, %v3429
      %v3764 = vmul.f32 %v3651, %v3429
      %v3765 = vmul.f32 %v3653, %v3429
      %v3766 = vmul.f32 %v3655, %v3429
      %v3767 = vmul.f32 %v3657, %v3429
      %v3768 = vmul.f32 %v3659, %v3429
      %v3769 = vmul.f32 %v3661, %v3429
      %v3770 = vmul.f32 %v3663, %v3429
      %v3771 = vmul.f32 %v3665, %v3429
      %v3772 = vmul.f32 %v3667, %v3429
      %v3773 = vmul.f32 %v3669, %v3429
      %v3774 = vmul.f32 %v3671, %v3429
      %v3775 = vmul.f32 %v3673, %v3429
      %v3776 = vmul.f32 %v3675, %v3429
      %v3777 = vmul.f32 %v3677, %v3429
      %v3778 = vmul.f32 %v3679, %v3429
      %v3779 = vmul.f32 %v3681, %v3429
      %v3780 = vmul.f32 %v3683, %v3429
      %v3781 = vmul.f32 %v3685, %v3429
      %v3782 = vmul.f32 %v3687, %v3429
      %v3783 = vmul.f32 %v3689, %v3429
      %v3784 = vmul.f32 %v3691, %v3429
      %v3785 = vmul.f32 %v3693, %v3429
      %v3786 = vmul.f32 %v3695, %v3429
      %v3787 = vmul.f32 %v3697, %v3429
      %v3788 = vmul.f32 %v3699, %v3429
      %v3789 = vmul.f32 %v3701, %v3429
      %v3790 = vmul.f32 %v3703, %v3429
      %v3791 = vmul.f32 %v3705, %v3429
      %v3792 = vmul.f32 %v3707, %v3429
      %v3793 = vmul.f32 %v3709, %v3429
      %v3794 = vmul.f32 %v3711, %v3429
      %v3795 = vmul.f32 %v3713, %v3429
      %v3796 = vmul.f32 %v3715, %v3429
      %v3797 = vmul.f32 %v3717, %v3429
      %v3798 = vmul.f32 %v3719, %v3429
      %v3799 = vmul.f32 %v3721, %v3429
      %v3800 = vmul.f32 %v3723, %v3429
      %v3801 = vmul.f32 %v3725, %v3429
      %v3802 = vmul.f32 %v3727, %v3429
      %v3803 = vmul.f32 %v3729, %v3429
      %v3804 = vmul.f32 %v3731, %v3429
      %v3805 = vmul.f32 %v3733, %v3429
      %v3806 = vmul.f32 %v3735, %v3429
      %v3807 = vmul.f32 %v3737, %v3429
      %v3808 = vmul.f32 %v3739, %v3429
      %v3809 = vmul.f32 %v3741, %v3429
      %v3810 = vmul.f32 %v3743, %v3429
      %v3811 = vmul.f32 %v3745, %v3429
      %v3812 = vmul.f32 %v3747, %v3429
      %v3813 = vmul.f32 %v3749, %v3429
      %v3814 = vadd.f32 %v3750, 1e-05
      %v3815 = vadd.f32 %v3751, 1e-05
      %v3816 = vadd.f32 %v3752, 1e-05
      %v3817 = vadd.f32 %v3753, 1e-05
      %v3818 = vadd.f32 %v3754, 1e-05
      %v3819 = vadd.f32 %v3755, 1e-05
      %v3820 = vadd.f32 %v3756, 1e-05
      %v3821 = vadd.f32 %v3757, 1e-05
      %v3822 = vadd.f32 %v3758, 1e-05
      %v3823 = vadd.f32 %v3759, 1e-05
      %v3824 = vadd.f32 %v3760, 1e-05
      %v3825 = vadd.f32 %v3761, 1e-05
      %v3826 = vadd.f32 %v3762, 1e-05
      %v3827 = vadd.f32 %v3763, 1e-05
      %v3828 = vadd.f32 %v3764, 1e-05
      %v3829 = vadd.f32 %v3765, 1e-05
      %v3830 = vadd.f32 %v3766, 1e-05
      %v3831 = vadd.f32 %v3767, 1e-05
      %v3832 = vadd.f32 %v3768, 1e-05
      %v3833 = vadd.f32 %v3769, 1e-05
      %v3834 = vadd.f32 %v3770, 1e-05
      %v3835 = vadd.f32 %v3771, 1e-05
      %v3836 = vadd.f32 %v3772, 1e-05
      %v3837 = vadd.f32 %v3773, 1e-05
      %v3838 = vadd.f32 %v3774, 1e-05
      %v3839 = vadd.f32 %v3775, 1e-05
      %v3840 = vadd.f32 %v3776, 1e-05
      %v3841 = vadd.f32 %v3777, 1e-05
      %v3842 = vadd.f32 %v3778, 1e-05
      %v3843 = vadd.f32 %v3779, 1e-05
      %v3844 = vadd.f32 %v3780, 1e-05
      %v3845 = vadd.f32 %v3781, 1e-05
      %v3846 = vadd.f32 %v3782, 1e-05
      %v3847 = vadd.f32 %v3783, 1e-05
      %v3848 = vadd.f32 %v3784, 1e-05
      %v3849 = vadd.f32 %v3785, 1e-05
      %v3850 = vadd.f32 %v3786, 1e-05
      %v3851 = vadd.f32 %v3787, 1e-05
      %v3852 = vadd.f32 %v3788, 1e-05
      %v3853 = vadd.f32 %v3789, 1e-05
      %v3854 = vadd.f32 %v3790, 1e-05
      %v3855 = vadd.f32 %v3791, 1e-05
      %v3856 = vadd.f32 %v3792, 1e-05
      %v3857 = vadd.f32 %v3793, 1e-05
      %v3858 = vadd.f32 %v3794, 1e-05
      %v3859 = vadd.f32 %v3795, 1e-05
      %v3860 = vadd.f32 %v3796, 1e-05
      %v3861 = vadd.f32 %v3797, 1e-05
      %v3862 = vadd.f32 %v3798, 1e-05
      %v3863 = vadd.f32 %v3799, 1e-05
      %v3864 = vadd.f32 %v3800, 1e-05
      %v3865 = vadd.f32 %v3801, 1e-05
      %v3866 = vadd.f32 %v3802, 1e-05
      %v3867 = vadd.f32 %v3803, 1e-05
      %v3868 = vadd.f32 %v3804, 1e-05
      %v3869 = vadd.f32 %v3805, 1e-05
      %v3870 = vadd.f32 %v3806, 1e-05
      %v3871 = vadd.f32 %v3807, 1e-05
      %v3872 = vadd.f32 %v3808, 1e-05
      %v3873 = vadd.f32 %v3809, 1e-05
      %v3874 = vadd.f32 %v3810, 1e-05
      %v3875 = vadd.f32 %v3811, 1e-05
      %v3876 = vadd.f32 %v3812, 1e-05
      %v3877 = vadd.f32 %v3813, 1e-05
      %v3878 = vrsqrt.pop %v3814
      %v3879 = vmul.f32 %v3878, %v3814
      %v3880 = vmul.f32 %v3879, %v3878
      %v3881 = vmul.f32 0.5, %v3880
      %v3882 = vsub.f32 1.5, %v3881
      %v3883 = vmul.f32 %v3878, %v3882
      %vm3884 = vweird.f32 %v3814
      %vm3885 = vweird.f32 %v3878
      %vm3886 = vmor %vm3884, %vm3885
      %v3887 = vsel %vm3886, %v3878, %v3883
      %v3888 = vrsqrt.pop %v3815
      %v3889 = vmul.f32 %v3888, %v3815
      %v3890 = vmul.f32 %v3889, %v3888
      %v3891 = vmul.f32 0.5, %v3890
      %v3892 = vsub.f32 1.5, %v3891
      %v3893 = vmul.f32 %v3888, %v3892
      %vm3894 = vweird.f32 %v3815
      %vm3895 = vweird.f32 %v3888
      %vm3896 = vmor %vm3894, %vm3895
      %v3897 = vsel %vm3896, %v3888, %v3893
      %v3898 = vrsqrt.pop %v3816
      %v3899 = vmul.f32 %v3898, %v3816
      %v3900 = vmul.f32 %v3899, %v3898
      %v3901 = vmul.f32 0.5, %v3900
      %v3902 = vsub.f32 1.5, %v3901
      %v3903 = vmul.f32 %v3898, %v3902
      %vm3904 = vweird.f32 %v3816
      %vm3905 = vweird.f32 %v3898
      %vm3906 = vmor %vm3904, %vm3905
      %v3907 = vsel %vm3906, %v3898, %v3903
      %v3908 = vrsqrt.pop %v3817
      %v3909 = vmul.f32 %v3908, %v3817
      %v3910 = vmul.f32 %v3909, %v3908
      %v3911 = vmul.f32 0.5, %v3910
      %v3912 = vsub.f32 1.5, %v3911
      %v3913 = vmul.f32 %v3908, %v3912
      %vm3914 = vweird.f32 %v3817
      %vm3915 = vweird.f32 %v3908
      %vm3916 = vmor %vm3914, %vm3915
      %v3917 = vsel %vm3916, %v3908, %v3913
      %v3918 = vrsqrt.pop %v3818
      %v3919 = vmul.f32 %v3918, %v3818
      %v3920 = vmul.f32 %v3919, %v3918
      %v3921 = vmul.f32 0.5, %v3920
      %v3922 = vsub.f32 1.5, %v3921
      %v3923 = vmul.f32 %v3918, %v3922
      %vm3924 = vweird.f32 %v3818
      %vm3925 = vweird.f32 %v3918
      %vm3926 = vmor %vm3924, %vm3925
      %v3927 = vsel %vm3926, %v3918, %v3923
      %v3928 = vrsqrt.pop %v3819
      %v3929 = vmul.f32 %v3928, %v3819
      %v3930 = vmul.f32 %v3929, %v3928
      %v3931 = vmul.f32 0.5, %v3930
      %v3932 = vsub.f32 1.5, %v3931
      %v3933 = vmul.f32 %v3928, %v3932
      %vm3934 = vweird.f32 %v3819
      %vm3935 = vweird.f32 %v3928
      %vm3936 = vmor %vm3934, %vm3935
      %v3937 = vsel %vm3936, %v3928, %v3933
      %v3938 = vrsqrt.pop %v3820
      %v3939 = vmul.f32 %v3938, %v3820
      %v3940 = vmul.f32 %v3939, %v3938
      %v3941 = vmul.f32 0.5, %v3940
      %v3942 = vsub.f32 1.5, %v3941
      %v3943 = vmul.f32 %v3938, %v3942
      %vm3944 = vweird.f32 %v3820
      %vm3945 = vweird.f32 %v3938
      %vm3946 = vmor %vm3944, %vm3945
      %v3947 = vsel %vm3946, %v3938, %v3943
      %v3948 = vrsqrt.pop %v3821
      %v3949 = vmul.f32 %v3948, %v3821
      %v3950 = vmul.f32 %v3949, %v3948
      %v3951 = vmul.f32 0.5, %v3950
      %v3952 = vsub.f32 1.5, %v3951
      %v3953 = vmul.f32 %v3948, %v3952
      %vm3954 = vweird.f32 %v3821
      %vm3955 = vweird.f32 %v3948
      %vm3956 = vmor %vm3954, %vm3955
      %v3957 = vsel %vm3956, %v3948, %v3953
      %v3958 = vrsqrt.pop %v3822
      %v3959 = vmul.f32 %v3958, %v3822
      %v3960 = vmul.f32 %v3959, %v3958
      %v3961 = vmul.f32 0.5, %v3960
      %v3962 = vsub.f32 1.5, %v3961
      %v3963 = vmul.f32 %v3958, %v3962
      %vm3964 = vweird.f32 %v3822
      %vm3965 = vweird.f32 %v3958
      %vm3966 = vmor %vm3964, %vm3965
      %v3967 = vsel %vm3966, %v3958, %v3963
      %v3968 = vrsqrt.pop %v3823
      %v3969 = vmul.f32 %v3968, %v3823
      %v3970 = vmul.f32 %v3969, %v3968
      %v3971 = vmul.f32 0.5, %v3970
      %v3972 = vsub.f32 1.5, %v3971
      %v3973 = vmul.f32 %v3968, %v3972
      %vm3974 = vweird.f32 %v3823
      %vm3975 = vweird.f32 %v3968
      %vm3976 = vmor %vm3974, %vm3975
      %v3977 = vsel %vm3976, %v3968, %v3973
      %v3978 = vrsqrt.pop %v3824
      %v3979 = vmul.f32 %v3978, %v3824
      %v3980 = vmul.f32 %v3979, %v3978
      %v3981 = vmul.f32 0.5, %v3980
      %v3982 = vsub.f32 1.5, %v3981
      %v3983 = vmul.f32 %v3978, %v3982
      %vm3984 = vweird.f32 %v3824
      %vm3985 = vweird.f32 %v3978
      %vm3986 = vmor %vm3984, %vm3985
      %v3987 = vsel %vm3986, %v3978, %v3983
      %v3988 = vrsqrt.pop %v3825
      %v3989 = vmul.f32 %v3988, %v3825
      %v3990 = vmul.f32 %v3989, %v3988
      %v3991 = vmul.f32 0.5, %v3990
      %v3992 = vsub.f32 1.5, %v3991
      %v3993 = vmul.f32 %v3988, %v3992
      %vm3994 = vweird.f32 %v3825
      %vm3995 = vweird.f32 %v3988
      %vm3996 = vmor %vm3994, %vm3995
      %v3997 = vsel %vm3996, %v3988, %v3993
      %v3998 = vrsqrt.pop %v3826
      %v3999 = vmul.f32 %v3998, %v3826
      %v4000 = vmul.f32 %v3999, %v3998
      %v4001 = vmul.f32 0.5, %v4000
      %v4002 = vsub.f32 1.5, %v4001
      %v4003 = vmul.f32 %v3998, %v4002
      %vm4004 = vweird.f32 %v3826
      %vm4005 = vweird.f32 %v3998
      %vm4006 = vmor %vm4004, %vm4005
      %v4007 = vsel %vm4006, %v3998, %v4003
      %v4008 = vrsqrt.pop %v3827
      %v4009 = vmul.f32 %v4008, %v3827
      %v4010 = vmul.f32 %v4009, %v4008
      %v4011 = vmul.f32 0.5, %v4010
      %v4012 = vsub.f32 1.5, %v4011
      %v4013 = vmul.f32 %v4008, %v4012
      %vm4014 = vweird.f32 %v3827
      %vm4015 = vweird.f32 %v4008
      %vm4016 = vmor %vm4014, %vm4015
      %v4017 = vsel %vm4016, %v4008, %v4013
      %v4018 = vrsqrt.pop %v3828
      %v4019 = vmul.f32 %v4018, %v3828
      %v4020 = vmul.f32 %v4019, %v4018
      %v4021 = vmul.f32 0.5, %v4020
      %v4022 = vsub.f32 1.5, %v4021
      %v4023 = vmul.f32 %v4018, %v4022
      %vm4024 = vweird.f32 %v3828
      %vm4025 = vweird.f32 %v4018
      %vm4026 = vmor %vm4024, %vm4025
      %v4027 = vsel %vm4026, %v4018, %v4023
      %v4028 = vrsqrt.pop %v3829
      %v4029 = vmul.f32 %v4028, %v3829
      %v4030 = vmul.f32 %v4029, %v4028
      %v4031 = vmul.f32 0.5, %v4030
      %v4032 = vsub.f32 1.5, %v4031
      %v4033 = vmul.f32 %v4028, %v4032
      %vm4034 = vweird.f32 %v3829
      %vm4035 = vweird.f32 %v4028
      %vm4036 = vmor %vm4034, %vm4035
      %v4037 = vsel %vm4036, %v4028, %v4033
      %v4038 = vrsqrt.pop %v3830
      %v4039 = vmul.f32 %v4038, %v3830
      %v4040 = vmul.f32 %v4039, %v4038
      %v4041 = vmul.f32 0.5, %v4040
      %v4042 = vsub.f32 1.5, %v4041
      %v4043 = vmul.f32 %v4038, %v4042
      %vm4044 = vweird.f32 %v3830
      %vm4045 = vweird.f32 %v4038
      %vm4046 = vmor %vm4044, %vm4045
      %v4047 = vsel %vm4046, %v4038, %v4043
      %v4048 = vrsqrt.pop %v3831
      %v4049 = vmul.f32 %v4048, %v3831
      %v4050 = vmul.f32 %v4049, %v4048
      %v4051 = vmul.f32 0.5, %v4050
      %v4052 = vsub.f32 1.5, %v4051
      %v4053 = vmul.f32 %v4048, %v4052
      %vm4054 = vweird.f32 %v3831
      %vm4055 = vweird.f32 %v4048
      %vm4056 = vmor %vm4054, %vm4055
      %v4057 = vsel %vm4056, %v4048, %v4053
      %v4058 = vrsqrt.pop %v3832
      %v4059 = vmul.f32 %v4058, %v3832
      %v4060 = vmul.f32 %v4059, %v4058
      %v4061 = vmul.f32 0.5, %v4060
      %v4062 = vsub.f32 1.5, %v4061
      %v4063 = vmul.f32 %v4058, %v4062
      %vm4064 = vweird.f32 %v3832
      %vm4065 = vweird.f32 %v4058
      %vm4066 = vmor %vm4064, %vm4065
      %v4067 = vsel %vm4066, %v4058, %v4063
      %v4068 = vrsqrt.pop %v3833
      %v4069 = vmul.f32 %v4068, %v3833
      %v4070 = vmul.f32 %v4069, %v4068
      %v4071 = vmul.f32 0.5, %v4070
      %v4072 = vsub.f32 1.5, %v4071
      %v4073 = vmul.f32 %v4068, %v4072
      %vm4074 = vweird.f32 %v3833
      %vm4075 = vweird.f32 %v4068
      %vm4076 = vmor %vm4074, %vm4075
      %v4077 = vsel %vm4076, %v4068, %v4073
      %v4078 = vrsqrt.pop %v3834
      %v4079 = vmul.f32 %v4078, %v3834
      %v4080 = vmul.f32 %v4079, %v4078
      %v4081 = vmul.f32 0.5, %v4080
      %v4082 = vsub.f32 1.5, %v4081
      %v4083 = vmul.f32 %v4078, %v4082
      %vm4084 = vweird.f32 %v3834
      %vm4085 = vweird.f32 %v4078
      %vm4086 = vmor %vm4084, %vm4085
      %v4087 = vsel %vm4086, %v4078, %v4083
      %v4088 = vrsqrt.pop %v3835
      %v4089 = vmul.f32 %v4088, %v3835
      %v4090 = vmul.f32 %v4089, %v4088
      %v4091 = vmul.f32 0.5, %v4090
      %v4092 = vsub.f32 1.5, %v4091
      %v4093 = vmul.f32 %v4088, %v4092
      %vm4094 = vweird.f32 %v3835
      %vm4095 = vweird.f32 %v4088
      %vm4096 = vmor %vm4094, %vm4095
      %v4097 = vsel %vm4096, %v4088, %v4093
      %v4098 = vrsqrt.pop %v3836
      %v4099 = vmul.f32 %v4098, %v3836
      %v4100 = vmul.f32 %v4099, %v4098
      %v4101 = vmul.f32 0.5, %v4100
      %v4102 = vsub.f32 1.5, %v4101
      %v4103 = vmul.f32 %v4098, %v4102
      %vm4104 = vweird.f32 %v3836
      %vm4105 = vweird.f32 %v4098
      %vm4106 = vmor %vm4104, %vm4105
      %v4107 = vsel %vm4106, %v4098, %v4103
      %v4108 = vrsqrt.pop %v3837
      %v4109 = vmul.f32 %v4108, %v3837
      %v4110 = vmul.f32 %v4109, %v4108
      %v4111 = vmul.f32 0.5, %v4110
      %v4112 = vsub.f32 1.5, %v4111
      %v4113 = vmul.f32 %v4108, %v4112
      %vm4114 = vweird.f32 %v3837
      %vm4115 = vweird.f32 %v4108
      %vm4116 = vmor %vm4114, %vm4115
      %v4117 = vsel %vm4116, %v4108, %v4113
      %v4118 = vrsqrt.pop %v3838
      %v4119 = vmul.f32 %v4118, %v3838
      %v4120 = vmul.f32 %v4119, %v4118
      %v4121 = vmul.f32 0.5, %v4120
      %v4122 = vsub.f32 1.5, %v4121
      %v4123 = vmul.f32 %v4118, %v4122
      %vm4124 = vweird.f32 %v3838
      %vm4125 = vweird.f32 %v4118
      %vm4126 = vmor %vm4124, %vm4125
      %v4127 = vsel %vm4126, %v4118, %v4123
      %v4128 = vrsqrt.pop %v3839
      %v4129 = vmul.f32 %v4128, %v3839
      %v4130 = vmul.f32 %v4129, %v4128
      %v4131 = vmul.f32 0.5, %v4130
      %v4132 = vsub.f32 1.5, %v4131
      %v4133 = vmul.f32 %v4128, %v4132
      %vm4134 = vweird.f32 %v3839
      %vm4135 = vweird.f32 %v4128
      %vm4136 = vmor %vm4134, %vm4135
      %v4137 = vsel %vm4136, %v4128, %v4133
      %v4138 = vrsqrt.pop %v3840
      %v4139 = vmul.f32 %v4138, %v3840
      %v4140 = vmul.f32 %v4139, %v4138
      %v4141 = vmul.f32 0.5, %v4140
      %v4142 = vsub.f32 1.5, %v4141
      %v4143 = vmul.f32 %v4138, %v4142
      %vm4144 = vweird.f32 %v3840
      %vm4145 = vweird.f32 %v4138
      %vm4146 = vmor %vm4144, %vm4145
      %v4147 = vsel %vm4146, %v4138, %v4143
      %v4148 = vrsqrt.pop %v3841
      %v4149 = vmul.f32 %v4148, %v3841
      %v4150 = vmul.f32 %v4149, %v4148
      %v4151 = vmul.f32 0.5, %v4150
      %v4152 = vsub.f32 1.5, %v4151
      %v4153 = vmul.f32 %v4148, %v4152
      %vm4154 = vweird.f32 %v3841
      %vm4155 = vweird.f32 %v4148
      %vm4156 = vmor %vm4154, %vm4155
      %v4157 = vsel %vm4156, %v4148, %v4153
      %v4158 = vrsqrt.pop %v3842
      %v4159 = vmul.f32 %v4158, %v3842
      %v4160 = vmul.f32 %v4159, %v4158
      %v4161 = vmul.f32 0.5, %v4160
      %v4162 = vsub.f32 1.5, %v4161
      %v4163 = vmul.f32 %v4158, %v4162
      %vm4164 = vweird.f32 %v3842
      %vm4165 = vweird.f32 %v4158
      %vm4166 = vmor %vm4164, %vm4165
      %v4167 = vsel %vm4166, %v4158, %v4163
      %v4168 = vrsqrt.pop %v3843
      %v4169 = vmul.f32 %v4168, %v3843
      %v4170 = vmul.f32 %v4169, %v4168
      %v4171 = vmul.f32 0.5, %v4170
      %v4172 = vsub.f32 1.5, %v4171
      %v4173 = vmul.f32 %v4168, %v4172
      %vm4174 = vweird.f32 %v3843
      %vm4175 = vweird.f32 %v4168
      %vm4176 = vmor %vm4174, %vm4175
      %v4177 = vsel %vm4176, %v4168, %v4173
      %v4178 = vrsqrt.pop %v3844
      %v4179 = vmul.f32 %v4178, %v3844
      %v4180 = vmul.f32 %v4179, %v4178
      %v4181 = vmul.f32 0.5, %v4180
      %v4182 = vsub.f32 1.5, %v4181
      %v4183 = vmul.f32 %v4178, %v4182
      %vm4184 = vweird.f32 %v3844
      %vm4185 = vweird.f32 %v4178
      %vm4186 = vmor %vm4184, %vm4185
      %v4187 = vsel %vm4186, %v4178, %v4183
      %v4188 = vrsqrt.pop %v3845
      %v4189 = vmul.f32 %v4188, %v3845
      %v4190 = vmul.f32 %v4189, %v4188
      %v4191 = vmul.f32 0.5, %v4190
      %v4192 = vsub.f32 1.5, %v4191
      %v4193 = vmul.f32 %v4188, %v4192
      %vm4194 = vweird.f32 %v3845
      %vm4195 = vweird.f32 %v4188
      %vm4196 = vmor %vm4194, %vm4195
      %v4197 = vsel %vm4196, %v4188, %v4193
      %v4198 = vrsqrt.pop %v3846
      %v4199 = vmul.f32 %v4198, %v3846
      %v4200 = vmul.f32 %v4199, %v4198
      %v4201 = vmul.f32 0.5, %v4200
      %v4202 = vsub.f32 1.5, %v4201
      %v4203 = vmul.f32 %v4198, %v4202
      %vm4204 = vweird.f32 %v3846
      %vm4205 = vweird.f32 %v4198
      %vm4206 = vmor %vm4204, %vm4205
      %v4207 = vsel %vm4206, %v4198, %v4203
      %v4208 = vrsqrt.pop %v3847
      %v4209 = vmul.f32 %v4208, %v3847
      %v4210 = vmul.f32 %v4209, %v4208
      %v4211 = vmul.f32 0.5, %v4210
      %v4212 = vsub.f32 1.5, %v4211
      %v4213 = vmul.f32 %v4208, %v4212
      %vm4214 = vweird.f32 %v3847
      %vm4215 = vweird.f32 %v4208
      %vm4216 = vmor %vm4214, %vm4215
      %v4217 = vsel %vm4216, %v4208, %v4213
      %v4218 = vrsqrt.pop %v3848
      %v4219 = vmul.f32 %v4218, %v3848
      %v4220 = vmul.f32 %v4219, %v4218
      %v4221 = vmul.f32 0.5, %v4220
      %v4222 = vsub.f32 1.5, %v4221
      %v4223 = vmul.f32 %v4218, %v4222
      %vm4224 = vweird.f32 %v3848
      %vm4225 = vweird.f32 %v4218
      %vm4226 = vmor %vm4224, %vm4225
      %v4227 = vsel %vm4226, %v4218, %v4223
      %v4228 = vrsqrt.pop %v3849
      %v4229 = vmul.f32 %v4228, %v3849
      %v4230 = vmul.f32 %v4229, %v4228
      %v4231 = vmul.f32 0.5, %v4230
      %v4232 = vsub.f32 1.5, %v4231
      %v4233 = vmul.f32 %v4228, %v4232
      %vm4234 = vweird.f32 %v3849
      %vm4235 = vweird.f32 %v4228
      %vm4236 = vmor %vm4234, %vm4235
      %v4237 = vsel %vm4236, %v4228, %v4233
      %v4238 = vrsqrt.pop %v3850
      %v4239 = vmul.f32 %v4238, %v3850
      %v4240 = vmul.f32 %v4239, %v4238
      %v4241 = vmul.f32 0.5, %v4240
      %v4242 = vsub.f32 1.5, %v4241
      %v4243 = vmul.f32 %v4238, %v4242
      %vm4244 = vweird.f32 %v3850
      %vm4245 = vweird.f32 %v4238
      %vm4246 = vmor %vm4244, %vm4245
      %v4247 = vsel %vm4246, %v4238, %v4243
      %v4248 = vrsqrt.pop %v3851
      %v4249 = vmul.f32 %v4248, %v3851
      %v4250 = vmul.f32 %v4249, %v4248
      %v4251 = vmul.f32 0.5, %v4250
      %v4252 = vsub.f32 1.5, %v4251
      %v4253 = vmul.f32 %v4248, %v4252
      %vm4254 = vweird.f32 %v3851
      %vm4255 = vweird.f32 %v4248
      %vm4256 = vmor %vm4254, %vm4255
      %v4257 = vsel %vm4256, %v4248, %v4253
      %v4258 = vrsqrt.pop %v3852
      %v4259 = vmul.f32 %v4258, %v3852
      %v4260 = vmul.f32 %v4259, %v4258
      %v4261 = vmul.f32 0.5, %v4260
      %v4262 = vsub.f32 1.5, %v4261
      %v4263 = vmul.f32 %v4258, %v4262
      %vm4264 = vweird.f32 %v3852
      %vm4265 = vweird.f32 %v4258
      %vm4266 = vmor %vm4264, %vm4265
      %v4267 = vsel %vm4266, %v4258, %v4263
      %v4268 = vrsqrt.pop %v3853
      %v4269 = vmul.f32 %v4268, %v3853
      %v4270 = vmul.f32 %v4269, %v4268
      %v4271 = vmul.f32 0.5, %v4270
      %v4272 = vsub.f32 1.5, %v4271
      %v4273 = vmul.f32 %v4268, %v4272
      %vm4274 = vweird.f32 %v3853
      %vm4275 = vweird.f32 %v4268
      %vm4276 = vmor %vm4274, %vm4275
      %v4277 = vsel %vm4276, %v4268, %v4273
      %v4278 = vrsqrt.pop %v3854
      %v4279 = vmul.f32 %v4278, %v3854
      %v4280 = vmul.f32 %v4279, %v4278
      %v4281 = vmul.f32 0.5, %v4280
      %v4282 = vsub.f32 1.5, %v4281
      %v4283 = vmul.f32 %v4278, %v4282
      %vm4284 = vweird.f32 %v3854
      %vm4285 = vweird.f32 %v4278
      %vm4286 = vmor %vm4284, %vm4285
      %v4287 = vsel %vm4286, %v4278, %v4283
      %v4288 = vrsqrt.pop %v3855
      %v4289 = vmul.f32 %v4288, %v3855
      %v4290 = vmul.f32 %v4289, %v4288
      %v4291 = vmul.f32 0.5, %v4290
      %v4292 = vsub.f32 1.5, %v4291
      %v4293 = vmul.f32 %v4288, %v4292
      %vm4294 = vweird.f32 %v3855
      %vm4295 = vweird.f32 %v4288
      %vm4296 = vmor %vm4294, %vm4295
      %v4297 = vsel %vm4296, %v4288, %v4293
      %v4298 = vrsqrt.pop %v3856
      %v4299 = vmul.f32 %v4298, %v3856
      %v4300 = vmul.f32 %v4299, %v4298
      %v4301 = vmul.f32 0.5, %v4300
      %v4302 = vsub.f32 1.5, %v4301
      %v4303 = vmul.f32 %v4298, %v4302
      %vm4304 = vweird.f32 %v3856
      %vm4305 = vweird.f32 %v4298
      %vm4306 = vmor %vm4304, %vm4305
      %v4307 = vsel %vm4306, %v4298, %v4303
      %v4308 = vrsqrt.pop %v3857
      %v4309 = vmul.f32 %v4308, %v3857
      %v4310 = vmul.f32 %v4309, %v4308
      %v4311 = vmul.f32 0.5, %v4310
      %v4312 = vsub.f32 1.5, %v4311
      %v4313 = vmul.f32 %v4308, %v4312
      %vm4314 = vweird.f32 %v3857
      %vm4315 = vweird.f32 %v4308
      %vm4316 = vmor %vm4314, %vm4315
      %v4317 = vsel %vm4316, %v4308, %v4313
      %v4318 = vrsqrt.pop %v3858
      %v4319 = vmul.f32 %v4318, %v3858
      %v4320 = vmul.f32 %v4319, %v4318
      %v4321 = vmul.f32 0.5, %v4320
      %v4322 = vsub.f32 1.5, %v4321
      %v4323 = vmul.f32 %v4318, %v4322
      %vm4324 = vweird.f32 %v3858
      %vm4325 = vweird.f32 %v4318
      %vm4326 = vmor %vm4324, %vm4325
      %v4327 = vsel %vm4326, %v4318, %v4323
      %v4328 = vrsqrt.pop %v3859
      %v4329 = vmul.f32 %v4328, %v3859
      %v4330 = vmul.f32 %v4329, %v4328
      %v4331 = vmul.f32 0.5, %v4330
      %v4332 = vsub.f32 1.5, %v4331
      %v4333 = vmul.f32 %v4328, %v4332
      %vm4334 = vweird.f32 %v3859
      %vm4335 = vweird.f32 %v4328
      %vm4336 = vmor %vm4334, %vm4335
      %v4337 = vsel %vm4336, %v4328, %v4333
      %v4338 = vrsqrt.pop %v3860
      %v4339 = vmul.f32 %v4338, %v3860
      %v4340 = vmul.f32 %v4339, %v4338
      %v4341 = vmul.f32 0.5, %v4340
      %v4342 = vsub.f32 1.5, %v4341
      %v4343 = vmul.f32 %v4338, %v4342
      %vm4344 = vweird.f32 %v3860
      %vm4345 = vweird.f32 %v4338
      %vm4346 = vmor %vm4344, %vm4345
      %v4347 = vsel %vm4346, %v4338, %v4343
      %v4348 = vrsqrt.pop %v3861
      %v4349 = vmul.f32 %v4348, %v3861
      %v4350 = vmul.f32 %v4349, %v4348
      %v4351 = vmul.f32 0.5, %v4350
      %v4352 = vsub.f32 1.5, %v4351
      %v4353 = vmul.f32 %v4348, %v4352
      %vm4354 = vweird.f32 %v3861
      %vm4355 = vweird.f32 %v4348
      %vm4356 = vmor %vm4354, %vm4355
      %v4357 = vsel %vm4356, %v4348, %v4353
      %v4358 = vrsqrt.pop %v3862
      %v4359 = vmul.f32 %v4358, %v3862
      %v4360 = vmul.f32 %v4359, %v4358
      %v4361 = vmul.f32 0.5, %v4360
      %v4362 = vsub.f32 1.5, %v4361
      %v4363 = vmul.f32 %v4358, %v4362
      %vm4364 = vweird.f32 %v3862
      %vm4365 = vweird.f32 %v4358
      %vm4366 = vmor %vm4364, %vm4365
      %v4367 = vsel %vm4366, %v4358, %v4363
      %v4368 = vrsqrt.pop %v3863
      %v4369 = vmul.f32 %v4368, %v3863
      %v4370 = vmul.f32 %v4369, %v4368
      %v4371 = vmul.f32 0.5, %v4370
      %v4372 = vsub.f32 1.5, %v4371
      %v4373 = vmul.f32 %v4368, %v4372
      %vm4374 = vweird.f32 %v3863
      %vm4375 = vweird.f32 %v4368
      %vm4376 = vmor %vm4374, %vm4375
      %v4377 = vsel %vm4376, %v4368, %v4373
      %v4378 = vrsqrt.pop %v3864
      %v4379 = vmul.f32 %v4378, %v3864
      %v4380 = vmul.f32 %v4379, %v4378
      %v4381 = vmul.f32 0.5, %v4380
      %v4382 = vsub.f32 1.5, %v4381
      %v4383 = vmul.f32 %v4378, %v4382
      %vm4384 = vweird.f32 %v3864
      %vm4385 = vweird.f32 %v4378
      %vm4386 = vmor %vm4384, %vm4385
      %v4387 = vsel %vm4386, %v4378, %v4383
      %v4388 = vrsqrt.pop %v3865
      %v4389 = vmul.f32 %v4388, %v3865
      %v4390 = vmul.f32 %v4389, %v4388
      %v4391 = vmul.f32 0.5, %v4390
      %v4392 = vsub.f32 1.5, %v4391
      %v4393 = vmul.f32 %v4388, %v4392
      %vm4394 = vweird.f32 %v3865
      %vm4395 = vweird.f32 %v4388
      %vm4396 = vmor %vm4394, %vm4395
      %v4397 = vsel %vm4396, %v4388, %v4393
      %v4398 = vrsqrt.pop %v3866
      %v4399 = vmul.f32 %v4398, %v3866
      %v4400 = vmul.f32 %v4399, %v4398
      %v4401 = vmul.f32 0.5, %v4400
      %v4402 = vsub.f32 1.5, %v4401
      %v4403 = vmul.f32 %v4398, %v4402
      %vm4404 = vweird.f32 %v3866
      %vm4405 = vweird.f32 %v4398
      %vm4406 = vmor %vm4404, %vm4405
      %v4407 = vsel %vm4406, %v4398, %v4403
      %v4408 = vrsqrt.pop %v3867
      %v4409 = vmul.f32 %v4408, %v3867
      %v4410 = vmul.f32 %v4409, %v4408
      %v4411 = vmul.f32 0.5, %v4410
      %v4412 = vsub.f32 1.5, %v4411
      %v4413 = vmul.f32 %v4408, %v4412
      %vm4414 = vweird.f32 %v3867
      %vm4415 = vweird.f32 %v4408
      %vm4416 = vmor %vm4414, %vm4415
      %v4417 = vsel %vm4416, %v4408, %v4413
      %v4418 = vrsqrt.pop %v3868
      %v4419 = vmul.f32 %v4418, %v3868
      %v4420 = vmul.f32 %v4419, %v4418
      %v4421 = vmul.f32 0.5, %v4420
      %v4422 = vsub.f32 1.5, %v4421
      %v4423 = vmul.f32 %v4418, %v4422
      %vm4424 = vweird.f32 %v3868
      %vm4425 = vweird.f32 %v4418
      %vm4426 = vmor %vm4424, %vm4425
      %v4427 = vsel %vm4426, %v4418, %v4423
      %v4428 = vrsqrt.pop %v3869
      %v4429 = vmul.f32 %v4428, %v3869
      %v4430 = vmul.f32 %v4429, %v4428
      %v4431 = vmul.f32 0.5, %v4430
      %v4432 = vsub.f32 1.5, %v4431
      %v4433 = vmul.f32 %v4428, %v4432
      %vm4434 = vweird.f32 %v3869
      %vm4435 = vweird.f32 %v4428
      %vm4436 = vmor %vm4434, %vm4435
      %v4437 = vsel %vm4436, %v4428, %v4433
      %v4438 = vrsqrt.pop %v3870
      %v4439 = vmul.f32 %v4438, %v3870
      %v4440 = vmul.f32 %v4439, %v4438
      %v4441 = vmul.f32 0.5, %v4440
      %v4442 = vsub.f32 1.5, %v4441
      %v4443 = vmul.f32 %v4438, %v4442
      %vm4444 = vweird.f32 %v3870
      %vm4445 = vweird.f32 %v4438
      %vm4446 = vmor %vm4444, %vm4445
      %v4447 = vsel %vm4446, %v4438, %v4443
      %v4448 = vrsqrt.pop %v3871
      %v4449 = vmul.f32 %v4448, %v3871
      %v4450 = vmul.f32 %v4449, %v4448
      %v4451 = vmul.f32 0.5, %v4450
      %v4452 = vsub.f32 1.5, %v4451
      %v4453 = vmul.f32 %v4448, %v4452
      %vm4454 = vweird.f32 %v3871
      %vm4455 = vweird.f32 %v4448
      %vm4456 = vmor %vm4454, %vm4455
      %v4457 = vsel %vm4456, %v4448, %v4453
      %v4458 = vrsqrt.pop %v3872
      %v4459 = vmul.f32 %v4458, %v3872
      %v4460 = vmul.f32 %v4459, %v4458
      %v4461 = vmul.f32 0.5, %v4460
      %v4462 = vsub.f32 1.5, %v4461
      %v4463 = vmul.f32 %v4458, %v4462
      %vm4464 = vweird.f32 %v3872
      %vm4465 = vweird.f32 %v4458
      %vm4466 = vmor %vm4464, %vm4465
      %v4467 = vsel %vm4466, %v4458, %v4463
      %v4468 = vrsqrt.pop %v3873
      %v4469 = vmul.f32 %v4468, %v3873
      %v4470 = vmul.f32 %v4469, %v4468
      %v4471 = vmul.f32 0.5, %v4470
      %v4472 = vsub.f32 1.5, %v4471
      %v4473 = vmul.f32 %v4468, %v4472
      %vm4474 = vweird.f32 %v3873
      %vm4475 = vweird.f32 %v4468
      %vm4476 = vmor %vm4474, %vm4475
      %v4477 = vsel %vm4476, %v4468, %v4473
      %v4478 = vrsqrt.pop %v3874
      %v4479 = vmul.f32 %v4478, %v3874
      %v4480 = vmul.f32 %v4479, %v4478
      %v4481 = vmul.f32 0.5, %v4480
      %v4482 = vsub.f32 1.5, %v4481
      %v4483 = vmul.f32 %v4478, %v4482
      %vm4484 = vweird.f32 %v3874
      %vm4485 = vweird.f32 %v4478
      %vm4486 = vmor %vm4484, %vm4485
      %v4487 = vsel %vm4486, %v4478, %v4483
      %v4488 = vrsqrt.pop %v3875
      %v4489 = vmul.f32 %v4488, %v3875
      %v4490 = vmul.f32 %v4489, %v4488
      %v4491 = vmul.f32 0.5, %v4490
      %v4492 = vsub.f32 1.5, %v4491
      %v4493 = vmul.f32 %v4488, %v4492
      %vm4494 = vweird.f32 %v3875
      %vm4495 = vweird.f32 %v4488
      %vm4496 = vmor %vm4494, %vm4495
      %v4497 = vsel %vm4496, %v4488, %v4493
      %v4498 = vrsqrt.pop %v3876
      %v4499 = vmul.f32 %v4498, %v3876
      %v4500 = vmul.f32 %v4499, %v4498
      %v4501 = vmul.f32 0.5, %v4500
      %v4502 = vsub.f32 1.5, %v4501
      %v4503 = vmul.f32 %v4498, %v4502
      %vm4504 = vweird.f32 %v3876
      %vm4505 = vweird.f32 %v4498
      %vm4506 = vmor %vm4504, %vm4505
      %v4507 = vsel %vm4506, %v4498, %v4503
      %v4508 = vrsqrt.pop %v3877
      %v4509 = vmul.f32 %v4508, %v3877
      %v4510 = vmul.f32 %v4509, %v4508
      %v4511 = vmul.f32 0.5, %v4510
      %v4512 = vsub.f32 1.5, %v4511
      %v4513 = vmul.f32 %v4508, %v4512
      %vm4514 = vweird.f32 %v3877
      %vm4515 = vweird.f32 %v4508
      %vm4516 = vmor %vm4514, %vm4515
      %v4517 = vsel %vm4516, %v4508, %v4513
      %v4518 = vmul.f32 %v3494, %v3887
      %v4519 = vmul.f32 %v3495, %v3897
      %v4520 = vmul.f32 %v3496, %v3907
      %v4521 = vmul.f32 %v3497, %v3917
      %v4522 = vmul.f32 %v3498, %v3927
      %v4523 = vmul.f32 %v3499, %v3937
      %v4524 = vmul.f32 %v3500, %v3947
      %v4525 = vmul.f32 %v3501, %v3957
      %v4526 = vmul.f32 %v3502, %v3967
      %v4527 = vmul.f32 %v3503, %v3977
      %v4528 = vmul.f32 %v3504, %v3987
      %v4529 = vmul.f32 %v3505, %v3997
      %v4530 = vmul.f32 %v3506, %v4007
      %v4531 = vmul.f32 %v3507, %v4017
      %v4532 = vmul.f32 %v3508, %v4027
      %v4533 = vmul.f32 %v3509, %v4037
      %v4534 = vmul.f32 %v3510, %v4047
      %v4535 = vmul.f32 %v3511, %v4057
      %v4536 = vmul.f32 %v3512, %v4067
      %v4537 = vmul.f32 %v3513, %v4077
      %v4538 = vmul.f32 %v3514, %v4087
      %v4539 = vmul.f32 %v3515, %v4097
      %v4540 = vmul.f32 %v3516, %v4107
      %v4541 = vmul.f32 %v3517, %v4117
      %v4542 = vmul.f32 %v3518, %v4127
      %v4543 = vmul.f32 %v3519, %v4137
      %v4544 = vmul.f32 %v3520, %v4147
      %v4545 = vmul.f32 %v3521, %v4157
      %v4546 = vmul.f32 %v3522, %v4167
      %v4547 = vmul.f32 %v3523, %v4177
      %v4548 = vmul.f32 %v3524, %v4187
      %v4549 = vmul.f32 %v3525, %v4197
      %v4550 = vmul.f32 %v3526, %v4207
      %v4551 = vmul.f32 %v3527, %v4217
      %v4552 = vmul.f32 %v3528, %v4227
      %v4553 = vmul.f32 %v3529, %v4237
      %v4554 = vmul.f32 %v3530, %v4247
      %v4555 = vmul.f32 %v3531, %v4257
      %v4556 = vmul.f32 %v3532, %v4267
      %v4557 = vmul.f32 %v3533, %v4277
      %v4558 = vmul.f32 %v3534, %v4287
      %v4559 = vmul.f32 %v3535, %v4297
      %v4560 = vmul.f32 %v3536, %v4307
      %v4561 = vmul.f32 %v3537, %v4317
      %v4562 = vmul.f32 %v3538, %v4327
      %v4563 = vmul.f32 %v3539, %v4337
      %v4564 = vmul.f32 %v3540, %v4347
      %v4565 = vmul.f32 %v3541, %v4357
      %v4566 = vmul.f32 %v3542, %v4367
      %v4567 = vmul.f32 %v3543, %v4377
      %v4568 = vmul.f32 %v3544, %v4387
      %v4569 = vmul.f32 %v3545, %v4397
      %v4570 = vmul.f32 %v3546, %v4407
      %v4571 = vmul.f32 %v3547, %v4417
      %v4572 = vmul.f32 %v3548, %v4427
      %v4573 = vmul.f32 %v3549, %v4437
      %v4574 = vmul.f32 %v3550, %v4447
      %v4575 = vmul.f32 %v3551, %v4457
      %v4576 = vmul.f32 %v3552, %v4467
      %v4577 = vmul.f32 %v3553, %v4477
      %v4578 = vmul.f32 %v3554, %v4487
      %v4579 = vmul.f32 %v3555, %v4497
      %v4580 = vmul.f32 %v3556, %v4507
      %v4581 = vmul.f32 %v3557, %v4517
      %v4582 = vmax.f32 %v4518, 0.0
      %v4583 = vmax.f32 %v4519, 0.0
      %v4584 = vmax.f32 %v4520, 0.0
      %v4585 = vmax.f32 %v4521, 0.0
      %v4586 = vmax.f32 %v4522, 0.0
      %v4587 = vmax.f32 %v4523, 0.0
      %v4588 = vmax.f32 %v4524, 0.0
      %v4589 = vmax.f32 %v4525, 0.0
      %v4590 = vmax.f32 %v4526, 0.0
      %v4591 = vmax.f32 %v4527, 0.0
      %v4592 = vmax.f32 %v4528, 0.0
      %v4593 = vmax.f32 %v4529, 0.0
      %v4594 = vmax.f32 %v4530, 0.0
      %v4595 = vmax.f32 %v4531, 0.0
      %v4596 = vmax.f32 %v4532, 0.0
      %v4597 = vmax.f32 %v4533, 0.0
      %v4598 = vmax.f32 %v4534, 0.0
      %v4599 = vmax.f32 %v4535, 0.0
      %v4600 = vmax.f32 %v4536, 0.0
      %v4601 = vmax.f32 %v4537, 0.0
      %v4602 = vmax.f32 %v4538, 0.0
      %v4603 = vmax.f32 %v4539, 0.0
      %v4604 = vmax.f32 %v4540, 0.0
      %v4605 = vmax.f32 %v4541, 0.0
      %v4606 = vmax.f32 %v4542, 0.0
      %v4607 = vmax.f32 %v4543, 0.0
      %v4608 = vmax.f32 %v4544, 0.0
      %v4609 = vmax.f32 %v4545, 0.0
      %v4610 = vmax.f32 %v4546, 0.0
      %v4611 = vmax.f32 %v4547, 0.0
      %v4612 = vmax.f32 %v4548, 0.0
      %v4613 = vmax.f32 %v4549, 0.0
      %v4614 = vmax.f32 %v4550, 0.0
      %v4615 = vmax.f32 %v4551, 0.0
      %v4616 = vmax.f32 %v4552, 0.0
      %v4617 = vmax.f32 %v4553, 0.0
      %v4618 = vmax.f32 %v4554, 0.0
      %v4619 = vmax.f32 %v4555, 0.0
      %v4620 = vmax.f32 %v4556, 0.0
      %v4621 = vmax.f32 %v4557, 0.0
      %v4622 = vmax.f32 %v4558, 0.0
      %v4623 = vmax.f32 %v4559, 0.0
      %v4624 = vmax.f32 %v4560, 0.0
      %v4625 = vmax.f32 %v4561, 0.0
      %v4626 = vmax.f32 %v4562, 0.0
      %v4627 = vmax.f32 %v4563, 0.0
      %v4628 = vmax.f32 %v4564, 0.0
      %v4629 = vmax.f32 %v4565, 0.0
      %v4630 = vmax.f32 %v4566, 0.0
      %v4631 = vmax.f32 %v4567, 0.0
      %v4632 = vmax.f32 %v4568, 0.0
      %v4633 = vmax.f32 %v4569, 0.0
      %v4634 = vmax.f32 %v4570, 0.0
      %v4635 = vmax.f32 %v4571, 0.0
      %v4636 = vmax.f32 %v4572, 0.0
      %v4637 = vmax.f32 %v4573, 0.0
      %v4638 = vmax.f32 %v4574, 0.0
      %v4639 = vmax.f32 %v4575, 0.0
      %v4640 = vmax.f32 %v4576, 0.0
      %v4641 = vmax.f32 %v4577, 0.0
      %v4642 = vmax.f32 %v4578, 0.0
      %v4643 = vmax.f32 %v4579, 0.0
      %v4644 = vmax.f32 %v4580, 0.0
      %v4645 = vmax.f32 %v4581, 0.0
      %v4646 = vpack.c.bf16 %v4583, %v4582
      %v4647 = vpack.c.bf16 %v4585, %v4584
      %v4648 = vpack.c.bf16 %v4587, %v4586
      %v4649 = vpack.c.bf16 %v4589, %v4588
      %v4650 = vpack.c.bf16 %v4591, %v4590
      %v4651 = vpack.c.bf16 %v4593, %v4592
      %v4652 = vpack.c.bf16 %v4595, %v4594
      %v4653 = vpack.c.bf16 %v4597, %v4596
      %v4654 = vpack.c.bf16 %v4599, %v4598
      %v4655 = vpack.c.bf16 %v4601, %v4600
      %v4656 = vpack.c.bf16 %v4603, %v4602
      %v4657 = vpack.c.bf16 %v4605, %v4604
      %v4658 = vpack.c.bf16 %v4607, %v4606
      %v4659 = vpack.c.bf16 %v4609, %v4608
      %v4660 = vpack.c.bf16 %v4611, %v4610
      %v4661 = vpack.c.bf16 %v4613, %v4612
      %v4662 = vpack.c.bf16 %v4615, %v4614
      %v4663 = vpack.c.bf16 %v4617, %v4616
      %v4664 = vpack.c.bf16 %v4619, %v4618
      %v4665 = vpack.c.bf16 %v4621, %v4620
      %v4666 = vpack.c.bf16 %v4623, %v4622
      %v4667 = vpack.c.bf16 %v4625, %v4624
      %v4668 = vpack.c.bf16 %v4627, %v4626
      %v4669 = vpack.c.bf16 %v4629, %v4628
      %v4670 = vpack.c.bf16 %v4631, %v4630
      %v4671 = vpack.c.bf16 %v4633, %v4632
      %v4672 = vpack.c.bf16 %v4635, %v4634
      %v4673 = vpack.c.bf16 %v4637, %v4636
      %v4674 = vpack.c.bf16 %v4639, %v4638
      %v4675 = vpack.c.bf16 %v4641, %v4640
      %v4676 = vpack.c.bf16 %v4643, %v4642
      %v4677 = vpack.c.bf16 %v4645, %v4644
      %v4678 = vld [vmem:[%s5] sm:$0xf]
      %v4679 = vld [vmem:[%s5 + $0x4] sm:$0xf]
      %v4680 = vld [vmem:[%s5 + $0x8] sm:$0xf]
      %v4681 = vld [vmem:[%s5 + $0xc] sm:$0xf]
      %v4682 = vld [vmem:[%s5 + $0x10] sm:$0xf]
      %v4683 = vld [vmem:[%s5 + $0x14] sm:$0xf]
      %v4684 = vld [vmem:[%s5 + $0x18] sm:$0xf]
      %v4685 = vld [vmem:[%s5 + $0x1c] sm:$0xf]
      %v4686 = vld [vmem:[%s5 + $0x20] sm:$0xf]
      %v4687 = vld [vmem:[%s5 + $0x24] sm:$0xf]
      %v4688 = vld [vmem:[%s5 + $0x28] sm:$0xf]
      %v4689 = vld [vmem:[%s5 + $0x2c] sm:$0xf]
      %v4690 = vld [vmem:[%s5 + $0x30] sm:$0xf]
      %v4691 = vld [vmem:[%s5 + $0x34] sm:$0xf]
      %v4692 = vld [vmem:[%s5 + $0x38] sm:$0xf]
      %v4693 = vld [vmem:[%s5 + $0x3c] sm:$0xf]
      %v4694 = vld [vmem:[%s6] sm:$0x1]
      %v4696 = vperm.slane %v4694, 0
      %v4714 = vunpack.c.l.b16 %v4678
      %v4715 = vunpack.c.l.b16 %v4679
      %v4716 = vunpack.c.l.b16 %v4680
      %v4717 = vunpack.c.l.b16 %v4681
      %v4718 = vunpack.c.l.b16 %v4682
      %v4719 = vunpack.c.l.b16 %v4683
      %v4720 = vunpack.c.l.b16 %v4684
      %v4721 = vunpack.c.l.b16 %v4685
      %v4722 = vunpack.c.l.b16 %v4686
      %v4723 = vunpack.c.l.b16 %v4687
      %v4724 = vunpack.c.l.b16 %v4688
      %v4725 = vunpack.c.l.b16 %v4689
      %v4726 = vunpack.c.l.b16 %v4690
      %v4727 = vunpack.c.l.b16 %v4691
      %v4728 = vunpack.c.l.b16 %v4692
      %v4729 = vunpack.c.l.b16 %v4693
      %v4730 = vpack.c.b16 %v4715, %v4714
      %v4731 = vpack.c.b16 %v4717, %v4716
      %v4732 = vpack.c.b16 %v4719, %v4718
      %v4733 = vpack.c.b16 %v4721, %v4720
      %v4734 = vpack.c.b16 %v4723, %v4722
      %v4735 = vpack.c.b16 %v4725, %v4724
      %v4736 = vpack.c.b16 %v4727, %v4726
      %v4737 = vpack.c.b16 %v4729, %v4728
      %4746 = vmatpush.bf16.msra.mxu0 %v4737
      %4747 = vmatpush.bf16.msra.mxu0 %v4736
      %4748 = vmatpush.bf16.msra.mxu0 %v4735
      %4749 = vmatpush.bf16.msra.mxu0 %v4734
      %4750 = vmatpush.bf16.msra.mxu0 %v4733
      %4751 = vmatpush.bf16.msra.mxu0 %v4732
      %4752 = vmatpush.bf16.msra.mxu0 %v4731
      %4753 = vmatpush.bf16.msra.mxu0 %v4730
      %4754 = vmatmul.bf16.gmra.mxu0 %v4646
      %v4755 = vpop.f32.mrf.mxu0
      %v4756 = vadd.f32 %v4696, %v4755
      %v4757 = vpop.f32.mrf.mxu0
      %v4758 = vadd.f32 %v4696, %v4757
      %4759 = vmatmul.bf16.gmra.mxu0 %v4647
      %v4760 = vpop.f32.mrf.mxu0
      %v4761 = vadd.f32 %v4696, %v4760
      %v4762 = vpop.f32.mrf.mxu0
      %v4763 = vadd.f32 %v4696, %v4762
      %4764 = vmatmul.bf16.gmra.mxu0 %v4648
      %v4765 = vpop.f32.mrf.mxu0
      %v4766 = vadd.f32 %v4696, %v4765
      %v4767 = vpop.f32.mrf.mxu0
      %v4768 = vadd.f32 %v4696, %v4767
      %4769 = vmatmul.bf16.gmra.mxu0 %v4649
      %v4770 = vpop.f32.mrf.mxu0
      %v4771 = vadd.f32 %v4696, %v4770
      %v4772 = vpop.f32.mrf.mxu0
      %v4773 = vadd.f32 %v4696, %v4772
      %4774 = vmatmul.bf16.gmra.mxu0 %v4650
      %v4775 = vpop.f32.mrf.mxu0
      %v4776 = vadd.f32 %v4696, %v4775
      %v4777 = vpop.f32.mrf.mxu0
      %v4778 = vadd.f32 %v4696, %v4777
      %4779 = vmatmul.bf16.gmra.mxu0 %v4651
      %v4780 = vpop.f32.mrf.mxu0
      %v4781 = vadd.f32 %v4696, %v4780
      %v4782 = vpop.f32.mrf.mxu0
      %v4783 = vadd.f32 %v4696, %v4782
      %4784 = vmatmul.bf16.gmra.mxu0 %v4652
      %v4785 = vpop.f32.mrf.mxu0
      %v4786 = vadd.f32 %v4696, %v4785
      %v4787 = vpop.f32.mrf.mxu0
      %v4788 = vadd.f32 %v4696, %v4787
      %4789 = vmatmul.bf16.gmra.mxu0 %v4653
      %v4790 = vpop.f32.mrf.mxu0
      %v4791 = vadd.f32 %v4696, %v4790
      %v4792 = vpop.f32.mrf.mxu0
      %v4793 = vadd.f32 %v4696, %v4792
      %4794 = vmatmul.bf16.gmra.mxu0 %v4654
      %v4795 = vpop.f32.mrf.mxu0
      %v4796 = vadd.f32 %v4696, %v4795
      %v4797 = vpop.f32.mrf.mxu0
      %v4798 = vadd.f32 %v4696, %v4797
      %4799 = vmatmul.bf16.gmra.mxu0 %v4655
      %v4800 = vpop.f32.mrf.mxu0
      %v4801 = vadd.f32 %v4696, %v4800
      %v4802 = vpop.f32.mrf.mxu0
      %v4803 = vadd.f32 %v4696, %v4802
      %4804 = vmatmul.bf16.gmra.mxu0 %v4656
      %v4805 = vpop.f32.mrf.mxu0
      %v4806 = vadd.f32 %v4696, %v4805
      %v4807 = vpop.f32.mrf.mxu0
      %v4808 = vadd.f32 %v4696, %v4807
      %4809 = vmatmul.bf16.gmra.mxu0 %v4657
      %v4810 = vpop.f32.mrf.mxu0
      %v4811 = vadd.f32 %v4696, %v4810
      %v4812 = vpop.f32.mrf.mxu0
      %v4813 = vadd.f32 %v4696, %v4812
      %4814 = vmatmul.bf16.gmra.mxu0 %v4658
      %v4815 = vpop.f32.mrf.mxu0
      %v4816 = vadd.f32 %v4696, %v4815
      %v4817 = vpop.f32.mrf.mxu0
      %v4818 = vadd.f32 %v4696, %v4817
      %4819 = vmatmul.bf16.gmra.mxu0 %v4659
      %v4820 = vpop.f32.mrf.mxu0
      %v4821 = vadd.f32 %v4696, %v4820
      %v4822 = vpop.f32.mrf.mxu0
      %v4823 = vadd.f32 %v4696, %v4822
      %4824 = vmatmul.bf16.gmra.mxu0 %v4660
      %v4825 = vpop.f32.mrf.mxu0
      %v4826 = vadd.f32 %v4696, %v4825
      %v4827 = vpop.f32.mrf.mxu0
      %v4828 = vadd.f32 %v4696, %v4827
      %4829 = vmatmul.bf16.gmra.mxu0 %v4661
      %v4830 = vpop.f32.mrf.mxu0
      %v4831 = vadd.f32 %v4696, %v4830
      %v4832 = vpop.f32.mrf.mxu0
      %v4833 = vadd.f32 %v4696, %v4832
      %4834 = vmatmul.bf16.gmra.mxu0 %v4662
      %v4835 = vpop.f32.mrf.mxu0
      %v4836 = vadd.f32 %v4696, %v4835
      %v4837 = vpop.f32.mrf.mxu0
      %v4838 = vadd.f32 %v4696, %v4837
      %4839 = vmatmul.bf16.gmra.mxu0 %v4663
      %v4840 = vpop.f32.mrf.mxu0
      %v4841 = vadd.f32 %v4696, %v4840
      %v4842 = vpop.f32.mrf.mxu0
      %v4843 = vadd.f32 %v4696, %v4842
      %4844 = vmatmul.bf16.gmra.mxu0 %v4664
      %v4845 = vpop.f32.mrf.mxu0
      %v4846 = vadd.f32 %v4696, %v4845
      %v4847 = vpop.f32.mrf.mxu0
      %v4848 = vadd.f32 %v4696, %v4847
      %4849 = vmatmul.bf16.gmra.mxu0 %v4665
      %v4850 = vpop.f32.mrf.mxu0
      %v4851 = vadd.f32 %v4696, %v4850
      %v4852 = vpop.f32.mrf.mxu0
      %v4853 = vadd.f32 %v4696, %v4852
      %4854 = vmatmul.bf16.gmra.mxu0 %v4666
      %v4855 = vpop.f32.mrf.mxu0
      %v4856 = vadd.f32 %v4696, %v4855
      %v4857 = vpop.f32.mrf.mxu0
      %v4858 = vadd.f32 %v4696, %v4857
      %4859 = vmatmul.bf16.gmra.mxu0 %v4667
      %v4860 = vpop.f32.mrf.mxu0
      %v4861 = vadd.f32 %v4696, %v4860
      %v4862 = vpop.f32.mrf.mxu0
      %v4863 = vadd.f32 %v4696, %v4862
      %4864 = vmatmul.bf16.gmra.mxu0 %v4668
      %v4865 = vpop.f32.mrf.mxu0
      %v4866 = vadd.f32 %v4696, %v4865
      %v4867 = vpop.f32.mrf.mxu0
      %v4868 = vadd.f32 %v4696, %v4867
      %4869 = vmatmul.bf16.gmra.mxu0 %v4669
      %v4870 = vpop.f32.mrf.mxu0
      %v4871 = vadd.f32 %v4696, %v4870
      %v4872 = vpop.f32.mrf.mxu0
      %v4873 = vadd.f32 %v4696, %v4872
      %4874 = vmatmul.bf16.gmra.mxu0 %v4670
      %v4875 = vpop.f32.mrf.mxu0
      %v4876 = vadd.f32 %v4696, %v4875
      %v4877 = vpop.f32.mrf.mxu0
      %v4878 = vadd.f32 %v4696, %v4877
      %4879 = vmatmul.bf16.gmra.mxu0 %v4671
      %v4880 = vpop.f32.mrf.mxu0
      %v4881 = vadd.f32 %v4696, %v4880
      %v4882 = vpop.f32.mrf.mxu0
      %v4883 = vadd.f32 %v4696, %v4882
      %4884 = vmatmul.bf16.gmra.mxu0 %v4672
      %v4885 = vpop.f32.mrf.mxu0
      %v4886 = vadd.f32 %v4696, %v4885
      %v4887 = vpop.f32.mrf.mxu0
      %v4888 = vadd.f32 %v4696, %v4887
      %4889 = vmatmul.bf16.gmra.mxu0 %v4673
      %v4890 = vpop.f32.mrf.mxu0
      %v4891 = vadd.f32 %v4696, %v4890
      %v4892 = vpop.f32.mrf.mxu0
      %v4893 = vadd.f32 %v4696, %v4892
      %4894 = vmatmul.bf16.gmra.mxu0 %v4674
      %v4895 = vpop.f32.mrf.mxu0
      %v4896 = vadd.f32 %v4696, %v4895
      %v4897 = vpop.f32.mrf.mxu0
      %v4898 = vadd.f32 %v4696, %v4897
      %4899 = vmatmul.bf16.gmra.mxu0 %v4675
      %v4900 = vpop.f32.mrf.mxu0
      %v4901 = vadd.f32 %v4696, %v4900
      %v4902 = vpop.f32.mrf.mxu0
      %v4903 = vadd.f32 %v4696, %v4902
      %4904 = vmatmul.bf16.gmra.mxu0 %v4676
      %v4905 = vpop.f32.mrf.mxu0
      %v4906 = vadd.f32 %v4696, %v4905
      %v4907 = vpop.f32.mrf.mxu0
      %v4908 = vadd.f32 %v4696, %v4907
      %4909 = vmatmul.bf16.gmra.mxu0 %v4677
      %v4910 = vpop.f32.mrf.mxu0
      %v4911 = vadd.f32 %v4696, %v4910
      %v4912 = vpop.f32.mrf.mxu0
      %v4913 = vadd.f32 %v4696, %v4912
      %4914 = vdwg.mxu0
      %vm4915 = vcmask 523264
      %v4916 = vsel %vm4915, %v4756, 0.0
      %4917 = vadd.xlane.f32.xlu0 %v4916
      %v4918 = vpop.xlane.xlu0 %4917
      %v4919 = vsel %vm4915, %v4758, 0.0
      %4920 = vadd.xlane.f32.xlu0 %v4919
      %v4921 = vpop.xlane.xlu0 %4920
      %v4922 = vsel %vm4915, %v4761, 0.0
      %4923 = vadd.xlane.f32.xlu0 %v4922
      %v4924 = vpop.xlane.xlu0 %4923
      %v4925 = vsel %vm4915, %v4763, 0.0
      %4926 = vadd.xlane.f32.xlu0 %v4925
      %v4927 = vpop.xlane.xlu0 %4926
      %v4928 = vsel %vm4915, %v4766, 0.0
      %4929 = vadd.xlane.f32.xlu0 %v4928
      %v4930 = vpop.xlane.xlu0 %4929
      %v4931 = vsel %vm4915, %v4768, 0.0
      %4932 = vadd.xlane.f32.xlu0 %v4931
      %v4933 = vpop.xlane.xlu0 %4932
      %v4934 = vsel %vm4915, %v4771, 0.0
      %4935 = vadd.xlane.f32.xlu0 %v4934
      %v4936 = vpop.xlane.xlu0 %4935
      %v4937 = vsel %vm4915, %v4773, 0.0
      %4938 = vadd.xlane.f32.xlu0 %v4937
      %v4939 = vpop.xlane.xlu0 %4938
      %v4940 = vsel %vm4915, %v4776, 0.0
      %4941 = vadd.xlane.f32.xlu0 %v4940
      %v4942 = vpop.xlane.xlu0 %4941
      %v4943 = vsel %vm4915, %v4778, 0.0
      %4944 = vadd.xlane.f32.xlu0 %v4943
      %v4945 = vpop.xlane.xlu0 %4944
      %v4946 = vsel %vm4915, %v4781, 0.0
      %4947 = vadd.xlane.f32.xlu0 %v4946
      %v4948 = vpop.xlane.xlu0 %4947
      %v4949 = vsel %vm4915, %v4783, 0.0
      %4950 = vadd.xlane.f32.xlu0 %v4949
      %v4951 = vpop.xlane.xlu0 %4950
      %v4952 = vsel %vm4915, %v4786, 0.0
      %4953 = vadd.xlane.f32.xlu0 %v4952
      %v4954 = vpop.xlane.xlu0 %4953
      %v4955 = vsel %vm4915, %v4788, 0.0
      %4956 = vadd.xlane.f32.xlu0 %v4955
      %v4957 = vpop.xlane.xlu0 %4956
      %v4958 = vsel %vm4915, %v4791, 0.0
      %4959 = vadd.xlane.f32.xlu0 %v4958
      %v4960 = vpop.xlane.xlu0 %4959
      %v4961 = vsel %vm4915, %v4793, 0.0
      %4962 = vadd.xlane.f32.xlu0 %v4961
      %v4963 = vpop.xlane.xlu0 %4962
      %v4964 = vsel %vm4915, %v4796, 0.0
      %4965 = vadd.xlane.f32.xlu0 %v4964
      %v4966 = vpop.xlane.xlu0 %4965
      %v4967 = vsel %vm4915, %v4798, 0.0
      %4968 = vadd.xlane.f32.xlu0 %v4967
      %v4969 = vpop.xlane.xlu0 %4968
      %v4970 = vsel %vm4915, %v4801, 0.0
      %4971 = vadd.xlane.f32.xlu0 %v4970
      %v4972 = vpop.xlane.xlu0 %4971
      %v4973 = vsel %vm4915, %v4803, 0.0
      %4974 = vadd.xlane.f32.xlu0 %v4973
      %v4975 = vpop.xlane.xlu0 %4974
      %v4976 = vsel %vm4915, %v4806, 0.0
      %4977 = vadd.xlane.f32.xlu0 %v4976
      %v4978 = vpop.xlane.xlu0 %4977
      %v4979 = vsel %vm4915, %v4808, 0.0
      %4980 = vadd.xlane.f32.xlu0 %v4979
      %v4981 = vpop.xlane.xlu0 %4980
      %v4982 = vsel %vm4915, %v4811, 0.0
      %4983 = vadd.xlane.f32.xlu0 %v4982
      %v4984 = vpop.xlane.xlu0 %4983
      %v4985 = vsel %vm4915, %v4813, 0.0
      %4986 = vadd.xlane.f32.xlu0 %v4985
      %v4987 = vpop.xlane.xlu0 %4986
      %v4988 = vsel %vm4915, %v4816, 0.0
      %4989 = vadd.xlane.f32.xlu0 %v4988
      %v4990 = vpop.xlane.xlu0 %4989
      %v4991 = vsel %vm4915, %v4818, 0.0
      %4992 = vadd.xlane.f32.xlu0 %v4991
      %v4993 = vpop.xlane.xlu0 %4992
      %v4994 = vsel %vm4915, %v4821, 0.0
      %4995 = vadd.xlane.f32.xlu0 %v4994
      %v4996 = vpop.xlane.xlu0 %4995
      %v4997 = vsel %vm4915, %v4823, 0.0
      %4998 = vadd.xlane.f32.xlu0 %v4997
      %v4999 = vpop.xlane.xlu0 %4998
      %v5000 = vsel %vm4915, %v4826, 0.0
      %5001 = vadd.xlane.f32.xlu0 %v5000
      %v5002 = vpop.xlane.xlu0 %5001
      %v5003 = vsel %vm4915, %v4828, 0.0
      %5004 = vadd.xlane.f32.xlu0 %v5003
      %v5005 = vpop.xlane.xlu0 %5004
      %v5006 = vsel %vm4915, %v4831, 0.0
      %5007 = vadd.xlane.f32.xlu0 %v5006
      %v5008 = vpop.xlane.xlu0 %5007
      %v5009 = vsel %vm4915, %v4833, 0.0
      %5010 = vadd.xlane.f32.xlu0 %v5009
      %v5011 = vpop.xlane.xlu0 %5010
      %v5012 = vsel %vm4915, %v4836, 0.0
      %5013 = vadd.xlane.f32.xlu0 %v5012
      %v5014 = vpop.xlane.xlu0 %5013
      %v5015 = vsel %vm4915, %v4838, 0.0
      %5016 = vadd.xlane.f32.xlu0 %v5015
      %v5017 = vpop.xlane.xlu0 %5016
      %v5018 = vsel %vm4915, %v4841, 0.0
      %5019 = vadd.xlane.f32.xlu0 %v5018
      %v5020 = vpop.xlane.xlu0 %5019
      %v5021 = vsel %vm4915, %v4843, 0.0
      %5022 = vadd.xlane.f32.xlu0 %v5021
      %v5023 = vpop.xlane.xlu0 %5022
      %v5024 = vsel %vm4915, %v4846, 0.0
      %5025 = vadd.xlane.f32.xlu0 %v5024
      %v5026 = vpop.xlane.xlu0 %5025
      %v5027 = vsel %vm4915, %v4848, 0.0
      %5028 = vadd.xlane.f32.xlu0 %v5027
      %v5029 = vpop.xlane.xlu0 %5028
      %v5030 = vsel %vm4915, %v4851, 0.0
      %5031 = vadd.xlane.f32.xlu0 %v5030
      %v5032 = vpop.xlane.xlu0 %5031
      %v5033 = vsel %vm4915, %v4853, 0.0
      %5034 = vadd.xlane.f32.xlu0 %v5033
      %v5035 = vpop.xlane.xlu0 %5034
      %v5036 = vsel %vm4915, %v4856, 0.0
      %5037 = vadd.xlane.f32.xlu0 %v5036
      %v5038 = vpop.xlane.xlu0 %5037
      %v5039 = vsel %vm4915, %v4858, 0.0
      %5040 = vadd.xlane.f32.xlu0 %v5039
      %v5041 = vpop.xlane.xlu0 %5040
      %v5042 = vsel %vm4915, %v4861, 0.0
      %5043 = vadd.xlane.f32.xlu0 %v5042
      %v5044 = vpop.xlane.xlu0 %5043
      %v5045 = vsel %vm4915, %v4863, 0.0
      %5046 = vadd.xlane.f32.xlu0 %v5045
      %v5047 = vpop.xlane.xlu0 %5046
      %v5048 = vsel %vm4915, %v4866, 0.0
      %5049 = vadd.xlane.f32.xlu0 %v5048
      %v5050 = vpop.xlane.xlu0 %5049
      %v5051 = vsel %vm4915, %v4868, 0.0
      %5052 = vadd.xlane.f32.xlu0 %v5051
      %v5053 = vpop.xlane.xlu0 %5052
      %v5054 = vsel %vm4915, %v4871, 0.0
      %5055 = vadd.xlane.f32.xlu0 %v5054
      %v5056 = vpop.xlane.xlu0 %5055
      %v5057 = vsel %vm4915, %v4873, 0.0
      %5058 = vadd.xlane.f32.xlu0 %v5057
      %v5059 = vpop.xlane.xlu0 %5058
      %v5060 = vsel %vm4915, %v4876, 0.0
      %5061 = vadd.xlane.f32.xlu0 %v5060
      %v5062 = vpop.xlane.xlu0 %5061
      %v5063 = vsel %vm4915, %v4878, 0.0
      %5064 = vadd.xlane.f32.xlu0 %v5063
      %v5065 = vpop.xlane.xlu0 %5064
      %v5066 = vsel %vm4915, %v4881, 0.0
      %5067 = vadd.xlane.f32.xlu0 %v5066
      %v5068 = vpop.xlane.xlu0 %5067
      %v5069 = vsel %vm4915, %v4883, 0.0
      %5070 = vadd.xlane.f32.xlu0 %v5069
      %v5071 = vpop.xlane.xlu0 %5070
      %v5072 = vsel %vm4915, %v4886, 0.0
      %5073 = vadd.xlane.f32.xlu0 %v5072
      %v5074 = vpop.xlane.xlu0 %5073
      %v5075 = vsel %vm4915, %v4888, 0.0
      %5076 = vadd.xlane.f32.xlu0 %v5075
      %v5077 = vpop.xlane.xlu0 %5076
      %v5078 = vsel %vm4915, %v4891, 0.0
      %5079 = vadd.xlane.f32.xlu0 %v5078
      %v5080 = vpop.xlane.xlu0 %5079
      %v5081 = vsel %vm4915, %v4893, 0.0
      %5082 = vadd.xlane.f32.xlu0 %v5081
      %v5083 = vpop.xlane.xlu0 %5082
      %v5084 = vsel %vm4915, %v4896, 0.0
      %5085 = vadd.xlane.f32.xlu0 %v5084
      %v5086 = vpop.xlane.xlu0 %5085
      %v5087 = vsel %vm4915, %v4898, 0.0
      %5088 = vadd.xlane.f32.xlu0 %v5087
      %v5089 = vpop.xlane.xlu0 %5088
      %v5090 = vsel %vm4915, %v4901, 0.0
      %5091 = vadd.xlane.f32.xlu0 %v5090
      %v5092 = vpop.xlane.xlu0 %5091
      %v5093 = vsel %vm4915, %v4903, 0.0
      %5094 = vadd.xlane.f32.xlu0 %v5093
      %v5095 = vpop.xlane.xlu0 %5094
      %v5096 = vsel %vm4915, %v4906, 0.0
      %5097 = vadd.xlane.f32.xlu0 %v5096
      %v5098 = vpop.xlane.xlu0 %5097
      %v5099 = vsel %vm4915, %v4908, 0.0
      %5100 = vadd.xlane.f32.xlu0 %v5099
      %v5101 = vpop.xlane.xlu0 %5100
      %v5102 = vsel %vm4915, %v4911, 0.0
      %5103 = vadd.xlane.f32.xlu0 %v5102
      %v5104 = vpop.xlane.xlu0 %5103
      %v5105 = vsel %vm4915, %v4913, 0.0
      %5106 = vadd.xlane.f32.xlu0 %v5105
      %v5107 = vpop.xlane.xlu0 %5106
      %v5108 = vrcp.pop 64.0
      %v5109 = vmul.f32 64.0, %v5108
      %v5110 = vsub.f32 1.0, %v5109
      %v5111 = vmul.f32 %v5108, %v5110
      %v5112 = vadd.f32 %v5108, %v5111
      %vm5113 = vweird.f32 %v5108
      %v5114 = vsel %vm5113, %v5108, %v5112
      %v5115 = vmul.f32 %v4918, %v5114
      %v5116 = vmul.f32 %v4921, %v5114
      %v5117 = vmul.f32 %v4924, %v5114
      %v5118 = vmul.f32 %v4927, %v5114
      %v5119 = vmul.f32 %v4930, %v5114
      %v5120 = vmul.f32 %v4933, %v5114
      %v5121 = vmul.f32 %v4936, %v5114
      %v5122 = vmul.f32 %v4939, %v5114
      %v5123 = vmul.f32 %v4942, %v5114
      %v5124 = vmul.f32 %v4945, %v5114
      %v5125 = vmul.f32 %v4948, %v5114
      %v5126 = vmul.f32 %v4951, %v5114
      %v5127 = vmul.f32 %v4954, %v5114
      %v5128 = vmul.f32 %v4957, %v5114
      %v5129 = vmul.f32 %v4960, %v5114
      %v5130 = vmul.f32 %v4963, %v5114
      %v5131 = vmul.f32 %v4966, %v5114
      %v5132 = vmul.f32 %v4969, %v5114
      %v5133 = vmul.f32 %v4972, %v5114
      %v5134 = vmul.f32 %v4975, %v5114
      %v5135 = vmul.f32 %v4978, %v5114
      %v5136 = vmul.f32 %v4981, %v5114
      %v5137 = vmul.f32 %v4984, %v5114
      %v5138 = vmul.f32 %v4987, %v5114
      %v5139 = vmul.f32 %v4990, %v5114
      %v5140 = vmul.f32 %v4993, %v5114
      %v5141 = vmul.f32 %v4996, %v5114
      %v5142 = vmul.f32 %v4999, %v5114
      %v5143 = vmul.f32 %v5002, %v5114
      %v5144 = vmul.f32 %v5005, %v5114
      %v5145 = vmul.f32 %v5008, %v5114
      %v5146 = vmul.f32 %v5011, %v5114
      %v5147 = vmul.f32 %v5014, %v5114
      %v5148 = vmul.f32 %v5017, %v5114
      %v5149 = vmul.f32 %v5020, %v5114
      %v5150 = vmul.f32 %v5023, %v5114
      %v5151 = vmul.f32 %v5026, %v5114
      %v5152 = vmul.f32 %v5029, %v5114
      %v5153 = vmul.f32 %v5032, %v5114
      %v5154 = vmul.f32 %v5035, %v5114
      %v5155 = vmul.f32 %v5038, %v5114
      %v5156 = vmul.f32 %v5041, %v5114
      %v5157 = vmul.f32 %v5044, %v5114
      %v5158 = vmul.f32 %v5047, %v5114
      %v5159 = vmul.f32 %v5050, %v5114
      %v5160 = vmul.f32 %v5053, %v5114
      %v5161 = vmul.f32 %v5056, %v5114
      %v5162 = vmul.f32 %v5059, %v5114
      %v5163 = vmul.f32 %v5062, %v5114
      %v5164 = vmul.f32 %v5065, %v5114
      %v5165 = vmul.f32 %v5068, %v5114
      %v5166 = vmul.f32 %v5071, %v5114
      %v5167 = vmul.f32 %v5074, %v5114
      %v5168 = vmul.f32 %v5077, %v5114
      %v5169 = vmul.f32 %v5080, %v5114
      %v5170 = vmul.f32 %v5083, %v5114
      %v5171 = vmul.f32 %v5086, %v5114
      %v5172 = vmul.f32 %v5089, %v5114
      %v5173 = vmul.f32 %v5092, %v5114
      %v5174 = vmul.f32 %v5095, %v5114
      %v5175 = vmul.f32 %v5098, %v5114
      %v5176 = vmul.f32 %v5101, %v5114
      %v5177 = vmul.f32 %v5104, %v5114
      %v5178 = vmul.f32 %v5107, %v5114
      %v5179 = vsub.f32 %v4756, %v5115
      %v5180 = vsub.f32 %v4758, %v5116
      %v5181 = vsub.f32 %v4761, %v5117
      %v5182 = vsub.f32 %v4763, %v5118
      %v5183 = vsub.f32 %v4766, %v5119
      %v5184 = vsub.f32 %v4768, %v5120
      %v5185 = vsub.f32 %v4771, %v5121
      %v5186 = vsub.f32 %v4773, %v5122
      %v5187 = vsub.f32 %v4776, %v5123
      %v5188 = vsub.f32 %v4778, %v5124
      %v5189 = vsub.f32 %v4781, %v5125
      %v5190 = vsub.f32 %v4783, %v5126
      %v5191 = vsub.f32 %v4786, %v5127
      %v5192 = vsub.f32 %v4788, %v5128
      %v5193 = vsub.f32 %v4791, %v5129
      %v5194 = vsub.f32 %v4793, %v5130
      %v5195 = vsub.f32 %v4796, %v5131
      %v5196 = vsub.f32 %v4798, %v5132
      %v5197 = vsub.f32 %v4801, %v5133
      %v5198 = vsub.f32 %v4803, %v5134
      %v5199 = vsub.f32 %v4806, %v5135
      %v5200 = vsub.f32 %v4808, %v5136
      %v5201 = vsub.f32 %v4811, %v5137
      %v5202 = vsub.f32 %v4813, %v5138
      %v5203 = vsub.f32 %v4816, %v5139
      %v5204 = vsub.f32 %v4818, %v5140
      %v5205 = vsub.f32 %v4821, %v5141
      %v5206 = vsub.f32 %v4823, %v5142
      %v5207 = vsub.f32 %v4826, %v5143
      %v5208 = vsub.f32 %v4828, %v5144
      %v5209 = vsub.f32 %v4831, %v5145
      %v5210 = vsub.f32 %v4833, %v5146
      %v5211 = vsub.f32 %v4836, %v5147
      %v5212 = vsub.f32 %v4838, %v5148
      %v5213 = vsub.f32 %v4841, %v5149
      %v5214 = vsub.f32 %v4843, %v5150
      %v5215 = vsub.f32 %v4846, %v5151
      %v5216 = vsub.f32 %v4848, %v5152
      %v5217 = vsub.f32 %v4851, %v5153
      %v5218 = vsub.f32 %v4853, %v5154
      %v5219 = vsub.f32 %v4856, %v5155
      %v5220 = vsub.f32 %v4858, %v5156
      %v5221 = vsub.f32 %v4861, %v5157
      %v5222 = vsub.f32 %v4863, %v5158
      %v5223 = vsub.f32 %v4866, %v5159
      %v5224 = vsub.f32 %v4868, %v5160
      %v5225 = vsub.f32 %v4871, %v5161
      %v5226 = vsub.f32 %v4873, %v5162
      %v5227 = vsub.f32 %v4876, %v5163
      %v5228 = vsub.f32 %v4878, %v5164
      %v5229 = vsub.f32 %v4881, %v5165
      %v5230 = vsub.f32 %v4883, %v5166
      %v5231 = vsub.f32 %v4886, %v5167
      %v5232 = vsub.f32 %v4888, %v5168
      %v5233 = vsub.f32 %v4891, %v5169
      %v5234 = vsub.f32 %v4893, %v5170
      %v5235 = vsub.f32 %v4896, %v5171
      %v5236 = vsub.f32 %v4898, %v5172
      %v5237 = vsub.f32 %v4901, %v5173
      %v5238 = vsub.f32 %v4903, %v5174
      %v5239 = vsub.f32 %v4906, %v5175
      %v5240 = vsub.f32 %v4908, %v5176
      %v5241 = vsub.f32 %v4911, %v5177
      %v5242 = vsub.f32 %v4913, %v5178
      %v5243 = vmul.f32 %v5179, %v5179
      %v5244 = vmul.f32 %v5180, %v5180
      %v5245 = vmul.f32 %v5181, %v5181
      %v5246 = vmul.f32 %v5182, %v5182
      %v5247 = vmul.f32 %v5183, %v5183
      %v5248 = vmul.f32 %v5184, %v5184
      %v5249 = vmul.f32 %v5185, %v5185
      %v5250 = vmul.f32 %v5186, %v5186
      %v5251 = vmul.f32 %v5187, %v5187
      %v5252 = vmul.f32 %v5188, %v5188
      %v5253 = vmul.f32 %v5189, %v5189
      %v5254 = vmul.f32 %v5190, %v5190
      %v5255 = vmul.f32 %v5191, %v5191
      %v5256 = vmul.f32 %v5192, %v5192
      %v5257 = vmul.f32 %v5193, %v5193
      %v5258 = vmul.f32 %v5194, %v5194
      %v5259 = vmul.f32 %v5195, %v5195
      %v5260 = vmul.f32 %v5196, %v5196
      %v5261 = vmul.f32 %v5197, %v5197
      %v5262 = vmul.f32 %v5198, %v5198
      %v5263 = vmul.f32 %v5199, %v5199
      %v5264 = vmul.f32 %v5200, %v5200
      %v5265 = vmul.f32 %v5201, %v5201
      %v5266 = vmul.f32 %v5202, %v5202
      %v5267 = vmul.f32 %v5203, %v5203
      %v5268 = vmul.f32 %v5204, %v5204
      %v5269 = vmul.f32 %v5205, %v5205
      %v5270 = vmul.f32 %v5206, %v5206
      %v5271 = vmul.f32 %v5207, %v5207
      %v5272 = vmul.f32 %v5208, %v5208
      %v5273 = vmul.f32 %v5209, %v5209
      %v5274 = vmul.f32 %v5210, %v5210
      %v5275 = vmul.f32 %v5211, %v5211
      %v5276 = vmul.f32 %v5212, %v5212
      %v5277 = vmul.f32 %v5213, %v5213
      %v5278 = vmul.f32 %v5214, %v5214
      %v5279 = vmul.f32 %v5215, %v5215
      %v5280 = vmul.f32 %v5216, %v5216
      %v5281 = vmul.f32 %v5217, %v5217
      %v5282 = vmul.f32 %v5218, %v5218
      %v5283 = vmul.f32 %v5219, %v5219
      %v5284 = vmul.f32 %v5220, %v5220
      %v5285 = vmul.f32 %v5221, %v5221
      %v5286 = vmul.f32 %v5222, %v5222
      %v5287 = vmul.f32 %v5223, %v5223
      %v5288 = vmul.f32 %v5224, %v5224
      %v5289 = vmul.f32 %v5225, %v5225
      %v5290 = vmul.f32 %v5226, %v5226
      %v5291 = vmul.f32 %v5227, %v5227
      %v5292 = vmul.f32 %v5228, %v5228
      %v5293 = vmul.f32 %v5229, %v5229
      %v5294 = vmul.f32 %v5230, %v5230
      %v5295 = vmul.f32 %v5231, %v5231
      %v5296 = vmul.f32 %v5232, %v5232
      %v5297 = vmul.f32 %v5233, %v5233
      %v5298 = vmul.f32 %v5234, %v5234
      %v5299 = vmul.f32 %v5235, %v5235
      %v5300 = vmul.f32 %v5236, %v5236
      %v5301 = vmul.f32 %v5237, %v5237
      %v5302 = vmul.f32 %v5238, %v5238
      %v5303 = vmul.f32 %v5239, %v5239
      %v5304 = vmul.f32 %v5240, %v5240
      %v5305 = vmul.f32 %v5241, %v5241
      %v5306 = vmul.f32 %v5242, %v5242
      %v5307 = vsel %vm4915, %v5243, 0.0
      %5308 = vadd.xlane.f32.xlu0 %v5307
      %v5309 = vpop.xlane.xlu0 %5308
      %v5310 = vsel %vm4915, %v5244, 0.0
      %5311 = vadd.xlane.f32.xlu0 %v5310
      %v5312 = vpop.xlane.xlu0 %5311
      %v5313 = vsel %vm4915, %v5245, 0.0
      %5314 = vadd.xlane.f32.xlu0 %v5313
      %v5315 = vpop.xlane.xlu0 %5314
      %v5316 = vsel %vm4915, %v5246, 0.0
      %5317 = vadd.xlane.f32.xlu0 %v5316
      %v5318 = vpop.xlane.xlu0 %5317
      %v5319 = vsel %vm4915, %v5247, 0.0
      %5320 = vadd.xlane.f32.xlu0 %v5319
      %v5321 = vpop.xlane.xlu0 %5320
      %v5322 = vsel %vm4915, %v5248, 0.0
      %5323 = vadd.xlane.f32.xlu0 %v5322
      %v5324 = vpop.xlane.xlu0 %5323
      %v5325 = vsel %vm4915, %v5249, 0.0
      %5326 = vadd.xlane.f32.xlu0 %v5325
      %v5327 = vpop.xlane.xlu0 %5326
      %v5328 = vsel %vm4915, %v5250, 0.0
      %5329 = vadd.xlane.f32.xlu0 %v5328
      %v5330 = vpop.xlane.xlu0 %5329
      %v5331 = vsel %vm4915, %v5251, 0.0
      %5332 = vadd.xlane.f32.xlu0 %v5331
      %v5333 = vpop.xlane.xlu0 %5332
      %v5334 = vsel %vm4915, %v5252, 0.0
      %5335 = vadd.xlane.f32.xlu0 %v5334
      %v5336 = vpop.xlane.xlu0 %5335
      %v5337 = vsel %vm4915, %v5253, 0.0
      %5338 = vadd.xlane.f32.xlu0 %v5337
      %v5339 = vpop.xlane.xlu0 %5338
      %v5340 = vsel %vm4915, %v5254, 0.0
      %5341 = vadd.xlane.f32.xlu0 %v5340
      %v5342 = vpop.xlane.xlu0 %5341
      %v5343 = vsel %vm4915, %v5255, 0.0
      %5344 = vadd.xlane.f32.xlu0 %v5343
      %v5345 = vpop.xlane.xlu0 %5344
      %v5346 = vsel %vm4915, %v5256, 0.0
      %5347 = vadd.xlane.f32.xlu0 %v5346
      %v5348 = vpop.xlane.xlu0 %5347
      %v5349 = vsel %vm4915, %v5257, 0.0
      %5350 = vadd.xlane.f32.xlu0 %v5349
      %v5351 = vpop.xlane.xlu0 %5350
      %v5352 = vsel %vm4915, %v5258, 0.0
      %5353 = vadd.xlane.f32.xlu0 %v5352
      %v5354 = vpop.xlane.xlu0 %5353
      %v5355 = vsel %vm4915, %v5259, 0.0
      %5356 = vadd.xlane.f32.xlu0 %v5355
      %v5357 = vpop.xlane.xlu0 %5356
      %v5358 = vsel %vm4915, %v5260, 0.0
      %5359 = vadd.xlane.f32.xlu0 %v5358
      %v5360 = vpop.xlane.xlu0 %5359
      %v5361 = vsel %vm4915, %v5261, 0.0
      %5362 = vadd.xlane.f32.xlu0 %v5361
      %v5363 = vpop.xlane.xlu0 %5362
      %v5364 = vsel %vm4915, %v5262, 0.0
      %5365 = vadd.xlane.f32.xlu0 %v5364
      %v5366 = vpop.xlane.xlu0 %5365
      %v5367 = vsel %vm4915, %v5263, 0.0
      %5368 = vadd.xlane.f32.xlu0 %v5367
      %v5369 = vpop.xlane.xlu0 %5368
      %v5370 = vsel %vm4915, %v5264, 0.0
      %5371 = vadd.xlane.f32.xlu0 %v5370
      %v5372 = vpop.xlane.xlu0 %5371
      %v5373 = vsel %vm4915, %v5265, 0.0
      %5374 = vadd.xlane.f32.xlu0 %v5373
      %v5375 = vpop.xlane.xlu0 %5374
      %v5376 = vsel %vm4915, %v5266, 0.0
      %5377 = vadd.xlane.f32.xlu0 %v5376
      %v5378 = vpop.xlane.xlu0 %5377
      %v5379 = vsel %vm4915, %v5267, 0.0
      %5380 = vadd.xlane.f32.xlu0 %v5379
      %v5381 = vpop.xlane.xlu0 %5380
      %v5382 = vsel %vm4915, %v5268, 0.0
      %5383 = vadd.xlane.f32.xlu0 %v5382
      %v5384 = vpop.xlane.xlu0 %5383
      %v5385 = vsel %vm4915, %v5269, 0.0
      %5386 = vadd.xlane.f32.xlu0 %v5385
      %v5387 = vpop.xlane.xlu0 %5386
      %v5388 = vsel %vm4915, %v5270, 0.0
      %5389 = vadd.xlane.f32.xlu0 %v5388
      %v5390 = vpop.xlane.xlu0 %5389
      %v5391 = vsel %vm4915, %v5271, 0.0
      %5392 = vadd.xlane.f32.xlu0 %v5391
      %v5393 = vpop.xlane.xlu0 %5392
      %v5394 = vsel %vm4915, %v5272, 0.0
      %5395 = vadd.xlane.f32.xlu0 %v5394
      %v5396 = vpop.xlane.xlu0 %5395
      %v5397 = vsel %vm4915, %v5273, 0.0
      %5398 = vadd.xlane.f32.xlu0 %v5397
      %v5399 = vpop.xlane.xlu0 %5398
      %v5400 = vsel %vm4915, %v5274, 0.0
      %5401 = vadd.xlane.f32.xlu0 %v5400
      %v5402 = vpop.xlane.xlu0 %5401
      %v5403 = vsel %vm4915, %v5275, 0.0
      %5404 = vadd.xlane.f32.xlu0 %v5403
      %v5405 = vpop.xlane.xlu0 %5404
      %v5406 = vsel %vm4915, %v5276, 0.0
      %5407 = vadd.xlane.f32.xlu0 %v5406
      %v5408 = vpop.xlane.xlu0 %5407
      %v5409 = vsel %vm4915, %v5277, 0.0
      %5410 = vadd.xlane.f32.xlu0 %v5409
      %v5411 = vpop.xlane.xlu0 %5410
      %v5412 = vsel %vm4915, %v5278, 0.0
      %5413 = vadd.xlane.f32.xlu0 %v5412
      %v5414 = vpop.xlane.xlu0 %5413
      %v5415 = vsel %vm4915, %v5279, 0.0
      %5416 = vadd.xlane.f32.xlu0 %v5415
      %v5417 = vpop.xlane.xlu0 %5416
      %v5418 = vsel %vm4915, %v5280, 0.0
      %5419 = vadd.xlane.f32.xlu0 %v5418
      %v5420 = vpop.xlane.xlu0 %5419
      %v5421 = vsel %vm4915, %v5281, 0.0
      %5422 = vadd.xlane.f32.xlu0 %v5421
      %v5423 = vpop.xlane.xlu0 %5422
      %v5424 = vsel %vm4915, %v5282, 0.0
      %5425 = vadd.xlane.f32.xlu0 %v5424
      %v5426 = vpop.xlane.xlu0 %5425
      %v5427 = vsel %vm4915, %v5283, 0.0
      %5428 = vadd.xlane.f32.xlu0 %v5427
      %v5429 = vpop.xlane.xlu0 %5428
      %v5430 = vsel %vm4915, %v5284, 0.0
      %5431 = vadd.xlane.f32.xlu0 %v5430
      %v5432 = vpop.xlane.xlu0 %5431
      %v5433 = vsel %vm4915, %v5285, 0.0
      %5434 = vadd.xlane.f32.xlu0 %v5433
      %v5435 = vpop.xlane.xlu0 %5434
      %v5436 = vsel %vm4915, %v5286, 0.0
      %5437 = vadd.xlane.f32.xlu0 %v5436
      %v5438 = vpop.xlane.xlu0 %5437
      %v5439 = vsel %vm4915, %v5287, 0.0
      %5440 = vadd.xlane.f32.xlu0 %v5439
      %v5441 = vpop.xlane.xlu0 %5440
      %v5442 = vsel %vm4915, %v5288, 0.0
      %5443 = vadd.xlane.f32.xlu0 %v5442
      %v5444 = vpop.xlane.xlu0 %5443
      %v5445 = vsel %vm4915, %v5289, 0.0
      %5446 = vadd.xlane.f32.xlu0 %v5445
      %v5447 = vpop.xlane.xlu0 %5446
      %v5448 = vsel %vm4915, %v5290, 0.0
      %5449 = vadd.xlane.f32.xlu0 %v5448
      %v5450 = vpop.xlane.xlu0 %5449
      %v5451 = vsel %vm4915, %v5291, 0.0
      %5452 = vadd.xlane.f32.xlu0 %v5451
      %v5453 = vpop.xlane.xlu0 %5452
      %v5454 = vsel %vm4915, %v5292, 0.0
      %5455 = vadd.xlane.f32.xlu0 %v5454
      %v5456 = vpop.xlane.xlu0 %5455
      %v5457 = vsel %vm4915, %v5293, 0.0
      %5458 = vadd.xlane.f32.xlu0 %v5457
      %v5459 = vpop.xlane.xlu0 %5458
      %v5460 = vsel %vm4915, %v5294, 0.0
      %5461 = vadd.xlane.f32.xlu0 %v5460
      %v5462 = vpop.xlane.xlu0 %5461
      %v5463 = vsel %vm4915, %v5295, 0.0
      %5464 = vadd.xlane.f32.xlu0 %v5463
      %v5465 = vpop.xlane.xlu0 %5464
      %v5466 = vsel %vm4915, %v5296, 0.0
      %5467 = vadd.xlane.f32.xlu0 %v5466
      %v5468 = vpop.xlane.xlu0 %5467
      %v5469 = vsel %vm4915, %v5297, 0.0
      %5470 = vadd.xlane.f32.xlu0 %v5469
      %v5471 = vpop.xlane.xlu0 %5470
      %v5472 = vsel %vm4915, %v5298, 0.0
      %5473 = vadd.xlane.f32.xlu0 %v5472
      %v5474 = vpop.xlane.xlu0 %5473
      %v5475 = vsel %vm4915, %v5299, 0.0
      %5476 = vadd.xlane.f32.xlu0 %v5475
      %v5477 = vpop.xlane.xlu0 %5476
      %v5478 = vsel %vm4915, %v5300, 0.0
      %5479 = vadd.xlane.f32.xlu0 %v5478
      %v5480 = vpop.xlane.xlu0 %5479
      %v5481 = vsel %vm4915, %v5301, 0.0
      %5482 = vadd.xlane.f32.xlu0 %v5481
      %v5483 = vpop.xlane.xlu0 %5482
      %v5484 = vsel %vm4915, %v5302, 0.0
      %5485 = vadd.xlane.f32.xlu0 %v5484
      %v5486 = vpop.xlane.xlu0 %5485
      %v5487 = vsel %vm4915, %v5303, 0.0
      %5488 = vadd.xlane.f32.xlu0 %v5487
      %v5489 = vpop.xlane.xlu0 %5488
      %v5490 = vsel %vm4915, %v5304, 0.0
      %5491 = vadd.xlane.f32.xlu0 %v5490
      %v5492 = vpop.xlane.xlu0 %5491
      %v5493 = vsel %vm4915, %v5305, 0.0
      %5494 = vadd.xlane.f32.xlu0 %v5493
      %v5495 = vpop.xlane.xlu0 %5494
      %v5496 = vsel %vm4915, %v5306, 0.0
      %5497 = vadd.xlane.f32.xlu0 %v5496
      %v5498 = vpop.xlane.xlu0 %5497
      %v5499 = vmul.f32 %v5309, %v5114
      %v5500 = vmul.f32 %v5312, %v5114
      %v5501 = vmul.f32 %v5315, %v5114
      %v5502 = vmul.f32 %v5318, %v5114
      %v5503 = vmul.f32 %v5321, %v5114
      %v5504 = vmul.f32 %v5324, %v5114
      %v5505 = vmul.f32 %v5327, %v5114
      %v5506 = vmul.f32 %v5330, %v5114
      %v5507 = vmul.f32 %v5333, %v5114
      %v5508 = vmul.f32 %v5336, %v5114
      %v5509 = vmul.f32 %v5339, %v5114
      %v5510 = vmul.f32 %v5342, %v5114
      %v5511 = vmul.f32 %v5345, %v5114
      %v5512 = vmul.f32 %v5348, %v5114
      %v5513 = vmul.f32 %v5351, %v5114
      %v5514 = vmul.f32 %v5354, %v5114
      %v5515 = vmul.f32 %v5357, %v5114
      %v5516 = vmul.f32 %v5360, %v5114
      %v5517 = vmul.f32 %v5363, %v5114
      %v5518 = vmul.f32 %v5366, %v5114
      %v5519 = vmul.f32 %v5369, %v5114
      %v5520 = vmul.f32 %v5372, %v5114
      %v5521 = vmul.f32 %v5375, %v5114
      %v5522 = vmul.f32 %v5378, %v5114
      %v5523 = vmul.f32 %v5381, %v5114
      %v5524 = vmul.f32 %v5384, %v5114
      %v5525 = vmul.f32 %v5387, %v5114
      %v5526 = vmul.f32 %v5390, %v5114
      %v5527 = vmul.f32 %v5393, %v5114
      %v5528 = vmul.f32 %v5396, %v5114
      %v5529 = vmul.f32 %v5399, %v5114
      %v5530 = vmul.f32 %v5402, %v5114
      %v5531 = vmul.f32 %v5405, %v5114
      %v5532 = vmul.f32 %v5408, %v5114
      %v5533 = vmul.f32 %v5411, %v5114
      %v5534 = vmul.f32 %v5414, %v5114
      %v5535 = vmul.f32 %v5417, %v5114
      %v5536 = vmul.f32 %v5420, %v5114
      %v5537 = vmul.f32 %v5423, %v5114
      %v5538 = vmul.f32 %v5426, %v5114
      %v5539 = vmul.f32 %v5429, %v5114
      %v5540 = vmul.f32 %v5432, %v5114
      %v5541 = vmul.f32 %v5435, %v5114
      %v5542 = vmul.f32 %v5438, %v5114
      %v5543 = vmul.f32 %v5441, %v5114
      %v5544 = vmul.f32 %v5444, %v5114
      %v5545 = vmul.f32 %v5447, %v5114
      %v5546 = vmul.f32 %v5450, %v5114
      %v5547 = vmul.f32 %v5453, %v5114
      %v5548 = vmul.f32 %v5456, %v5114
      %v5549 = vmul.f32 %v5459, %v5114
      %v5550 = vmul.f32 %v5462, %v5114
      %v5551 = vmul.f32 %v5465, %v5114
      %v5552 = vmul.f32 %v5468, %v5114
      %v5553 = vmul.f32 %v5471, %v5114
      %v5554 = vmul.f32 %v5474, %v5114
      %v5555 = vmul.f32 %v5477, %v5114
      %v5556 = vmul.f32 %v5480, %v5114
      %v5557 = vmul.f32 %v5483, %v5114
      %v5558 = vmul.f32 %v5486, %v5114
      %v5559 = vmul.f32 %v5489, %v5114
      %v5560 = vmul.f32 %v5492, %v5114
      %v5561 = vmul.f32 %v5495, %v5114
      %v5562 = vmul.f32 %v5498, %v5114
      %v5563 = vadd.f32 %v5499, 1e-05
      %v5564 = vadd.f32 %v5500, 1e-05
      %v5565 = vadd.f32 %v5501, 1e-05
      %v5566 = vadd.f32 %v5502, 1e-05
      %v5567 = vadd.f32 %v5503, 1e-05
      %v5568 = vadd.f32 %v5504, 1e-05
      %v5569 = vadd.f32 %v5505, 1e-05
      %v5570 = vadd.f32 %v5506, 1e-05
      %v5571 = vadd.f32 %v5507, 1e-05
      %v5572 = vadd.f32 %v5508, 1e-05
      %v5573 = vadd.f32 %v5509, 1e-05
      %v5574 = vadd.f32 %v5510, 1e-05
      %v5575 = vadd.f32 %v5511, 1e-05
      %v5576 = vadd.f32 %v5512, 1e-05
      %v5577 = vadd.f32 %v5513, 1e-05
      %v5578 = vadd.f32 %v5514, 1e-05
      %v5579 = vadd.f32 %v5515, 1e-05
      %v5580 = vadd.f32 %v5516, 1e-05
      %v5581 = vadd.f32 %v5517, 1e-05
      %v5582 = vadd.f32 %v5518, 1e-05
      %v5583 = vadd.f32 %v5519, 1e-05
      %v5584 = vadd.f32 %v5520, 1e-05
      %v5585 = vadd.f32 %v5521, 1e-05
      %v5586 = vadd.f32 %v5522, 1e-05
      %v5587 = vadd.f32 %v5523, 1e-05
      %v5588 = vadd.f32 %v5524, 1e-05
      %v5589 = vadd.f32 %v5525, 1e-05
      %v5590 = vadd.f32 %v5526, 1e-05
      %v5591 = vadd.f32 %v5527, 1e-05
      %v5592 = vadd.f32 %v5528, 1e-05
      %v5593 = vadd.f32 %v5529, 1e-05
      %v5594 = vadd.f32 %v5530, 1e-05
      %v5595 = vadd.f32 %v5531, 1e-05
      %v5596 = vadd.f32 %v5532, 1e-05
      %v5597 = vadd.f32 %v5533, 1e-05
      %v5598 = vadd.f32 %v5534, 1e-05
      %v5599 = vadd.f32 %v5535, 1e-05
      %v5600 = vadd.f32 %v5536, 1e-05
      %v5601 = vadd.f32 %v5537, 1e-05
      %v5602 = vadd.f32 %v5538, 1e-05
      %v5603 = vadd.f32 %v5539, 1e-05
      %v5604 = vadd.f32 %v5540, 1e-05
      %v5605 = vadd.f32 %v5541, 1e-05
      %v5606 = vadd.f32 %v5542, 1e-05
      %v5607 = vadd.f32 %v5543, 1e-05
      %v5608 = vadd.f32 %v5544, 1e-05
      %v5609 = vadd.f32 %v5545, 1e-05
      %v5610 = vadd.f32 %v5546, 1e-05
      %v5611 = vadd.f32 %v5547, 1e-05
      %v5612 = vadd.f32 %v5548, 1e-05
      %v5613 = vadd.f32 %v5549, 1e-05
      %v5614 = vadd.f32 %v5550, 1e-05
      %v5615 = vadd.f32 %v5551, 1e-05
      %v5616 = vadd.f32 %v5552, 1e-05
      %v5617 = vadd.f32 %v5553, 1e-05
      %v5618 = vadd.f32 %v5554, 1e-05
      %v5619 = vadd.f32 %v5555, 1e-05
      %v5620 = vadd.f32 %v5556, 1e-05
      %v5621 = vadd.f32 %v5557, 1e-05
      %v5622 = vadd.f32 %v5558, 1e-05
      %v5623 = vadd.f32 %v5559, 1e-05
      %v5624 = vadd.f32 %v5560, 1e-05
      %v5625 = vadd.f32 %v5561, 1e-05
      %v5626 = vadd.f32 %v5562, 1e-05
      %v5627 = vrsqrt.pop %v5563
      %v5628 = vmul.f32 %v5627, %v5563
      %v5629 = vmul.f32 %v5628, %v5627
      %v5630 = vmul.f32 0.5, %v5629
      %v5631 = vsub.f32 1.5, %v5630
      %v5632 = vmul.f32 %v5627, %v5631
      %vm5633 = vweird.f32 %v5563
      %vm5634 = vweird.f32 %v5627
      %vm5635 = vmor %vm5633, %vm5634
      %v5636 = vsel %vm5635, %v5627, %v5632
      %v5637 = vrsqrt.pop %v5564
      %v5638 = vmul.f32 %v5637, %v5564
      %v5639 = vmul.f32 %v5638, %v5637
      %v5640 = vmul.f32 0.5, %v5639
      %v5641 = vsub.f32 1.5, %v5640
      %v5642 = vmul.f32 %v5637, %v5641
      %vm5643 = vweird.f32 %v5564
      %vm5644 = vweird.f32 %v5637
      %vm5645 = vmor %vm5643, %vm5644
      %v5646 = vsel %vm5645, %v5637, %v5642
      %v5647 = vrsqrt.pop %v5565
      %v5648 = vmul.f32 %v5647, %v5565
      %v5649 = vmul.f32 %v5648, %v5647
      %v5650 = vmul.f32 0.5, %v5649
      %v5651 = vsub.f32 1.5, %v5650
      %v5652 = vmul.f32 %v5647, %v5651
      %vm5653 = vweird.f32 %v5565
      %vm5654 = vweird.f32 %v5647
      %vm5655 = vmor %vm5653, %vm5654
      %v5656 = vsel %vm5655, %v5647, %v5652
      %v5657 = vrsqrt.pop %v5566
      %v5658 = vmul.f32 %v5657, %v5566
      %v5659 = vmul.f32 %v5658, %v5657
      %v5660 = vmul.f32 0.5, %v5659
      %v5661 = vsub.f32 1.5, %v5660
      %v5662 = vmul.f32 %v5657, %v5661
      %vm5663 = vweird.f32 %v5566
      %vm5664 = vweird.f32 %v5657
      %vm5665 = vmor %vm5663, %vm5664
      %v5666 = vsel %vm5665, %v5657, %v5662
      %v5667 = vrsqrt.pop %v5567
      %v5668 = vmul.f32 %v5667, %v5567
      %v5669 = vmul.f32 %v5668, %v5667
      %v5670 = vmul.f32 0.5, %v5669
      %v5671 = vsub.f32 1.5, %v5670
      %v5672 = vmul.f32 %v5667, %v5671
      %vm5673 = vweird.f32 %v5567
      %vm5674 = vweird.f32 %v5667
      %vm5675 = vmor %vm5673, %vm5674
      %v5676 = vsel %vm5675, %v5667, %v5672
      %v5677 = vrsqrt.pop %v5568
      %v5678 = vmul.f32 %v5677, %v5568
      %v5679 = vmul.f32 %v5678, %v5677
      %v5680 = vmul.f32 0.5, %v5679
      %v5681 = vsub.f32 1.5, %v5680
      %v5682 = vmul.f32 %v5677, %v5681
      %vm5683 = vweird.f32 %v5568
      %vm5684 = vweird.f32 %v5677
      %vm5685 = vmor %vm5683, %vm5684
      %v5686 = vsel %vm5685, %v5677, %v5682
      %v5687 = vrsqrt.pop %v5569
      %v5688 = vmul.f32 %v5687, %v5569
      %v5689 = vmul.f32 %v5688, %v5687
      %v5690 = vmul.f32 0.5, %v5689
      %v5691 = vsub.f32 1.5, %v5690
      %v5692 = vmul.f32 %v5687, %v5691
      %vm5693 = vweird.f32 %v5569
      %vm5694 = vweird.f32 %v5687
      %vm5695 = vmor %vm5693, %vm5694
      %v5696 = vsel %vm5695, %v5687, %v5692
      %v5697 = vrsqrt.pop %v5570
      %v5698 = vmul.f32 %v5697, %v5570
      %v5699 = vmul.f32 %v5698, %v5697
      %v5700 = vmul.f32 0.5, %v5699
      %v5701 = vsub.f32 1.5, %v5700
      %v5702 = vmul.f32 %v5697, %v5701
      %vm5703 = vweird.f32 %v5570
      %vm5704 = vweird.f32 %v5697
      %vm5705 = vmor %vm5703, %vm5704
      %v5706 = vsel %vm5705, %v5697, %v5702
      %v5707 = vrsqrt.pop %v5571
      %v5708 = vmul.f32 %v5707, %v5571
      %v5709 = vmul.f32 %v5708, %v5707
      %v5710 = vmul.f32 0.5, %v5709
      %v5711 = vsub.f32 1.5, %v5710
      %v5712 = vmul.f32 %v5707, %v5711
      %vm5713 = vweird.f32 %v5571
      %vm5714 = vweird.f32 %v5707
      %vm5715 = vmor %vm5713, %vm5714
      %v5716 = vsel %vm5715, %v5707, %v5712
      %v5717 = vrsqrt.pop %v5572
      %v5718 = vmul.f32 %v5717, %v5572
      %v5719 = vmul.f32 %v5718, %v5717
      %v5720 = vmul.f32 0.5, %v5719
      %v5721 = vsub.f32 1.5, %v5720
      %v5722 = vmul.f32 %v5717, %v5721
      %vm5723 = vweird.f32 %v5572
      %vm5724 = vweird.f32 %v5717
      %vm5725 = vmor %vm5723, %vm5724
      %v5726 = vsel %vm5725, %v5717, %v5722
      %v5727 = vrsqrt.pop %v5573
      %v5728 = vmul.f32 %v5727, %v5573
      %v5729 = vmul.f32 %v5728, %v5727
      %v5730 = vmul.f32 0.5, %v5729
      %v5731 = vsub.f32 1.5, %v5730
      %v5732 = vmul.f32 %v5727, %v5731
      %vm5733 = vweird.f32 %v5573
      %vm5734 = vweird.f32 %v5727
      %vm5735 = vmor %vm5733, %vm5734
      %v5736 = vsel %vm5735, %v5727, %v5732
      %v5737 = vrsqrt.pop %v5574
      %v5738 = vmul.f32 %v5737, %v5574
      %v5739 = vmul.f32 %v5738, %v5737
      %v5740 = vmul.f32 0.5, %v5739
      %v5741 = vsub.f32 1.5, %v5740
      %v5742 = vmul.f32 %v5737, %v5741
      %vm5743 = vweird.f32 %v5574
      %vm5744 = vweird.f32 %v5737
      %vm5745 = vmor %vm5743, %vm5744
      %v5746 = vsel %vm5745, %v5737, %v5742
      %v5747 = vrsqrt.pop %v5575
      %v5748 = vmul.f32 %v5747, %v5575
      %v5749 = vmul.f32 %v5748, %v5747
      %v5750 = vmul.f32 0.5, %v5749
      %v5751 = vsub.f32 1.5, %v5750
      %v5752 = vmul.f32 %v5747, %v5751
      %vm5753 = vweird.f32 %v5575
      %vm5754 = vweird.f32 %v5747
      %vm5755 = vmor %vm5753, %vm5754
      %v5756 = vsel %vm5755, %v5747, %v5752
      %v5757 = vrsqrt.pop %v5576
      %v5758 = vmul.f32 %v5757, %v5576
      %v5759 = vmul.f32 %v5758, %v5757
      %v5760 = vmul.f32 0.5, %v5759
      %v5761 = vsub.f32 1.5, %v5760
      %v5762 = vmul.f32 %v5757, %v5761
      %vm5763 = vweird.f32 %v5576
      %vm5764 = vweird.f32 %v5757
      %vm5765 = vmor %vm5763, %vm5764
      %v5766 = vsel %vm5765, %v5757, %v5762
      %v5767 = vrsqrt.pop %v5577
      %v5768 = vmul.f32 %v5767, %v5577
      %v5769 = vmul.f32 %v5768, %v5767
      %v5770 = vmul.f32 0.5, %v5769
      %v5771 = vsub.f32 1.5, %v5770
      %v5772 = vmul.f32 %v5767, %v5771
      %vm5773 = vweird.f32 %v5577
      %vm5774 = vweird.f32 %v5767
      %vm5775 = vmor %vm5773, %vm5774
      %v5776 = vsel %vm5775, %v5767, %v5772
      %v5777 = vrsqrt.pop %v5578
      %v5778 = vmul.f32 %v5777, %v5578
      %v5779 = vmul.f32 %v5778, %v5777
      %v5780 = vmul.f32 0.5, %v5779
      %v5781 = vsub.f32 1.5, %v5780
      %v5782 = vmul.f32 %v5777, %v5781
      %vm5783 = vweird.f32 %v5578
      %vm5784 = vweird.f32 %v5777
      %vm5785 = vmor %vm5783, %vm5784
      %v5786 = vsel %vm5785, %v5777, %v5782
      %v5787 = vrsqrt.pop %v5579
      %v5788 = vmul.f32 %v5787, %v5579
      %v5789 = vmul.f32 %v5788, %v5787
      %v5790 = vmul.f32 0.5, %v5789
      %v5791 = vsub.f32 1.5, %v5790
      %v5792 = vmul.f32 %v5787, %v5791
      %vm5793 = vweird.f32 %v5579
      %vm5794 = vweird.f32 %v5787
      %vm5795 = vmor %vm5793, %vm5794
      %v5796 = vsel %vm5795, %v5787, %v5792
      %v5797 = vrsqrt.pop %v5580
      %v5798 = vmul.f32 %v5797, %v5580
      %v5799 = vmul.f32 %v5798, %v5797
      %v5800 = vmul.f32 0.5, %v5799
      %v5801 = vsub.f32 1.5, %v5800
      %v5802 = vmul.f32 %v5797, %v5801
      %vm5803 = vweird.f32 %v5580
      %vm5804 = vweird.f32 %v5797
      %vm5805 = vmor %vm5803, %vm5804
      %v5806 = vsel %vm5805, %v5797, %v5802
      %v5807 = vrsqrt.pop %v5581
      %v5808 = vmul.f32 %v5807, %v5581
      %v5809 = vmul.f32 %v5808, %v5807
      %v5810 = vmul.f32 0.5, %v5809
      %v5811 = vsub.f32 1.5, %v5810
      %v5812 = vmul.f32 %v5807, %v5811
      %vm5813 = vweird.f32 %v5581
      %vm5814 = vweird.f32 %v5807
      %vm5815 = vmor %vm5813, %vm5814
      %v5816 = vsel %vm5815, %v5807, %v5812
      %v5817 = vrsqrt.pop %v5582
      %v5818 = vmul.f32 %v5817, %v5582
      %v5819 = vmul.f32 %v5818, %v5817
      %v5820 = vmul.f32 0.5, %v5819
      %v5821 = vsub.f32 1.5, %v5820
      %v5822 = vmul.f32 %v5817, %v5821
      %vm5823 = vweird.f32 %v5582
      %vm5824 = vweird.f32 %v5817
      %vm5825 = vmor %vm5823, %vm5824
      %v5826 = vsel %vm5825, %v5817, %v5822
      %v5827 = vrsqrt.pop %v5583
      %v5828 = vmul.f32 %v5827, %v5583
      %v5829 = vmul.f32 %v5828, %v5827
      %v5830 = vmul.f32 0.5, %v5829
      %v5831 = vsub.f32 1.5, %v5830
      %v5832 = vmul.f32 %v5827, %v5831
      %vm5833 = vweird.f32 %v5583
      %vm5834 = vweird.f32 %v5827
      %vm5835 = vmor %vm5833, %vm5834
      %v5836 = vsel %vm5835, %v5827, %v5832
      %v5837 = vrsqrt.pop %v5584
      %v5838 = vmul.f32 %v5837, %v5584
      %v5839 = vmul.f32 %v5838, %v5837
      %v5840 = vmul.f32 0.5, %v5839
      %v5841 = vsub.f32 1.5, %v5840
      %v5842 = vmul.f32 %v5837, %v5841
      %vm5843 = vweird.f32 %v5584
      %vm5844 = vweird.f32 %v5837
      %vm5845 = vmor %vm5843, %vm5844
      %v5846 = vsel %vm5845, %v5837, %v5842
      %v5847 = vrsqrt.pop %v5585
      %v5848 = vmul.f32 %v5847, %v5585
      %v5849 = vmul.f32 %v5848, %v5847
      %v5850 = vmul.f32 0.5, %v5849
      %v5851 = vsub.f32 1.5, %v5850
      %v5852 = vmul.f32 %v5847, %v5851
      %vm5853 = vweird.f32 %v5585
      %vm5854 = vweird.f32 %v5847
      %vm5855 = vmor %vm5853, %vm5854
      %v5856 = vsel %vm5855, %v5847, %v5852
      %v5857 = vrsqrt.pop %v5586
      %v5858 = vmul.f32 %v5857, %v5586
      %v5859 = vmul.f32 %v5858, %v5857
      %v5860 = vmul.f32 0.5, %v5859
      %v5861 = vsub.f32 1.5, %v5860
      %v5862 = vmul.f32 %v5857, %v5861
      %vm5863 = vweird.f32 %v5586
      %vm5864 = vweird.f32 %v5857
      %vm5865 = vmor %vm5863, %vm5864
      %v5866 = vsel %vm5865, %v5857, %v5862
      %v5867 = vrsqrt.pop %v5587
      %v5868 = vmul.f32 %v5867, %v5587
      %v5869 = vmul.f32 %v5868, %v5867
      %v5870 = vmul.f32 0.5, %v5869
      %v5871 = vsub.f32 1.5, %v5870
      %v5872 = vmul.f32 %v5867, %v5871
      %vm5873 = vweird.f32 %v5587
      %vm5874 = vweird.f32 %v5867
      %vm5875 = vmor %vm5873, %vm5874
      %v5876 = vsel %vm5875, %v5867, %v5872
      %v5877 = vrsqrt.pop %v5588
      %v5878 = vmul.f32 %v5877, %v5588
      %v5879 = vmul.f32 %v5878, %v5877
      %v5880 = vmul.f32 0.5, %v5879
      %v5881 = vsub.f32 1.5, %v5880
      %v5882 = vmul.f32 %v5877, %v5881
      %vm5883 = vweird.f32 %v5588
      %vm5884 = vweird.f32 %v5877
      %vm5885 = vmor %vm5883, %vm5884
      %v5886 = vsel %vm5885, %v5877, %v5882
      %v5887 = vrsqrt.pop %v5589
      %v5888 = vmul.f32 %v5887, %v5589
      %v5889 = vmul.f32 %v5888, %v5887
      %v5890 = vmul.f32 0.5, %v5889
      %v5891 = vsub.f32 1.5, %v5890
      %v5892 = vmul.f32 %v5887, %v5891
      %vm5893 = vweird.f32 %v5589
      %vm5894 = vweird.f32 %v5887
      %vm5895 = vmor %vm5893, %vm5894
      %v5896 = vsel %vm5895, %v5887, %v5892
      %v5897 = vrsqrt.pop %v5590
      %v5898 = vmul.f32 %v5897, %v5590
      %v5899 = vmul.f32 %v5898, %v5897
      %v5900 = vmul.f32 0.5, %v5899
      %v5901 = vsub.f32 1.5, %v5900
      %v5902 = vmul.f32 %v5897, %v5901
      %vm5903 = vweird.f32 %v5590
      %vm5904 = vweird.f32 %v5897
      %vm5905 = vmor %vm5903, %vm5904
      %v5906 = vsel %vm5905, %v5897, %v5902
      %v5907 = vrsqrt.pop %v5591
      %v5908 = vmul.f32 %v5907, %v5591
      %v5909 = vmul.f32 %v5908, %v5907
      %v5910 = vmul.f32 0.5, %v5909
      %v5911 = vsub.f32 1.5, %v5910
      %v5912 = vmul.f32 %v5907, %v5911
      %vm5913 = vweird.f32 %v5591
      %vm5914 = vweird.f32 %v5907
      %vm5915 = vmor %vm5913, %vm5914
      %v5916 = vsel %vm5915, %v5907, %v5912
      %v5917 = vrsqrt.pop %v5592
      %v5918 = vmul.f32 %v5917, %v5592
      %v5919 = vmul.f32 %v5918, %v5917
      %v5920 = vmul.f32 0.5, %v5919
      %v5921 = vsub.f32 1.5, %v5920
      %v5922 = vmul.f32 %v5917, %v5921
      %vm5923 = vweird.f32 %v5592
      %vm5924 = vweird.f32 %v5917
      %vm5925 = vmor %vm5923, %vm5924
      %v5926 = vsel %vm5925, %v5917, %v5922
      %v5927 = vrsqrt.pop %v5593
      %v5928 = vmul.f32 %v5927, %v5593
      %v5929 = vmul.f32 %v5928, %v5927
      %v5930 = vmul.f32 0.5, %v5929
      %v5931 = vsub.f32 1.5, %v5930
      %v5932 = vmul.f32 %v5927, %v5931
      %vm5933 = vweird.f32 %v5593
      %vm5934 = vweird.f32 %v5927
      %vm5935 = vmor %vm5933, %vm5934
      %v5936 = vsel %vm5935, %v5927, %v5932
      %v5937 = vrsqrt.pop %v5594
      %v5938 = vmul.f32 %v5937, %v5594
      %v5939 = vmul.f32 %v5938, %v5937
      %v5940 = vmul.f32 0.5, %v5939
      %v5941 = vsub.f32 1.5, %v5940
      %v5942 = vmul.f32 %v5937, %v5941
      %vm5943 = vweird.f32 %v5594
      %vm5944 = vweird.f32 %v5937
      %vm5945 = vmor %vm5943, %vm5944
      %v5946 = vsel %vm5945, %v5937, %v5942
      %v5947 = vrsqrt.pop %v5595
      %v5948 = vmul.f32 %v5947, %v5595
      %v5949 = vmul.f32 %v5948, %v5947
      %v5950 = vmul.f32 0.5, %v5949
      %v5951 = vsub.f32 1.5, %v5950
      %v5952 = vmul.f32 %v5947, %v5951
      %vm5953 = vweird.f32 %v5595
      %vm5954 = vweird.f32 %v5947
      %vm5955 = vmor %vm5953, %vm5954
      %v5956 = vsel %vm5955, %v5947, %v5952
      %v5957 = vrsqrt.pop %v5596
      %v5958 = vmul.f32 %v5957, %v5596
      %v5959 = vmul.f32 %v5958, %v5957
      %v5960 = vmul.f32 0.5, %v5959
      %v5961 = vsub.f32 1.5, %v5960
      %v5962 = vmul.f32 %v5957, %v5961
      %vm5963 = vweird.f32 %v5596
      %vm5964 = vweird.f32 %v5957
      %vm5965 = vmor %vm5963, %vm5964
      %v5966 = vsel %vm5965, %v5957, %v5962
      %v5967 = vrsqrt.pop %v5597
      %v5968 = vmul.f32 %v5967, %v5597
      %v5969 = vmul.f32 %v5968, %v5967
      %v5970 = vmul.f32 0.5, %v5969
      %v5971 = vsub.f32 1.5, %v5970
      %v5972 = vmul.f32 %v5967, %v5971
      %vm5973 = vweird.f32 %v5597
      %vm5974 = vweird.f32 %v5967
      %vm5975 = vmor %vm5973, %vm5974
      %v5976 = vsel %vm5975, %v5967, %v5972
      %v5977 = vrsqrt.pop %v5598
      %v5978 = vmul.f32 %v5977, %v5598
      %v5979 = vmul.f32 %v5978, %v5977
      %v5980 = vmul.f32 0.5, %v5979
      %v5981 = vsub.f32 1.5, %v5980
      %v5982 = vmul.f32 %v5977, %v5981
      %vm5983 = vweird.f32 %v5598
      %vm5984 = vweird.f32 %v5977
      %vm5985 = vmor %vm5983, %vm5984
      %v5986 = vsel %vm5985, %v5977, %v5982
      %v5987 = vrsqrt.pop %v5599
      %v5988 = vmul.f32 %v5987, %v5599
      %v5989 = vmul.f32 %v5988, %v5987
      %v5990 = vmul.f32 0.5, %v5989
      %v5991 = vsub.f32 1.5, %v5990
      %v5992 = vmul.f32 %v5987, %v5991
      %vm5993 = vweird.f32 %v5599
      %vm5994 = vweird.f32 %v5987
      %vm5995 = vmor %vm5993, %vm5994
      %v5996 = vsel %vm5995, %v5987, %v5992
      %v5997 = vrsqrt.pop %v5600
      %v5998 = vmul.f32 %v5997, %v5600
      %v5999 = vmul.f32 %v5998, %v5997
      %v6000 = vmul.f32 0.5, %v5999
      %v6001 = vsub.f32 1.5, %v6000
      %v6002 = vmul.f32 %v5997, %v6001
      %vm6003 = vweird.f32 %v5600
      %vm6004 = vweird.f32 %v5997
      %vm6005 = vmor %vm6003, %vm6004
      %v6006 = vsel %vm6005, %v5997, %v6002
      %v6007 = vrsqrt.pop %v5601
      %v6008 = vmul.f32 %v6007, %v5601
      %v6009 = vmul.f32 %v6008, %v6007
      %v6010 = vmul.f32 0.5, %v6009
      %v6011 = vsub.f32 1.5, %v6010
      %v6012 = vmul.f32 %v6007, %v6011
      %vm6013 = vweird.f32 %v5601
      %vm6014 = vweird.f32 %v6007
      %vm6015 = vmor %vm6013, %vm6014
      %v6016 = vsel %vm6015, %v6007, %v6012
      %v6017 = vrsqrt.pop %v5602
      %v6018 = vmul.f32 %v6017, %v5602
      %v6019 = vmul.f32 %v6018, %v6017
      %v6020 = vmul.f32 0.5, %v6019
      %v6021 = vsub.f32 1.5, %v6020
      %v6022 = vmul.f32 %v6017, %v6021
      %vm6023 = vweird.f32 %v5602
      %vm6024 = vweird.f32 %v6017
      %vm6025 = vmor %vm6023, %vm6024
      %v6026 = vsel %vm6025, %v6017, %v6022
      %v6027 = vrsqrt.pop %v5603
      %v6028 = vmul.f32 %v6027, %v5603
      %v6029 = vmul.f32 %v6028, %v6027
      %v6030 = vmul.f32 0.5, %v6029
      %v6031 = vsub.f32 1.5, %v6030
      %v6032 = vmul.f32 %v6027, %v6031
      %vm6033 = vweird.f32 %v5603
      %vm6034 = vweird.f32 %v6027
      %vm6035 = vmor %vm6033, %vm6034
      %v6036 = vsel %vm6035, %v6027, %v6032
      %v6037 = vrsqrt.pop %v5604
      %v6038 = vmul.f32 %v6037, %v5604
      %v6039 = vmul.f32 %v6038, %v6037
      %v6040 = vmul.f32 0.5, %v6039
      %v6041 = vsub.f32 1.5, %v6040
      %v6042 = vmul.f32 %v6037, %v6041
      %vm6043 = vweird.f32 %v5604
      %vm6044 = vweird.f32 %v6037
      %vm6045 = vmor %vm6043, %vm6044
      %v6046 = vsel %vm6045, %v6037, %v6042
      %v6047 = vrsqrt.pop %v5605
      %v6048 = vmul.f32 %v6047, %v5605
      %v6049 = vmul.f32 %v6048, %v6047
      %v6050 = vmul.f32 0.5, %v6049
      %v6051 = vsub.f32 1.5, %v6050
      %v6052 = vmul.f32 %v6047, %v6051
      %vm6053 = vweird.f32 %v5605
      %vm6054 = vweird.f32 %v6047
      %vm6055 = vmor %vm6053, %vm6054
      %v6056 = vsel %vm6055, %v6047, %v6052
      %v6057 = vrsqrt.pop %v5606
      %v6058 = vmul.f32 %v6057, %v5606
      %v6059 = vmul.f32 %v6058, %v6057
      %v6060 = vmul.f32 0.5, %v6059
      %v6061 = vsub.f32 1.5, %v6060
      %v6062 = vmul.f32 %v6057, %v6061
      %vm6063 = vweird.f32 %v5606
      %vm6064 = vweird.f32 %v6057
      %vm6065 = vmor %vm6063, %vm6064
      %v6066 = vsel %vm6065, %v6057, %v6062
      %v6067 = vrsqrt.pop %v5607
      %v6068 = vmul.f32 %v6067, %v5607
      %v6069 = vmul.f32 %v6068, %v6067
      %v6070 = vmul.f32 0.5, %v6069
      %v6071 = vsub.f32 1.5, %v6070
      %v6072 = vmul.f32 %v6067, %v6071
      %vm6073 = vweird.f32 %v5607
      %vm6074 = vweird.f32 %v6067
      %vm6075 = vmor %vm6073, %vm6074
      %v6076 = vsel %vm6075, %v6067, %v6072
      %v6077 = vrsqrt.pop %v5608
      %v6078 = vmul.f32 %v6077, %v5608
      %v6079 = vmul.f32 %v6078, %v6077
      %v6080 = vmul.f32 0.5, %v6079
      %v6081 = vsub.f32 1.5, %v6080
      %v6082 = vmul.f32 %v6077, %v6081
      %vm6083 = vweird.f32 %v5608
      %vm6084 = vweird.f32 %v6077
      %vm6085 = vmor %vm6083, %vm6084
      %v6086 = vsel %vm6085, %v6077, %v6082
      %v6087 = vrsqrt.pop %v5609
      %v6088 = vmul.f32 %v6087, %v5609
      %v6089 = vmul.f32 %v6088, %v6087
      %v6090 = vmul.f32 0.5, %v6089
      %v6091 = vsub.f32 1.5, %v6090
      %v6092 = vmul.f32 %v6087, %v6091
      %vm6093 = vweird.f32 %v5609
      %vm6094 = vweird.f32 %v6087
      %vm6095 = vmor %vm6093, %vm6094
      %v6096 = vsel %vm6095, %v6087, %v6092
      %v6097 = vrsqrt.pop %v5610
      %v6098 = vmul.f32 %v6097, %v5610
      %v6099 = vmul.f32 %v6098, %v6097
      %v6100 = vmul.f32 0.5, %v6099
      %v6101 = vsub.f32 1.5, %v6100
      %v6102 = vmul.f32 %v6097, %v6101
      %vm6103 = vweird.f32 %v5610
      %vm6104 = vweird.f32 %v6097
      %vm6105 = vmor %vm6103, %vm6104
      %v6106 = vsel %vm6105, %v6097, %v6102
      %v6107 = vrsqrt.pop %v5611
      %v6108 = vmul.f32 %v6107, %v5611
      %v6109 = vmul.f32 %v6108, %v6107
      %v6110 = vmul.f32 0.5, %v6109
      %v6111 = vsub.f32 1.5, %v6110
      %v6112 = vmul.f32 %v6107, %v6111
      %vm6113 = vweird.f32 %v5611
      %vm6114 = vweird.f32 %v6107
      %vm6115 = vmor %vm6113, %vm6114
      %v6116 = vsel %vm6115, %v6107, %v6112
      %v6117 = vrsqrt.pop %v5612
      %v6118 = vmul.f32 %v6117, %v5612
      %v6119 = vmul.f32 %v6118, %v6117
      %v6120 = vmul.f32 0.5, %v6119
      %v6121 = vsub.f32 1.5, %v6120
      %v6122 = vmul.f32 %v6117, %v6121
      %vm6123 = vweird.f32 %v5612
      %vm6124 = vweird.f32 %v6117
      %vm6125 = vmor %vm6123, %vm6124
      %v6126 = vsel %vm6125, %v6117, %v6122
      %v6127 = vrsqrt.pop %v5613
      %v6128 = vmul.f32 %v6127, %v5613
      %v6129 = vmul.f32 %v6128, %v6127
      %v6130 = vmul.f32 0.5, %v6129
      %v6131 = vsub.f32 1.5, %v6130
      %v6132 = vmul.f32 %v6127, %v6131
      %vm6133 = vweird.f32 %v5613
      %vm6134 = vweird.f32 %v6127
      %vm6135 = vmor %vm6133, %vm6134
      %v6136 = vsel %vm6135, %v6127, %v6132
      %v6137 = vrsqrt.pop %v5614
      %v6138 = vmul.f32 %v6137, %v5614
      %v6139 = vmul.f32 %v6138, %v6137
      %v6140 = vmul.f32 0.5, %v6139
      %v6141 = vsub.f32 1.5, %v6140
      %v6142 = vmul.f32 %v6137, %v6141
      %vm6143 = vweird.f32 %v5614
      %vm6144 = vweird.f32 %v6137
      %vm6145 = vmor %vm6143, %vm6144
      %v6146 = vsel %vm6145, %v6137, %v6142
      %v6147 = vrsqrt.pop %v5615
      %v6148 = vmul.f32 %v6147, %v5615
      %v6149 = vmul.f32 %v6148, %v6147
      %v6150 = vmul.f32 0.5, %v6149
      %v6151 = vsub.f32 1.5, %v6150
      %v6152 = vmul.f32 %v6147, %v6151
      %vm6153 = vweird.f32 %v5615
      %vm6154 = vweird.f32 %v6147
      %vm6155 = vmor %vm6153, %vm6154
      %v6156 = vsel %vm6155, %v6147, %v6152
      %v6157 = vrsqrt.pop %v5616
      %v6158 = vmul.f32 %v6157, %v5616
      %v6159 = vmul.f32 %v6158, %v6157
      %v6160 = vmul.f32 0.5, %v6159
      %v6161 = vsub.f32 1.5, %v6160
      %v6162 = vmul.f32 %v6157, %v6161
      %vm6163 = vweird.f32 %v5616
      %vm6164 = vweird.f32 %v6157
      %vm6165 = vmor %vm6163, %vm6164
      %v6166 = vsel %vm6165, %v6157, %v6162
      %v6167 = vrsqrt.pop %v5617
      %v6168 = vmul.f32 %v6167, %v5617
      %v6169 = vmul.f32 %v6168, %v6167
      %v6170 = vmul.f32 0.5, %v6169
      %v6171 = vsub.f32 1.5, %v6170
      %v6172 = vmul.f32 %v6167, %v6171
      %vm6173 = vweird.f32 %v5617
      %vm6174 = vweird.f32 %v6167
      %vm6175 = vmor %vm6173, %vm6174
      %v6176 = vsel %vm6175, %v6167, %v6172
      %v6177 = vrsqrt.pop %v5618
      %v6178 = vmul.f32 %v6177, %v5618
      %v6179 = vmul.f32 %v6178, %v6177
      %v6180 = vmul.f32 0.5, %v6179
      %v6181 = vsub.f32 1.5, %v6180
      %v6182 = vmul.f32 %v6177, %v6181
      %vm6183 = vweird.f32 %v5618
      %vm6184 = vweird.f32 %v6177
      %vm6185 = vmor %vm6183, %vm6184
      %v6186 = vsel %vm6185, %v6177, %v6182
      %v6187 = vrsqrt.pop %v5619
      %v6188 = vmul.f32 %v6187, %v5619
      %v6189 = vmul.f32 %v6188, %v6187
      %v6190 = vmul.f32 0.5, %v6189
      %v6191 = vsub.f32 1.5, %v6190
      %v6192 = vmul.f32 %v6187, %v6191
      %vm6193 = vweird.f32 %v5619
      %vm6194 = vweird.f32 %v6187
      %vm6195 = vmor %vm6193, %vm6194
      %v6196 = vsel %vm6195, %v6187, %v6192
      %v6197 = vrsqrt.pop %v5620
      %v6198 = vmul.f32 %v6197, %v5620
      %v6199 = vmul.f32 %v6198, %v6197
      %v6200 = vmul.f32 0.5, %v6199
      %v6201 = vsub.f32 1.5, %v6200
      %v6202 = vmul.f32 %v6197, %v6201
      %vm6203 = vweird.f32 %v5620
      %vm6204 = vweird.f32 %v6197
      %vm6205 = vmor %vm6203, %vm6204
      %v6206 = vsel %vm6205, %v6197, %v6202
      %v6207 = vrsqrt.pop %v5621
      %v6208 = vmul.f32 %v6207, %v5621
      %v6209 = vmul.f32 %v6208, %v6207
      %v6210 = vmul.f32 0.5, %v6209
      %v6211 = vsub.f32 1.5, %v6210
      %v6212 = vmul.f32 %v6207, %v6211
      %vm6213 = vweird.f32 %v5621
      %vm6214 = vweird.f32 %v6207
      %vm6215 = vmor %vm6213, %vm6214
      %v6216 = vsel %vm6215, %v6207, %v6212
      %v6217 = vrsqrt.pop %v5622
      %v6218 = vmul.f32 %v6217, %v5622
      %v6219 = vmul.f32 %v6218, %v6217
      %v6220 = vmul.f32 0.5, %v6219
      %v6221 = vsub.f32 1.5, %v6220
      %v6222 = vmul.f32 %v6217, %v6221
      %vm6223 = vweird.f32 %v5622
      %vm6224 = vweird.f32 %v6217
      %vm6225 = vmor %vm6223, %vm6224
      %v6226 = vsel %vm6225, %v6217, %v6222
      %v6227 = vrsqrt.pop %v5623
      %v6228 = vmul.f32 %v6227, %v5623
      %v6229 = vmul.f32 %v6228, %v6227
      %v6230 = vmul.f32 0.5, %v6229
      %v6231 = vsub.f32 1.5, %v6230
      %v6232 = vmul.f32 %v6227, %v6231
      %vm6233 = vweird.f32 %v5623
      %vm6234 = vweird.f32 %v6227
      %vm6235 = vmor %vm6233, %vm6234
      %v6236 = vsel %vm6235, %v6227, %v6232
      %v6237 = vrsqrt.pop %v5624
      %v6238 = vmul.f32 %v6237, %v5624
      %v6239 = vmul.f32 %v6238, %v6237
      %v6240 = vmul.f32 0.5, %v6239
      %v6241 = vsub.f32 1.5, %v6240
      %v6242 = vmul.f32 %v6237, %v6241
      %vm6243 = vweird.f32 %v5624
      %vm6244 = vweird.f32 %v6237
      %vm6245 = vmor %vm6243, %vm6244
      %v6246 = vsel %vm6245, %v6237, %v6242
      %v6247 = vrsqrt.pop %v5625
      %v6248 = vmul.f32 %v6247, %v5625
      %v6249 = vmul.f32 %v6248, %v6247
      %v6250 = vmul.f32 0.5, %v6249
      %v6251 = vsub.f32 1.5, %v6250
      %v6252 = vmul.f32 %v6247, %v6251
      %vm6253 = vweird.f32 %v5625
      %vm6254 = vweird.f32 %v6247
      %vm6255 = vmor %vm6253, %vm6254
      %v6256 = vsel %vm6255, %v6247, %v6252
      %v6257 = vrsqrt.pop %v5626
      %v6258 = vmul.f32 %v6257, %v5626
      %v6259 = vmul.f32 %v6258, %v6257
      %v6260 = vmul.f32 0.5, %v6259
      %v6261 = vsub.f32 1.5, %v6260
      %v6262 = vmul.f32 %v6257, %v6261
      %vm6263 = vweird.f32 %v5626
      %vm6264 = vweird.f32 %v6257
      %vm6265 = vmor %vm6263, %vm6264
      %v6266 = vsel %vm6265, %v6257, %v6262
      %v6267 = vmul.f32 %v5179, %v5636
      %v6268 = vmul.f32 %v5180, %v5646
      %v6269 = vmul.f32 %v5181, %v5656
      %v6270 = vmul.f32 %v5182, %v5666
      %v6271 = vmul.f32 %v5183, %v5676
      %v6272 = vmul.f32 %v5184, %v5686
      %v6273 = vmul.f32 %v5185, %v5696
      %v6274 = vmul.f32 %v5186, %v5706
      %v6275 = vmul.f32 %v5187, %v5716
      %v6276 = vmul.f32 %v5188, %v5726
      %v6277 = vmul.f32 %v5189, %v5736
      %v6278 = vmul.f32 %v5190, %v5746
      %v6279 = vmul.f32 %v5191, %v5756
      %v6280 = vmul.f32 %v5192, %v5766
      %v6281 = vmul.f32 %v5193, %v5776
      %v6282 = vmul.f32 %v5194, %v5786
      %v6283 = vmul.f32 %v5195, %v5796
      %v6284 = vmul.f32 %v5196, %v5806
      %v6285 = vmul.f32 %v5197, %v5816
      %v6286 = vmul.f32 %v5198, %v5826
      %v6287 = vmul.f32 %v5199, %v5836
      %v6288 = vmul.f32 %v5200, %v5846
      %v6289 = vmul.f32 %v5201, %v5856
      %v6290 = vmul.f32 %v5202, %v5866
      %v6291 = vmul.f32 %v5203, %v5876
      %v6292 = vmul.f32 %v5204, %v5886
      %v6293 = vmul.f32 %v5205, %v5896
      %v6294 = vmul.f32 %v5206, %v5906
      %v6295 = vmul.f32 %v5207, %v5916
      %v6296 = vmul.f32 %v5208, %v5926
      %v6297 = vmul.f32 %v5209, %v5936
      %v6298 = vmul.f32 %v5210, %v5946
      %v6299 = vmul.f32 %v5211, %v5956
      %v6300 = vmul.f32 %v5212, %v5966
      %v6301 = vmul.f32 %v5213, %v5976
      %v6302 = vmul.f32 %v5214, %v5986
      %v6303 = vmul.f32 %v5215, %v5996
      %v6304 = vmul.f32 %v5216, %v6006
      %v6305 = vmul.f32 %v5217, %v6016
      %v6306 = vmul.f32 %v5218, %v6026
      %v6307 = vmul.f32 %v5219, %v6036
      %v6308 = vmul.f32 %v5220, %v6046
      %v6309 = vmul.f32 %v5221, %v6056
      %v6310 = vmul.f32 %v5222, %v6066
      %v6311 = vmul.f32 %v5223, %v6076
      %v6312 = vmul.f32 %v5224, %v6086
      %v6313 = vmul.f32 %v5225, %v6096
      %v6314 = vmul.f32 %v5226, %v6106
      %v6315 = vmul.f32 %v5227, %v6116
      %v6316 = vmul.f32 %v5228, %v6126
      %v6317 = vmul.f32 %v5229, %v6136
      %v6318 = vmul.f32 %v5230, %v6146
      %v6319 = vmul.f32 %v5231, %v6156
      %v6320 = vmul.f32 %v5232, %v6166
      %v6321 = vmul.f32 %v5233, %v6176
      %v6322 = vmul.f32 %v5234, %v6186
      %v6323 = vmul.f32 %v5235, %v6196
      %v6324 = vmul.f32 %v5236, %v6206
      %v6325 = vmul.f32 %v5237, %v6216
      %v6326 = vmul.f32 %v5238, %v6226
      %v6327 = vmul.f32 %v5239, %v6236
      %v6328 = vmul.f32 %v5240, %v6246
      %v6329 = vmul.f32 %v5241, %v6256
      %v6330 = vmul.f32 %v5242, %v6266
      %v6331 = vmax.f32 %v6267, 0.0
      %v6332 = vmax.f32 %v6268, 0.0
      %v6333 = vmax.f32 %v6269, 0.0
      %v6334 = vmax.f32 %v6270, 0.0
      %v6335 = vmax.f32 %v6271, 0.0
      %v6336 = vmax.f32 %v6272, 0.0
      %v6337 = vmax.f32 %v6273, 0.0
      %v6338 = vmax.f32 %v6274, 0.0
      %v6339 = vmax.f32 %v6275, 0.0
      %v6340 = vmax.f32 %v6276, 0.0
      %v6341 = vmax.f32 %v6277, 0.0
      %v6342 = vmax.f32 %v6278, 0.0
      %v6343 = vmax.f32 %v6279, 0.0
      %v6344 = vmax.f32 %v6280, 0.0
      %v6345 = vmax.f32 %v6281, 0.0
      %v6346 = vmax.f32 %v6282, 0.0
      %v6347 = vmax.f32 %v6283, 0.0
      %v6348 = vmax.f32 %v6284, 0.0
      %v6349 = vmax.f32 %v6285, 0.0
      %v6350 = vmax.f32 %v6286, 0.0
      %v6351 = vmax.f32 %v6287, 0.0
      %v6352 = vmax.f32 %v6288, 0.0
      %v6353 = vmax.f32 %v6289, 0.0
      %v6354 = vmax.f32 %v6290, 0.0
      %v6355 = vmax.f32 %v6291, 0.0
      %v6356 = vmax.f32 %v6292, 0.0
      %v6357 = vmax.f32 %v6293, 0.0
      %v6358 = vmax.f32 %v6294, 0.0
      %v6359 = vmax.f32 %v6295, 0.0
      %v6360 = vmax.f32 %v6296, 0.0
      %v6361 = vmax.f32 %v6297, 0.0
      %v6362 = vmax.f32 %v6298, 0.0
      %v6363 = vmax.f32 %v6299, 0.0
      %v6364 = vmax.f32 %v6300, 0.0
      %v6365 = vmax.f32 %v6301, 0.0
      %v6366 = vmax.f32 %v6302, 0.0
      %v6367 = vmax.f32 %v6303, 0.0
      %v6368 = vmax.f32 %v6304, 0.0
      %v6369 = vmax.f32 %v6305, 0.0
      %v6370 = vmax.f32 %v6306, 0.0
      %v6371 = vmax.f32 %v6307, 0.0
      %v6372 = vmax.f32 %v6308, 0.0
      %v6373 = vmax.f32 %v6309, 0.0
      %v6374 = vmax.f32 %v6310, 0.0
      %v6375 = vmax.f32 %v6311, 0.0
      %v6376 = vmax.f32 %v6312, 0.0
      %v6377 = vmax.f32 %v6313, 0.0
      %v6378 = vmax.f32 %v6314, 0.0
      %v6379 = vmax.f32 %v6315, 0.0
      %v6380 = vmax.f32 %v6316, 0.0
      %v6381 = vmax.f32 %v6317, 0.0
      %v6382 = vmax.f32 %v6318, 0.0
      %v6383 = vmax.f32 %v6319, 0.0
      %v6384 = vmax.f32 %v6320, 0.0
      %v6385 = vmax.f32 %v6321, 0.0
      %v6386 = vmax.f32 %v6322, 0.0
      %v6387 = vmax.f32 %v6323, 0.0
      %v6388 = vmax.f32 %v6324, 0.0
      %v6389 = vmax.f32 %v6325, 0.0
      %v6390 = vmax.f32 %v6326, 0.0
      %v6391 = vmax.f32 %v6327, 0.0
      %v6392 = vmax.f32 %v6328, 0.0
      %v6393 = vmax.f32 %v6329, 0.0
      %v6394 = vmax.f32 %v6330, 0.0
      %v6395 = vpack.c.bf16 %v6332, %v6331
      %v6396 = vpack.c.bf16 %v6334, %v6333
      %v6397 = vpack.c.bf16 %v6336, %v6335
      %v6398 = vpack.c.bf16 %v6338, %v6337
      %v6399 = vpack.c.bf16 %v6340, %v6339
      %v6400 = vpack.c.bf16 %v6342, %v6341
      %v6401 = vpack.c.bf16 %v6344, %v6343
      %v6402 = vpack.c.bf16 %v6346, %v6345
      %v6403 = vpack.c.bf16 %v6348, %v6347
      %v6404 = vpack.c.bf16 %v6350, %v6349
      %v6405 = vpack.c.bf16 %v6352, %v6351
      %v6406 = vpack.c.bf16 %v6354, %v6353
      %v6407 = vpack.c.bf16 %v6356, %v6355
      %v6408 = vpack.c.bf16 %v6358, %v6357
      %v6409 = vpack.c.bf16 %v6360, %v6359
      %v6410 = vpack.c.bf16 %v6362, %v6361
      %v6411 = vpack.c.bf16 %v6364, %v6363
      %v6412 = vpack.c.bf16 %v6366, %v6365
      %v6413 = vpack.c.bf16 %v6368, %v6367
      %v6414 = vpack.c.bf16 %v6370, %v6369
      %v6415 = vpack.c.bf16 %v6372, %v6371
      %v6416 = vpack.c.bf16 %v6374, %v6373
      %v6417 = vpack.c.bf16 %v6376, %v6375
      %v6418 = vpack.c.bf16 %v6378, %v6377
      %v6419 = vpack.c.bf16 %v6380, %v6379
      %v6420 = vpack.c.bf16 %v6382, %v6381
      %v6421 = vpack.c.bf16 %v6384, %v6383
      %v6422 = vpack.c.bf16 %v6386, %v6385
      %v6423 = vpack.c.bf16 %v6388, %v6387
      %v6424 = vpack.c.bf16 %v6390, %v6389
      %v6425 = vpack.c.bf16 %v6392, %v6391
      %v6426 = vpack.c.bf16 %v6394, %v6393
      %v6427 = vld [vmem:[%s7] sm:$0xf]
      %v6428 = vld [vmem:[%s7 + $0x4] sm:$0xf]
      %v6429 = vld [vmem:[%s7 + $0x8] sm:$0xf]
      %v6430 = vld [vmem:[%s7 + $0xc] sm:$0xf]
      %v6431 = vld [vmem:[%s7 + $0x10] sm:$0xf]
      %v6432 = vld [vmem:[%s7 + $0x14] sm:$0xf]
      %v6433 = vld [vmem:[%s7 + $0x18] sm:$0xf]
      %v6434 = vld [vmem:[%s7 + $0x1c] sm:$0xf]
      %v6435 = vld [vmem:[%s8] sm:$0x1]
      %v6437 = vperm.slane %v6435, 0
      %v6447 = vunpack.c.l.b16 %v6427
      %v6448 = vunpack.c.l.b16 %v6428
      %v6449 = vunpack.c.l.b16 %v6429
      %v6450 = vunpack.c.l.b16 %v6430
      %v6451 = vunpack.c.l.b16 %v6431
      %v6452 = vunpack.c.l.b16 %v6432
      %v6453 = vunpack.c.l.b16 %v6433
      %v6454 = vunpack.c.l.b16 %v6434
      %v6455 = vpack.c.b16 %v6448, %v6447
      %v6456 = vpack.c.b16 %v6450, %v6449
      %v6457 = vpack.c.b16 %v6452, %v6451
      %v6458 = vpack.c.b16 %v6454, %v6453
      %v6464 = vsel %vm4915, %v6395, 0
      %v6467 = vsel %vm4915, %v6396, 0
      %v6470 = vsel %vm4915, %v6397, 0
      %v6473 = vsel %vm4915, %v6398, 0
      %v6476 = vsel %vm4915, %v6399, 0
      %v6479 = vsel %vm4915, %v6400, 0
      %v6482 = vsel %vm4915, %v6401, 0
      %v6485 = vsel %vm4915, %v6402, 0
      %v6488 = vsel %vm4915, %v6403, 0
      %v6491 = vsel %vm4915, %v6404, 0
      %v6494 = vsel %vm4915, %v6405, 0
      %v6497 = vsel %vm4915, %v6406, 0
      %v6500 = vsel %vm4915, %v6407, 0
      %v6503 = vsel %vm4915, %v6408, 0
      %v6506 = vsel %vm4915, %v6409, 0
      %v6509 = vsel %vm4915, %v6410, 0
      %v6512 = vsel %vm4915, %v6411, 0
      %v6515 = vsel %vm4915, %v6412, 0
      %v6518 = vsel %vm4915, %v6413, 0
      %v6521 = vsel %vm4915, %v6414, 0
      %v6524 = vsel %vm4915, %v6415, 0
      %v6527 = vsel %vm4915, %v6416, 0
      %v6530 = vsel %vm4915, %v6417, 0
      %v6533 = vsel %vm4915, %v6418, 0
      %v6536 = vsel %vm4915, %v6419, 0
      %v6539 = vsel %vm4915, %v6420, 0
      %v6542 = vsel %vm4915, %v6421, 0
      %v6545 = vsel %vm4915, %v6422, 0
      %v6548 = vsel %vm4915, %v6423, 0
      %v6551 = vsel %vm4915, %v6424, 0
      %v6554 = vsel %vm4915, %v6425, 0
      %v6557 = vsel %vm4915, %v6426, 0
      %6559 = vmatpush.bf16.msra.mxu0 0
      %6560 = vmatpush.bf16.msra.mxu0 0
      %6561 = vmatpush.bf16.msra.mxu0 0
      %6562 = vmatpush.bf16.msra.mxu0 0
      %6563 = vmatpush.bf16.msra.mxu0 %v6458
      %6564 = vmatpush.bf16.msra.mxu0 %v6457
      %6565 = vmatpush.bf16.msra.mxu0 %v6456
      %6566 = vmatpush.bf16.msra.mxu0 %v6455
      %6567 = vmatmul.bf16.gmra.mxu0 %v6464
      %v6568 = vpop.f32.mrf.mxu0
      %v6569 = vadd.f32 %v6437, %v6568
      %v6570 = vpop.f32.mrf.mxu0
      %v6571 = vadd.f32 %v6437, %v6570
      %6572 = vmatmul.bf16.gmra.mxu0 %v6467
      %v6573 = vpop.f32.mrf.mxu0
      %v6574 = vadd.f32 %v6437, %v6573
      %v6575 = vpop.f32.mrf.mxu0
      %v6576 = vadd.f32 %v6437, %v6575
      %6577 = vmatmul.bf16.gmra.mxu0 %v6470
      %v6578 = vpop.f32.mrf.mxu0
      %v6579 = vadd.f32 %v6437, %v6578
      %v6580 = vpop.f32.mrf.mxu0
      %v6581 = vadd.f32 %v6437, %v6580
      %6582 = vmatmul.bf16.gmra.mxu0 %v6473
      %v6583 = vpop.f32.mrf.mxu0
      %v6584 = vadd.f32 %v6437, %v6583
      %v6585 = vpop.f32.mrf.mxu0
      %v6586 = vadd.f32 %v6437, %v6585
      %6587 = vmatmul.bf16.gmra.mxu0 %v6476
      %v6588 = vpop.f32.mrf.mxu0
      %v6589 = vadd.f32 %v6437, %v6588
      %v6590 = vpop.f32.mrf.mxu0
      %v6591 = vadd.f32 %v6437, %v6590
      %6592 = vmatmul.bf16.gmra.mxu0 %v6479
      %v6593 = vpop.f32.mrf.mxu0
      %v6594 = vadd.f32 %v6437, %v6593
      %v6595 = vpop.f32.mrf.mxu0
      %v6596 = vadd.f32 %v6437, %v6595
      %6597 = vmatmul.bf16.gmra.mxu0 %v6482
      %v6598 = vpop.f32.mrf.mxu0
      %v6599 = vadd.f32 %v6437, %v6598
      %v6600 = vpop.f32.mrf.mxu0
      %v6601 = vadd.f32 %v6437, %v6600
      %6602 = vmatmul.bf16.gmra.mxu0 %v6485
      %v6603 = vpop.f32.mrf.mxu0
      %v6604 = vadd.f32 %v6437, %v6603
      %v6605 = vpop.f32.mrf.mxu0
      %v6606 = vadd.f32 %v6437, %v6605
      %6607 = vmatmul.bf16.gmra.mxu0 %v6488
      %v6608 = vpop.f32.mrf.mxu0
      %v6609 = vadd.f32 %v6437, %v6608
      %v6610 = vpop.f32.mrf.mxu0
      %v6611 = vadd.f32 %v6437, %v6610
      %6612 = vmatmul.bf16.gmra.mxu0 %v6491
      %v6613 = vpop.f32.mrf.mxu0
      %v6614 = vadd.f32 %v6437, %v6613
      %v6615 = vpop.f32.mrf.mxu0
      %v6616 = vadd.f32 %v6437, %v6615
      %6617 = vmatmul.bf16.gmra.mxu0 %v6494
      %v6618 = vpop.f32.mrf.mxu0
      %v6619 = vadd.f32 %v6437, %v6618
      %v6620 = vpop.f32.mrf.mxu0
      %v6621 = vadd.f32 %v6437, %v6620
      %6622 = vmatmul.bf16.gmra.mxu0 %v6497
      %v6623 = vpop.f32.mrf.mxu0
      %v6624 = vadd.f32 %v6437, %v6623
      %v6625 = vpop.f32.mrf.mxu0
      %v6626 = vadd.f32 %v6437, %v6625
      %6627 = vmatmul.bf16.gmra.mxu0 %v6500
      %v6628 = vpop.f32.mrf.mxu0
      %v6629 = vadd.f32 %v6437, %v6628
      %v6630 = vpop.f32.mrf.mxu0
      %v6631 = vadd.f32 %v6437, %v6630
      %6632 = vmatmul.bf16.gmra.mxu0 %v6503
      %v6633 = vpop.f32.mrf.mxu0
      %v6634 = vadd.f32 %v6437, %v6633
      %v6635 = vpop.f32.mrf.mxu0
      %v6636 = vadd.f32 %v6437, %v6635
      %6637 = vmatmul.bf16.gmra.mxu0 %v6506
      %v6638 = vpop.f32.mrf.mxu0
      %v6639 = vadd.f32 %v6437, %v6638
      %v6640 = vpop.f32.mrf.mxu0
      %v6641 = vadd.f32 %v6437, %v6640
      %6642 = vmatmul.bf16.gmra.mxu0 %v6509
      %v6643 = vpop.f32.mrf.mxu0
      %v6644 = vadd.f32 %v6437, %v6643
      %v6645 = vpop.f32.mrf.mxu0
      %v6646 = vadd.f32 %v6437, %v6645
      %6647 = vmatmul.bf16.gmra.mxu0 %v6512
      %v6648 = vpop.f32.mrf.mxu0
      %v6649 = vadd.f32 %v6437, %v6648
      %v6650 = vpop.f32.mrf.mxu0
      %v6651 = vadd.f32 %v6437, %v6650
      %6652 = vmatmul.bf16.gmra.mxu0 %v6515
      %v6653 = vpop.f32.mrf.mxu0
      %v6654 = vadd.f32 %v6437, %v6653
      %v6655 = vpop.f32.mrf.mxu0
      %v6656 = vadd.f32 %v6437, %v6655
      %6657 = vmatmul.bf16.gmra.mxu0 %v6518
      %v6658 = vpop.f32.mrf.mxu0
      %v6659 = vadd.f32 %v6437, %v6658
      %v6660 = vpop.f32.mrf.mxu0
      %v6661 = vadd.f32 %v6437, %v6660
      %6662 = vmatmul.bf16.gmra.mxu0 %v6521
      %v6663 = vpop.f32.mrf.mxu0
      %v6664 = vadd.f32 %v6437, %v6663
      %v6665 = vpop.f32.mrf.mxu0
      %v6666 = vadd.f32 %v6437, %v6665
      %6667 = vmatmul.bf16.gmra.mxu0 %v6524
      %v6668 = vpop.f32.mrf.mxu0
      %v6669 = vadd.f32 %v6437, %v6668
      %v6670 = vpop.f32.mrf.mxu0
      %v6671 = vadd.f32 %v6437, %v6670
      %6672 = vmatmul.bf16.gmra.mxu0 %v6527
      %v6673 = vpop.f32.mrf.mxu0
      %v6674 = vadd.f32 %v6437, %v6673
      %v6675 = vpop.f32.mrf.mxu0
      %v6676 = vadd.f32 %v6437, %v6675
      %6677 = vmatmul.bf16.gmra.mxu0 %v6530
      %v6678 = vpop.f32.mrf.mxu0
      %v6679 = vadd.f32 %v6437, %v6678
      %v6680 = vpop.f32.mrf.mxu0
      %v6681 = vadd.f32 %v6437, %v6680
      %6682 = vmatmul.bf16.gmra.mxu0 %v6533
      %v6683 = vpop.f32.mrf.mxu0
      %v6684 = vadd.f32 %v6437, %v6683
      %v6685 = vpop.f32.mrf.mxu0
      %v6686 = vadd.f32 %v6437, %v6685
      %6687 = vmatmul.bf16.gmra.mxu0 %v6536
      %v6688 = vpop.f32.mrf.mxu0
      %v6689 = vadd.f32 %v6437, %v6688
      %v6690 = vpop.f32.mrf.mxu0
      %v6691 = vadd.f32 %v6437, %v6690
      %6692 = vmatmul.bf16.gmra.mxu0 %v6539
      %v6693 = vpop.f32.mrf.mxu0
      %v6694 = vadd.f32 %v6437, %v6693
      %v6695 = vpop.f32.mrf.mxu0
      %v6696 = vadd.f32 %v6437, %v6695
      %6697 = vmatmul.bf16.gmra.mxu0 %v6542
      %v6698 = vpop.f32.mrf.mxu0
      %v6699 = vadd.f32 %v6437, %v6698
      %v6700 = vpop.f32.mrf.mxu0
      %v6701 = vadd.f32 %v6437, %v6700
      %6702 = vmatmul.bf16.gmra.mxu0 %v6545
      %v6703 = vpop.f32.mrf.mxu0
      %v6704 = vadd.f32 %v6437, %v6703
      %v6705 = vpop.f32.mrf.mxu0
      %v6706 = vadd.f32 %v6437, %v6705
      %6707 = vmatmul.bf16.gmra.mxu0 %v6548
      %v6708 = vpop.f32.mrf.mxu0
      %v6709 = vadd.f32 %v6437, %v6708
      %v6710 = vpop.f32.mrf.mxu0
      %v6711 = vadd.f32 %v6437, %v6710
      %6712 = vmatmul.bf16.gmra.mxu0 %v6551
      %v6713 = vpop.f32.mrf.mxu0
      %v6714 = vadd.f32 %v6437, %v6713
      %v6715 = vpop.f32.mrf.mxu0
      %v6716 = vadd.f32 %v6437, %v6715
      %6717 = vmatmul.bf16.gmra.mxu0 %v6554
      %v6718 = vpop.f32.mrf.mxu0
      %v6719 = vadd.f32 %v6437, %v6718
      %v6720 = vpop.f32.mrf.mxu0
      %v6721 = vadd.f32 %v6437, %v6720
      %6722 = vmatmul.bf16.gmra.mxu0 %v6557
      %v6723 = vpop.f32.mrf.mxu0
      %v6724 = vadd.f32 %v6437, %v6723
      %v6725 = vpop.f32.mrf.mxu0
      %v6726 = vadd.f32 %v6437, %v6725
      %6727 = vdwg.mxu0
      %vm6728 = vcmask 130048
      %6729 = vst.msk [vmem:[%s334] sm:$0xff] %vm6728, %v6569
      %6730 = vst.msk [vmem:[%s334 + $0x8] sm:$0xff] %vm6728, %v6571
      %6731 = vst.msk [vmem:[%s334 + $0x10] sm:$0xff] %vm6728, %v6574
      %6732 = vst.msk [vmem:[%s334 + $0x18] sm:$0xff] %vm6728, %v6576
      %6733 = vst.msk [vmem:[%s334 + $0x20] sm:$0xff] %vm6728, %v6579
      %6734 = vst.msk [vmem:[%s334 + $0x28] sm:$0xff] %vm6728, %v6581
      %6735 = vst.msk [vmem:[%s334 + $0x30] sm:$0xff] %vm6728, %v6584
      %6736 = vst.msk [vmem:[%s334 + $0x38] sm:$0xff] %vm6728, %v6586
      %6737 = vst.msk [vmem:[%s334 + $0x40] sm:$0xff] %vm6728, %v6589
      %6738 = vst.msk [vmem:[%s334 + $0x48] sm:$0xff] %vm6728, %v6591
      %6739 = vst.msk [vmem:[%s334 + $0x50] sm:$0xff] %vm6728, %v6594
      %6740 = vst.msk [vmem:[%s334 + $0x58] sm:$0xff] %vm6728, %v6596
      %6741 = vst.msk [vmem:[%s334 + $0x60] sm:$0xff] %vm6728, %v6599
      %6742 = vst.msk [vmem:[%s334 + $0x68] sm:$0xff] %vm6728, %v6601
      %6743 = vst.msk [vmem:[%s334 + $0x70] sm:$0xff] %vm6728, %v6604
      %6744 = vst.msk [vmem:[%s334 + $0x78] sm:$0xff] %vm6728, %v6606
      %6745 = vst.msk [vmem:[%s334 + $0x80] sm:$0xff] %vm6728, %v6609
      %6746 = vst.msk [vmem:[%s334 + $0x88] sm:$0xff] %vm6728, %v6611
      %6747 = vst.msk [vmem:[%s334 + $0x90] sm:$0xff] %vm6728, %v6614
      %6748 = vst.msk [vmem:[%s334 + $0x98] sm:$0xff] %vm6728, %v6616
      %6749 = vst.msk [vmem:[%s334 + $0xa0] sm:$0xff] %vm6728, %v6619
      %6750 = vst.msk [vmem:[%s334 + $0xa8] sm:$0xff] %vm6728, %v6621
      %6751 = vst.msk [vmem:[%s334 + $0xb0] sm:$0xff] %vm6728, %v6624
      %6752 = vst.msk [vmem:[%s334 + $0xb8] sm:$0xff] %vm6728, %v6626
      %6753 = vst.msk [vmem:[%s334 + $0xc0] sm:$0xff] %vm6728, %v6629
      %6754 = vst.msk [vmem:[%s334 + $0xc8] sm:$0xff] %vm6728, %v6631
      %6755 = vst.msk [vmem:[%s334 + $0xd0] sm:$0xff] %vm6728, %v6634
      %6756 = vst.msk [vmem:[%s334 + $0xd8] sm:$0xff] %vm6728, %v6636
      %6757 = vst.msk [vmem:[%s334 + $0xe0] sm:$0xff] %vm6728, %v6639
      %6758 = vst.msk [vmem:[%s334 + $0xe8] sm:$0xff] %vm6728, %v6641
      %6759 = vst.msk [vmem:[%s334 + $0xf0] sm:$0xff] %vm6728, %v6644
      %6760 = vst.msk [vmem:[%s334 + $0xf8] sm:$0xff] %vm6728, %v6646
      %6761 = vst.msk [vmem:[%s334 + $0x100] sm:$0xff] %vm6728, %v6649
      %6762 = vst.msk [vmem:[%s334 + $0x108] sm:$0xff] %vm6728, %v6651
      %6763 = vst.msk [vmem:[%s334 + $0x110] sm:$0xff] %vm6728, %v6654
      %6764 = vst.msk [vmem:[%s334 + $0x118] sm:$0xff] %vm6728, %v6656
      %6765 = vst.msk [vmem:[%s334 + $0x120] sm:$0xff] %vm6728, %v6659
      %6766 = vst.msk [vmem:[%s334 + $0x128] sm:$0xff] %vm6728, %v6661
      %6767 = vst.msk [vmem:[%s334 + $0x130] sm:$0xff] %vm6728, %v6664
      %6768 = vst.msk [vmem:[%s334 + $0x138] sm:$0xff] %vm6728, %v6666
      %6769 = vst.msk [vmem:[%s334 + $0x140] sm:$0xff] %vm6728, %v6669
      %6770 = vst.msk [vmem:[%s334 + $0x148] sm:$0xff] %vm6728, %v6671
      %6771 = vst.msk [vmem:[%s334 + $0x150] sm:$0xff] %vm6728, %v6674
      %6772 = vst.msk [vmem:[%s334 + $0x158] sm:$0xff] %vm6728, %v6676
      %6773 = vst.msk [vmem:[%s334 + $0x160] sm:$0xff] %vm6728, %v6679
      %6774 = vst.msk [vmem:[%s334 + $0x168] sm:$0xff] %vm6728, %v6681
      %6775 = vst.msk [vmem:[%s334 + $0x170] sm:$0xff] %vm6728, %v6684
      %6776 = vst.msk [vmem:[%s334 + $0x178] sm:$0xff] %vm6728, %v6686
      %6777 = vst.msk [vmem:[%s334 + $0x180] sm:$0xff] %vm6728, %v6689
      %6778 = vst.msk [vmem:[%s334 + $0x188] sm:$0xff] %vm6728, %v6691
      %6779 = vst.msk [vmem:[%s334 + $0x190] sm:$0xff] %vm6728, %v6694
      %6780 = vst.msk [vmem:[%s334 + $0x198] sm:$0xff] %vm6728, %v6696
      %6781 = vst.msk [vmem:[%s334 + $0x1a0] sm:$0xff] %vm6728, %v6699
      %6782 = vst.msk [vmem:[%s334 + $0x1a8] sm:$0xff] %vm6728, %v6701
      %6783 = vst.msk [vmem:[%s334 + $0x1b0] sm:$0xff] %vm6728, %v6704
      %6784 = vst.msk [vmem:[%s334 + $0x1b8] sm:$0xff] %vm6728, %v6706
      %6785 = vst.msk [vmem:[%s334 + $0x1c0] sm:$0xff] %vm6728, %v6709
      %6786 = vst.msk [vmem:[%s334 + $0x1c8] sm:$0xff] %vm6728, %v6711
      %6787 = vst.msk [vmem:[%s334 + $0x1d0] sm:$0xff] %vm6728, %v6714
      %6788 = vst.msk [vmem:[%s334 + $0x1d8] sm:$0xff] %vm6728, %v6716
      %6789 = vst.msk [vmem:[%s334 + $0x1e0] sm:$0xff] %vm6728, %v6719
      %6790 = vst.msk [vmem:[%s334 + $0x1e8] sm:$0xff] %vm6728, %v6721
      %6791 = vst.msk [vmem:[%s334 + $0x1f0] sm:$0xff] %vm6728, %v6724
      %6792 = vst.msk [vmem:[%s334 + $0x1f8] sm:$0xff] %vm6728, %v6726
      %s6793 = smul.u32 64, %s20
      %p6794 = scmp.lt.s32.totalorder %s6793, 511
      %s6795 = scalar_select %p6794, %s6793, 511
      %s6796 = smul.addr %s6795, 8
      %s6797 = scalar_lea.vmem %s9, %s6796
      // Predicated region
      $region57: #{mlp_instance_norm.1} parent=55 // pred_check
        %p6798 = pneg %p232
      $region58: #{mlp_instance_norm.1} parent=55 // pred_check_branch
        %6800 = sbr.rel (%p6798) target = $region60
      $region59: #{mlp_instance_norm.1} parent=55 // pred_region
        %s6801 = smul.u32 64, %s20
      $region60: #{mlp_instance_norm.1} parent=55 // pred_fallthru
        _
    $region56: #{mlp_instance_norm.1} parent=5 // pred_fallthru
      _
    %p6802 = scmp.le.s32.totalorder 2, %s15
    // Predicated region
    $region61: #{mlp_instance_norm.1} parent=5 // pred_check
      %p6803 = pneg %p6802
    $region62: #{mlp_instance_norm.1} parent=5 // pred_check_branch
      %6805 = sbr.rel (%p6803) target = $region64
    $region63: #{mlp_instance_norm.1} parent=5 // pred_region
      %s6806 = ssub.s32 %s15, 2
      // Predicated region
      $region65: #{mlp_instance_norm.1} parent=63 // pred_check
        %p6807 = pneg %p238
      $region66: #{mlp_instance_norm.1} parent=63 // pred_check_branch
        %6809 = sbr.rel (%p6807) target = $region68
      $region67: #{mlp_instance_norm.1} parent=63 // pred_region
        %s6810 = smul.u32 64, %s21
        %p6811 = scmp.lt.s32.totalorder %s6810, 511
        %s6812 = scalar_select %p6811, %s6810, 511
        %s6813 = smul.addr %s6812, 8
        %s6814 = scalar_lea.vmem %s9, %s6813
      $region68: #{mlp_instance_norm.1} parent=63 // pred_fallthru
        _
    $region64: #{mlp_instance_norm.1} parent=5 // pred_fallthru
      _
  $region6: #{mlp_instance_norm.1} parent=0 // loop_footer
    %s19 = sadd.s32 1, %s15
  $region7: #{mlp_instance_norm.1} parent=0 // loop_footer_branch
    %14 = sbr.rel target = $region3
  $region8: #{mlp_instance_norm.1} parent=0 // loop_exit
    _

</llo_original>
